<compile_context>
chip_gen: v6e
topology: v6e:2x2x1
jax: 0.10.0
libtpu: 0.0.40
codegen_flags: <defaults>
</compile_context>

<pallas_src>
import jax
import jax.numpy as jnp
from jax import lax
from jax.experimental import pallas as pl
from jax.experimental.pallas import tpu as pltpu

# Module hyper-parameters (channel counts match the PyTorch module; kernLength
# and the time axis are shrunk to small, consistent sizes).
IN_CH = 2          # nn.Conv2d(in_channels=2, ...)
F1 = 8             # conv channel width used throughout
KERN_LEN = 16      # "kernLength" (500 in the module; shrunk, kept even like 500)
NB_CLASSES = 2
BN_EPS = 1e-5


def _elu(x):
    # nn.ELU(alpha=1.0), f32 math (v5e VPU/EUP have no bf16)
    return jnp.where(x > 0, x, jnp.exp(jnp.minimum(x, 0.0)) - 1.0)


# ---------------------------------------------------------------------------
# Single fused kernel: trunk (convs/BN/ELU/pools) + head (Linear + Softmax).
# B samples per grid step; activations are (B*H, lanes) slabs so every matmul
# has M = B*H rows.
# ---------------------------------------------------------------------------
def _eegnet_kernel(x_ref,      # (Cin, B*H, W)    bf16  input rows (B samples stacked)
                   band1_ref,  # (C, W, W)        bf16  conv1 band (groups=2, BN1 scale folded)
                   band2_ref,  # (C, W, W)        bf16  conv2 band (depthwise, BN2 scale folded)
                   sh12_ref,   # (C, 1, W)        f32   BN1 shift pushed through conv2 + BN2 shift
                   p4_ref,     # (W, W4)          bf16  AvgPool(1,4) matrix
                   bd3_ref,    # (3*C*W4, C*Wo)   bf16  conv3(3x3 dw) x conv4(1x1) x BN3 scale
                   sh3_ref,    # (1, C*Wo)        f32   BN3 shift
                   fce_ref,    # (NB, B*H, C*Wo)  bf16  AvgPool(1,8)+Flatten+Linear weights
                   pool_ref,   # (B, B*H)         f32   per-sample row-block selector
                   fcb_ref,    # (1, NB)          f32   Linear bias
                   out_ref):   # (B, NB)          f32   softmax probabilities
    bf16 = jnp.bfloat16
    f32 = jnp.float32
    cin = x_ref.shape[0]
    c_out = band1_ref.shape[0]
    rows = x_ref.shape[1]
    gsz = c_out // cin

    # conv1 (groups=2,'same')+BN1 -> conv2 (depthwise,'same')+BN2 -> ELU ->
    # AvgPool(1,4): per-channel (B*H, W) x (W, W) MXU matmuls, f32 accumulation.
    xin_all = [x_ref[i] for i in range(cin)]
    h3_parts = []
    for c in range(c_out):
        xin = xin_all[c // gsz]                                        # (rows, W) bf16
        h1 = jnp.dot(xin, band1_ref[c], preferred_element_type=f32)
        h2 = _elu(jnp.dot(h1.astype(bf16), band2_ref[c],
                          preferred_element_type=f32) + sh12_ref[c])
        h3_parts.append(jnp.dot(h2.astype(bf16), p4_ref[...],
                                preferred_element_type=f32))
    h3 = jnp.concatenate(h3_parts, axis=1)                             # (rows, C*W4) f32

    # depthwise 3x3 (valid over EEG rows) fused with the 1x1 channel mix + BN3
    # scale: sublane rolls (XLU) provide the dy = 1, 2 row offsets, one big MXU
    # matmul does the rest.  Rows that straddle a sample boundary are garbage
    # but get zero weights in fce, so no in-kernel masking is needed.
    h3_cat = jnp.concatenate(
        [h3,
         pltpu.roll(h3, rows - 1, 0),     # row i <- row i+1
         pltpu.roll(h3, rows - 2, 0)],    # row i <- row i+2
        axis=1).astype(bf16)                                           # (rows, 3*C*W4)
    a4 = jnp.dot(h3_cat, bd3_ref[...], preferred_element_type=f32)
    a5 = _elu(a4 + sh3_ref[...])                                       # (rows, C*Wo) f32

    # AvgPool(1,8)+Flatten+Linear head: per-class elementwise weight map, then
    # the per-sample row reduction is an MXU matmul against the block selector.
    pooled0 = jnp.dot(pool_ref[...], a5 * fce_ref[0], preferred_element_type=f32)
    pooled1 = jnp.dot(pool_ref[...], a5 * fce_ref[1], preferred_element_type=f32)
    l0 = jnp.sum(pooled0, axis=1, keepdims=True)                       # (B, 1)
    l1 = jnp.sum(pooled1, axis=1, keepdims=True)
    logits = jnp.concatenate([l0, l1], axis=1) + fcb_ref[...]          # (B, NB)
    m = jnp.max(logits, axis=1, keepdims=True)
    e = jnp.exp(logits - m)
    out_ref[...] = e / jnp.sum(e, axis=1, keepdims=True)


def _pick_block_b(n, h, target_rows=256):
    """Largest per-step sample count B with N % B == 0, B*H <= target rows and a
    layout-friendly row count (B % 8 == 0 unless the block covers the whole batch)."""
    best = None
    for b in range(1, n + 1):
        if n % b == 0 and (b % 8 == 0 or b == n) and b * h <= max(target_rows, h):
            best = b
    return best if best is not None else n


# ---------------------------------------------------------------------------
# Wrapper: builds the per-channel band / pooling / head matrices (plain JAX
# glue) and launches the kernel with a batch-parallel grid.
# ---------------------------------------------------------------------------
def eegnet_forward(x, params):
    N, Cin, H, W = x.shape
    C = F1
    K = params['conv1_w'].shape[-1]
    assert C % Cin == 0, "output channels must be a multiple of input channels"
    assert W % 4 == 0, "time axis must be divisible by 4 (AvgPool(1,4))"
    assert H > 2, "need H > 2 for the valid 3x3 conv"
    left = (K - 1) // 2                      # PyTorch 'same' split: (left, K-1-left)
    W4 = W // 4
    Ho, Wo = H - 2, W4 - 2
    W8 = Wo // 8
    assert Wo > 0 and W8 > 0, "time axis too short after pooling/valid conv"
    assert params['fc_w'].shape == (NB_CLASSES, C * Ho * W8)
    f32, bf16 = jnp.float32, jnp.bfloat16

    B = _pick_block_b(N, H)                  # samples per grid step (B*H matmul rows)
    assert N % B == 0
    BH = B * H

    def bn_fold(g, b, m, v):
        s = g / jnp.sqrt(v + BN_EPS)
        return s, b - m * s

    s1, sh1 = bn_fold(params['bn1_g'], params['bn1_b'], params['bn1_m'], params['bn1_v'])
    s2, sh2 = bn_fold(params['bn2_g'], params['bn2_b'], params['bn2_m'], params['bn2_v'])
    s3, sh3 = bn_fold(params['bn3_g'], params['bn3_b'], params['bn3_m'], params['bn3_v'])

    w1f = params['conv1_w'][:, 0, 0, :] * s1[:, None]          # (C, K)  BN1 scale folded
    w2f = params['conv2_w'][:, 0, 0, :] * s2[:, None]          # (C, K)  BN2 scale folded
    w3w = params['conv3_w'][:, 0, :, :]                        # (C, 3, 3) depthwise
    w4t = params['conv4_w'][:, :, 0, 0] * s3[:, None]          # (C_out, C_in) BN3 scale folded

    # Per-channel banded Toeplitz matrices for the two (1,K) 'same' convs.
    k_off = jnp.arange(W)[:, None] - jnp.arange(W)[None, :] + left      # (W_in, W_out)
    valid = (k_off >= 0) & (k_off < K)
    k_clip = jnp.clip(k_off, 0, K - 1)

    def band(wf):                                            # (C, K) -> (C, W, W)
        return jnp.where(valid[None], wf[:, k_clip], 0.0)

    band1 = band(w1f)
    band2 = band(w2f)
    # BN1 shift pushed through the (linear) conv2 band + BN2 shift -> per-channel bias row.
    sh12 = (sh1[:, None] * jnp.sum(band2, axis=1) + sh2[:, None])[:, None, :]   # (C, 1, W)

    # AvgPool(1,4) pooling matrix (shared by all channels).
    p4 = ((jnp.arange(W)[:, None] // 4) == jnp.arange(W4)[None, :]).astype(f32) / 4.0

    # Depthwise 3x3 (valid) fused with the 1x1 conv + BN3 scale; rows ordered
    # (dy, c_in, w_in), columns (c_out, w_out) to match the kernel lane layouts.
    dx_off = jnp.arange(W4)[:, None] - jnp.arange(Wo)[None, :]          # win - wout
    valid3 = (dx_off >= 0) & (dx_off < 3)
    dx_clip = jnp.clip(dx_off, 0, 2)
    band3 = jnp.where(valid3[None, None],
                      jnp.transpose(w3w[:, :, dx_clip], (1, 0, 2, 3)), 0.0)  # (3,C,W4,Wo)
    bd3 = (band3[:, :, :, None, :] *
           jnp.transpose(w4t)[None, :, None, :, None]).reshape(3 * C * W4, C * Wo)

    sh3cat = jnp.repeat(sh3, Wo)[None, :].astype(f32)                   # (1, C*Wo)

    # AvgPool(1,8) + Flatten + Linear folded into one per-class weight map laid
    # out exactly like the kernel's (B*H, C*Wo) activation slab.  The 2 rows per
    # sample that are invalid after the valid 3x3 conv (and therefore any
    # cross-sample roll contamination) get zero weights.
    fcw4 = params['fc_w'].reshape(NB_CLASSES, C, Ho, W8)
    w_idx = jnp.arange(Wo)
    fce = jnp.where((w_idx < W8 * 8)[None, None, None, :],
                    fcw4[:, :, :, jnp.clip(w_idx // 8, 0, W8 - 1)] / 8.0, 0.0)
    fce = jnp.transpose(fce, (0, 2, 1, 3)).reshape(NB_CLASSES, Ho, C * Wo)
    fce = jnp.concatenate(
        [fce, jnp.zeros((NB_CLASSES, H - Ho, C * Wo), f32)], axis=1)     # (NB, H, C*Wo)
    fce = jnp.tile(fce, (1, B, 1))                                       # (NB, B*H, C*Wo)

    # Per-sample row-block selector for the head reduction.
    pool_m = (jnp.arange(B)[:, None] == (jnp.arange(BH)[None, :] // H)).astype(f32)
    fcb = params['fc_b'].reshape(1, NB_CLASSES).astype(f32)

    # bf16 weights / input, f32 accumulation inside the kernel.
    band1 = band1.astype(bf16)
    band2 = band2.astype(bf16)
    p4 = p4.astype(bf16)
    bd3 = bd3.astype(bf16)
    fce = fce.astype(bf16)
    sh12 = sh12.astype(f32)

    # Input layout: samples stacked along the matmul M (row) axis, per input channel.
    x_lay = jnp.transpose(x, (1, 0, 2, 3)).reshape(Cin, N * H, W).astype(bf16)

    consts = (band1, band2, sh12, p4, bd3, sh3cat, fce, pool_m, fcb)

    def const_spec(a):
        zeros = (0,) * a.ndim
        return pl.BlockSpec(a.shape, lambda n: zeros)

    # Re-derived VMEM budget: double-buffered blocks + resident activation
    # slabs, clamped well under v7x's 64 MiB physical VMEM.
    const_bytes = sum(int(a.size) * a.dtype.itemsize for a in consts)
    x_blk_bytes = Cin * BH * W * 2
    act_bytes = BH * (8 * W + 10 * C * W4 + 8 * C * Wo) * 4
    vmem_limit = int(min(32 * 1024 * 1024,
                         max(16 * 1024 * 1024,
                             2 * (const_bytes + x_blk_bytes) + act_bytes)))

    out = pl.pallas_call(
        _eegnet_kernel,
        out_shape=jax.ShapeDtypeStruct((N, NB_CLASSES), f32),
        grid=(N // B,),
        in_specs=[pl.BlockSpec((Cin, BH, W), lambda n: (0, n, 0))] +
                 [const_spec(a) for a in consts],
        out_specs=pl.BlockSpec((B, NB_CLASSES), lambda n: (n, 0)),
        compiler_params=pltpu.CompilerParams(
            dimension_semantics=("parallel",),
            vmem_limit_bytes=vmem_limit),
    )(x_lay, *consts)
    return out


# ---------------------------------------------------------------------------
# Deterministic parameter init (shapes follow the module's __init__).
# ---------------------------------------------------------------------------
def init_params(key, H, W):
    f_in = F1 * (H - 2) * (((W // 4) - 2) // 8)   # == nn.Linear in_features at full size
    ks = jax.random.split(key, 18)

    def nrm(k, shape, scale=0.3):
        return scale * jax.random.normal(k, shape, dtype=jnp.float32)

    def bn_init(kg, kb, km, kv):
        return (1.0 + 0.1 * jax.random.normal(kg, (F1,), jnp.float32),
                0.1 * jax.random.normal(kb, (F1,), jnp.float32),
                0.1 * jax.random.normal(km, (F1,), jnp.float32),
                1.0 + 0.1 * jnp.abs(jax.random.normal(kv, (F1,), jnp.float32)))

    bn1 = bn_init(*ks[4:8])
    bn2 = bn_init(*ks[8:12])
    bn3 = bn_init(*ks[12:16])
    return dict(
        conv1_w=nrm(ks[0], (F1, 1, 1, KERN_LEN)),      # Conv2d(2->8,(1,K),groups=2)
        conv2_w=nrm(ks[1], (F1, 1, 1, KERN_LEN)),      # Conv2d(8->8,(1,K),groups=8)
        conv3_w=nrm(ks[2], (F1, 1, 3, 3)),             # Conv2d(8->8,3x3,groups=8)
        conv4_w=nrm(ks[3], (F1, F1, 1, 1)),            # Conv2d(8->8,1x1)
        bn1_g=bn1[0], bn1_b=bn1[1], bn1_m=bn1[2], bn1_v=bn1[3],
        bn2_g=bn2[0], bn2_b=bn2[1], bn2_m=bn2[2], bn2_v=bn2[3],
        bn3_g=bn3[0], bn3_b=bn3[1], bn3_m=bn3[2], bn3_v=bn3[3],
        fc_w=nrm(ks[16], (NB_CLASSES, f_in), 0.1),
        fc_b=nrm(ks[17], (NB_CLASSES,), 0.1),
    )


# ---------------------------------------------------------------------------
# Pure-JAX reference (same semantics as the PyTorch module, eval mode).
# ---------------------------------------------------------------------------
def eegnet_reference(x, params):
    dn = ('NCHW', 'OIHW', 'NCHW')
    K = params['conv1_w'].shape[-1]
    left = (K - 1) // 2
    right = (K - 1) - left
    prec = lax.Precision.HIGHEST

    def bn(h, g, b, m, v):
        return ((h - m[None, :, None, None]) /
                jnp.sqrt(v[None, :, None, None] + BN_EPS)) * g[None, :, None, None] \
            + b[None, :, None, None]

    h = lax.conv_general_dilated(x, params['conv1_w'], (1, 1), [(0, 0), (left, right)],
                                 dimension_numbers=dn, feature_group_count=2, precision=prec)
    h = bn(h, params['bn1_g'], params['bn1_b'], params['bn1_m'], params['bn1_v'])
    h = lax.conv_general_dilated(h, params['conv2_w'], (1, 1), [(0, 0), (left, right)],
                                 dimension_numbers=dn, feature_group_count=F1, precision=prec)
    h = bn(h, params['bn2_g'], params['bn2_b'], params['bn2_m'], params['bn2_v'])
    h = jax.nn.elu(h)
    N, C, H, W = h.shape
    h = h[..., :(W // 4) * 4].reshape(N, C, H, W // 4, 4).mean(-1)       # AvgPool(1,4)
    h = lax.conv_general_dilated(h, params['conv3_w'], (1, 1), 'VALID',
                                 dimension_numbers=dn, feature_group_count=F1, precision=prec)
    h = lax.conv_general_dilated(h, params['conv4_w'], (1, 1), 'VALID',
                                 dimension_numbers=dn, precision=prec)
    h = bn(h, params['bn3_g'], params['bn3_b'], params['bn3_m'], params['bn3_v'])
    h = jax.nn.elu(h)
    N, C, Hh, Ww = h.shape
    h = h[..., :(Ww // 8) * 8].reshape(N, C, Hh, Ww // 8, 8).mean(-1)    # AvgPool(1,8)
    f = h.reshape(N, -1)
    logits = f @ params['fc_w'].T + params['fc_b']
    return jax.nn.softmax(logits, axis=-1)


if __name__ == "__main__":
    key = jax.random.PRNGKey(0)
    k_param, k_x = jax.random.split(key)

    # Small shapes consistent with the module: x is NCHW with 2 input channels.
    # N=64 exercises the batched-row design: B=32 samples (256 matmul rows) per
    # grid step, a 2-step "parallel" grid (so v7x's 2 TensorCores both work).
    N, H, W = 64, 8, 128
    params = init_params(k_param, H, W)
    x = jax.random.normal(k_x, (N, IN_CH, H, W), jnp.float32)

    probs = jax.jit(eegnet_forward)(x, params)
    probs = jax.block_until_ready(probs)

    ref = eegnet_reference(x, params)
    assert probs.shape == (N, NB_CLASSES)
    assert bool(jnp.all(jnp.isfinite(probs)))
    assert bool(jnp.allclose(jnp.sum(probs, axis=-1), 1.0, atol=1e-4))
    # bf16 weights/input with f32 accumulation -> slightly looser tolerance vs f32 ref.
    assert bool(jnp.allclose(probs, ref, atol=2e-2, rtol=2e-2)), (probs, ref)
    print("KERNEL_OK")
</pallas_src>

<mosaic_0001>
module attributes {stable_mosaic.version = 11 : i64} {
  func.func @_eegnet_kernel(%arg0: i32, %arg1: memref<2x256x128xbf16, #tpu.memory_space<vmem>>, %arg2: memref<8x128x128xbf16, #tpu.memory_space<vmem>>, %arg3: memref<8x128x128xbf16, #tpu.memory_space<vmem>>, %arg4: memref<8x1x128xf32, #tpu.memory_space<vmem>>, %arg5: memref<128x32xbf16, #tpu.memory_space<vmem>>, %arg6: memref<768x240xbf16, #tpu.memory_space<vmem>>, %arg7: memref<1x240xf32, #tpu.memory_space<vmem>>, %arg8: memref<2x256x240xbf16, #tpu.memory_space<vmem>>, %arg9: memref<32x256xf32, #tpu.memory_space<vmem>>, %arg10: memref<1x2xf32, #tpu.memory_space<vmem>>, %arg11: memref<32x2xf32, #tpu.memory_space<vmem>>) attributes {dimension_semantics = [#tpu.dimension_semantics<parallel>], iteration_bounds = array<i64: 2>, scalar_prefetch = 0 : i64, scratch_operands = 0 : i64, tpu.core_type = #tpu.core_type<tc>, window_params = [{transform_indices = @transform_0, window_bounds = array<i64: 2, 256, 128>}, {pipeline_mode = #tpu.pipeline_mode<synchronous>, transform_indices = @transform_1, window_bounds = array<i64: 8, 128, 128>}, {pipeline_mode = #tpu.pipeline_mode<synchronous>, transform_indices = @transform_2, window_bounds = array<i64: 8, 128, 128>}, {pipeline_mode = #tpu.pipeline_mode<synchronous>, transform_indices = @transform_3, window_bounds = array<i64: 8, 1, 128>}, {pipeline_mode = #tpu.pipeline_mode<synchronous>, transform_indices = @transform_4, window_bounds = array<i64: 128, 32>}, {pipeline_mode = #tpu.pipeline_mode<synchronous>, transform_indices = @transform_5, window_bounds = array<i64: 768, 240>}, {pipeline_mode = #tpu.pipeline_mode<synchronous>, transform_indices = @transform_6, window_bounds = array<i64: 1, 240>}, {pipeline_mode = #tpu.pipeline_mode<synchronous>, transform_indices = @transform_7, window_bounds = array<i64: 2, 256, 240>}, {pipeline_mode = #tpu.pipeline_mode<synchronous>, transform_indices = @transform_8, window_bounds = array<i64: 32, 256>}, {pipeline_mode = #tpu.pipeline_mode<synchronous>, transform_indices = @transform_9, window_bounds = array<i64: 1, 2>}, {transform_indices = @transform_10, window_bounds = array<i64: 32, 2>}]} {
    %c0 = arith.constant 0 : index
    %c0_0 = arith.constant 0 : index
    %c0_1 = arith.constant 0 : index
    %0 = vector.load %arg1[%c0, %c0_0, %c0_1] : memref<2x256x128xbf16, #tpu.memory_space<vmem>>, vector<1x256x128xbf16>
    %1 = vector.shape_cast %0 : vector<1x256x128xbf16> to vector<256x128xbf16>
    %c1 = arith.constant 1 : index
    %c0_2 = arith.constant 0 : index
    %c0_3 = arith.constant 0 : index
    %2 = vector.load %arg1[%c1, %c0_2, %c0_3] : memref<2x256x128xbf16, #tpu.memory_space<vmem>>, vector<1x256x128xbf16>
    %3 = vector.shape_cast %2 : vector<1x256x128xbf16> to vector<256x128xbf16>
    %c0_4 = arith.constant 0 : index
    %c0_5 = arith.constant 0 : index
    %c0_6 = arith.constant 0 : index
    %4 = vector.load %arg2[%c0_4, %c0_5, %c0_6] : memref<8x128x128xbf16, #tpu.memory_space<vmem>>, vector<1x128x128xbf16>
    %5 = vector.shape_cast %4 : vector<1x128x128xbf16> to vector<128x128xbf16>
    %cst = arith.constant dense<0.000000e+00> : vector<256x128xf32>
    %6 = tpu.matmul %1, %5, %cst {dimension_numbers = #tpu.dot_dimension_numbers<[1], [0], [0], [1], [0, 0, 1, 1], [], []>} : vector<256x128xbf16>, vector<128x128xbf16>, vector<256x128xf32> -> vector<256x128xf32>
    %7 = arith.truncf %6 : vector<256x128xf32> to vector<256x128xbf16>
    %c0_7 = arith.constant 0 : index
    %c0_8 = arith.constant 0 : index
    %c0_9 = arith.constant 0 : index
    %8 = vector.load %arg3[%c0_7, %c0_8, %c0_9] : memref<8x128x128xbf16, #tpu.memory_space<vmem>>, vector<1x128x128xbf16>
    %9 = vector.shape_cast %8 : vector<1x128x128xbf16> to vector<128x128xbf16>
    %cst_10 = arith.constant dense<0.000000e+00> : vector<256x128xf32>
    %10 = tpu.matmul %7, %9, %cst_10 {dimension_numbers = #tpu.dot_dimension_numbers<[1], [0], [0], [1], [0, 0, 1, 1], [], []>} : vector<256x128xbf16>, vector<128x128xbf16>, vector<256x128xf32> -> vector<256x128xf32>
    %c0_11 = arith.constant 0 : index
    %c0_12 = arith.constant 0 : index
    %c0_13 = arith.constant 0 : index
    %11 = vector.load %arg4[%c0_11, %c0_12, %c0_13] : memref<8x1x128xf32, #tpu.memory_space<vmem>>, vector<1x1x128xf32>
    %12 = vector.shape_cast %11 : vector<1x1x128xf32> to vector<1x128xf32>
    %13 = vector.broadcast %12 : vector<1x128xf32> to vector<256x128xf32>
    %14 = arith.addf %10, %13 : vector<256x128xf32>
    %cst_14 = arith.constant 0.000000e+00 : f32
    %15 = vector.broadcast %cst_14 : f32 to vector<256x128xf32>
    %16 = arith.cmpf ogt, %14, %15 : vector<256x128xf32>
    %cst_15 = arith.constant 0.000000e+00 : f32
    %17 = vector.broadcast %cst_15 : f32 to vector<256x128xf32>
    %18 = arith.minimumf %14, %17 : vector<256x128xf32>
    %19 = math.exp %18 : vector<256x128xf32>
    %cst_16 = arith.constant 1.000000e+00 : f32
    %20 = vector.broadcast %cst_16 : f32 to vector<256x128xf32>
    %21 = arith.subf %19, %20 : vector<256x128xf32>
    %22 = arith.select %16, %14, %21 : vector<256x128xi1>, vector<256x128xf32>
    %23 = arith.truncf %22 : vector<256x128xf32> to vector<256x128xbf16>
    %c0_17 = arith.constant 0 : index
    %c0_18 = arith.constant 0 : index
    %24 = vector.load %arg5[%c0_17, %c0_18] : memref<128x32xbf16, #tpu.memory_space<vmem>>, vector<128x32xbf16>
    %cst_19 = arith.constant dense<0.000000e+00> : vector<256x32xf32>
    %25 = tpu.matmul %23, %24, %cst_19 {dimension_numbers = #tpu.dot_dimension_numbers<[1], [0], [0], [1], [0, 0, 1, 1], [], []>} : vector<256x128xbf16>, vector<128x32xbf16>, vector<256x32xf32> -> vector<256x32xf32>
    %c1_20 = arith.constant 1 : index
    %c0_21 = arith.constant 0 : index
    %c0_22 = arith.constant 0 : index
    %26 = vector.load %arg2[%c1_20, %c0_21, %c0_22] : memref<8x128x128xbf16, #tpu.memory_space<vmem>>, vector<1x128x128xbf16>
    %27 = vector.shape_cast %26 : vector<1x128x128xbf16> to vector<128x128xbf16>
    %cst_23 = arith.constant dense<0.000000e+00> : vector<256x128xf32>
    %28 = tpu.matmul %1, %27, %cst_23 {dimension_numbers = #tpu.dot_dimension_numbers<[1], [0], [0], [1], [0, 0, 1, 1], [], []>} : vector<256x128xbf16>, vector<128x128xbf16>, vector<256x128xf32> -> vector<256x128xf32>
    %29 = arith.truncf %28 : vector<256x128xf32> to vector<256x128xbf16>
    %c1_24 = arith.constant 1 : index
    %c0_25 = arith.constant 0 : index
    %c0_26 = arith.constant 0 : index
    %30 = vector.load %arg3[%c1_24, %c0_25, %c0_26] : memref<8x128x128xbf16, #tpu.memory_space<vmem>>, vector<1x128x128xbf16>
    %31 = vector.shape_cast %30 : vector<1x128x128xbf16> to vector<128x128xbf16>
    %cst_27 = arith.constant dense<0.000000e+00> : vector<256x128xf32>
    %32 = tpu.matmul %29, %31, %cst_27 {dimension_numbers = #tpu.dot_dimension_numbers<[1], [0], [0], [1], [0, 0, 1, 1], [], []>} : vector<256x128xbf16>, vector<128x128xbf16>, vector<256x128xf32> -> vector<256x128xf32>
    %c1_28 = arith.constant 1 : index
    %c0_29 = arith.constant 0 : index
    %c0_30 = arith.constant 0 : index
    %33 = vector.load %arg4[%c1_28, %c0_29, %c0_30] : memref<8x1x128xf32, #tpu.memory_space<vmem>>, vector<1x1x128xf32>
    %34 = vector.shape_cast %33 : vector<1x1x128xf32> to vector<1x128xf32>
    %35 = vector.broadcast %34 : vector<1x128xf32> to vector<256x128xf32>
    %36 = arith.addf %32, %35 : vector<256x128xf32>
    %cst_31 = arith.constant 0.000000e+00 : f32
    %37 = vector.broadcast %cst_31 : f32 to vector<256x128xf32>
    %38 = arith.cmpf ogt, %36, %37 : vector<256x128xf32>
    %cst_32 = arith.constant 0.000000e+00 : f32
    %39 = vector.broadcast %cst_32 : f32 to vector<256x128xf32>
    %40 = arith.minimumf %36, %39 : vector<256x128xf32>
    %41 = math.exp %40 : vector<256x128xf32>
    %cst_33 = arith.constant 1.000000e+00 : f32
    %42 = vector.broadcast %cst_33 : f32 to vector<256x128xf32>
    %43 = arith.subf %41, %42 : vector<256x128xf32>
    %44 = arith.select %38, %36, %43 : vector<256x128xi1>, vector<256x128xf32>
    %45 = arith.truncf %44 : vector<256x128xf32> to vector<256x128xbf16>
    %c0_34 = arith.constant 0 : index
    %c0_35 = arith.constant 0 : index
    %46 = vector.load %arg5[%c0_34, %c0_35] : memref<128x32xbf16, #tpu.memory_space<vmem>>, vector<128x32xbf16>
    %cst_36 = arith.constant dense<0.000000e+00> : vector<256x32xf32>
    %47 = tpu.matmul %45, %46, %cst_36 {dimension_numbers = #tpu.dot_dimension_numbers<[1], [0], [0], [1], [0, 0, 1, 1], [], []>} : vector<256x128xbf16>, vector<128x32xbf16>, vector<256x32xf32> -> vector<256x32xf32>
    %c2 = arith.constant 2 : index
    %c0_37 = arith.constant 0 : index
    %c0_38 = arith.constant 0 : index
    %48 = vector.load %arg2[%c2, %c0_37, %c0_38] : memref<8x128x128xbf16, #tpu.memory_space<vmem>>, vector<1x128x128xbf16>
    %49 = vector.shape_cast %48 : vector<1x128x128xbf16> to vector<128x128xbf16>
    %cst_39 = arith.constant dense<0.000000e+00> : vector<256x128xf32>
    %50 = tpu.matmul %1, %49, %cst_39 {dimension_numbers = #tpu.dot_dimension_numbers<[1], [0], [0], [1], [0, 0, 1, 1], [], []>} : vector<256x128xbf16>, vector<128x128xbf16>, vector<256x128xf32> -> vector<256x128xf32>
    %51 = arith.truncf %50 : vector<256x128xf32> to vector<256x128xbf16>
    %c2_40 = arith.constant 2 : index
    %c0_41 = arith.constant 0 : index
    %c0_42 = arith.constant 0 : index
    %52 = vector.load %arg3[%c2_40, %c0_41, %c0_42] : memref<8x128x128xbf16, #tpu.memory_space<vmem>>, vector<1x128x128xbf16>
    %53 = vector.shape_cast %52 : vector<1x128x128xbf16> to vector<128x128xbf16>
    %cst_43 = arith.constant dense<0.000000e+00> : vector<256x128xf32>
    %54 = tpu.matmul %51, %53, %cst_43 {dimension_numbers = #tpu.dot_dimension_numbers<[1], [0], [0], [1], [0, 0, 1, 1], [], []>} : vector<256x128xbf16>, vector<128x128xbf16>, vector<256x128xf32> -> vector<256x128xf32>
    %c2_44 = arith.constant 2 : index
    %c0_45 = arith.constant 0 : index
    %c0_46 = arith.constant 0 : index
    %55 = vector.load %arg4[%c2_44, %c0_45, %c0_46] : memref<8x1x128xf32, #tpu.memory_space<vmem>>, vector<1x1x128xf32>
    %56 = vector.shape_cast %55 : vector<1x1x128xf32> to vector<1x128xf32>
    %57 = vector.broadcast %56 : vector<1x128xf32> to vector<256x128xf32>
    %58 = arith.addf %54, %57 : vector<256x128xf32>
    %cst_47 = arith.constant 0.000000e+00 : f32
    %59 = vector.broadcast %cst_47 : f32 to vector<256x128xf32>
    %60 = arith.cmpf ogt, %58, %59 : vector<256x128xf32>
    %cst_48 = arith.constant 0.000000e+00 : f32
    %61 = vector.broadcast %cst_48 : f32 to vector<256x128xf32>
    %62 = arith.minimumf %58, %61 : vector<256x128xf32>
    %63 = math.exp %62 : vector<256x128xf32>
    %cst_49 = arith.constant 1.000000e+00 : f32
    %64 = vector.broadcast %cst_49 : f32 to vector<256x128xf32>
    %65 = arith.subf %63, %64 : vector<256x128xf32>
    %66 = arith.select %60, %58, %65 : vector<256x128xi1>, vector<256x128xf32>
    %67 = arith.truncf %66 : vector<256x128xf32> to vector<256x128xbf16>
    %c0_50 = arith.constant 0 : index
    %c0_51 = arith.constant 0 : index
    %68 = vector.load %arg5[%c0_50, %c0_51] : memref<128x32xbf16, #tpu.memory_space<vmem>>, vector<128x32xbf16>
    %cst_52 = arith.constant dense<0.000000e+00> : vector<256x32xf32>
    %69 = tpu.matmul %67, %68, %cst_52 {dimension_numbers = #tpu.dot_dimension_numbers<[1], [0], [0], [1], [0, 0, 1, 1], [], []>} : vector<256x128xbf16>, vector<128x32xbf16>, vector<256x32xf32> -> vector<256x32xf32>
    %c3 = arith.constant 3 : index
    %c0_53 = arith.constant 0 : index
    %c0_54 = arith.constant 0 : index
    %70 = vector.load %arg2[%c3, %c0_53, %c0_54] : memref<8x128x128xbf16, #tpu.memory_space<vmem>>, vector<1x128x128xbf16>
    %71 = vector.shape_cast %70 : vector<1x128x128xbf16> to vector<128x128xbf16>
    %cst_55 = arith.constant dense<0.000000e+00> : vector<256x128xf32>
    %72 = tpu.matmul %1, %71, %cst_55 {dimension_numbers = #tpu.dot_dimension_numbers<[1], [0], [0], [1], [0, 0, 1, 1], [], []>} : vector<256x128xbf16>, vector<128x128xbf16>, vector<256x128xf32> -> vector<256x128xf32>
    %73 = arith.truncf %72 : vector<256x128xf32> to vector<256x128xbf16>
    %c3_56 = arith.constant 3 : index
    %c0_57 = arith.constant 0 : index
    %c0_58 = arith.constant 0 : index
    %74 = vector.load %arg3[%c3_56, %c0_57, %c0_58] : memref<8x128x128xbf16, #tpu.memory_space<vmem>>, vector<1x128x128xbf16>
    %75 = vector.shape_cast %74 : vector<1x128x128xbf16> to vector<128x128xbf16>
    %cst_59 = arith.constant dense<0.000000e+00> : vector<256x128xf32>
    %76 = tpu.matmul %73, %75, %cst_59 {dimension_numbers = #tpu.dot_dimension_numbers<[1], [0], [0], [1], [0, 0, 1, 1], [], []>} : vector<256x128xbf16>, vector<128x128xbf16>, vector<256x128xf32> -> vector<256x128xf32>
    %c3_60 = arith.constant 3 : index
    %c0_61 = arith.constant 0 : index
    %c0_62 = arith.constant 0 : index
    %77 = vector.load %arg4[%c3_60, %c0_61, %c0_62] : memref<8x1x128xf32, #tpu.memory_space<vmem>>, vector<1x1x128xf32>
    %78 = vector.shape_cast %77 : vector<1x1x128xf32> to vector<1x128xf32>
    %79 = vector.broadcast %78 : vector<1x128xf32> to vector<256x128xf32>
    %80 = arith.addf %76, %79 : vector<256x128xf32>
    %cst_63 = arith.constant 0.000000e+00 : f32
    %81 = vector.broadcast %cst_63 : f32 to vector<256x128xf32>
    %82 = arith.cmpf ogt, %80, %81 : vector<256x128xf32>
    %cst_64 = arith.constant 0.000000e+00 : f32
    %83 = vector.broadcast %cst_64 : f32 to vector<256x128xf32>
    %84 = arith.minimumf %80, %83 : vector<256x128xf32>
    %85 = math.exp %84 : vector<256x128xf32>
    %cst_65 = arith.constant 1.000000e+00 : f32
    %86 = vector.broadcast %cst_65 : f32 to vector<256x128xf32>
    %87 = arith.subf %85, %86 : vector<256x128xf32>
    %88 = arith.select %82, %80, %87 : vector<256x128xi1>, vector<256x128xf32>
    %89 = arith.truncf %88 : vector<256x128xf32> to vector<256x128xbf16>
    %c0_66 = arith.constant 0 : index
    %c0_67 = arith.constant 0 : index
    %90 = vector.load %arg5[%c0_66, %c0_67] : memref<128x32xbf16, #tpu.memory_space<vmem>>, vector<128x32xbf16>
    %cst_68 = arith.constant dense<0.000000e+00> : vector<256x32xf32>
    %91 = tpu.matmul %89, %90, %cst_68 {dimension_numbers = #tpu.dot_dimension_numbers<[1], [0], [0], [1], [0, 0, 1, 1], [], []>} : vector<256x128xbf16>, vector<128x32xbf16>, vector<256x32xf32> -> vector<256x32xf32>
    %c4 = arith.constant 4 : index
    %c0_69 = arith.constant 0 : index
    %c0_70 = arith.constant 0 : index
    %92 = vector.load %arg2[%c4, %c0_69, %c0_70] : memref<8x128x128xbf16, #tpu.memory_space<vmem>>, vector<1x128x128xbf16>
    %93 = vector.shape_cast %92 : vector<1x128x128xbf16> to vector<128x128xbf16>
    %cst_71 = arith.constant dense<0.000000e+00> : vector<256x128xf32>
    %94 = tpu.matmul %3, %93, %cst_71 {dimension_numbers = #tpu.dot_dimension_numbers<[1], [0], [0], [1], [0, 0, 1, 1], [], []>} : vector<256x128xbf16>, vector<128x128xbf16>, vector<256x128xf32> -> vector<256x128xf32>
    %95 = arith.truncf %94 : vector<256x128xf32> to vector<256x128xbf16>
    %c4_72 = arith.constant 4 : index
    %c0_73 = arith.constant 0 : index
    %c0_74 = arith.constant 0 : index
    %96 = vector.load %arg3[%c4_72, %c0_73, %c0_74] : memref<8x128x128xbf16, #tpu.memory_space<vmem>>, vector<1x128x128xbf16>
    %97 = vector.shape_cast %96 : vector<1x128x128xbf16> to vector<128x128xbf16>
    %cst_75 = arith.constant dense<0.000000e+00> : vector<256x128xf32>
    %98 = tpu.matmul %95, %97, %cst_75 {dimension_numbers = #tpu.dot_dimension_numbers<[1], [0], [0], [1], [0, 0, 1, 1], [], []>} : vector<256x128xbf16>, vector<128x128xbf16>, vector<256x128xf32> -> vector<256x128xf32>
    %c4_76 = arith.constant 4 : index
    %c0_77 = arith.constant 0 : index
    %c0_78 = arith.constant 0 : index
    %99 = vector.load %arg4[%c4_76, %c0_77, %c0_78] : memref<8x1x128xf32, #tpu.memory_space<vmem>>, vector<1x1x128xf32>
    %100 = vector.shape_cast %99 : vector<1x1x128xf32> to vector<1x128xf32>
    %101 = vector.broadcast %100 : vector<1x128xf32> to vector<256x128xf32>
    %102 = arith.addf %98, %101 : vector<256x128xf32>
    %cst_79 = arith.constant 0.000000e+00 : f32
    %103 = vector.broadcast %cst_79 : f32 to vector<256x128xf32>
    %104 = arith.cmpf ogt, %102, %103 : vector<256x128xf32>
    %cst_80 = arith.constant 0.000000e+00 : f32
    %105 = vector.broadcast %cst_80 : f32 to vector<256x128xf32>
    %106 = arith.minimumf %102, %105 : vector<256x128xf32>
    %107 = math.exp %106 : vector<256x128xf32>
    %cst_81 = arith.constant 1.000000e+00 : f32
    %108 = vector.broadcast %cst_81 : f32 to vector<256x128xf32>
    %109 = arith.subf %107, %108 : vector<256x128xf32>
    %110 = arith.select %104, %102, %109 : vector<256x128xi1>, vector<256x128xf32>
    %111 = arith.truncf %110 : vector<256x128xf32> to vector<256x128xbf16>
    %c0_82 = arith.constant 0 : index
    %c0_83 = arith.constant 0 : index
    %112 = vector.load %arg5[%c0_82, %c0_83] : memref<128x32xbf16, #tpu.memory_space<vmem>>, vector<128x32xbf16>
    %cst_84 = arith.constant dense<0.000000e+00> : vector<256x32xf32>
    %113 = tpu.matmul %111, %112, %cst_84 {dimension_numbers = #tpu.dot_dimension_numbers<[1], [0], [0], [1], [0, 0, 1, 1], [], []>} : vector<256x128xbf16>, vector<128x32xbf16>, vector<256x32xf32> -> vector<256x32xf32>
    %c5 = arith.constant 5 : index
    %c0_85 = arith.constant 0 : index
    %c0_86 = arith.constant 0 : index
    %114 = vector.load %arg2[%c5, %c0_85, %c0_86] : memref<8x128x128xbf16, #tpu.memory_space<vmem>>, vector<1x128x128xbf16>
    %115 = vector.shape_cast %114 : vector<1x128x128xbf16> to vector<128x128xbf16>
    %cst_87 = arith.constant dense<0.000000e+00> : vector<256x128xf32>
    %116 = tpu.matmul %3, %115, %cst_87 {dimension_numbers = #tpu.dot_dimension_numbers<[1], [0], [0], [1], [0, 0, 1, 1], [], []>} : vector<256x128xbf16>, vector<128x128xbf16>, vector<256x128xf32> -> vector<256x128xf32>
    %117 = arith.truncf %116 : vector<256x128xf32> to vector<256x128xbf16>
    %c5_88 = arith.constant 5 : index
    %c0_89 = arith.constant 0 : index
    %c0_90 = arith.constant 0 : index
    %118 = vector.load %arg3[%c5_88, %c0_89, %c0_90] : memref<8x128x128xbf16, #tpu.memory_space<vmem>>, vector<1x128x128xbf16>
    %119 = vector.shape_cast %118 : vector<1x128x128xbf16> to vector<128x128xbf16>
    %cst_91 = arith.constant dense<0.000000e+00> : vector<256x128xf32>
    %120 = tpu.matmul %117, %119, %cst_91 {dimension_numbers = #tpu.dot_dimension_numbers<[1], [0], [0], [1], [0, 0, 1, 1], [], []>} : vector<256x128xbf16>, vector<128x128xbf16>, vector<256x128xf32> -> vector<256x128xf32>
    %c5_92 = arith.constant 5 : index
    %c0_93 = arith.constant 0 : index
    %c0_94 = arith.constant 0 : index
    %121 = vector.load %arg4[%c5_92, %c0_93, %c0_94] : memref<8x1x128xf32, #tpu.memory_space<vmem>>, vector<1x1x128xf32>
    %122 = vector.shape_cast %121 : vector<1x1x128xf32> to vector<1x128xf32>
    %123 = vector.broadcast %122 : vector<1x128xf32> to vector<256x128xf32>
    %124 = arith.addf %120, %123 : vector<256x128xf32>
    %cst_95 = arith.constant 0.000000e+00 : f32
    %125 = vector.broadcast %cst_95 : f32 to vector<256x128xf32>
    %126 = arith.cmpf ogt, %124, %125 : vector<256x128xf32>
    %cst_96 = arith.constant 0.000000e+00 : f32
    %127 = vector.broadcast %cst_96 : f32 to vector<256x128xf32>
    %128 = arith.minimumf %124, %127 : vector<256x128xf32>
    %129 = math.exp %128 : vector<256x128xf32>
    %cst_97 = arith.constant 1.000000e+00 : f32
    %130 = vector.broadcast %cst_97 : f32 to vector<256x128xf32>
    %131 = arith.subf %129, %130 : vector<256x128xf32>
    %132 = arith.select %126, %124, %131 : vector<256x128xi1>, vector<256x128xf32>
    %133 = arith.truncf %132 : vector<256x128xf32> to vector<256x128xbf16>
    %c0_98 = arith.constant 0 : index
    %c0_99 = arith.constant 0 : index
    %134 = vector.load %arg5[%c0_98, %c0_99] : memref<128x32xbf16, #tpu.memory_space<vmem>>, vector<128x32xbf16>
    %cst_100 = arith.constant dense<0.000000e+00> : vector<256x32xf32>
    %135 = tpu.matmul %133, %134, %cst_100 {dimension_numbers = #tpu.dot_dimension_numbers<[1], [0], [0], [1], [0, 0, 1, 1], [], []>} : vector<256x128xbf16>, vector<128x32xbf16>, vector<256x32xf32> -> vector<256x32xf32>
    %c6 = arith.constant 6 : index
    %c0_101 = arith.constant 0 : index
    %c0_102 = arith.constant 0 : index
    %136 = vector.load %arg2[%c6, %c0_101, %c0_102] : memref<8x128x128xbf16, #tpu.memory_space<vmem>>, vector<1x128x128xbf16>
    %137 = vector.shape_cast %136 : vector<1x128x128xbf16> to vector<128x128xbf16>
    %cst_103 = arith.constant dense<0.000000e+00> : vector<256x128xf32>
    %138 = tpu.matmul %3, %137, %cst_103 {dimension_numbers = #tpu.dot_dimension_numbers<[1], [0], [0], [1], [0, 0, 1, 1], [], []>} : vector<256x128xbf16>, vector<128x128xbf16>, vector<256x128xf32> -> vector<256x128xf32>
    %139 = arith.truncf %138 : vector<256x128xf32> to vector<256x128xbf16>
    %c6_104 = arith.constant 6 : index
    %c0_105 = arith.constant 0 : index
    %c0_106 = arith.constant 0 : index
    %140 = vector.load %arg3[%c6_104, %c0_105, %c0_106] : memref<8x128x128xbf16, #tpu.memory_space<vmem>>, vector<1x128x128xbf16>
    %141 = vector.shape_cast %140 : vector<1x128x128xbf16> to vector<128x128xbf16>
    %cst_107 = arith.constant dense<0.000000e+00> : vector<256x128xf32>
    %142 = tpu.matmul %139, %141, %cst_107 {dimension_numbers = #tpu.dot_dimension_numbers<[1], [0], [0], [1], [0, 0, 1, 1], [], []>} : vector<256x128xbf16>, vector<128x128xbf16>, vector<256x128xf32> -> vector<256x128xf32>
    %c6_108 = arith.constant 6 : index
    %c0_109 = arith.constant 0 : index
    %c0_110 = arith.constant 0 : index
    %143 = vector.load %arg4[%c6_108, %c0_109, %c0_110] : memref<8x1x128xf32, #tpu.memory_space<vmem>>, vector<1x1x128xf32>
    %144 = vector.shape_cast %143 : vector<1x1x128xf32> to vector<1x128xf32>
    %145 = vector.broadcast %144 : vector<1x128xf32> to vector<256x128xf32>
    %146 = arith.addf %142, %145 : vector<256x128xf32>
    %cst_111 = arith.constant 0.000000e+00 : f32
    %147 = vector.broadcast %cst_111 : f32 to vector<256x128xf32>
    %148 = arith.cmpf ogt, %146, %147 : vector<256x128xf32>
    %cst_112 = arith.constant 0.000000e+00 : f32
    %149 = vector.broadcast %cst_112 : f32 to vector<256x128xf32>
    %150 = arith.minimumf %146, %149 : vector<256x128xf32>
    %151 = math.exp %150 : vector<256x128xf32>
    %cst_113 = arith.constant 1.000000e+00 : f32
    %152 = vector.broadcast %cst_113 : f32 to vector<256x128xf32>
    %153 = arith.subf %151, %152 : vector<256x128xf32>
    %154 = arith.select %148, %146, %153 : vector<256x128xi1>, vector<256x128xf32>
    %155 = arith.truncf %154 : vector<256x128xf32> to vector<256x128xbf16>
    %c0_114 = arith.constant 0 : index
    %c0_115 = arith.constant 0 : index
    %156 = vector.load %arg5[%c0_114, %c0_115] : memref<128x32xbf16, #tpu.memory_space<vmem>>, vector<128x32xbf16>
    %cst_116 = arith.constant dense<0.000000e+00> : vector<256x32xf32>
    %157 = tpu.matmul %155, %156, %cst_116 {dimension_numbers = #tpu.dot_dimension_numbers<[1], [0], [0], [1], [0, 0, 1, 1], [], []>} : vector<256x128xbf16>, vector<128x32xbf16>, vector<256x32xf32> -> vector<256x32xf32>
    %c7 = arith.constant 7 : index
    %c0_117 = arith.constant 0 : index
    %c0_118 = arith.constant 0 : index
    %158 = vector.load %arg2[%c7, %c0_117, %c0_118] : memref<8x128x128xbf16, #tpu.memory_space<vmem>>, vector<1x128x128xbf16>
    %159 = vector.shape_cast %158 : vector<1x128x128xbf16> to vector<128x128xbf16>
    %cst_119 = arith.constant dense<0.000000e+00> : vector<256x128xf32>
    %160 = tpu.matmul %3, %159, %cst_119 {dimension_numbers = #tpu.dot_dimension_numbers<[1], [0], [0], [1], [0, 0, 1, 1], [], []>} : vector<256x128xbf16>, vector<128x128xbf16>, vector<256x128xf32> -> vector<256x128xf32>
    %161 = arith.truncf %160 : vector<256x128xf32> to vector<256x128xbf16>
    %c7_120 = arith.constant 7 : index
    %c0_121 = arith.constant 0 : index
    %c0_122 = arith.constant 0 : index
    %162 = vector.load %arg3[%c7_120, %c0_121, %c0_122] : memref<8x128x128xbf16, #tpu.memory_space<vmem>>, vector<1x128x128xbf16>
    %163 = vector.shape_cast %162 : vector<1x128x128xbf16> to vector<128x128xbf16>
    %cst_123 = arith.constant dense<0.000000e+00> : vector<256x128xf32>
    %164 = tpu.matmul %161, %163, %cst_123 {dimension_numbers = #tpu.dot_dimension_numbers<[1], [0], [0], [1], [0, 0, 1, 1], [], []>} : vector<256x128xbf16>, vector<128x128xbf16>, vector<256x128xf32> -> vector<256x128xf32>
    %c7_124 = arith.constant 7 : index
    %c0_125 = arith.constant 0 : index
    %c0_126 = arith.constant 0 : index
    %165 = vector.load %arg4[%c7_124, %c0_125, %c0_126] : memref<8x1x128xf32, #tpu.memory_space<vmem>>, vector<1x1x128xf32>
    %166 = vector.shape_cast %165 : vector<1x1x128xf32> to vector<1x128xf32>
    %167 = vector.broadcast %166 : vector<1x128xf32> to vector<256x128xf32>
    %168 = arith.addf %164, %167 : vector<256x128xf32>
    %cst_127 = arith.constant 0.000000e+00 : f32
    %169 = vector.broadcast %cst_127 : f32 to vector<256x128xf32>
    %170 = arith.cmpf ogt, %168, %169 : vector<256x128xf32>
    %cst_128 = arith.constant 0.000000e+00 : f32
    %171 = vector.broadcast %cst_128 : f32 to vector<256x128xf32>
    %172 = arith.minimumf %168, %171 : vector<256x128xf32>
    %173 = math.exp %172 : vector<256x128xf32>
    %cst_129 = arith.constant 1.000000e+00 : f32
    %174 = vector.broadcast %cst_129 : f32 to vector<256x128xf32>
    %175 = arith.subf %173, %174 : vector<256x128xf32>
    %176 = arith.select %170, %168, %175 : vector<256x128xi1>, vector<256x128xf32>
    %177 = arith.truncf %176 : vector<256x128xf32> to vector<256x128xbf16>
    %c0_130 = arith.constant 0 : index
    %c0_131 = arith.constant 0 : index
    %178 = vector.load %arg5[%c0_130, %c0_131] : memref<128x32xbf16, #tpu.memory_space<vmem>>, vector<128x32xbf16>
    %cst_132 = arith.constant dense<0.000000e+00> : vector<256x32xf32>
    %179 = tpu.matmul %177, %178, %cst_132 {dimension_numbers = #tpu.dot_dimension_numbers<[1], [0], [0], [1], [0, 0, 1, 1], [], []>} : vector<256x128xbf16>, vector<128x32xbf16>, vector<256x32xf32> -> vector<256x32xf32>
    %180 = tpu.concatenate %25, %47, %69, %91, %113, %135, %157, %179 in 1 : vector<256x32xf32>, vector<256x32xf32>, vector<256x32xf32>, vector<256x32xf32>, vector<256x32xf32>, vector<256x32xf32>, vector<256x32xf32>, vector<256x32xf32> -> vector<256x256xf32>
    %c255_i32 = arith.constant 255 : i32
    %181 = tpu.dynamic_rotate %180 by %c255_i32 dim 0 : vector<256x256xf32>, i32 -> vector<256x256xf32>
    %c254_i32 = arith.constant 254 : i32
    %182 = tpu.dynamic_rotate %180 by %c254_i32 dim 0 : vector<256x256xf32>, i32 -> vector<256x256xf32>
    %183 = tpu.concatenate %180, %181, %182 in 1 : vector<256x256xf32>, vector<256x256xf32>, vector<256x256xf32> -> vector<256x768xf32>
    %184 = arith.truncf %183 : vector<256x768xf32> to vector<256x768xbf16>
    %c0_133 = arith.constant 0 : index
    %c0_134 = arith.constant 0 : index
    %185 = vector.load %arg6[%c0_133, %c0_134] : memref<768x240xbf16, #tpu.memory_space<vmem>>, vector<768x240xbf16>
    %cst_135 = arith.constant dense<0.000000e+00> : vector<256x240xf32>
    %186 = tpu.matmul %184, %185, %cst_135 {dimension_numbers = #tpu.dot_dimension_numbers<[1], [0], [0], [1], [0, 0, 1, 1], [], []>} : vector<256x768xbf16>, vector<768x240xbf16>, vector<256x240xf32> -> vector<256x240xf32>
    %c0_136 = arith.constant 0 : index
    %c0_137 = arith.constant 0 : index
    %187 = vector.load %arg7[%c0_136, %c0_137] : memref<1x240xf32, #tpu.memory_space<vmem>>, vector<1x240xf32>
    %188 = vector.broadcast %187 : vector<1x240xf32> to vector<256x240xf32>
    %189 = arith.addf %186, %188 : vector<256x240xf32>
    %cst_138 = arith.constant 0.000000e+00 : f32
    %190 = vector.broadcast %cst_138 : f32 to vector<256x240xf32>
    %191 = arith.cmpf ogt, %189, %190 : vector<256x240xf32>
    %cst_139 = arith.constant 0.000000e+00 : f32
    %192 = vector.broadcast %cst_139 : f32 to vector<256x240xf32>
    %193 = arith.minimumf %189, %192 : vector<256x240xf32>
    %194 = math.exp %193 : vector<256x240xf32>
    %cst_140 = arith.constant 1.000000e+00 : f32
    %195 = vector.broadcast %cst_140 : f32 to vector<256x240xf32>
    %196 = arith.subf %194, %195 : vector<256x240xf32>
    %197 = arith.select %191, %189, %196 : vector<256x240xi1>, vector<256x240xf32>
    %c0_141 = arith.constant 0 : index
    %c0_142 = arith.constant 0 : index
    %198 = vector.load %arg9[%c0_141, %c0_142] : memref<32x256xf32, #tpu.memory_space<vmem>>, vector<32x256xf32>
    %c0_143 = arith.constant 0 : index
    %c0_144 = arith.constant 0 : index
    %c0_145 = arith.constant 0 : index
    %199 = vector.load %arg8[%c0_143, %c0_144, %c0_145] : memref<2x256x240xbf16, #tpu.memory_space<vmem>>, vector<1x256x240xbf16>
    %200 = vector.shape_cast %199 : vector<1x256x240xbf16> to vector<256x240xbf16>
    %201 = arith.extf %200 : vector<256x240xbf16> to vector<256x240xf32>
    %202 = arith.mulf %197, %201 : vector<256x240xf32>
    %cst_146 = arith.constant dense<0.000000e+00> : vector<32x240xf32>
    %203 = tpu.matmul %198, %202, %cst_146 {dimension_numbers = #tpu.dot_dimension_numbers<[1], [0], [0], [1], [0, 0, 1, 1], [], []>} : vector<32x256xf32>, vector<256x240xf32>, vector<32x240xf32> -> vector<32x240xf32>
    %c0_147 = arith.constant 0 : index
    %c0_148 = arith.constant 0 : index
    %204 = vector.load %arg9[%c0_147, %c0_148] : memref<32x256xf32, #tpu.memory_space<vmem>>, vector<32x256xf32>
    %c1_149 = arith.constant 1 : index
    %c0_150 = arith.constant 0 : index
    %c0_151 = arith.constant 0 : index
    %205 = vector.load %arg8[%c1_149, %c0_150, %c0_151] : memref<2x256x240xbf16, #tpu.memory_space<vmem>>, vector<1x256x240xbf16>
    %206 = vector.shape_cast %205 : vector<1x256x240xbf16> to vector<256x240xbf16>
    %207 = arith.extf %206 : vector<256x240xbf16> to vector<256x240xf32>
    %208 = arith.mulf %197, %207 : vector<256x240xf32>
    %cst_152 = arith.constant dense<0.000000e+00> : vector<32x240xf32>
    %209 = tpu.matmul %204, %208, %cst_152 {dimension_numbers = #tpu.dot_dimension_numbers<[1], [0], [0], [1], [0, 0, 1, 1], [], []>} : vector<32x256xf32>, vector<256x240xf32>, vector<32x240xf32> -> vector<32x240xf32>
    %cst_153 = arith.constant dense<0.000000e+00> : vector<32xf32>
    %210 = vector.multi_reduction <add>, %203, %cst_153 [1] : vector<32x240xf32> to vector<32xf32>
    %211 = vector.shape_cast %210 : vector<32xf32> to vector<32x1xf32>
    %cst_154 = arith.constant dense<0.000000e+00> : vector<32xf32>
    %212 = vector.multi_reduction <add>, %209, %cst_154 [1] : vector<32x240xf32> to vector<32xf32>
    %213 = vector.shape_cast %212 : vector<32xf32> to vector<32x1xf32>
    %214 = tpu.concatenate %211, %213 in 1 : vector<32x1xf32>, vector<32x1xf32> -> vector<32x2xf32>
    %c0_155 = arith.constant 0 : index
    %c0_156 = arith.constant 0 : index
    %215 = vector.load %arg10[%c0_155, %c0_156] : memref<1x2xf32, #tpu.memory_space<vmem>>, vector<1x2xf32>
    %216 = vector.broadcast %215 : vector<1x2xf32> to vector<32x2xf32>
    %217 = arith.addf %214, %216 : vector<32x2xf32>
    %cst_157 = arith.constant dense<0xFF800000> : vector<32xf32>
    %218 = vector.multi_reduction <maximumf>, %217, %cst_157 [1] : vector<32x2xf32> to vector<32xf32>
    %219 = vector.shape_cast %218 : vector<32xf32> to vector<32x1xf32>
    %220 = vector.broadcast %219 : vector<32x1xf32> to vector<32x2xf32>
    %221 = arith.subf %217, %220 : vector<32x2xf32>
    %222 = math.exp %221 : vector<32x2xf32>
    %cst_158 = arith.constant dense<0.000000e+00> : vector<32xf32>
    %223 = vector.multi_reduction <add>, %222, %cst_158 [1] : vector<32x2xf32> to vector<32xf32>
    %224 = vector.shape_cast %223 : vector<32xf32> to vector<32x1xf32>
    %225 = vector.broadcast %224 : vector<32x1xf32> to vector<32x2xf32>
    %226 = arith.divf %222, %225 : vector<32x2xf32>
    %c0_159 = arith.constant 0 : index
    %c0_160 = arith.constant 0 : index
    %227 = vector.load %arg11[%c0_159, %c0_160] : memref<32x2xf32, #tpu.memory_space<vmem>>, vector<32x2xf32>
    tpu.vector_store %arg11[%c0_159, %c0_160], %226 {strides = array<i32>} : memref<32x2xf32, #tpu.memory_space<vmem>>, vector<32x2xf32>,
    return
  }
  func.func @transform_0(%arg0: i32) -> (i32, i32, i32) {
    %c0_i32 = arith.constant 0 : i32
    %c0_i32_0 = arith.constant 0 : i32
    %c0_i32_1 = arith.constant 0 : i32
    return %c0_i32, %arg0, %c0_i32_0 : i32, i32, i32
  }
  func.func @transform_1(%arg0: i32) -> (i32, i32, i32) {
    %c0_i32 = arith.constant 0 : i32
    %c0_i32_0 = arith.constant 0 : i32
    %c0_i32_1 = arith.constant 0 : i32
    %c0_i32_2 = arith.constant 0 : i32
    return %c0_i32, %c0_i32_0, %c0_i32_1 : i32, i32, i32
  }
  func.func @transform_2(%arg0: i32) -> (i32, i32, i32) {
    %c0_i32 = arith.constant 0 : i32
    %c0_i32_0 = arith.constant 0 : i32
    %c0_i32_1 = arith.constant 0 : i32
    %c0_i32_2 = arith.constant 0 : i32
    return %c0_i32, %c0_i32_0, %c0_i32_1 : i32, i32, i32
  }
  func.func @transform_3(%arg0: i32) -> (i32, i32, i32) {
    %c0_i32 = arith.constant 0 : i32
    %c0_i32_0 = arith.constant 0 : i32
    %c0_i32_1 = arith.constant 0 : i32
    %c0_i32_2 = arith.constant 0 : i32
    return %c0_i32, %c0_i32_0, %c0_i32_1 : i32, i32, i32
  }
  func.func @transform_4(%arg0: i32) -> (i32, i32) {
    %c0_i32 = arith.constant 0 : i32
    %c0_i32_0 = arith.constant 0 : i32
    %c0_i32_1 = arith.constant 0 : i32
    return %c0_i32, %c0_i32_0 : i32, i32
  }
  func.func @transform_5(%arg0: i32) -> (i32, i32) {
    %c0_i32 = arith.constant 0 : i32
    %c0_i32_0 = arith.constant 0 : i32
    %c0_i32_1 = arith.constant 0 : i32
    return %c0_i32, %c0_i32_0 : i32, i32
  }
  func.func @transform_6(%arg0: i32) -> (i32, i32) {
    %c0_i32 = arith.constant 0 : i32
    %c0_i32_0 = arith.constant 0 : i32
    %c0_i32_1 = arith.constant 0 : i32
    return %c0_i32, %c0_i32_0 : i32, i32
  }
  func.func @transform_7(%arg0: i32) -> (i32, i32, i32) {
    %c0_i32 = arith.constant 0 : i32
    %c0_i32_0 = arith.constant 0 : i32
    %c0_i32_1 = arith.constant 0 : i32
    %c0_i32_2 = arith.constant 0 : i32
    return %c0_i32, %c0_i32_0, %c0_i32_1 : i32, i32, i32
  }
  func.func @transform_8(%arg0: i32) -> (i32, i32) {
    %c0_i32 = arith.constant 0 : i32
    %c0_i32_0 = arith.constant 0 : i32
    %c0_i32_1 = arith.constant 0 : i32
    return %c0_i32, %c0_i32_0 : i32, i32
  }
  func.func @transform_9(%arg0: i32) -> (i32, i32) {
    %c0_i32 = arith.constant 0 : i32
    %c0_i32_0 = arith.constant 0 : i32
    %c0_i32_1 = arith.constant 0 : i32
    return %c0_i32, %c0_i32_0 : i32, i32
  }
  func.func @transform_10(%arg0: i32) -> (i32, i32) {
    %c0_i32 = arith.constant 0 : i32
    %c0_i32_0 = arith.constant 0 : i32
    return %arg0, %c0_i32 : i32, i32
  }
}

</mosaic_0001>

<llo_original>
// kernel: eegnet_forward.1
$region0: #{eegnet_forward.1}
  #allocation0 [shape = 'u32[]', space=smem, size = 0x4, offset = 0x4, fixed_abs, tag = 'smem constant byte address 0x4 - core index']
  #allocation1 [shape = 'u32[144,128]{1,0:T(1,128)}', space=vmem, size = 0x12000, scoped, tag = 'internal scratch']
  %s0 = inlined_call_operand.vmem [shape: bf16[2,512,128], index: 0, kind: input, shape index: {}]
  %s1 = inlined_call_operand.vmem [shape: bf16[8,128,128], index: 1, kind: input, shape index: {}]
  %s2 = inlined_call_operand.vmem [shape: bf16[8,128,128], index: 2, kind: input, shape index: {}]
  %s3 = inlined_call_operand.vmem [shape: f32[8,1,128], index: 3, kind: input, shape index: {}]
  %s4 = inlined_call_operand.vmem [shape: bf16[128,32], index: 4, kind: input, shape index: {}]
  %s5 = inlined_call_operand.vmem [shape: bf16[768,240], index: 5, kind: input, shape index: {}]
  %s6 = inlined_call_operand.vmem [shape: f32[1,240], index: 6, kind: input, shape index: {}]
  %s7 = inlined_call_operand.vmem [shape: bf16[2,256,240], index: 7, kind: input, shape index: {}]
  %s8 = inlined_call_operand.vmem [shape: f32[32,256], index: 8, kind: input, shape index: {}]
  %s9 = inlined_call_operand.vmem [shape: f32[1,2], index: 9, kind: input, shape index: {}]
  %s10 = inlined_call_operand.vmem [shape: f32[64,2], index: 10, kind: output, shape index: {}]
  %s11 = sld [smem:[#allocation0]]
  $region114: #{eegnet_forward.1} parent=0
    _
  %s13 = ssub.s32 1, %s11
  %s14 = scalar_select 0, %s13, %s11
  $region1: #{eegnet_forward.1} parent=0
    #allocation2 [shape = 'u8[262144]{0}', space=vmem, size = 0x40000, scoped, tag = 'input window, operand 0']
    loop: start=0, step=1, limit=4
    $region2: #{eegnet_forward.1} parent=1 // loop_pre_header
      _
    $region3: #{eegnet_forward.1} parent=1 // loop_header
      %s16 = sphi 0, %s20
      %p17 = scmp.ge.s32.totalorder %s16, 4
      %s26 = sphi 0, %s28
      %s29 = sphi 0, %s26
      %s30 = sphi 0, %s29
      %s46 = sphi 0, %s30
      %s50 = sphi 0, %s50
      %s52 = sphi 0, %s50
      %s53 = sphi 0, %s52
      %s67 = sphi 0, %s53
      %s71 = sphi 0, %s71
      %s73 = sphi 0, %s71
      %s74 = sphi 0, %s73
      %s88 = sphi 0, %s74
      %s92 = sphi 0, %s92
      %s94 = sphi 0, %s92
      %s95 = sphi 0, %s94
      %s109 = sphi 0, %s95
      %s113 = sphi 0, %s113
      %s115 = sphi 0, %s113
      %s116 = sphi 0, %s115
      %s130 = sphi 0, %s116
      %s134 = sphi 0, %s134
      %s136 = sphi 0, %s134
      %s137 = sphi 0, %s136
      %s151 = sphi 0, %s137
      %s155 = sphi 0, %s155
      %s157 = sphi 0, %s155
      %s158 = sphi 0, %s157
      %s172 = sphi 0, %s158
      %s176 = sphi 0, %s176
      %s178 = sphi 0, %s176
      %s179 = sphi 0, %s178
      %s193 = sphi 0, %s179
      %s197 = sphi 0, %s197
      %s199 = sphi 0, %s197
      %s200 = sphi 0, %s199
      %s214 = sphi 0, %s200
      %s218 = sphi 0, %s218
      %s220 = sphi 0, %s218
      %s221 = sphi 0, %s220
      %s235 = sphi 0, %s221
      %s241 = sphi 0, %s243
      %s244 = sphi 0, %s241
      %s245 = sphi 0, %s244
      %s261 = sphi 0, %s245
    $region4: #{eegnet_forward.1} parent=1 // loop_header_branch
      %19 = sbr.rel (%p17) target = $region8
    $region5: #{eegnet_forward.1} parent=1 // loop_body
      %s21 = ssub.s32 %s16, 1
      %s22 = ssub.s32 %s16, 2
      %s23 = sadd.s32 %s16, 1
      %s24 = ssub.s32 %s16, %s23
      %p25 = scmp.eq.s32.totalorder %s24, 0
      %s27 = sadd.s32 %s26, 1
      %s28 = scalar_select %p25, %s26, %s27
      %p31 = pneg %p25
      %p32 = scmp.eq.s32.totalorder %s16, 1
      %p33 = por %p31, %p32
      %p34 = scmp.ne.s32.totalorder %s26, %s29
      %p35 = scmp.eq.s32.totalorder %s16, 0
      %p36 = por %p34, %p35
      %p37 = scmp.ne.s32.totalorder %s26, %s29
      %p38 = scmp.eq.s32.totalorder %s21, 1
      %p39 = por %p37, %p38
      %p40 = scmp.ne.s32.totalorder %s29, %s30
      %p41 = scmp.eq.s32.totalorder %s21, 0
      %p42 = por %p40, %p41
      %p43 = scmp.ne.s32.totalorder %s29, %s30
      %p44 = scmp.eq.s32.totalorder %s22, 1
      %p45 = por %p43, %p44
      %p47 = scmp.ne.s32.totalorder %s30, %s46
      %p48 = scmp.eq.s32.totalorder %s22, 0
      %p49 = por %p47, %p48
      %s51 = sadd.s32 %s50, 1
      %p54 = scmp.eq.s32.totalorder %s16, 1
      %p55 = scmp.ne.s32.totalorder %s50, %s52
      %p56 = scmp.eq.s32.totalorder %s16, 0
      %p57 = por %p55, %p56
      %p58 = scmp.ne.s32.totalorder %s50, %s52
      %p59 = scmp.eq.s32.totalorder %s21, 1
      %p60 = por %p58, %p59
      %p61 = scmp.ne.s32.totalorder %s52, %s53
      %p62 = scmp.eq.s32.totalorder %s21, 0
      %p63 = por %p61, %p62
      %p64 = scmp.ne.s32.totalorder %s52, %s53
      %p65 = scmp.eq.s32.totalorder %s22, 1
      %p66 = por %p64, %p65
      %p68 = scmp.ne.s32.totalorder %s53, %s67
      %p69 = scmp.eq.s32.totalorder %s22, 0
      %p70 = por %p68, %p69
      %s72 = sadd.s32 %s71, 1
      %p75 = scmp.eq.s32.totalorder %s16, 1
      %p76 = scmp.ne.s32.totalorder %s71, %s73
      %p77 = scmp.eq.s32.totalorder %s16, 0
      %p78 = por %p76, %p77
      %p79 = scmp.ne.s32.totalorder %s71, %s73
      %p80 = scmp.eq.s32.totalorder %s21, 1
      %p81 = por %p79, %p80
      %p82 = scmp.ne.s32.totalorder %s73, %s74
      %p83 = scmp.eq.s32.totalorder %s21, 0
      %p84 = por %p82, %p83
      %p85 = scmp.ne.s32.totalorder %s73, %s74
      %p86 = scmp.eq.s32.totalorder %s22, 1
      %p87 = por %p85, %p86
      %p89 = scmp.ne.s32.totalorder %s74, %s88
      %p90 = scmp.eq.s32.totalorder %s22, 0
      %p91 = por %p89, %p90
      %s93 = sadd.s32 %s92, 1
      %p96 = scmp.eq.s32.totalorder %s16, 1
      %p97 = scmp.ne.s32.totalorder %s92, %s94
      %p98 = scmp.eq.s32.totalorder %s16, 0
      %p99 = por %p97, %p98
      %p100 = scmp.ne.s32.totalorder %s92, %s94
      %p101 = scmp.eq.s32.totalorder %s21, 1
      %p102 = por %p100, %p101
      %p103 = scmp.ne.s32.totalorder %s94, %s95
      %p104 = scmp.eq.s32.totalorder %s21, 0
      %p105 = por %p103, %p104
      %p106 = scmp.ne.s32.totalorder %s94, %s95
      %p107 = scmp.eq.s32.totalorder %s22, 1
      %p108 = por %p106, %p107
      %p110 = scmp.ne.s32.totalorder %s95, %s109
      %p111 = scmp.eq.s32.totalorder %s22, 0
      %p112 = por %p110, %p111
      %s114 = sadd.s32 %s113, 1
      %p117 = scmp.eq.s32.totalorder %s16, 1
      %p118 = scmp.ne.s32.totalorder %s113, %s115
      %p119 = scmp.eq.s32.totalorder %s16, 0
      %p120 = por %p118, %p119
      %p121 = scmp.ne.s32.totalorder %s113, %s115
      %p122 = scmp.eq.s32.totalorder %s21, 1
      %p123 = por %p121, %p122
      %p124 = scmp.ne.s32.totalorder %s115, %s116
      %p125 = scmp.eq.s32.totalorder %s21, 0
      %p126 = por %p124, %p125
      %p127 = scmp.ne.s32.totalorder %s115, %s116
      %p128 = scmp.eq.s32.totalorder %s22, 1
      %p129 = por %p127, %p128
      %p131 = scmp.ne.s32.totalorder %s116, %s130
      %p132 = scmp.eq.s32.totalorder %s22, 0
      %p133 = por %p131, %p132
      %s135 = sadd.s32 %s134, 1
      %p138 = scmp.eq.s32.totalorder %s16, 1
      %p139 = scmp.ne.s32.totalorder %s134, %s136
      %p140 = scmp.eq.s32.totalorder %s16, 0
      %p141 = por %p139, %p140
      %p142 = scmp.ne.s32.totalorder %s134, %s136
      %p143 = scmp.eq.s32.totalorder %s21, 1
      %p144 = por %p142, %p143
      %p145 = scmp.ne.s32.totalorder %s136, %s137
      %p146 = scmp.eq.s32.totalorder %s21, 0
      %p147 = por %p145, %p146
      %p148 = scmp.ne.s32.totalorder %s136, %s137
      %p149 = scmp.eq.s32.totalorder %s22, 1
      %p150 = por %p148, %p149
      %p152 = scmp.ne.s32.totalorder %s137, %s151
      %p153 = scmp.eq.s32.totalorder %s22, 0
      %p154 = por %p152, %p153
      %s156 = sadd.s32 %s155, 1
      %p159 = scmp.eq.s32.totalorder %s16, 1
      %p160 = scmp.ne.s32.totalorder %s155, %s157
      %p161 = scmp.eq.s32.totalorder %s16, 0
      %p162 = por %p160, %p161
      %p163 = scmp.ne.s32.totalorder %s155, %s157
      %p164 = scmp.eq.s32.totalorder %s21, 1
      %p165 = por %p163, %p164
      %p166 = scmp.ne.s32.totalorder %s157, %s158
      %p167 = scmp.eq.s32.totalorder %s21, 0
      %p168 = por %p166, %p167
      %p169 = scmp.ne.s32.totalorder %s157, %s158
      %p170 = scmp.eq.s32.totalorder %s22, 1
      %p171 = por %p169, %p170
      %p173 = scmp.ne.s32.totalorder %s158, %s172
      %p174 = scmp.eq.s32.totalorder %s22, 0
      %p175 = por %p173, %p174
      %s177 = sadd.s32 %s176, 1
      %p180 = scmp.eq.s32.totalorder %s16, 1
      %p181 = scmp.ne.s32.totalorder %s176, %s178
      %p182 = scmp.eq.s32.totalorder %s16, 0
      %p183 = por %p181, %p182
      %p184 = scmp.ne.s32.totalorder %s176, %s178
      %p185 = scmp.eq.s32.totalorder %s21, 1
      %p186 = por %p184, %p185
      %p187 = scmp.ne.s32.totalorder %s178, %s179
      %p188 = scmp.eq.s32.totalorder %s21, 0
      %p189 = por %p187, %p188
      %p190 = scmp.ne.s32.totalorder %s178, %s179
      %p191 = scmp.eq.s32.totalorder %s22, 1
      %p192 = por %p190, %p191
      %p194 = scmp.ne.s32.totalorder %s179, %s193
      %p195 = scmp.eq.s32.totalorder %s22, 0
      %p196 = por %p194, %p195
      %s198 = sadd.s32 %s197, 1
      %p201 = scmp.eq.s32.totalorder %s16, 1
      %p202 = scmp.ne.s32.totalorder %s197, %s199
      %p203 = scmp.eq.s32.totalorder %s16, 0
      %p204 = por %p202, %p203
      %p205 = scmp.ne.s32.totalorder %s197, %s199
      %p206 = scmp.eq.s32.totalorder %s21, 1
      %p207 = por %p205, %p206
      %p208 = scmp.ne.s32.totalorder %s199, %s200
      %p209 = scmp.eq.s32.totalorder %s21, 0
      %p210 = por %p208, %p209
      %p211 = scmp.ne.s32.totalorder %s199, %s200
      %p212 = scmp.eq.s32.totalorder %s22, 1
      %p213 = por %p211, %p212
      %p215 = scmp.ne.s32.totalorder %s200, %s214
      %p216 = scmp.eq.s32.totalorder %s22, 0
      %p217 = por %p215, %p216
      %s219 = sadd.s32 %s218, 1
      %p222 = scmp.eq.s32.totalorder %s16, 1
      %p223 = scmp.ne.s32.totalorder %s218, %s220
      %p224 = scmp.eq.s32.totalorder %s16, 0
      %p225 = por %p223, %p224
      %p226 = scmp.ne.s32.totalorder %s218, %s220
      %p227 = scmp.eq.s32.totalorder %s21, 1
      %p228 = por %p226, %p227
      %p229 = scmp.ne.s32.totalorder %s220, %s221
      %p230 = scmp.eq.s32.totalorder %s21, 0
      %p231 = por %p229, %p230
      %p232 = scmp.ne.s32.totalorder %s220, %s221
      %p233 = scmp.eq.s32.totalorder %s22, 1
      %p234 = por %p232, %p233
      %p236 = scmp.ne.s32.totalorder %s221, %s235
      %p237 = scmp.eq.s32.totalorder %s22, 0
      %p238 = por %p236, %p237
      %s239 = ssub.s32 %s16, %s23
      %p240 = scmp.eq.s32.totalorder %s239, 0
      %s242 = sadd.s32 %s241, 1
      %s243 = scalar_select %p240, %s241, %s242
      %p246 = pneg %p240
      %p247 = scmp.eq.s32.totalorder %s16, 1
      %p248 = por %p246, %p247
      %p249 = scmp.ne.s32.totalorder %s241, %s244
      %p250 = scmp.eq.s32.totalorder %s16, 0
      %p251 = por %p249, %p250
      %p252 = scmp.ne.s32.totalorder %s241, %s244
      %p253 = scmp.eq.s32.totalorder %s21, 1
      %p254 = por %p252, %p253
      %p255 = scmp.ne.s32.totalorder %s244, %s245
      %p256 = scmp.eq.s32.totalorder %s21, 0
      %p257 = por %p255, %p256
      %p258 = scmp.ne.s32.totalorder %s244, %s245
      %p259 = scmp.eq.s32.totalorder %s22, 1
      %p260 = por %p258, %p259
      %p262 = scmp.ne.s32.totalorder %s245, %s261
      %p263 = scmp.eq.s32.totalorder %s22, 0
      %p264 = por %p262, %p263
      %p265 = scmp.le.s32.totalorder 1, %s16
      %p266 = scmp.lt.s32.totalorder %s16, 3
      %p267 = pnand %p265, %p266
      %p268 = pneg %p267
      // Predicated region
      $region9: #{eegnet_forward.1} parent=5 // pred_check
        _
      $region10: #{eegnet_forward.1} parent=5 // pred_check_branch
        %270 = sbr.rel (%p267) target = $region12
      $region11: #{eegnet_forward.1} parent=5 // pred_region
        %s271 = ssub.s32 %s16, 1
        // Predicated region
        $region13: #{eegnet_forward.1} parent=11 // pred_check
          %p272 = pneg %p63
        $region14: #{eegnet_forward.1} parent=11 // pred_check_branch
          %274 = sbr.rel (%p272) target = $region16
        $region15: #{eegnet_forward.1} parent=11 // pred_region
          _
        $region16: #{eegnet_forward.1} parent=11 // pred_fallthru
          _
        // Predicated region
        $region17: #{eegnet_forward.1} parent=11 // pred_check
          %p275 = pneg %p84
        $region18: #{eegnet_forward.1} parent=11 // pred_check_branch
          %277 = sbr.rel (%p275) target = $region20
        $region19: #{eegnet_forward.1} parent=11 // pred_region
          _
        $region20: #{eegnet_forward.1} parent=11 // pred_fallthru
          _
        // Predicated region
        $region21: #{eegnet_forward.1} parent=11 // pred_check
          %p278 = pneg %p105
        $region22: #{eegnet_forward.1} parent=11 // pred_check_branch
          %280 = sbr.rel (%p278) target = $region24
        $region23: #{eegnet_forward.1} parent=11 // pred_region
          _
        $region24: #{eegnet_forward.1} parent=11 // pred_fallthru
          _
        // Predicated region
        $region25: #{eegnet_forward.1} parent=11 // pred_check
          %p281 = pneg %p126
        $region26: #{eegnet_forward.1} parent=11 // pred_check_branch
          %283 = sbr.rel (%p281) target = $region28
        $region27: #{eegnet_forward.1} parent=11 // pred_region
          _
        $region28: #{eegnet_forward.1} parent=11 // pred_fallthru
          _
        // Predicated region
        $region29: #{eegnet_forward.1} parent=11 // pred_check
          %p284 = pneg %p147
        $region30: #{eegnet_forward.1} parent=11 // pred_check_branch
          %286 = sbr.rel (%p284) target = $region32
        $region31: #{eegnet_forward.1} parent=11 // pred_region
          _
        $region32: #{eegnet_forward.1} parent=11 // pred_fallthru
          _
        // Predicated region
        $region33: #{eegnet_forward.1} parent=11 // pred_check
          %p287 = pneg %p168
        $region34: #{eegnet_forward.1} parent=11 // pred_check_branch
          %289 = sbr.rel (%p287) target = $region36
        $region35: #{eegnet_forward.1} parent=11 // pred_region
          _
        $region36: #{eegnet_forward.1} parent=11 // pred_fallthru
          _
        // Predicated region
        $region37: #{eegnet_forward.1} parent=11 // pred_check
          %p290 = pneg %p189
        $region38: #{eegnet_forward.1} parent=11 // pred_check_branch
          %292 = sbr.rel (%p290) target = $region40
        $region39: #{eegnet_forward.1} parent=11 // pred_region
          _
        $region40: #{eegnet_forward.1} parent=11 // pred_fallthru
          _
        // Predicated region
        $region41: #{eegnet_forward.1} parent=11 // pred_check
          %p293 = pneg %p210
        $region42: #{eegnet_forward.1} parent=11 // pred_check_branch
          %295 = sbr.rel (%p293) target = $region44
        $region43: #{eegnet_forward.1} parent=11 // pred_region
          _
        $region44: #{eegnet_forward.1} parent=11 // pred_fallthru
          _
        // Predicated region
        $region45: #{eegnet_forward.1} parent=11 // pred_check
          %p296 = pneg %p231
        $region46: #{eegnet_forward.1} parent=11 // pred_check_branch
          %298 = sbr.rel (%p296) target = $region48
        $region47: #{eegnet_forward.1} parent=11 // pred_region
          _
        $region48: #{eegnet_forward.1} parent=11 // pred_fallthru
          _
      $region12: #{eegnet_forward.1} parent=5 // pred_fallthru
        _
      %p299 = scmp.lt.s32.totalorder %s16, 2
      // Predicated region
      $region49: #{eegnet_forward.1} parent=5 // pred_check
        %p300 = pneg %p299
      $region50: #{eegnet_forward.1} parent=5 // pred_check_branch
        %302 = sbr.rel (%p300) target = $region52
      $region51: #{eegnet_forward.1} parent=5 // pred_region
        // Predicated region
        $region53: #{eegnet_forward.1} parent=51 // pred_check
          %p303 = pneg %p36
        $region54: #{eegnet_forward.1} parent=51 // pred_check_branch
          %305 = sbr.rel (%p303) target = $region56
        $region55: #{eegnet_forward.1} parent=51 // pred_region
          %s306 = sand.u32 %s26, 1
          %s307 = sand.u32 %s26, 1
          %s308 = smul.addr %s307, 256
          %s309 = scalar_lea.vmem [#allocation2], %s308
          %s310 = smul.u32 32, %s16
          %s311 = smul.addr %s310, 4
          %s312 = scalar_lea.vmem %s0, %s311
          // Predicated region
          $region57: #{eegnet_forward.1} parent=55 // pred_check
            _
          $region58: #{eegnet_forward.1} parent=55 // pred_check_branch
            %314 = sbr.rel (0) target = $region60
          $region59: #{eegnet_forward.1} parent=55 // pred_region
            // Predicated region
            $region61: #{eegnet_forward.1} parent=59 // pred_check
              _
            $region62: #{eegnet_forward.1} parent=59 // pred_check_branch
              %316 = sbr.rel target = $region64
            $region63: #{eegnet_forward.1} parent=59 // pred_region
              // Predicated region
              $region76: #{eegnet_forward.1} parent=63 // pred_check
                _
              $region77: #{eegnet_forward.1} parent=63 // pred_check_branch
                %458 = sbr.rel (0) target = $region79
              $region78: #{eegnet_forward.1} parent=63 // pred_region
                loop: start=0, step=1, limit=1
                $region80: #{eegnet_forward.1} parent=78 // loop_pre_header
                  _
                $region81: #{eegnet_forward.1} parent=78 // loop_header
                  %s460 = sphi 0, %s464
                  %p461 = scmp.ge.s32.totalorder %s460, 1
                  %s465 = sphi %s312, %s312
                  %s466 = sphi %s309, %s309
                $region82: #{eegnet_forward.1} parent=78 // loop_header_branch
                  %463 = sbr.rel (%p461) target = $region86
                $region83: #{eegnet_forward.1} parent=78 // loop_body
                  _
                $region84: #{eegnet_forward.1} parent=78 // loop_footer
                  %s464 = sadd.s32 1, %s460
                $region85: #{eegnet_forward.1} parent=78 // loop_footer_branch
                  %459 = sbr.rel target = $region81
                $region86: #{eegnet_forward.1} parent=78 // loop_exit
                  _
                %s468 = ssub.s32 16, 1
                loop: start=0, step=1, limit=1
                $region87: #{eegnet_forward.1} parent=78 // loop_pre_header
                  _
                $region88: #{eegnet_forward.1} parent=78 // loop_header
                  %s470 = sphi 0, %s474
                  %p471 = scmp.ge.s32.totalorder %s470, 1
                  %s475 = sphi %s312, %s312
                  %s476 = sphi %s309, %s309
                $region89: #{eegnet_forward.1} parent=78 // loop_header_branch
                  %473 = sbr.rel (%p471) target = $region93
                $region90: #{eegnet_forward.1} parent=78 // loop_body
                  %v477 = vld [vmem:[%s475] sm:%s468]
                  %478 = vst [vmem:[%s476] sm:%s468] %v477
                  %v479 = vld [vmem:[%s475 + $0x4] sm:%s468]
                  %480 = vst [vmem:[%s476 + $0x4] sm:%s468] %v479
                  %v481 = vld [vmem:[%s475 + $0x8] sm:%s468]
                  %482 = vst [vmem:[%s476 + $0x8] sm:%s468] %v481
                  %v483 = vld [vmem:[%s475 + $0xc] sm:%s468]
                  %484 = vst [vmem:[%s476 + $0xc] sm:%s468] %v483
                  %v485 = vld [vmem:[%s475 + $0x10] sm:%s468]
                  %486 = vst [vmem:[%s476 + $0x10] sm:%s468] %v485
                  %v487 = vld [vmem:[%s475 + $0x14] sm:%s468]
                  %488 = vst [vmem:[%s476 + $0x14] sm:%s468] %v487
                  %v489 = vld [vmem:[%s475 + $0x18] sm:%s468]
                  %490 = vst [vmem:[%s476 + $0x18] sm:%s468] %v489
                  %v491 = vld [vmem:[%s475 + $0x1c] sm:%s468]
                  %492 = vst [vmem:[%s476 + $0x1c] sm:%s468] %v491
                  %v493 = vld [vmem:[%s475 + $0x20] sm:%s468]
                  %494 = vst [vmem:[%s476 + $0x20] sm:%s468] %v493
                  %v495 = vld [vmem:[%s475 + $0x24] sm:%s468]
                  %496 = vst [vmem:[%s476 + $0x24] sm:%s468] %v495
                  %v497 = vld [vmem:[%s475 + $0x28] sm:%s468]
                  %498 = vst [vmem:[%s476 + $0x28] sm:%s468] %v497
                  %v499 = vld [vmem:[%s475 + $0x2c] sm:%s468]
                  %500 = vst [vmem:[%s476 + $0x2c] sm:%s468] %v499
                  %v501 = vld [vmem:[%s475 + $0x30] sm:%s468]
                  %502 = vst [vmem:[%s476 + $0x30] sm:%s468] %v501
                  %v503 = vld [vmem:[%s475 + $0x34] sm:%s468]
                  %504 = vst [vmem:[%s476 + $0x34] sm:%s468] %v503
                  %v505 = vld [vmem:[%s475 + $0x38] sm:%s468]
                  %506 = vst [vmem:[%s476 + $0x38] sm:%s468] %v505
                  %v507 = vld [vmem:[%s475 + $0x3c] sm:%s468]
                  %508 = vst [vmem:[%s476 + $0x3c] sm:%s468] %v507
                  %v509 = vld [vmem:[%s475 + $0x40] sm:%s468]
                  %510 = vst [vmem:[%s476 + $0x40] sm:%s468] %v509
                  %v511 = vld [vmem:[%s475 + $0x44] sm:%s468]
                  %512 = vst [vmem:[%s476 + $0x44] sm:%s468] %v511
                  %v513 = vld [vmem:[%s475 + $0x48] sm:%s468]
                  %514 = vst [vmem:[%s476 + $0x48] sm:%s468] %v513
                  %v515 = vld [vmem:[%s475 + $0x4c] sm:%s468]
                  %516 = vst [vmem:[%s476 + $0x4c] sm:%s468] %v515
                  %v517 = vld [vmem:[%s475 + $0x50] sm:%s468]
                  %518 = vst [vmem:[%s476 + $0x50] sm:%s468] %v517
                  %v519 = vld [vmem:[%s475 + $0x54] sm:%s468]
                  %520 = vst [vmem:[%s476 + $0x54] sm:%s468] %v519
                  %v521 = vld [vmem:[%s475 + $0x58] sm:%s468]
                  %522 = vst [vmem:[%s476 + $0x58] sm:%s468] %v521
                  %v523 = vld [vmem:[%s475 + $0x5c] sm:%s468]
                  %524 = vst [vmem:[%s476 + $0x5c] sm:%s468] %v523
                  %v525 = vld [vmem:[%s475 + $0x60] sm:%s468]
                  %526 = vst [vmem:[%s476 + $0x60] sm:%s468] %v525
                  %v527 = vld [vmem:[%s475 + $0x64] sm:%s468]
                  %528 = vst [vmem:[%s476 + $0x64] sm:%s468] %v527
                  %v529 = vld [vmem:[%s475 + $0x68] sm:%s468]
                  %530 = vst [vmem:[%s476 + $0x68] sm:%s468] %v529
                  %v531 = vld [vmem:[%s475 + $0x6c] sm:%s468]
                  %532 = vst [vmem:[%s476 + $0x6c] sm:%s468] %v531
                  %v533 = vld [vmem:[%s475 + $0x70] sm:%s468]
                  %534 = vst [vmem:[%s476 + $0x70] sm:%s468] %v533
                  %v535 = vld [vmem:[%s475 + $0x74] sm:%s468]
                  %536 = vst [vmem:[%s476 + $0x74] sm:%s468] %v535
                  %v537 = vld [vmem:[%s475 + $0x78] sm:%s468]
                  %538 = vst [vmem:[%s476 + $0x78] sm:%s468] %v537
                  %v539 = vld [vmem:[%s475 + $0x7c] sm:%s468]
                  %540 = vst [vmem:[%s476 + $0x7c] sm:%s468] %v539
                  %v541 = vld [vmem:[%s475 + $0x100] sm:%s468]
                  %542 = vst [vmem:[%s476 + $0x80] sm:%s468] %v541
                  %v543 = vld [vmem:[%s475 + $0x104] sm:%s468]
                  %544 = vst [vmem:[%s476 + $0x84] sm:%s468] %v543
                  %v545 = vld [vmem:[%s475 + $0x108] sm:%s468]
                  %546 = vst [vmem:[%s476 + $0x88] sm:%s468] %v545
                  %v547 = vld [vmem:[%s475 + $0x10c] sm:%s468]
                  %548 = vst [vmem:[%s476 + $0x8c] sm:%s468] %v547
                  %v549 = vld [vmem:[%s475 + $0x110] sm:%s468]
                  %550 = vst [vmem:[%s476 + $0x90] sm:%s468] %v549
                  %v551 = vld [vmem:[%s475 + $0x114] sm:%s468]
                  %552 = vst [vmem:[%s476 + $0x94] sm:%s468] %v551
                  %v553 = vld [vmem:[%s475 + $0x118] sm:%s468]
                  %554 = vst [vmem:[%s476 + $0x98] sm:%s468] %v553
                  %v555 = vld [vmem:[%s475 + $0x11c] sm:%s468]
                  %556 = vst [vmem:[%s476 + $0x9c] sm:%s468] %v555
                  %v557 = vld [vmem:[%s475 + $0x120] sm:%s468]
                  %558 = vst [vmem:[%s476 + $0xa0] sm:%s468] %v557
                  %v559 = vld [vmem:[%s475 + $0x124] sm:%s468]
                  %560 = vst [vmem:[%s476 + $0xa4] sm:%s468] %v559
                  %v561 = vld [vmem:[%s475 + $0x128] sm:%s468]
                  %562 = vst [vmem:[%s476 + $0xa8] sm:%s468] %v561
                  %v563 = vld [vmem:[%s475 + $0x12c] sm:%s468]
                  %564 = vst [vmem:[%s476 + $0xac] sm:%s468] %v563
                  %v565 = vld [vmem:[%s475 + $0x130] sm:%s468]
                  %566 = vst [vmem:[%s476 + $0xb0] sm:%s468] %v565
                  %v567 = vld [vmem:[%s475 + $0x134] sm:%s468]
                  %568 = vst [vmem:[%s476 + $0xb4] sm:%s468] %v567
                  %v569 = vld [vmem:[%s475 + $0x138] sm:%s468]
                  %570 = vst [vmem:[%s476 + $0xb8] sm:%s468] %v569
                  %v571 = vld [vmem:[%s475 + $0x13c] sm:%s468]
                  %572 = vst [vmem:[%s476 + $0xbc] sm:%s468] %v571
                  %v573 = vld [vmem:[%s475 + $0x140] sm:%s468]
                  %574 = vst [vmem:[%s476 + $0xc0] sm:%s468] %v573
                  %v575 = vld [vmem:[%s475 + $0x144] sm:%s468]
                  %576 = vst [vmem:[%s476 + $0xc4] sm:%s468] %v575
                  %v577 = vld [vmem:[%s475 + $0x148] sm:%s468]
                  %578 = vst [vmem:[%s476 + $0xc8] sm:%s468] %v577
                  %v579 = vld [vmem:[%s475 + $0x14c] sm:%s468]
                  %580 = vst [vmem:[%s476 + $0xcc] sm:%s468] %v579
                  %v581 = vld [vmem:[%s475 + $0x150] sm:%s468]
                  %582 = vst [vmem:[%s476 + $0xd0] sm:%s468] %v581
                  %v583 = vld [vmem:[%s475 + $0x154] sm:%s468]
                  %584 = vst [vmem:[%s476 + $0xd4] sm:%s468] %v583
                  %v585 = vld [vmem:[%s475 + $0x158] sm:%s468]
                  %586 = vst [vmem:[%s476 + $0xd8] sm:%s468] %v585
                  %v587 = vld [vmem:[%s475 + $0x15c] sm:%s468]
                  %588 = vst [vmem:[%s476 + $0xdc] sm:%s468] %v587
                  %v589 = vld [vmem:[%s475 + $0x160] sm:%s468]
                  %590 = vst [vmem:[%s476 + $0xe0] sm:%s468] %v589
                  %v591 = vld [vmem:[%s475 + $0x164] sm:%s468]
                  %592 = vst [vmem:[%s476 + $0xe4] sm:%s468] %v591
                  %v593 = vld [vmem:[%s475 + $0x168] sm:%s468]
                  %594 = vst [vmem:[%s476 + $0xe8] sm:%s468] %v593
                  %v595 = vld [vmem:[%s475 + $0x16c] sm:%s468]
                  %596 = vst [vmem:[%s476 + $0xec] sm:%s468] %v595
                  %v597 = vld [vmem:[%s475 + $0x170] sm:%s468]
                  %598 = vst [vmem:[%s476 + $0xf0] sm:%s468] %v597
                  %v599 = vld [vmem:[%s475 + $0x174] sm:%s468]
                  %600 = vst [vmem:[%s476 + $0xf4] sm:%s468] %v599
                  %v601 = vld [vmem:[%s475 + $0x178] sm:%s468]
                  %602 = vst [vmem:[%s476 + $0xf8] sm:%s468] %v601
                  %v603 = vld [vmem:[%s475 + $0x17c] sm:%s468]
                  %604 = vst [vmem:[%s476 + $0xfc] sm:%s468] %v603
                $region91: #{eegnet_forward.1} parent=78 // loop_footer
                  %s474 = sadd.s32 1, %s470
                $region92: #{eegnet_forward.1} parent=78 // loop_footer_branch
                  %469 = sbr.rel target = $region88
                $region93: #{eegnet_forward.1} parent=78 // loop_exit
                  _
              $region79: #{eegnet_forward.1} parent=63 // pred_fallthru
                _
            $region64: #{eegnet_forward.1} parent=59 // pred_fallthru
              _
            // Predicated region
            $region65: #{eegnet_forward.1} parent=59 // pred_check
              _
            $region66: #{eegnet_forward.1} parent=59 // pred_check_branch
              %318 = sbr.rel (0) target = $region68
            $region67: #{eegnet_forward.1} parent=59 // pred_region
              %s320 = ssub.s32 16, 1
              loop: start=0, step=1, limit=1
              $region69: #{eegnet_forward.1} parent=67 // loop_pre_header
                _
              $region70: #{eegnet_forward.1} parent=67 // loop_header
                %s322 = sphi 0, %s326
                %p323 = scmp.ge.s32.totalorder %s322, 1
                %s327 = sphi %s312, %s312
                %s328 = sphi %s309, %s309
              $region71: #{eegnet_forward.1} parent=67 // loop_header_branch
                %325 = sbr.rel (%p323) target = $region75
              $region72: #{eegnet_forward.1} parent=67 // loop_body
                %v329 = vld [vmem:[%s327] sm:%s320]
                %330 = vst [vmem:[%s328] sm:%s320] %v329
                %v331 = vld [vmem:[%s327 + $0x4] sm:%s320]
                %332 = vst [vmem:[%s328 + $0x4] sm:%s320] %v331
                %v333 = vld [vmem:[%s327 + $0x8] sm:%s320]
                %334 = vst [vmem:[%s328 + $0x8] sm:%s320] %v333
                %v335 = vld [vmem:[%s327 + $0xc] sm:%s320]
                %336 = vst [vmem:[%s328 + $0xc] sm:%s320] %v335
                %v337 = vld [vmem:[%s327 + $0x10] sm:%s320]
                %338 = vst [vmem:[%s328 + $0x10] sm:%s320] %v337
                %v339 = vld [vmem:[%s327 + $0x14] sm:%s320]
                %340 = vst [vmem:[%s328 + $0x14] sm:%s320] %v339
                %v341 = vld [vmem:[%s327 + $0x18] sm:%s320]
                %342 = vst [vmem:[%s328 + $0x18] sm:%s320] %v341
                %v343 = vld [vmem:[%s327 + $0x1c] sm:%s320]
                %344 = vst [vmem:[%s328 + $0x1c] sm:%s320] %v343
                %v345 = vld [vmem:[%s327 + $0x20] sm:%s320]
                %346 = vst [vmem:[%s328 + $0x20] sm:%s320] %v345
                %v347 = vld [vmem:[%s327 + $0x24] sm:%s320]
                %348 = vst [vmem:[%s328 + $0x24] sm:%s320] %v347
                %v349 = vld [vmem:[%s327 + $0x28] sm:%s320]
                %350 = vst [vmem:[%s328 + $0x28] sm:%s320] %v349
                %v351 = vld [vmem:[%s327 + $0x2c] sm:%s320]
                %352 = vst [vmem:[%s328 + $0x2c] sm:%s320] %v351
                %v353 = vld [vmem:[%s327 + $0x30] sm:%s320]
                %354 = vst [vmem:[%s328 + $0x30] sm:%s320] %v353
                %v355 = vld [vmem:[%s327 + $0x34] sm:%s320]
                %356 = vst [vmem:[%s328 + $0x34] sm:%s320] %v355
                %v357 = vld [vmem:[%s327 + $0x38] sm:%s320]
                %358 = vst [vmem:[%s328 + $0x38] sm:%s320] %v357
                %v359 = vld [vmem:[%s327 + $0x3c] sm:%s320]
                %360 = vst [vmem:[%s328 + $0x3c] sm:%s320] %v359
                %v361 = vld [vmem:[%s327 + $0x40] sm:%s320]
                %362 = vst [vmem:[%s328 + $0x40] sm:%s320] %v361
                %v363 = vld [vmem:[%s327 + $0x44] sm:%s320]
                %364 = vst [vmem:[%s328 + $0x44] sm:%s320] %v363
                %v365 = vld [vmem:[%s327 + $0x48] sm:%s320]
                %366 = vst [vmem:[%s328 + $0x48] sm:%s320] %v365
                %v367 = vld [vmem:[%s327 + $0x4c] sm:%s320]
                %368 = vst [vmem:[%s328 + $0x4c] sm:%s320] %v367
                %v369 = vld [vmem:[%s327 + $0x50] sm:%s320]
                %370 = vst [vmem:[%s328 + $0x50] sm:%s320] %v369
                %v371 = vld [vmem:[%s327 + $0x54] sm:%s320]
                %372 = vst [vmem:[%s328 + $0x54] sm:%s320] %v371
                %v373 = vld [vmem:[%s327 + $0x58] sm:%s320]
                %374 = vst [vmem:[%s328 + $0x58] sm:%s320] %v373
                %v375 = vld [vmem:[%s327 + $0x5c] sm:%s320]
                %376 = vst [vmem:[%s328 + $0x5c] sm:%s320] %v375
                %v377 = vld [vmem:[%s327 + $0x60] sm:%s320]
                %378 = vst [vmem:[%s328 + $0x60] sm:%s320] %v377
                %v379 = vld [vmem:[%s327 + $0x64] sm:%s320]
                %380 = vst [vmem:[%s328 + $0x64] sm:%s320] %v379
                %v381 = vld [vmem:[%s327 + $0x68] sm:%s320]
                %382 = vst [vmem:[%s328 + $0x68] sm:%s320] %v381
                %v383 = vld [vmem:[%s327 + $0x6c] sm:%s320]
                %384 = vst [vmem:[%s328 + $0x6c] sm:%s320] %v383
                %v385 = vld [vmem:[%s327 + $0x70] sm:%s320]
                %386 = vst [vmem:[%s328 + $0x70] sm:%s320] %v385
                %v387 = vld [vmem:[%s327 + $0x74] sm:%s320]
                %388 = vst [vmem:[%s328 + $0x74] sm:%s320] %v387
                %v389 = vld [vmem:[%s327 + $0x78] sm:%s320]
                %390 = vst [vmem:[%s328 + $0x78] sm:%s320] %v389
                %v391 = vld [vmem:[%s327 + $0x7c] sm:%s320]
                %392 = vst [vmem:[%s328 + $0x7c] sm:%s320] %v391
                %v393 = vld [vmem:[%s327 + $0x100] sm:%s320]
                %394 = vst [vmem:[%s328 + $0x80] sm:%s320] %v393
                %v395 = vld [vmem:[%s327 + $0x104] sm:%s320]
                %396 = vst [vmem:[%s328 + $0x84] sm:%s320] %v395
                %v397 = vld [vmem:[%s327 + $0x108] sm:%s320]
                %398 = vst [vmem:[%s328 + $0x88] sm:%s320] %v397
                %v399 = vld [vmem:[%s327 + $0x10c] sm:%s320]
                %400 = vst [vmem:[%s328 + $0x8c] sm:%s320] %v399
                %v401 = vld [vmem:[%s327 + $0x110] sm:%s320]
                %402 = vst [vmem:[%s328 + $0x90] sm:%s320] %v401
                %v403 = vld [vmem:[%s327 + $0x114] sm:%s320]
                %404 = vst [vmem:[%s328 + $0x94] sm:%s320] %v403
                %v405 = vld [vmem:[%s327 + $0x118] sm:%s320]
                %406 = vst [vmem:[%s328 + $0x98] sm:%s320] %v405
                %v407 = vld [vmem:[%s327 + $0x11c] sm:%s320]
                %408 = vst [vmem:[%s328 + $0x9c] sm:%s320] %v407
                %v409 = vld [vmem:[%s327 + $0x120] sm:%s320]
                %410 = vst [vmem:[%s328 + $0xa0] sm:%s320] %v409
                %v411 = vld [vmem:[%s327 + $0x124] sm:%s320]
                %412 = vst [vmem:[%s328 + $0xa4] sm:%s320] %v411
                %v413 = vld [vmem:[%s327 + $0x128] sm:%s320]
                %414 = vst [vmem:[%s328 + $0xa8] sm:%s320] %v413
                %v415 = vld [vmem:[%s327 + $0x12c] sm:%s320]
                %416 = vst [vmem:[%s328 + $0xac] sm:%s320] %v415
                %v417 = vld [vmem:[%s327 + $0x130] sm:%s320]
                %418 = vst [vmem:[%s328 + $0xb0] sm:%s320] %v417
                %v419 = vld [vmem:[%s327 + $0x134] sm:%s320]
                %420 = vst [vmem:[%s328 + $0xb4] sm:%s320] %v419
                %v421 = vld [vmem:[%s327 + $0x138] sm:%s320]
                %422 = vst [vmem:[%s328 + $0xb8] sm:%s320] %v421
                %v423 = vld [vmem:[%s327 + $0x13c] sm:%s320]
                %424 = vst [vmem:[%s328 + $0xbc] sm:%s320] %v423
                %v425 = vld [vmem:[%s327 + $0x140] sm:%s320]
                %426 = vst [vmem:[%s328 + $0xc0] sm:%s320] %v425
                %v427 = vld [vmem:[%s327 + $0x144] sm:%s320]
                %428 = vst [vmem:[%s328 + $0xc4] sm:%s320] %v427
                %v429 = vld [vmem:[%s327 + $0x148] sm:%s320]
                %430 = vst [vmem:[%s328 + $0xc8] sm:%s320] %v429
                %v431 = vld [vmem:[%s327 + $0x14c] sm:%s320]
                %432 = vst [vmem:[%s328 + $0xcc] sm:%s320] %v431
                %v433 = vld [vmem:[%s327 + $0x150] sm:%s320]
                %434 = vst [vmem:[%s328 + $0xd0] sm:%s320] %v433
                %v435 = vld [vmem:[%s327 + $0x154] sm:%s320]
                %436 = vst [vmem:[%s328 + $0xd4] sm:%s320] %v435
                %v437 = vld [vmem:[%s327 + $0x158] sm:%s320]
                %438 = vst [vmem:[%s328 + $0xd8] sm:%s320] %v437
                %v439 = vld [vmem:[%s327 + $0x15c] sm:%s320]
                %440 = vst [vmem:[%s328 + $0xdc] sm:%s320] %v439
                %v441 = vld [vmem:[%s327 + $0x160] sm:%s320]
                %442 = vst [vmem:[%s328 + $0xe0] sm:%s320] %v441
                %v443 = vld [vmem:[%s327 + $0x164] sm:%s320]
                %444 = vst [vmem:[%s328 + $0xe4] sm:%s320] %v443
                %v445 = vld [vmem:[%s327 + $0x168] sm:%s320]
                %446 = vst [vmem:[%s328 + $0xe8] sm:%s320] %v445
                %v447 = vld [vmem:[%s327 + $0x16c] sm:%s320]
                %448 = vst [vmem:[%s328 + $0xec] sm:%s320] %v447
                %v449 = vld [vmem:[%s327 + $0x170] sm:%s320]
                %450 = vst [vmem:[%s328 + $0xf0] sm:%s320] %v449
                %v451 = vld [vmem:[%s327 + $0x174] sm:%s320]
                %452 = vst [vmem:[%s328 + $0xf4] sm:%s320] %v451
                %v453 = vld [vmem:[%s327 + $0x178] sm:%s320]
                %454 = vst [vmem:[%s328 + $0xf8] sm:%s320] %v453
                %v455 = vld [vmem:[%s327 + $0x17c] sm:%s320]
                %456 = vst [vmem:[%s328 + $0xfc] sm:%s320] %v455
              $region73: #{eegnet_forward.1} parent=67 // loop_footer
                %s326 = sadd.s32 1, %s322
              $region74: #{eegnet_forward.1} parent=67 // loop_footer_branch
                %321 = sbr.rel target = $region70
              $region75: #{eegnet_forward.1} parent=67 // loop_exit
                _
            $region68: #{eegnet_forward.1} parent=59 // pred_fallthru
              _
          $region60: #{eegnet_forward.1} parent=55 // pred_fallthru
            _
          %605 = vnop
        $region56: #{eegnet_forward.1} parent=51 // pred_fallthru
          _
      $region52: #{eegnet_forward.1} parent=5 // pred_fallthru
        _
      %p606 = scmp.le.s32.totalorder 1, %s16
      %p607 = scmp.lt.s32.totalorder %s16, 3
      %p608 = pnand %p606, %p607
      %p609 = pneg %p608
      // Predicated region
      $region94: #{eegnet_forward.1} parent=5 // pred_check
        _
      $region95: #{eegnet_forward.1} parent=5 // pred_check_branch
        %611 = sbr.rel (%p608) target = $region97
      $region96: #{eegnet_forward.1} parent=5 // pred_region
        %s612 = ssub.s32 %s16, 1
        %s613 = sand.u32 %s29, 1
        %s614 = sand.u32 %s29, 1
        %s615 = smul.addr %s614, 256
        %s616 = scalar_lea.vmem [#allocation2], %s615
        // Predicated region
        $region98: #{eegnet_forward.1} parent=96 // pred_check
          %p617 = pneg %p42
        $region99: #{eegnet_forward.1} parent=96 // pred_check_branch
          %619 = sbr.rel (%p617) target = $region101
        $region100: #{eegnet_forward.1} parent=96 // pred_region
          _
        $region101: #{eegnet_forward.1} parent=96 // pred_fallthru
          _
        %s620 = sand.u32 %s29, 1
        %s621 = sand.u32 %s29, 1
        %s622 = smul.addr %s621, 256
        %s623 = scalar_lea.vmem [#allocation2], %s622
        %p624 = pneg %p42
        %p625 = pneg %p39
        %p626 = pneg %p63
        %p627 = pneg %p60
        %p628 = pneg %p84
        %p629 = pneg %p81
        %p630 = pneg %p105
        %p631 = pneg %p102
        %p632 = pneg %p126
        %p633 = pneg %p123
        %p634 = pneg %p147
        %p635 = pneg %p144
        %p636 = pneg %p168
        %p637 = pneg %p165
        %p638 = pneg %p189
        %p639 = pneg %p186
        %p640 = pneg %p210
        %p641 = pneg %p207
        %p642 = pneg %p231
        %p643 = pneg %p228
        %p644 = pneg %p257
        %p645 = pneg %p254
        %s646 = smul.u32 4, %s21
        %p647 = scmp.lt.s32.totalorder %s646, 7
        %s648 = scalar_select %p647, %s646, 7
        %s649 = smul.addr %s648, 8
        %s650 = scalar_lea.vmem %s10, %s649
        %s651 = smul.u32 32, %s21
        %s652 = smul.u32 4, %s21
        %p653 = scmp.lt.s32.totalorder %s652, 7
        %s654 = scalar_select %p653, %s652, 7
        %s655 = smul.addr %s654, 8
        %s656 = scalar_lea.vmem %s10, %s655
        %s657 = smul.u32 4, %s21
        %v659 = vld [vmem:[%s616] sm:$0xf]
        %v660 = vld [vmem:[%s616 + $0x4] sm:$0xf]
        %v661 = vld [vmem:[%s616 + $0x8] sm:$0xf]
        %v662 = vld [vmem:[%s616 + $0xc] sm:$0xf]
        %v663 = vld [vmem:[%s616 + $0x10] sm:$0xf]
        %v664 = vld [vmem:[%s616 + $0x14] sm:$0xf]
        %v665 = vld [vmem:[%s616 + $0x18] sm:$0xf]
        %v666 = vld [vmem:[%s616 + $0x1c] sm:$0xf]
        %v667 = vld [vmem:[%s616 + $0x20] sm:$0xf]
        %v668 = vld [vmem:[%s616 + $0x24] sm:$0xf]
        %v669 = vld [vmem:[%s616 + $0x28] sm:$0xf]
        %v670 = vld [vmem:[%s616 + $0x2c] sm:$0xf]
        %v671 = vld [vmem:[%s616 + $0x30] sm:$0xf]
        %v672 = vld [vmem:[%s616 + $0x34] sm:$0xf]
        %v673 = vld [vmem:[%s616 + $0x38] sm:$0xf]
        %v674 = vld [vmem:[%s616 + $0x3c] sm:$0xf]
        %v675 = vld [vmem:[%s616 + $0x40] sm:$0xf]
        %v676 = vld [vmem:[%s616 + $0x44] sm:$0xf]
        %v677 = vld [vmem:[%s616 + $0x48] sm:$0xf]
        %v678 = vld [vmem:[%s616 + $0x4c] sm:$0xf]
        %v679 = vld [vmem:[%s616 + $0x50] sm:$0xf]
        %v680 = vld [vmem:[%s616 + $0x54] sm:$0xf]
        %v681 = vld [vmem:[%s616 + $0x58] sm:$0xf]
        %v682 = vld [vmem:[%s616 + $0x5c] sm:$0xf]
        %v683 = vld [vmem:[%s616 + $0x60] sm:$0xf]
        %v684 = vld [vmem:[%s616 + $0x64] sm:$0xf]
        %v685 = vld [vmem:[%s616 + $0x68] sm:$0xf]
        %v686 = vld [vmem:[%s616 + $0x6c] sm:$0xf]
        %v687 = vld [vmem:[%s616 + $0x70] sm:$0xf]
        %v688 = vld [vmem:[%s616 + $0x74] sm:$0xf]
        %v689 = vld [vmem:[%s616 + $0x78] sm:$0xf]
        %v690 = vld [vmem:[%s616 + $0x7c] sm:$0xf]
        %s691 = scalar_lea.vmem %s616, 128 [#allocation2]
        %v692 = vld [vmem:[%s691] sm:$0xf]
        %v693 = vld [vmem:[%s691 + $0x4] sm:$0xf]
        %v694 = vld [vmem:[%s691 + $0x8] sm:$0xf]
        %v695 = vld [vmem:[%s691 + $0xc] sm:$0xf]
        %v696 = vld [vmem:[%s691 + $0x10] sm:$0xf]
        %v697 = vld [vmem:[%s691 + $0x14] sm:$0xf]
        %v698 = vld [vmem:[%s691 + $0x18] sm:$0xf]
        %v699 = vld [vmem:[%s691 + $0x1c] sm:$0xf]
        %v700 = vld [vmem:[%s691 + $0x20] sm:$0xf]
        %v701 = vld [vmem:[%s691 + $0x24] sm:$0xf]
        %v702 = vld [vmem:[%s691 + $0x28] sm:$0xf]
        %v703 = vld [vmem:[%s691 + $0x2c] sm:$0xf]
        %v704 = vld [vmem:[%s691 + $0x30] sm:$0xf]
        %v705 = vld [vmem:[%s691 + $0x34] sm:$0xf]
        %v706 = vld [vmem:[%s691 + $0x38] sm:$0xf]
        %v707 = vld [vmem:[%s691 + $0x3c] sm:$0xf]
        %v708 = vld [vmem:[%s691 + $0x40] sm:$0xf]
        %v709 = vld [vmem:[%s691 + $0x44] sm:$0xf]
        %v710 = vld [vmem:[%s691 + $0x48] sm:$0xf]
        %v711 = vld [vmem:[%s691 + $0x4c] sm:$0xf]
        %v712 = vld [vmem:[%s691 + $0x50] sm:$0xf]
        %v713 = vld [vmem:[%s691 + $0x54] sm:$0xf]
        %v714 = vld [vmem:[%s691 + $0x58] sm:$0xf]
        %v715 = vld [vmem:[%s691 + $0x5c] sm:$0xf]
        %v716 = vld [vmem:[%s691 + $0x60] sm:$0xf]
        %v717 = vld [vmem:[%s691 + $0x64] sm:$0xf]
        %v718 = vld [vmem:[%s691 + $0x68] sm:$0xf]
        %v719 = vld [vmem:[%s691 + $0x6c] sm:$0xf]
        %v720 = vld [vmem:[%s691 + $0x70] sm:$0xf]
        %v721 = vld [vmem:[%s691 + $0x74] sm:$0xf]
        %v722 = vld [vmem:[%s691 + $0x78] sm:$0xf]
        %v723 = vld [vmem:[%s691 + $0x7c] sm:$0xf]
        %v724 = vld [vmem:[%s1] sm:$0xf]
        %v725 = vld [vmem:[%s1 + $0x4] sm:$0xf]
        %v726 = vld [vmem:[%s1 + $0x8] sm:$0xf]
        %v727 = vld [vmem:[%s1 + $0xc] sm:$0xf]
        %v728 = vld [vmem:[%s1 + $0x10] sm:$0xf]
        %v729 = vld [vmem:[%s1 + $0x14] sm:$0xf]
        %v730 = vld [vmem:[%s1 + $0x18] sm:$0xf]
        %v731 = vld [vmem:[%s1 + $0x1c] sm:$0xf]
        %v732 = vld [vmem:[%s1 + $0x20] sm:$0xf]
        %v733 = vld [vmem:[%s1 + $0x24] sm:$0xf]
        %v734 = vld [vmem:[%s1 + $0x28] sm:$0xf]
        %v735 = vld [vmem:[%s1 + $0x2c] sm:$0xf]
        %v736 = vld [vmem:[%s1 + $0x30] sm:$0xf]
        %v737 = vld [vmem:[%s1 + $0x34] sm:$0xf]
        %v738 = vld [vmem:[%s1 + $0x38] sm:$0xf]
        %v739 = vld [vmem:[%s1 + $0x3c] sm:$0xf]
        %v772 = vunpack.c.l.b16 %v659
        %v773 = vunpack.c.l.b16 %v660
        %v774 = vunpack.c.l.b16 %v661
        %v775 = vunpack.c.l.b16 %v662
        %v776 = vunpack.c.l.b16 %v663
        %v777 = vunpack.c.l.b16 %v664
        %v778 = vunpack.c.l.b16 %v665
        %v779 = vunpack.c.l.b16 %v666
        %v780 = vunpack.c.l.b16 %v667
        %v781 = vunpack.c.l.b16 %v668
        %v782 = vunpack.c.l.b16 %v669
        %v783 = vunpack.c.l.b16 %v670
        %v784 = vunpack.c.l.b16 %v671
        %v785 = vunpack.c.l.b16 %v672
        %v786 = vunpack.c.l.b16 %v673
        %v787 = vunpack.c.l.b16 %v674
        %v788 = vunpack.c.l.b16 %v675
        %v789 = vunpack.c.l.b16 %v676
        %v790 = vunpack.c.l.b16 %v677
        %v791 = vunpack.c.l.b16 %v678
        %v792 = vunpack.c.l.b16 %v679
        %v793 = vunpack.c.l.b16 %v680
        %v794 = vunpack.c.l.b16 %v681
        %v795 = vunpack.c.l.b16 %v682
        %v796 = vunpack.c.l.b16 %v683
        %v797 = vunpack.c.l.b16 %v684
        %v798 = vunpack.c.l.b16 %v685
        %v799 = vunpack.c.l.b16 %v686
        %v800 = vunpack.c.l.b16 %v687
        %v801 = vunpack.c.l.b16 %v688
        %v802 = vunpack.c.l.b16 %v689
        %v803 = vunpack.c.l.b16 %v690
        %v804 = vpack.c.b16 %v773, %v772
        %v805 = vpack.c.b16 %v775, %v774
        %v806 = vpack.c.b16 %v777, %v776
        %v807 = vpack.c.b16 %v779, %v778
        %v808 = vpack.c.b16 %v781, %v780
        %v809 = vpack.c.b16 %v783, %v782
        %v810 = vpack.c.b16 %v785, %v784
        %v811 = vpack.c.b16 %v787, %v786
        %v812 = vpack.c.b16 %v789, %v788
        %v813 = vpack.c.b16 %v791, %v790
        %v814 = vpack.c.b16 %v793, %v792
        %v815 = vpack.c.b16 %v795, %v794
        %v816 = vpack.c.b16 %v797, %v796
        %v817 = vpack.c.b16 %v799, %v798
        %v818 = vpack.c.b16 %v801, %v800
        %v819 = vpack.c.b16 %v803, %v802
        %v852 = vunpack.c.l.b16 %v724
        %v853 = vunpack.c.l.b16 %v725
        %v854 = vunpack.c.l.b16 %v726
        %v855 = vunpack.c.l.b16 %v727
        %v856 = vunpack.c.l.b16 %v728
        %v857 = vunpack.c.l.b16 %v729
        %v858 = vunpack.c.l.b16 %v730
        %v859 = vunpack.c.l.b16 %v731
        %v860 = vunpack.c.l.b16 %v732
        %v861 = vunpack.c.l.b16 %v733
        %v862 = vunpack.c.l.b16 %v734
        %v863 = vunpack.c.l.b16 %v735
        %v864 = vunpack.c.l.b16 %v736
        %v865 = vunpack.c.l.b16 %v737
        %v866 = vunpack.c.l.b16 %v738
        %v867 = vunpack.c.l.b16 %v739
        %v868 = vpack.c.b16 %v853, %v852
        %v869 = vpack.c.b16 %v855, %v854
        %v870 = vpack.c.b16 %v857, %v856
        %v871 = vpack.c.b16 %v859, %v858
        %v872 = vpack.c.b16 %v861, %v860
        %v873 = vpack.c.b16 %v863, %v862
        %v874 = vpack.c.b16 %v865, %v864
        %v875 = vpack.c.b16 %v867, %v866
        %884 = vmatprep.subr.bf16.mxu0 0
        %885 = vmatpush1.bf16.msra.mxu0 %v875
        %886 = vmatprep.subr.bf16.mxu0 0
        %887 = vmatpush1.bf16.msra.mxu0 %v874
        %888 = vmatprep.subr.bf16.mxu0 0
        %889 = vmatpush1.bf16.msra.mxu0 %v873
        %890 = vmatprep.subr.bf16.mxu0 0
        %891 = vmatpush1.bf16.msra.mxu0 %v872
        %892 = vmatprep.subr.bf16.mxu0 0
        %893 = vmatpush1.bf16.msra.mxu0 %v871
        %894 = vmatprep.subr.bf16.mxu0 0
        %895 = vmatpush1.bf16.msra.mxu0 %v870
        %896 = vmatprep.subr.bf16.mxu0 0
        %897 = vmatpush1.bf16.msra.mxu0 %v869
        %898 = vmatprep.subr.bf16.mxu0 0
        %899 = vmatpush1.bf16.msra.mxu0 %v868
        %900 = vmatprep.subr.bf16.mxu0 0
        %901 = vmatpush2.bf16.msra.mxu0 0
        %902 = vmatprep.subr.bf16.mxu0 0
        %903 = vmatpush2.bf16.msra.mxu0 0
        %904 = vmatprep.subr.bf16.mxu0 0
        %905 = vmatpush2.bf16.msra.mxu0 0
        %906 = vmatprep.subr.bf16.mxu0 0
        %907 = vmatpush2.bf16.msra.mxu0 0
        %908 = vmatprep.subr.bf16.mxu0 0
        %909 = vmatpush2.bf16.msra.mxu0 0
        %910 = vmatprep.subr.bf16.mxu0 0
        %911 = vmatpush2.bf16.msra.mxu0 0
        %912 = vmatprep.subr.bf16.mxu0 0
        %913 = vmatpush2.bf16.msra.mxu0 0
        %914 = vmatprep.subr.bf16.mxu0 0
        %915 = vmatpush2.bf16.msra.mxu0 0
        %916 = vmatprep.mubr.bf16.mxu0 0
        %917 = vmatmul.mubr.bf16.gmra.mxu0 %v804
        %v918 = vpop.f32.mrf.mxu0
        %v919 = vadd.f32 0.0, %v918
        %v920 = vpop.f32.mrf.mxu0
        %v921 = vpop.f32.mrf.mxu0
        %v922 = vadd.f32 0.0, %v921
        %v923 = vpop.f32.mrf.mxu0
        %924 = vmatprep.mubr.bf16.mxu0 0
        %925 = vmatmul.mubr.bf16.gmra.mxu0 %v805
        %v926 = vpop.f32.mrf.mxu0
        %v927 = vadd.f32 0.0, %v926
        %v928 = vpop.f32.mrf.mxu0
        %v929 = vpop.f32.mrf.mxu0
        %v930 = vadd.f32 0.0, %v929
        %v931 = vpop.f32.mrf.mxu0
        %932 = vmatprep.mubr.bf16.mxu0 0
        %933 = vmatmul.mubr.bf16.gmra.mxu0 %v806
        %v934 = vpop.f32.mrf.mxu0
        %v935 = vadd.f32 0.0, %v934
        %v936 = vpop.f32.mrf.mxu0
        %v937 = vpop.f32.mrf.mxu0
        %v938 = vadd.f32 0.0, %v937
        %v939 = vpop.f32.mrf.mxu0
        %940 = vmatprep.mubr.bf16.mxu0 0
        %941 = vmatmul.mubr.bf16.gmra.mxu0 %v807
        %v942 = vpop.f32.mrf.mxu0
        %v943 = vadd.f32 0.0, %v942
        %v944 = vpop.f32.mrf.mxu0
        %v945 = vpop.f32.mrf.mxu0
        %v946 = vadd.f32 0.0, %v945
        %v947 = vpop.f32.mrf.mxu0
        %948 = vmatprep.mubr.bf16.mxu0 0
        %949 = vmatmul.mubr.bf16.gmra.mxu0 %v808
        %v950 = vpop.f32.mrf.mxu0
        %v951 = vadd.f32 0.0, %v950
        %v952 = vpop.f32.mrf.mxu0
        %v953 = vpop.f32.mrf.mxu0
        %v954 = vadd.f32 0.0, %v953
        %v955 = vpop.f32.mrf.mxu0
        %956 = vmatprep.mubr.bf16.mxu0 0
        %957 = vmatmul.mubr.bf16.gmra.mxu0 %v809
        %v958 = vpop.f32.mrf.mxu0
        %v959 = vadd.f32 0.0, %v958
        %v960 = vpop.f32.mrf.mxu0
        %v961 = vpop.f32.mrf.mxu0
        %v962 = vadd.f32 0.0, %v961
        %v963 = vpop.f32.mrf.mxu0
        %964 = vmatprep.mubr.bf16.mxu0 0
        %965 = vmatmul.mubr.bf16.gmra.mxu0 %v810
        %v966 = vpop.f32.mrf.mxu0
        %v967 = vadd.f32 0.0, %v966
        %v968 = vpop.f32.mrf.mxu0
        %v969 = vpop.f32.mrf.mxu0
        %v970 = vadd.f32 0.0, %v969
        %v971 = vpop.f32.mrf.mxu0
        %972 = vmatprep.mubr.bf16.mxu0 0
        %973 = vmatmul.mubr.bf16.gmra.mxu0 %v811
        %v974 = vpop.f32.mrf.mxu0
        %v975 = vadd.f32 0.0, %v974
        %v976 = vpop.f32.mrf.mxu0
        %v977 = vpop.f32.mrf.mxu0
        %v978 = vadd.f32 0.0, %v977
        %v979 = vpop.f32.mrf.mxu0
        %980 = vmatprep.mubr.bf16.mxu0 0
        %981 = vmatmul.mubr.bf16.gmra.mxu0 %v812
        %v982 = vpop.f32.mrf.mxu0
        %v983 = vadd.f32 0.0, %v982
        %v984 = vpop.f32.mrf.mxu0
        %v985 = vpop.f32.mrf.mxu0
        %v986 = vadd.f32 0.0, %v985
        %v987 = vpop.f32.mrf.mxu0
        %988 = vmatprep.mubr.bf16.mxu0 0
        %989 = vmatmul.mubr.bf16.gmra.mxu0 %v813
        %v990 = vpop.f32.mrf.mxu0
        %v991 = vadd.f32 0.0, %v990
        %v992 = vpop.f32.mrf.mxu0
        %v993 = vpop.f32.mrf.mxu0
        %v994 = vadd.f32 0.0, %v993
        %v995 = vpop.f32.mrf.mxu0
        %996 = vmatprep.mubr.bf16.mxu0 0
        %997 = vmatmul.mubr.bf16.gmra.mxu0 %v814
        %v998 = vpop.f32.mrf.mxu0
        %v999 = vadd.f32 0.0, %v998
        %v1000 = vpop.f32.mrf.mxu0
        %v1001 = vpop.f32.mrf.mxu0
        %v1002 = vadd.f32 0.0, %v1001
        %v1003 = vpop.f32.mrf.mxu0
        %1004 = vmatprep.mubr.bf16.mxu0 0
        %1005 = vmatmul.mubr.bf16.gmra.mxu0 %v815
        %v1006 = vpop.f32.mrf.mxu0
        %v1007 = vadd.f32 0.0, %v1006
        %v1008 = vpop.f32.mrf.mxu0
        %v1009 = vpop.f32.mrf.mxu0
        %v1010 = vadd.f32 0.0, %v1009
        %v1011 = vpop.f32.mrf.mxu0
        %1012 = vmatprep.mubr.bf16.mxu0 0
        %1013 = vmatmul.mubr.bf16.gmra.mxu0 %v816
        %v1014 = vpop.f32.mrf.mxu0
        %v1015 = vadd.f32 0.0, %v1014
        %v1016 = vpop.f32.mrf.mxu0
        %v1017 = vpop.f32.mrf.mxu0
        %v1018 = vadd.f32 0.0, %v1017
        %v1019 = vpop.f32.mrf.mxu0
        %1020 = vmatprep.mubr.bf16.mxu0 0
        %1021 = vmatmul.mubr.bf16.gmra.mxu0 %v817
        %v1022 = vpop.f32.mrf.mxu0
        %v1023 = vadd.f32 0.0, %v1022
        %v1024 = vpop.f32.mrf.mxu0
        %v1025 = vpop.f32.mrf.mxu0
        %v1026 = vadd.f32 0.0, %v1025
        %v1027 = vpop.f32.mrf.mxu0
        %1028 = vmatprep.mubr.bf16.mxu0 0
        %1029 = vmatmul.mubr.bf16.gmra.mxu0 %v818
        %v1030 = vpop.f32.mrf.mxu0
        %v1031 = vadd.f32 0.0, %v1030
        %v1032 = vpop.f32.mrf.mxu0
        %v1033 = vpop.f32.mrf.mxu0
        %v1034 = vadd.f32 0.0, %v1033
        %v1035 = vpop.f32.mrf.mxu0
        %1036 = vmatprep.mubr.bf16.mxu0 0
        %1037 = vmatmul.mubr.bf16.gmra.mxu0 %v819
        %v1038 = vpop.f32.mrf.mxu0
        %v1039 = vadd.f32 0.0, %v1038
        %v1040 = vpop.f32.mrf.mxu0
        %v1041 = vpop.f32.mrf.mxu0
        %v1042 = vadd.f32 0.0, %v1041
        %v1043 = vpop.f32.mrf.mxu0
        %1044 = vdwg.mxu0
        %v1045 = vpack.c.bf16 %v922, %v919
        %v1046 = vpack.c.bf16 %v930, %v927
        %v1047 = vpack.c.bf16 %v938, %v935
        %v1048 = vpack.c.bf16 %v946, %v943
        %v1049 = vpack.c.bf16 %v954, %v951
        %v1050 = vpack.c.bf16 %v962, %v959
        %v1051 = vpack.c.bf16 %v970, %v967
        %v1052 = vpack.c.bf16 %v978, %v975
        %v1053 = vpack.c.bf16 %v986, %v983
        %v1054 = vpack.c.bf16 %v994, %v991
        %v1055 = vpack.c.bf16 %v1002, %v999
        %v1056 = vpack.c.bf16 %v1010, %v1007
        %v1057 = vpack.c.bf16 %v1018, %v1015
        %v1058 = vpack.c.bf16 %v1026, %v1023
        %v1059 = vpack.c.bf16 %v1034, %v1031
        %v1060 = vpack.c.bf16 %v1042, %v1039
        %v1061 = vld [vmem:[%s2] sm:$0xf]
        %v1062 = vld [vmem:[%s2 + $0x4] sm:$0xf]
        %v1063 = vld [vmem:[%s2 + $0x8] sm:$0xf]
        %v1064 = vld [vmem:[%s2 + $0xc] sm:$0xf]
        %v1065 = vld [vmem:[%s2 + $0x10] sm:$0xf]
        %v1066 = vld [vmem:[%s2 + $0x14] sm:$0xf]
        %v1067 = vld [vmem:[%s2 + $0x18] sm:$0xf]
        %v1068 = vld [vmem:[%s2 + $0x1c] sm:$0xf]
        %v1069 = vld [vmem:[%s2 + $0x20] sm:$0xf]
        %v1070 = vld [vmem:[%s2 + $0x24] sm:$0xf]
        %v1071 = vld [vmem:[%s2 + $0x28] sm:$0xf]
        %v1072 = vld [vmem:[%s2 + $0x2c] sm:$0xf]
        %v1073 = vld [vmem:[%s2 + $0x30] sm:$0xf]
        %v1074 = vld [vmem:[%s2 + $0x34] sm:$0xf]
        %v1075 = vld [vmem:[%s2 + $0x38] sm:$0xf]
        %v1076 = vld [vmem:[%s2 + $0x3c] sm:$0xf]
        %v1077 = vld [vmem:[%s3] sm:$0x1]
        %v1079 = vlaneseq
        %v1080 = vshrl.u32 %v1079, 7
        %v1081 = vsub.s32 0, %v1080
        %v1082 = vrot.slane %v1077, %v1081
        %v1100 = vunpack.c.l.b16 %v1061
        %v1101 = vunpack.c.l.b16 %v1062
        %v1102 = vunpack.c.l.b16 %v1063
        %v1103 = vunpack.c.l.b16 %v1064
        %v1104 = vunpack.c.l.b16 %v1065
        %v1105 = vunpack.c.l.b16 %v1066
        %v1106 = vunpack.c.l.b16 %v1067
        %v1107 = vunpack.c.l.b16 %v1068
        %v1108 = vunpack.c.l.b16 %v1069
        %v1109 = vunpack.c.l.b16 %v1070
        %v1110 = vunpack.c.l.b16 %v1071
        %v1111 = vunpack.c.l.b16 %v1072
        %v1112 = vunpack.c.l.b16 %v1073
        %v1113 = vunpack.c.l.b16 %v1074
        %v1114 = vunpack.c.l.b16 %v1075
        %v1115 = vunpack.c.l.b16 %v1076
        %v1116 = vpack.c.b16 %v1101, %v1100
        %v1117 = vpack.c.b16 %v1103, %v1102
        %v1118 = vpack.c.b16 %v1105, %v1104
        %v1119 = vpack.c.b16 %v1107, %v1106
        %v1120 = vpack.c.b16 %v1109, %v1108
        %v1121 = vpack.c.b16 %v1111, %v1110
        %v1122 = vpack.c.b16 %v1113, %v1112
        %v1123 = vpack.c.b16 %v1115, %v1114
        %1132 = vmatprep.subr.bf16.mxu0 0
        %1133 = vmatpush1.bf16.msra.mxu0 %v1123
        %1134 = vmatprep.subr.bf16.mxu0 0
        %1135 = vmatpush1.bf16.msra.mxu0 %v1122
        %1136 = vmatprep.subr.bf16.mxu0 0
        %1137 = vmatpush1.bf16.msra.mxu0 %v1121
        %1138 = vmatprep.subr.bf16.mxu0 0
        %1139 = vmatpush1.bf16.msra.mxu0 %v1120
        %1140 = vmatprep.subr.bf16.mxu0 0
        %1141 = vmatpush1.bf16.msra.mxu0 %v1119
        %1142 = vmatprep.subr.bf16.mxu0 0
        %1143 = vmatpush1.bf16.msra.mxu0 %v1118
        %1144 = vmatprep.subr.bf16.mxu0 0
        %1145 = vmatpush1.bf16.msra.mxu0 %v1117
        %1146 = vmatprep.subr.bf16.mxu0 0
        %1147 = vmatpush1.bf16.msra.mxu0 %v1116
        %1148 = vmatprep.subr.bf16.mxu0 0
        %1149 = vmatpush2.bf16.msra.mxu0 0
        %1150 = vmatprep.subr.bf16.mxu0 0
        %1151 = vmatpush2.bf16.msra.mxu0 0
        %1152 = vmatprep.subr.bf16.mxu0 0
        %1153 = vmatpush2.bf16.msra.mxu0 0
        %1154 = vmatprep.subr.bf16.mxu0 0
        %1155 = vmatpush2.bf16.msra.mxu0 0
        %1156 = vmatprep.subr.bf16.mxu0 0
        %1157 = vmatpush2.bf16.msra.mxu0 0
        %1158 = vmatprep.subr.bf16.mxu0 0
        %1159 = vmatpush2.bf16.msra.mxu0 0
        %1160 = vmatprep.subr.bf16.mxu0 0
        %1161 = vmatpush2.bf16.msra.mxu0 0
        %1162 = vmatprep.subr.bf16.mxu0 0
        %1163 = vmatpush2.bf16.msra.mxu0 0
        %1164 = vmatprep.mubr.bf16.mxu0 0
        %1165 = vmatmul.mubr.bf16.gmra.mxu0 %v1045
        %v1166 = vpop.f32.mrf.mxu0
        %v1167 = vadd.f32 %v1082, %v1166
        %v1168 = vpop.f32.mrf.mxu0
        %v1169 = vpop.f32.mrf.mxu0
        %v1170 = vadd.f32 %v1082, %v1169
        %v1171 = vpop.f32.mrf.mxu0
        %1172 = vmatprep.mubr.bf16.mxu0 0
        %1173 = vmatmul.mubr.bf16.gmra.mxu0 %v1046
        %v1174 = vpop.f32.mrf.mxu0
        %v1175 = vadd.f32 %v1082, %v1174
        %v1176 = vpop.f32.mrf.mxu0
        %v1177 = vpop.f32.mrf.mxu0
        %v1178 = vadd.f32 %v1082, %v1177
        %v1179 = vpop.f32.mrf.mxu0
        %1180 = vmatprep.mubr.bf16.mxu0 0
        %1181 = vmatmul.mubr.bf16.gmra.mxu0 %v1047
        %v1182 = vpop.f32.mrf.mxu0
        %v1183 = vadd.f32 %v1082, %v1182
        %v1184 = vpop.f32.mrf.mxu0
        %v1185 = vpop.f32.mrf.mxu0
        %v1186 = vadd.f32 %v1082, %v1185
        %v1187 = vpop.f32.mrf.mxu0
        %1188 = vmatprep.mubr.bf16.mxu0 0
        %1189 = vmatmul.mubr.bf16.gmra.mxu0 %v1048
        %v1190 = vpop.f32.mrf.mxu0
        %v1191 = vadd.f32 %v1082, %v1190
        %v1192 = vpop.f32.mrf.mxu0
        %v1193 = vpop.f32.mrf.mxu0
        %v1194 = vadd.f32 %v1082, %v1193
        %v1195 = vpop.f32.mrf.mxu0
        %1196 = vmatprep.mubr.bf16.mxu0 0
        %1197 = vmatmul.mubr.bf16.gmra.mxu0 %v1049
        %v1198 = vpop.f32.mrf.mxu0
        %v1199 = vadd.f32 %v1082, %v1198
        %v1200 = vpop.f32.mrf.mxu0
        %v1201 = vpop.f32.mrf.mxu0
        %v1202 = vadd.f32 %v1082, %v1201
        %v1203 = vpop.f32.mrf.mxu0
        %1204 = vmatprep.mubr.bf16.mxu0 0
        %1205 = vmatmul.mubr.bf16.gmra.mxu0 %v1050
        %v1206 = vpop.f32.mrf.mxu0
        %v1207 = vadd.f32 %v1082, %v1206
        %v1208 = vpop.f32.mrf.mxu0
        %v1209 = vpop.f32.mrf.mxu0
        %v1210 = vadd.f32 %v1082, %v1209
        %v1211 = vpop.f32.mrf.mxu0
        %1212 = vmatprep.mubr.bf16.mxu0 0
        %1213 = vmatmul.mubr.bf16.gmra.mxu0 %v1051
        %v1214 = vpop.f32.mrf.mxu0
        %v1215 = vadd.f32 %v1082, %v1214
        %v1216 = vpop.f32.mrf.mxu0
        %v1217 = vpop.f32.mrf.mxu0
        %v1218 = vadd.f32 %v1082, %v1217
        %v1219 = vpop.f32.mrf.mxu0
        %1220 = vmatprep.mubr.bf16.mxu0 0
        %1221 = vmatmul.mubr.bf16.gmra.mxu0 %v1052
        %v1222 = vpop.f32.mrf.mxu0
        %v1223 = vadd.f32 %v1082, %v1222
        %v1224 = vpop.f32.mrf.mxu0
        %v1225 = vpop.f32.mrf.mxu0
        %v1226 = vadd.f32 %v1082, %v1225
        %v1227 = vpop.f32.mrf.mxu0
        %1228 = vmatprep.mubr.bf16.mxu0 0
        %1229 = vmatmul.mubr.bf16.gmra.mxu0 %v1053
        %v1230 = vpop.f32.mrf.mxu0
        %v1231 = vadd.f32 %v1082, %v1230
        %v1232 = vpop.f32.mrf.mxu0
        %v1233 = vpop.f32.mrf.mxu0
        %v1234 = vadd.f32 %v1082, %v1233
        %v1235 = vpop.f32.mrf.mxu0
        %1236 = vmatprep.mubr.bf16.mxu0 0
        %1237 = vmatmul.mubr.bf16.gmra.mxu0 %v1054
        %v1238 = vpop.f32.mrf.mxu0
        %v1239 = vadd.f32 %v1082, %v1238
        %v1240 = vpop.f32.mrf.mxu0
        %v1241 = vpop.f32.mrf.mxu0
        %v1242 = vadd.f32 %v1082, %v1241
        %v1243 = vpop.f32.mrf.mxu0
        %1244 = vmatprep.mubr.bf16.mxu0 0
        %1245 = vmatmul.mubr.bf16.gmra.mxu0 %v1055
        %v1246 = vpop.f32.mrf.mxu0
        %v1247 = vadd.f32 %v1082, %v1246
        %v1248 = vpop.f32.mrf.mxu0
        %v1249 = vpop.f32.mrf.mxu0
        %v1250 = vadd.f32 %v1082, %v1249
        %v1251 = vpop.f32.mrf.mxu0
        %1252 = vmatprep.mubr.bf16.mxu0 0
        %1253 = vmatmul.mubr.bf16.gmra.mxu0 %v1056
        %v1254 = vpop.f32.mrf.mxu0
        %v1255 = vadd.f32 %v1082, %v1254
        %v1256 = vpop.f32.mrf.mxu0
        %v1257 = vpop.f32.mrf.mxu0
        %v1258 = vadd.f32 %v1082, %v1257
        %v1259 = vpop.f32.mrf.mxu0
        %1260 = vmatprep.mubr.bf16.mxu0 0
        %1261 = vmatmul.mubr.bf16.gmra.mxu0 %v1057
        %v1262 = vpop.f32.mrf.mxu0
        %v1263 = vadd.f32 %v1082, %v1262
        %v1264 = vpop.f32.mrf.mxu0
        %v1265 = vpop.f32.mrf.mxu0
        %v1266 = vadd.f32 %v1082, %v1265
        %v1267 = vpop.f32.mrf.mxu0
        %1268 = vmatprep.mubr.bf16.mxu0 0
        %1269 = vmatmul.mubr.bf16.gmra.mxu0 %v1058
        %v1270 = vpop.f32.mrf.mxu0
        %v1271 = vadd.f32 %v1082, %v1270
        %v1272 = vpop.f32.mrf.mxu0
        %v1273 = vpop.f32.mrf.mxu0
        %v1274 = vadd.f32 %v1082, %v1273
        %v1275 = vpop.f32.mrf.mxu0
        %1276 = vmatprep.mubr.bf16.mxu0 0
        %1277 = vmatmul.mubr.bf16.gmra.mxu0 %v1059
        %v1278 = vpop.f32.mrf.mxu0
        %v1279 = vadd.f32 %v1082, %v1278
        %v1280 = vpop.f32.mrf.mxu0
        %v1281 = vpop.f32.mrf.mxu0
        %v1282 = vadd.f32 %v1082, %v1281
        %v1283 = vpop.f32.mrf.mxu0
        %1284 = vmatprep.mubr.bf16.mxu0 0
        %1285 = vmatmul.mubr.bf16.gmra.mxu0 %v1060
        %v1286 = vpop.f32.mrf.mxu0
        %v1287 = vadd.f32 %v1082, %v1286
        %v1288 = vpop.f32.mrf.mxu0
        %v1289 = vpop.f32.mrf.mxu0
        %v1290 = vadd.f32 %v1082, %v1289
        %v1291 = vpop.f32.mrf.mxu0
        %1292 = vdwg.mxu0
        %vm1293 = vcmp.gt.f32.partialorder %v1167, 0.0
        %vm1294 = vcmp.gt.f32.partialorder %v1170, 0.0
        %vm1295 = vcmp.gt.f32.partialorder %v1175, 0.0
        %vm1296 = vcmp.gt.f32.partialorder %v1178, 0.0
        %vm1297 = vcmp.gt.f32.partialorder %v1183, 0.0
        %vm1298 = vcmp.gt.f32.partialorder %v1186, 0.0
        %vm1299 = vcmp.gt.f32.partialorder %v1191, 0.0
        %vm1300 = vcmp.gt.f32.partialorder %v1194, 0.0
        %vm1301 = vcmp.gt.f32.partialorder %v1199, 0.0
        %vm1302 = vcmp.gt.f32.partialorder %v1202, 0.0
        %vm1303 = vcmp.gt.f32.partialorder %v1207, 0.0
        %vm1304 = vcmp.gt.f32.partialorder %v1210, 0.0
        %vm1305 = vcmp.gt.f32.partialorder %v1215, 0.0
        %vm1306 = vcmp.gt.f32.partialorder %v1218, 0.0
        %vm1307 = vcmp.gt.f32.partialorder %v1223, 0.0
        %vm1308 = vcmp.gt.f32.partialorder %v1226, 0.0
        %vm1309 = vcmp.gt.f32.partialorder %v1231, 0.0
        %vm1310 = vcmp.gt.f32.partialorder %v1234, 0.0
        %vm1311 = vcmp.gt.f32.partialorder %v1239, 0.0
        %vm1312 = vcmp.gt.f32.partialorder %v1242, 0.0
        %vm1313 = vcmp.gt.f32.partialorder %v1247, 0.0
        %vm1314 = vcmp.gt.f32.partialorder %v1250, 0.0
        %vm1315 = vcmp.gt.f32.partialorder %v1255, 0.0
        %vm1316 = vcmp.gt.f32.partialorder %v1258, 0.0
        %vm1317 = vcmp.gt.f32.partialorder %v1263, 0.0
        %vm1318 = vcmp.gt.f32.partialorder %v1266, 0.0
        %vm1319 = vcmp.gt.f32.partialorder %v1271, 0.0
        %vm1320 = vcmp.gt.f32.partialorder %v1274, 0.0
        %vm1321 = vcmp.gt.f32.partialorder %v1279, 0.0
        %vm1322 = vcmp.gt.f32.partialorder %v1282, 0.0
        %vm1323 = vcmp.gt.f32.partialorder %v1287, 0.0
        %vm1324 = vcmp.gt.f32.partialorder %v1290, 0.0
        %v1325 = vmin.f32 %v1167, 0.0
        %v1326 = vmin.f32 %v1170, 0.0
        %v1327 = vmin.f32 %v1175, 0.0
        %v1328 = vmin.f32 %v1178, 0.0
        %v1329 = vmin.f32 %v1183, 0.0
        %v1330 = vmin.f32 %v1186, 0.0
        %v1331 = vmin.f32 %v1191, 0.0
        %v1332 = vmin.f32 %v1194, 0.0
        %v1333 = vmin.f32 %v1199, 0.0
        %v1334 = vmin.f32 %v1202, 0.0
        %v1335 = vmin.f32 %v1207, 0.0
        %v1336 = vmin.f32 %v1210, 0.0
        %v1337 = vmin.f32 %v1215, 0.0
        %v1338 = vmin.f32 %v1218, 0.0
        %v1339 = vmin.f32 %v1223, 0.0
        %v1340 = vmin.f32 %v1226, 0.0
        %v1341 = vmin.f32 %v1231, 0.0
        %v1342 = vmin.f32 %v1234, 0.0
        %v1343 = vmin.f32 %v1239, 0.0
        %v1344 = vmin.f32 %v1242, 0.0
        %v1345 = vmin.f32 %v1247, 0.0
        %v1346 = vmin.f32 %v1250, 0.0
        %v1347 = vmin.f32 %v1255, 0.0
        %v1348 = vmin.f32 %v1258, 0.0
        %v1349 = vmin.f32 %v1263, 0.0
        %v1350 = vmin.f32 %v1266, 0.0
        %v1351 = vmin.f32 %v1271, 0.0
        %v1352 = vmin.f32 %v1274, 0.0
        %v1353 = vmin.f32 %v1279, 0.0
        %v1354 = vmin.f32 %v1282, 0.0
        %v1355 = vmin.f32 %v1287, 0.0
        %v1356 = vmin.f32 %v1290, 0.0
        %v1357 = vmul.f32 %v1325, 1.442695
        %v1358 = vpow.pop %v1357
        %v1359 = vmul.f32 %v1326, 1.442695
        %v1360 = vpow.pop %v1359
        %v1361 = vmul.f32 %v1327, 1.442695
        %v1362 = vpow.pop %v1361
        %v1363 = vmul.f32 %v1328, 1.442695
        %v1364 = vpow.pop %v1363
        %v1365 = vmul.f32 %v1329, 1.442695
        %v1366 = vpow.pop %v1365
        %v1367 = vmul.f32 %v1330, 1.442695
        %v1368 = vpow.pop %v1367
        %v1369 = vmul.f32 %v1331, 1.442695
        %v1370 = vpow.pop %v1369
        %v1371 = vmul.f32 %v1332, 1.442695
        %v1372 = vpow.pop %v1371
        %v1373 = vmul.f32 %v1333, 1.442695
        %v1374 = vpow.pop %v1373
        %v1375 = vmul.f32 %v1334, 1.442695
        %v1376 = vpow.pop %v1375
        %v1377 = vmul.f32 %v1335, 1.442695
        %v1378 = vpow.pop %v1377
        %v1379 = vmul.f32 %v1336, 1.442695
        %v1380 = vpow.pop %v1379
        %v1381 = vmul.f32 %v1337, 1.442695
        %v1382 = vpow.pop %v1381
        %v1383 = vmul.f32 %v1338, 1.442695
        %v1384 = vpow.pop %v1383
        %v1385 = vmul.f32 %v1339, 1.442695
        %v1386 = vpow.pop %v1385
        %v1387 = vmul.f32 %v1340, 1.442695
        %v1388 = vpow.pop %v1387
        %v1389 = vmul.f32 %v1341, 1.442695
        %v1390 = vpow.pop %v1389
        %v1391 = vmul.f32 %v1342, 1.442695
        %v1392 = vpow.pop %v1391
        %v1393 = vmul.f32 %v1343, 1.442695
        %v1394 = vpow.pop %v1393
        %v1395 = vmul.f32 %v1344, 1.442695
        %v1396 = vpow.pop %v1395
        %v1397 = vmul.f32 %v1345, 1.442695
        %v1398 = vpow.pop %v1397
        %v1399 = vmul.f32 %v1346, 1.442695
        %v1400 = vpow.pop %v1399
        %v1401 = vmul.f32 %v1347, 1.442695
        %v1402 = vpow.pop %v1401
        %v1403 = vmul.f32 %v1348, 1.442695
        %v1404 = vpow.pop %v1403
        %v1405 = vmul.f32 %v1349, 1.442695
        %v1406 = vpow.pop %v1405
        %v1407 = vmul.f32 %v1350, 1.442695
        %v1408 = vpow.pop %v1407
        %v1409 = vmul.f32 %v1351, 1.442695
        %v1410 = vpow.pop %v1409
        %v1411 = vmul.f32 %v1352, 1.442695
        %v1412 = vpow.pop %v1411
        %v1413 = vmul.f32 %v1353, 1.442695
        %v1414 = vpow.pop %v1413
        %v1415 = vmul.f32 %v1354, 1.442695
        %v1416 = vpow.pop %v1415
        %v1417 = vmul.f32 %v1355, 1.442695
        %v1418 = vpow.pop %v1417
        %v1419 = vmul.f32 %v1356, 1.442695
        %v1420 = vpow.pop %v1419
        %v1421 = vsub.f32 %v1358, 1.0
        %v1422 = vsub.f32 %v1360, 1.0
        %v1423 = vsub.f32 %v1362, 1.0
        %v1424 = vsub.f32 %v1364, 1.0
        %v1425 = vsub.f32 %v1366, 1.0
        %v1426 = vsub.f32 %v1368, 1.0
        %v1427 = vsub.f32 %v1370, 1.0
        %v1428 = vsub.f32 %v1372, 1.0
        %v1429 = vsub.f32 %v1374, 1.0
        %v1430 = vsub.f32 %v1376, 1.0
        %v1431 = vsub.f32 %v1378, 1.0
        %v1432 = vsub.f32 %v1380, 1.0
        %v1433 = vsub.f32 %v1382, 1.0
        %v1434 = vsub.f32 %v1384, 1.0
        %v1435 = vsub.f32 %v1386, 1.0
        %v1436 = vsub.f32 %v1388, 1.0
        %v1437 = vsub.f32 %v1390, 1.0
        %v1438 = vsub.f32 %v1392, 1.0
        %v1439 = vsub.f32 %v1394, 1.0
        %v1440 = vsub.f32 %v1396, 1.0
        %v1441 = vsub.f32 %v1398, 1.0
        %v1442 = vsub.f32 %v1400, 1.0
        %v1443 = vsub.f32 %v1402, 1.0
        %v1444 = vsub.f32 %v1404, 1.0
        %v1445 = vsub.f32 %v1406, 1.0
        %v1446 = vsub.f32 %v1408, 1.0
        %v1447 = vsub.f32 %v1410, 1.0
        %v1448 = vsub.f32 %v1412, 1.0
        %v1449 = vsub.f32 %v1414, 1.0
        %v1450 = vsub.f32 %v1416, 1.0
        %v1451 = vsub.f32 %v1418, 1.0
        %v1452 = vsub.f32 %v1420, 1.0
        %v1453 = vsel %vm1293, %v1167, %v1421
        %v1454 = vsel %vm1294, %v1170, %v1422
        %v1455 = vsel %vm1295, %v1175, %v1423
        %v1456 = vsel %vm1296, %v1178, %v1424
        %v1457 = vsel %vm1297, %v1183, %v1425
        %v1458 = vsel %vm1298, %v1186, %v1426
        %v1459 = vsel %vm1299, %v1191, %v1427
        %v1460 = vsel %vm1300, %v1194, %v1428
        %v1461 = vsel %vm1301, %v1199, %v1429
        %v1462 = vsel %vm1302, %v1202, %v1430
        %v1463 = vsel %vm1303, %v1207, %v1431
        %v1464 = vsel %vm1304, %v1210, %v1432
        %v1465 = vsel %vm1305, %v1215, %v1433
        %v1466 = vsel %vm1306, %v1218, %v1434
        %v1467 = vsel %vm1307, %v1223, %v1435
        %v1468 = vsel %vm1308, %v1226, %v1436
        %v1469 = vsel %vm1309, %v1231, %v1437
        %v1470 = vsel %vm1310, %v1234, %v1438
        %v1471 = vsel %vm1311, %v1239, %v1439
        %v1472 = vsel %vm1312, %v1242, %v1440
        %v1473 = vsel %vm1313, %v1247, %v1441
        %v1474 = vsel %vm1314, %v1250, %v1442
        %v1475 = vsel %vm1315, %v1255, %v1443
        %v1476 = vsel %vm1316, %v1258, %v1444
        %v1477 = vsel %vm1317, %v1263, %v1445
        %v1478 = vsel %vm1318, %v1266, %v1446
        %v1479 = vsel %vm1319, %v1271, %v1447
        %v1480 = vsel %vm1320, %v1274, %v1448
        %v1481 = vsel %vm1321, %v1279, %v1449
        %v1482 = vsel %vm1322, %v1282, %v1450
        %v1483 = vsel %vm1323, %v1287, %v1451
        %v1484 = vsel %vm1324, %v1290, %v1452
        %v1485 = vpack.c.bf16 %v1454, %v1453
        %v1486 = vpack.c.bf16 %v1456, %v1455
        %v1487 = vpack.c.bf16 %v1458, %v1457
        %v1488 = vpack.c.bf16 %v1460, %v1459
        %v1489 = vpack.c.bf16 %v1462, %v1461
        %v1490 = vpack.c.bf16 %v1464, %v1463
        %v1491 = vpack.c.bf16 %v1466, %v1465
        %v1492 = vpack.c.bf16 %v1468, %v1467
        %v1493 = vpack.c.bf16 %v1470, %v1469
        %v1494 = vpack.c.bf16 %v1472, %v1471
        %v1495 = vpack.c.bf16 %v1474, %v1473
        %v1496 = vpack.c.bf16 %v1476, %v1475
        %v1497 = vpack.c.bf16 %v1478, %v1477
        %v1498 = vpack.c.bf16 %v1480, %v1479
        %v1499 = vpack.c.bf16 %v1482, %v1481
        %v1500 = vpack.c.bf16 %v1484, %v1483
        %v1501 = vld [vmem:[%s4] sm:$0xf]
        %v1502 = vld [vmem:[%s4 + $0x4] sm:$0xf]
        %v1503 = vld [vmem:[%s4 + $0x8] sm:$0xf]
        %v1504 = vld [vmem:[%s4 + $0xc] sm:$0xf]
        %v1505 = vld [vmem:[%s4 + $0x10] sm:$0xf]
        %v1506 = vld [vmem:[%s4 + $0x14] sm:$0xf]
        %v1507 = vld [vmem:[%s4 + $0x18] sm:$0xf]
        %v1508 = vld [vmem:[%s4 + $0x1c] sm:$0xf]
        %v1509 = vld [vmem:[%s4 + $0x20] sm:$0xf]
        %v1510 = vld [vmem:[%s4 + $0x24] sm:$0xf]
        %v1511 = vld [vmem:[%s4 + $0x28] sm:$0xf]
        %v1512 = vld [vmem:[%s4 + $0x2c] sm:$0xf]
        %v1513 = vld [vmem:[%s4 + $0x30] sm:$0xf]
        %v1514 = vld [vmem:[%s4 + $0x34] sm:$0xf]
        %v1515 = vld [vmem:[%s4 + $0x38] sm:$0xf]
        %v1516 = vld [vmem:[%s4 + $0x3c] sm:$0xf]
        %v1533 = vunpack.c.l.b16 %v1501
        %v1534 = vunpack.c.l.b16 %v1502
        %v1535 = vunpack.c.l.b16 %v1503
        %v1536 = vunpack.c.l.b16 %v1504
        %v1537 = vunpack.c.l.b16 %v1505
        %v1538 = vunpack.c.l.b16 %v1506
        %v1539 = vunpack.c.l.b16 %v1507
        %v1540 = vunpack.c.l.b16 %v1508
        %v1541 = vunpack.c.l.b16 %v1509
        %v1542 = vunpack.c.l.b16 %v1510
        %v1543 = vunpack.c.l.b16 %v1511
        %v1544 = vunpack.c.l.b16 %v1512
        %v1545 = vunpack.c.l.b16 %v1513
        %v1546 = vunpack.c.l.b16 %v1514
        %v1547 = vunpack.c.l.b16 %v1515
        %v1548 = vunpack.c.l.b16 %v1516
        %v1549 = vpack.c.b16 %v1534, %v1533
        %v1550 = vpack.c.b16 %v1536, %v1535
        %v1551 = vpack.c.b16 %v1538, %v1537
        %v1552 = vpack.c.b16 %v1540, %v1539
        %v1553 = vpack.c.b16 %v1542, %v1541
        %v1554 = vpack.c.b16 %v1544, %v1543
        %v1555 = vpack.c.b16 %v1546, %v1545
        %v1556 = vpack.c.b16 %v1548, %v1547
        %1565 = vmatprep.subr.bf16.mxu0 0
        %1566 = vmatpush1.bf16.msra.mxu0 %v1556
        %1567 = vmatprep.subr.bf16.mxu0 0
        %1568 = vmatpush1.bf16.msra.mxu0 %v1555
        %1569 = vmatprep.subr.bf16.mxu0 0
        %1570 = vmatpush1.bf16.msra.mxu0 %v1554
        %1571 = vmatprep.subr.bf16.mxu0 0
        %1572 = vmatpush1.bf16.msra.mxu0 %v1553
        %1573 = vmatprep.subr.bf16.mxu0 0
        %1574 = vmatpush1.bf16.msra.mxu0 %v1552
        %1575 = vmatprep.subr.bf16.mxu0 0
        %1576 = vmatpush1.bf16.msra.mxu0 %v1551
        %1577 = vmatprep.subr.bf16.mxu0 0
        %1578 = vmatpush1.bf16.msra.mxu0 %v1550
        %1579 = vmatprep.subr.bf16.mxu0 0
        %1580 = vmatpush1.bf16.msra.mxu0 %v1549
        %1581 = vmatprep.subr.bf16.mxu0 0
        %1582 = vmatpush2.bf16.msra.mxu0 0
        %1583 = vmatprep.subr.bf16.mxu0 0
        %1584 = vmatpush2.bf16.msra.mxu0 0
        %1585 = vmatprep.subr.bf16.mxu0 0
        %1586 = vmatpush2.bf16.msra.mxu0 0
        %1587 = vmatprep.subr.bf16.mxu0 0
        %1588 = vmatpush2.bf16.msra.mxu0 0
        %1589 = vmatprep.subr.bf16.mxu0 0
        %1590 = vmatpush2.bf16.msra.mxu0 0
        %1591 = vmatprep.subr.bf16.mxu0 0
        %1592 = vmatpush2.bf16.msra.mxu0 0
        %1593 = vmatprep.subr.bf16.mxu0 0
        %1594 = vmatpush2.bf16.msra.mxu0 0
        %1595 = vmatprep.subr.bf16.mxu0 0
        %1596 = vmatpush2.bf16.msra.mxu0 0
        %1597 = vmatprep.mubr.bf16.mxu0 0
        %1598 = vmatmul.mubr.bf16.gmra.mxu0 %v1485
        %v1599 = vpop.f32.mrf.mxu0
        %v1600 = vadd.f32 0.0, %v1599
        %v1601 = vpop.f32.mrf.mxu0
        %v1602 = vpop.f32.mrf.mxu0
        %v1603 = vadd.f32 0.0, %v1602
        %v1604 = vpop.f32.mrf.mxu0
        %1605 = vmatprep.mubr.bf16.mxu0 0
        %1606 = vmatmul.mubr.bf16.gmra.mxu0 %v1486
        %v1607 = vpop.f32.mrf.mxu0
        %v1608 = vadd.f32 0.0, %v1607
        %v1609 = vpop.f32.mrf.mxu0
        %v1610 = vpop.f32.mrf.mxu0
        %v1611 = vadd.f32 0.0, %v1610
        %v1612 = vpop.f32.mrf.mxu0
        %1613 = vmatprep.mubr.bf16.mxu0 0
        %1614 = vmatmul.mubr.bf16.gmra.mxu0 %v1487
        %v1615 = vpop.f32.mrf.mxu0
        %v1616 = vadd.f32 0.0, %v1615
        %v1617 = vpop.f32.mrf.mxu0
        %v1618 = vpop.f32.mrf.mxu0
        %v1619 = vadd.f32 0.0, %v1618
        %v1620 = vpop.f32.mrf.mxu0
        %1621 = vmatprep.mubr.bf16.mxu0 0
        %1622 = vmatmul.mubr.bf16.gmra.mxu0 %v1488
        %v1623 = vpop.f32.mrf.mxu0
        %v1624 = vadd.f32 0.0, %v1623
        %v1625 = vpop.f32.mrf.mxu0
        %v1626 = vpop.f32.mrf.mxu0
        %v1627 = vadd.f32 0.0, %v1626
        %v1628 = vpop.f32.mrf.mxu0
        %1629 = vmatprep.mubr.bf16.mxu0 0
        %1630 = vmatmul.mubr.bf16.gmra.mxu0 %v1489
        %v1631 = vpop.f32.mrf.mxu0
        %v1632 = vadd.f32 0.0, %v1631
        %v1633 = vpop.f32.mrf.mxu0
        %v1634 = vpop.f32.mrf.mxu0
        %v1635 = vadd.f32 0.0, %v1634
        %v1636 = vpop.f32.mrf.mxu0
        %1637 = vmatprep.mubr.bf16.mxu0 0
        %1638 = vmatmul.mubr.bf16.gmra.mxu0 %v1490
        %v1639 = vpop.f32.mrf.mxu0
        %v1640 = vadd.f32 0.0, %v1639
        %v1641 = vpop.f32.mrf.mxu0
        %v1642 = vpop.f32.mrf.mxu0
        %v1643 = vadd.f32 0.0, %v1642
        %v1644 = vpop.f32.mrf.mxu0
        %1645 = vmatprep.mubr.bf16.mxu0 0
        %1646 = vmatmul.mubr.bf16.gmra.mxu0 %v1491
        %v1647 = vpop.f32.mrf.mxu0
        %v1648 = vadd.f32 0.0, %v1647
        %v1649 = vpop.f32.mrf.mxu0
        %v1650 = vpop.f32.mrf.mxu0
        %v1651 = vadd.f32 0.0, %v1650
        %v1652 = vpop.f32.mrf.mxu0
        %1653 = vmatprep.mubr.bf16.mxu0 0
        %1654 = vmatmul.mubr.bf16.gmra.mxu0 %v1492
        %v1655 = vpop.f32.mrf.mxu0
        %v1656 = vadd.f32 0.0, %v1655
        %v1657 = vpop.f32.mrf.mxu0
        %v1658 = vpop.f32.mrf.mxu0
        %v1659 = vadd.f32 0.0, %v1658
        %v1660 = vpop.f32.mrf.mxu0
        %1661 = vmatprep.mubr.bf16.mxu0 0
        %1662 = vmatmul.mubr.bf16.gmra.mxu0 %v1493
        %v1663 = vpop.f32.mrf.mxu0
        %v1664 = vadd.f32 0.0, %v1663
        %v1665 = vpop.f32.mrf.mxu0
        %v1666 = vpop.f32.mrf.mxu0
        %v1667 = vadd.f32 0.0, %v1666
        %v1668 = vpop.f32.mrf.mxu0
        %1669 = vmatprep.mubr.bf16.mxu0 0
        %1670 = vmatmul.mubr.bf16.gmra.mxu0 %v1494
        %v1671 = vpop.f32.mrf.mxu0
        %v1672 = vadd.f32 0.0, %v1671
        %v1673 = vpop.f32.mrf.mxu0
        %v1674 = vpop.f32.mrf.mxu0
        %v1675 = vadd.f32 0.0, %v1674
        %v1676 = vpop.f32.mrf.mxu0
        %1677 = vmatprep.mubr.bf16.mxu0 0
        %1678 = vmatmul.mubr.bf16.gmra.mxu0 %v1495
        %v1679 = vpop.f32.mrf.mxu0
        %v1680 = vadd.f32 0.0, %v1679
        %v1681 = vpop.f32.mrf.mxu0
        %v1682 = vpop.f32.mrf.mxu0
        %v1683 = vadd.f32 0.0, %v1682
        %v1684 = vpop.f32.mrf.mxu0
        %1685 = vmatprep.mubr.bf16.mxu0 0
        %1686 = vmatmul.mubr.bf16.gmra.mxu0 %v1496
        %v1687 = vpop.f32.mrf.mxu0
        %v1688 = vadd.f32 0.0, %v1687
        %v1689 = vpop.f32.mrf.mxu0
        %v1690 = vpop.f32.mrf.mxu0
        %v1691 = vadd.f32 0.0, %v1690
        %v1692 = vpop.f32.mrf.mxu0
        %1693 = vmatprep.mubr.bf16.mxu0 0
        %1694 = vmatmul.mubr.bf16.gmra.mxu0 %v1497
        %v1695 = vpop.f32.mrf.mxu0
        %v1696 = vadd.f32 0.0, %v1695
        %v1697 = vpop.f32.mrf.mxu0
        %v1698 = vpop.f32.mrf.mxu0
        %v1699 = vadd.f32 0.0, %v1698
        %v1700 = vpop.f32.mrf.mxu0
        %1701 = vmatprep.mubr.bf16.mxu0 0
        %1702 = vmatmul.mubr.bf16.gmra.mxu0 %v1498
        %v1703 = vpop.f32.mrf.mxu0
        %v1704 = vadd.f32 0.0, %v1703
        %v1705 = vpop.f32.mrf.mxu0
        %v1706 = vpop.f32.mrf.mxu0
        %v1707 = vadd.f32 0.0, %v1706
        %v1708 = vpop.f32.mrf.mxu0
        %1709 = vmatprep.mubr.bf16.mxu0 0
        %1710 = vmatmul.mubr.bf16.gmra.mxu0 %v1499
        %v1711 = vpop.f32.mrf.mxu0
        %v1712 = vadd.f32 0.0, %v1711
        %v1713 = vpop.f32.mrf.mxu0
        %v1714 = vpop.f32.mrf.mxu0
        %v1715 = vadd.f32 0.0, %v1714
        %v1716 = vpop.f32.mrf.mxu0
        %1717 = vmatprep.mubr.bf16.mxu0 0
        %1718 = vmatmul.mubr.bf16.gmra.mxu0 %v1500
        %v1719 = vpop.f32.mrf.mxu0
        %v1720 = vadd.f32 0.0, %v1719
        %v1721 = vpop.f32.mrf.mxu0
        %v1722 = vpop.f32.mrf.mxu0
        %v1723 = vadd.f32 0.0, %v1722
        %v1724 = vpop.f32.mrf.mxu0
        %1725 = vdwg.mxu0
        %s1726 = scalar_lea.vmem %s1, 64
        %v1727 = vld [vmem:[%s1726] sm:$0xf]
        %v1728 = vld [vmem:[%s1726 + $0x4] sm:$0xf]
        %v1729 = vld [vmem:[%s1726 + $0x8] sm:$0xf]
        %v1730 = vld [vmem:[%s1726 + $0xc] sm:$0xf]
        %v1731 = vld [vmem:[%s1726 + $0x10] sm:$0xf]
        %v1732 = vld [vmem:[%s1726 + $0x14] sm:$0xf]
        %v1733 = vld [vmem:[%s1726 + $0x18] sm:$0xf]
        %v1734 = vld [vmem:[%s1726 + $0x1c] sm:$0xf]
        %v1735 = vld [vmem:[%s1726 + $0x20] sm:$0xf]
        %v1736 = vld [vmem:[%s1726 + $0x24] sm:$0xf]
        %v1737 = vld [vmem:[%s1726 + $0x28] sm:$0xf]
        %v1738 = vld [vmem:[%s1726 + $0x2c] sm:$0xf]
        %v1739 = vld [vmem:[%s1726 + $0x30] sm:$0xf]
        %v1740 = vld [vmem:[%s1726 + $0x34] sm:$0xf]
        %v1741 = vld [vmem:[%s1726 + $0x38] sm:$0xf]
        %v1742 = vld [vmem:[%s1726 + $0x3c] sm:$0xf]
        %v1759 = vunpack.c.l.b16 %v1727
        %v1760 = vunpack.c.l.b16 %v1728
        %v1761 = vunpack.c.l.b16 %v1729
        %v1762 = vunpack.c.l.b16 %v1730
        %v1763 = vunpack.c.l.b16 %v1731
        %v1764 = vunpack.c.l.b16 %v1732
        %v1765 = vunpack.c.l.b16 %v1733
        %v1766 = vunpack.c.l.b16 %v1734
        %v1767 = vunpack.c.l.b16 %v1735
        %v1768 = vunpack.c.l.b16 %v1736
        %v1769 = vunpack.c.l.b16 %v1737
        %v1770 = vunpack.c.l.b16 %v1738
        %v1771 = vunpack.c.l.b16 %v1739
        %v1772 = vunpack.c.l.b16 %v1740
        %v1773 = vunpack.c.l.b16 %v1741
        %v1774 = vunpack.c.l.b16 %v1742
        %v1775 = vpack.c.b16 %v1760, %v1759
        %v1776 = vpack.c.b16 %v1762, %v1761
        %v1777 = vpack.c.b16 %v1764, %v1763
        %v1778 = vpack.c.b16 %v1766, %v1765
        %v1779 = vpack.c.b16 %v1768, %v1767
        %v1780 = vpack.c.b16 %v1770, %v1769
        %v1781 = vpack.c.b16 %v1772, %v1771
        %v1782 = vpack.c.b16 %v1774, %v1773
        %1791 = vmatprep.subr.bf16.mxu0 0
        %1792 = vmatpush1.bf16.msra.mxu0 %v1782
        %1793 = vmatprep.subr.bf16.mxu0 0
        %1794 = vmatpush1.bf16.msra.mxu0 %v1781
        %1795 = vmatprep.subr.bf16.mxu0 0
        %1796 = vmatpush1.bf16.msra.mxu0 %v1780
        %1797 = vmatprep.subr.bf16.mxu0 0
        %1798 = vmatpush1.bf16.msra.mxu0 %v1779
        %1799 = vmatprep.subr.bf16.mxu0 0
        %1800 = vmatpush1.bf16.msra.mxu0 %v1778
        %1801 = vmatprep.subr.bf16.mxu0 0
        %1802 = vmatpush1.bf16.msra.mxu0 %v1777
        %1803 = vmatprep.subr.bf16.mxu0 0
        %1804 = vmatpush1.bf16.msra.mxu0 %v1776
        %1805 = vmatprep.subr.bf16.mxu0 0
        %1806 = vmatpush1.bf16.msra.mxu0 %v1775
        %1807 = vmatprep.subr.bf16.mxu0 0
        %1808 = vmatpush2.bf16.msra.mxu0 0
        %1809 = vmatprep.subr.bf16.mxu0 0
        %1810 = vmatpush2.bf16.msra.mxu0 0
        %1811 = vmatprep.subr.bf16.mxu0 0
        %1812 = vmatpush2.bf16.msra.mxu0 0
        %1813 = vmatprep.subr.bf16.mxu0 0
        %1814 = vmatpush2.bf16.msra.mxu0 0
        %1815 = vmatprep.subr.bf16.mxu0 0
        %1816 = vmatpush2.bf16.msra.mxu0 0
        %1817 = vmatprep.subr.bf16.mxu0 0
        %1818 = vmatpush2.bf16.msra.mxu0 0
        %1819 = vmatprep.subr.bf16.mxu0 0
        %1820 = vmatpush2.bf16.msra.mxu0 0
        %1821 = vmatprep.subr.bf16.mxu0 0
        %1822 = vmatpush2.bf16.msra.mxu0 0
        %1823 = vmatprep.mubr.bf16.mxu0 0
        %1824 = vmatmul.mubr.bf16.gmra.mxu0 %v804
        %v1825 = vpop.f32.mrf.mxu0
        %v1826 = vadd.f32 0.0, %v1825
        %v1827 = vpop.f32.mrf.mxu0
        %v1828 = vpop.f32.mrf.mxu0
        %v1829 = vadd.f32 0.0, %v1828
        %v1830 = vpop.f32.mrf.mxu0
        %1831 = vmatprep.mubr.bf16.mxu0 0
        %1832 = vmatmul.mubr.bf16.gmra.mxu0 %v805
        %v1833 = vpop.f32.mrf.mxu0
        %v1834 = vadd.f32 0.0, %v1833
        %v1835 = vpop.f32.mrf.mxu0
        %v1836 = vpop.f32.mrf.mxu0
        %v1837 = vadd.f32 0.0, %v1836
        %v1838 = vpop.f32.mrf.mxu0
        %1839 = vmatprep.mubr.bf16.mxu0 0
        %1840 = vmatmul.mubr.bf16.gmra.mxu0 %v806
        %v1841 = vpop.f32.mrf.mxu0
        %v1842 = vadd.f32 0.0, %v1841
        %v1843 = vpop.f32.mrf.mxu0
        %v1844 = vpop.f32.mrf.mxu0
        %v1845 = vadd.f32 0.0, %v1844
        %v1846 = vpop.f32.mrf.mxu0
        %1847 = vmatprep.mubr.bf16.mxu0 0
        %1848 = vmatmul.mubr.bf16.gmra.mxu0 %v807
        %v1849 = vpop.f32.mrf.mxu0
        %v1850 = vadd.f32 0.0, %v1849
        %v1851 = vpop.f32.mrf.mxu0
        %v1852 = vpop.f32.mrf.mxu0
        %v1853 = vadd.f32 0.0, %v1852
        %v1854 = vpop.f32.mrf.mxu0
        %1855 = vmatprep.mubr.bf16.mxu0 0
        %1856 = vmatmul.mubr.bf16.gmra.mxu0 %v808
        %v1857 = vpop.f32.mrf.mxu0
        %v1858 = vadd.f32 0.0, %v1857
        %v1859 = vpop.f32.mrf.mxu0
        %v1860 = vpop.f32.mrf.mxu0
        %v1861 = vadd.f32 0.0, %v1860
        %v1862 = vpop.f32.mrf.mxu0
        %1863 = vmatprep.mubr.bf16.mxu0 0
        %1864 = vmatmul.mubr.bf16.gmra.mxu0 %v809
        %v1865 = vpop.f32.mrf.mxu0
        %v1866 = vadd.f32 0.0, %v1865
        %v1867 = vpop.f32.mrf.mxu0
        %v1868 = vpop.f32.mrf.mxu0
        %v1869 = vadd.f32 0.0, %v1868
        %v1870 = vpop.f32.mrf.mxu0
        %1871 = vmatprep.mubr.bf16.mxu0 0
        %1872 = vmatmul.mubr.bf16.gmra.mxu0 %v810
        %v1873 = vpop.f32.mrf.mxu0
        %v1874 = vadd.f32 0.0, %v1873
        %v1875 = vpop.f32.mrf.mxu0
        %v1876 = vpop.f32.mrf.mxu0
        %v1877 = vadd.f32 0.0, %v1876
        %v1878 = vpop.f32.mrf.mxu0
        %1879 = vmatprep.mubr.bf16.mxu0 0
        %1880 = vmatmul.mubr.bf16.gmra.mxu0 %v811
        %v1881 = vpop.f32.mrf.mxu0
        %v1882 = vadd.f32 0.0, %v1881
        %v1883 = vpop.f32.mrf.mxu0
        %v1884 = vpop.f32.mrf.mxu0
        %v1885 = vadd.f32 0.0, %v1884
        %v1886 = vpop.f32.mrf.mxu0
        %1887 = vmatprep.mubr.bf16.mxu0 0
        %1888 = vmatmul.mubr.bf16.gmra.mxu0 %v812
        %v1889 = vpop.f32.mrf.mxu0
        %v1890 = vadd.f32 0.0, %v1889
        %v1891 = vpop.f32.mrf.mxu0
        %v1892 = vpop.f32.mrf.mxu0
        %v1893 = vadd.f32 0.0, %v1892
        %v1894 = vpop.f32.mrf.mxu0
        %1895 = vmatprep.mubr.bf16.mxu0 0
        %1896 = vmatmul.mubr.bf16.gmra.mxu0 %v813
        %v1897 = vpop.f32.mrf.mxu0
        %v1898 = vadd.f32 0.0, %v1897
        %v1899 = vpop.f32.mrf.mxu0
        %v1900 = vpop.f32.mrf.mxu0
        %v1901 = vadd.f32 0.0, %v1900
        %v1902 = vpop.f32.mrf.mxu0
        %1903 = vmatprep.mubr.bf16.mxu0 0
        %1904 = vmatmul.mubr.bf16.gmra.mxu0 %v814
        %v1905 = vpop.f32.mrf.mxu0
        %v1906 = vadd.f32 0.0, %v1905
        %v1907 = vpop.f32.mrf.mxu0
        %v1908 = vpop.f32.mrf.mxu0
        %v1909 = vadd.f32 0.0, %v1908
        %v1910 = vpop.f32.mrf.mxu0
        %1911 = vmatprep.mubr.bf16.mxu0 0
        %1912 = vmatmul.mubr.bf16.gmra.mxu0 %v815
        %v1913 = vpop.f32.mrf.mxu0
        %v1914 = vadd.f32 0.0, %v1913
        %v1915 = vpop.f32.mrf.mxu0
        %v1916 = vpop.f32.mrf.mxu0
        %v1917 = vadd.f32 0.0, %v1916
        %v1918 = vpop.f32.mrf.mxu0
        %1919 = vmatprep.mubr.bf16.mxu0 0
        %1920 = vmatmul.mubr.bf16.gmra.mxu0 %v816
        %v1921 = vpop.f32.mrf.mxu0
        %v1922 = vadd.f32 0.0, %v1921
        %v1923 = vpop.f32.mrf.mxu0
        %v1924 = vpop.f32.mrf.mxu0
        %v1925 = vadd.f32 0.0, %v1924
        %v1926 = vpop.f32.mrf.mxu0
        %1927 = vmatprep.mubr.bf16.mxu0 0
        %1928 = vmatmul.mubr.bf16.gmra.mxu0 %v817
        %v1929 = vpop.f32.mrf.mxu0
        %v1930 = vadd.f32 0.0, %v1929
        %v1931 = vpop.f32.mrf.mxu0
        %v1932 = vpop.f32.mrf.mxu0
        %v1933 = vadd.f32 0.0, %v1932
        %v1934 = vpop.f32.mrf.mxu0
        %1935 = vmatprep.mubr.bf16.mxu0 0
        %1936 = vmatmul.mubr.bf16.gmra.mxu0 %v818
        %v1937 = vpop.f32.mrf.mxu0
        %v1938 = vadd.f32 0.0, %v1937
        %v1939 = vpop.f32.mrf.mxu0
        %v1940 = vpop.f32.mrf.mxu0
        %v1941 = vadd.f32 0.0, %v1940
        %v1942 = vpop.f32.mrf.mxu0
        %1943 = vmatprep.mubr.bf16.mxu0 0
        %1944 = vmatmul.mubr.bf16.gmra.mxu0 %v819
        %v1945 = vpop.f32.mrf.mxu0
        %v1946 = vadd.f32 0.0, %v1945
        %v1947 = vpop.f32.mrf.mxu0
        %v1948 = vpop.f32.mrf.mxu0
        %v1949 = vadd.f32 0.0, %v1948
        %v1950 = vpop.f32.mrf.mxu0
        %1951 = vdwg.mxu0
        %v1952 = vpack.c.bf16 %v1829, %v1826
        %v1953 = vpack.c.bf16 %v1837, %v1834
        %v1954 = vpack.c.bf16 %v1845, %v1842
        %v1955 = vpack.c.bf16 %v1853, %v1850
        %v1956 = vpack.c.bf16 %v1861, %v1858
        %v1957 = vpack.c.bf16 %v1869, %v1866
        %v1958 = vpack.c.bf16 %v1877, %v1874
        %v1959 = vpack.c.bf16 %v1885, %v1882
        %v1960 = vpack.c.bf16 %v1893, %v1890
        %v1961 = vpack.c.bf16 %v1901, %v1898
        %v1962 = vpack.c.bf16 %v1909, %v1906
        %v1963 = vpack.c.bf16 %v1917, %v1914
        %v1964 = vpack.c.bf16 %v1925, %v1922
        %v1965 = vpack.c.bf16 %v1933, %v1930
        %v1966 = vpack.c.bf16 %v1941, %v1938
        %v1967 = vpack.c.bf16 %v1949, %v1946
        %s1968 = scalar_lea.vmem %s2, 64
        %v1969 = vld [vmem:[%s1968] sm:$0xf]
        %v1970 = vld [vmem:[%s1968 + $0x4] sm:$0xf]
        %v1971 = vld [vmem:[%s1968 + $0x8] sm:$0xf]
        %v1972 = vld [vmem:[%s1968 + $0xc] sm:$0xf]
        %v1973 = vld [vmem:[%s1968 + $0x10] sm:$0xf]
        %v1974 = vld [vmem:[%s1968 + $0x14] sm:$0xf]
        %v1975 = vld [vmem:[%s1968 + $0x18] sm:$0xf]
        %v1976 = vld [vmem:[%s1968 + $0x1c] sm:$0xf]
        %v1977 = vld [vmem:[%s1968 + $0x20] sm:$0xf]
        %v1978 = vld [vmem:[%s1968 + $0x24] sm:$0xf]
        %v1979 = vld [vmem:[%s1968 + $0x28] sm:$0xf]
        %v1980 = vld [vmem:[%s1968 + $0x2c] sm:$0xf]
        %v1981 = vld [vmem:[%s1968 + $0x30] sm:$0xf]
        %v1982 = vld [vmem:[%s1968 + $0x34] sm:$0xf]
        %v1983 = vld [vmem:[%s1968 + $0x38] sm:$0xf]
        %v1984 = vld [vmem:[%s1968 + $0x3c] sm:$0xf]
        %s1985 = scalar_lea.vmem %s3, 1
        %v1986 = vld [vmem:[%s1985] sm:$0x1]
        %v1988 = vlaneseq
        %v1989 = vshrl.u32 %v1988, 7
        %v1990 = vsub.s32 0, %v1989
        %v1991 = vrot.slane %v1986, %v1990
        %v2009 = vunpack.c.l.b16 %v1969
        %v2010 = vunpack.c.l.b16 %v1970
        %v2011 = vunpack.c.l.b16 %v1971
        %v2012 = vunpack.c.l.b16 %v1972
        %v2013 = vunpack.c.l.b16 %v1973
        %v2014 = vunpack.c.l.b16 %v1974
        %v2015 = vunpack.c.l.b16 %v1975
        %v2016 = vunpack.c.l.b16 %v1976
        %v2017 = vunpack.c.l.b16 %v1977
        %v2018 = vunpack.c.l.b16 %v1978
        %v2019 = vunpack.c.l.b16 %v1979
        %v2020 = vunpack.c.l.b16 %v1980
        %v2021 = vunpack.c.l.b16 %v1981
        %v2022 = vunpack.c.l.b16 %v1982
        %v2023 = vunpack.c.l.b16 %v1983
        %v2024 = vunpack.c.l.b16 %v1984
        %v2025 = vpack.c.b16 %v2010, %v2009
        %v2026 = vpack.c.b16 %v2012, %v2011
        %v2027 = vpack.c.b16 %v2014, %v2013
        %v2028 = vpack.c.b16 %v2016, %v2015
        %v2029 = vpack.c.b16 %v2018, %v2017
        %v2030 = vpack.c.b16 %v2020, %v2019
        %v2031 = vpack.c.b16 %v2022, %v2021
        %v2032 = vpack.c.b16 %v2024, %v2023
        %2041 = vmatprep.subr.bf16.mxu0 0
        %2042 = vmatpush1.bf16.msra.mxu0 %v2032
        %2043 = vmatprep.subr.bf16.mxu0 0
        %2044 = vmatpush1.bf16.msra.mxu0 %v2031
        %2045 = vmatprep.subr.bf16.mxu0 0
        %2046 = vmatpush1.bf16.msra.mxu0 %v2030
        %2047 = vmatprep.subr.bf16.mxu0 0
        %2048 = vmatpush1.bf16.msra.mxu0 %v2029
        %2049 = vmatprep.subr.bf16.mxu0 0
        %2050 = vmatpush1.bf16.msra.mxu0 %v2028
        %2051 = vmatprep.subr.bf16.mxu0 0
        %2052 = vmatpush1.bf16.msra.mxu0 %v2027
        %2053 = vmatprep.subr.bf16.mxu0 0
        %2054 = vmatpush1.bf16.msra.mxu0 %v2026
        %2055 = vmatprep.subr.bf16.mxu0 0
        %2056 = vmatpush1.bf16.msra.mxu0 %v2025
        %2057 = vmatprep.subr.bf16.mxu0 0
        %2058 = vmatpush2.bf16.msra.mxu0 0
        %2059 = vmatprep.subr.bf16.mxu0 0
        %2060 = vmatpush2.bf16.msra.mxu0 0
        %2061 = vmatprep.subr.bf16.mxu0 0
        %2062 = vmatpush2.bf16.msra.mxu0 0
        %2063 = vmatprep.subr.bf16.mxu0 0
        %2064 = vmatpush2.bf16.msra.mxu0 0
        %2065 = vmatprep.subr.bf16.mxu0 0
        %2066 = vmatpush2.bf16.msra.mxu0 0
        %2067 = vmatprep.subr.bf16.mxu0 0
        %2068 = vmatpush2.bf16.msra.mxu0 0
        %2069 = vmatprep.subr.bf16.mxu0 0
        %2070 = vmatpush2.bf16.msra.mxu0 0
        %2071 = vmatprep.subr.bf16.mxu0 0
        %2072 = vmatpush2.bf16.msra.mxu0 0
        %2073 = vmatprep.mubr.bf16.mxu0 0
        %2074 = vmatmul.mubr.bf16.gmra.mxu0 %v1952
        %v2075 = vpop.f32.mrf.mxu0
        %v2076 = vadd.f32 %v1991, %v2075
        %v2077 = vpop.f32.mrf.mxu0
        %v2078 = vpop.f32.mrf.mxu0
        %v2079 = vadd.f32 %v1991, %v2078
        %v2080 = vpop.f32.mrf.mxu0
        %2081 = vmatprep.mubr.bf16.mxu0 0
        %2082 = vmatmul.mubr.bf16.gmra.mxu0 %v1953
        %v2083 = vpop.f32.mrf.mxu0
        %v2084 = vadd.f32 %v1991, %v2083
        %v2085 = vpop.f32.mrf.mxu0
        %v2086 = vpop.f32.mrf.mxu0
        %v2087 = vadd.f32 %v1991, %v2086
        %v2088 = vpop.f32.mrf.mxu0
        %2089 = vmatprep.mubr.bf16.mxu0 0
        %2090 = vmatmul.mubr.bf16.gmra.mxu0 %v1954
        %v2091 = vpop.f32.mrf.mxu0
        %v2092 = vadd.f32 %v1991, %v2091
        %v2093 = vpop.f32.mrf.mxu0
        %v2094 = vpop.f32.mrf.mxu0
        %v2095 = vadd.f32 %v1991, %v2094
        %v2096 = vpop.f32.mrf.mxu0
        %2097 = vmatprep.mubr.bf16.mxu0 0
        %2098 = vmatmul.mubr.bf16.gmra.mxu0 %v1955
        %v2099 = vpop.f32.mrf.mxu0
        %v2100 = vadd.f32 %v1991, %v2099
        %v2101 = vpop.f32.mrf.mxu0
        %v2102 = vpop.f32.mrf.mxu0
        %v2103 = vadd.f32 %v1991, %v2102
        %v2104 = vpop.f32.mrf.mxu0
        %2105 = vmatprep.mubr.bf16.mxu0 0
        %2106 = vmatmul.mubr.bf16.gmra.mxu0 %v1956
        %v2107 = vpop.f32.mrf.mxu0
        %v2108 = vadd.f32 %v1991, %v2107
        %v2109 = vpop.f32.mrf.mxu0
        %v2110 = vpop.f32.mrf.mxu0
        %v2111 = vadd.f32 %v1991, %v2110
        %v2112 = vpop.f32.mrf.mxu0
        %2113 = vmatprep.mubr.bf16.mxu0 0
        %2114 = vmatmul.mubr.bf16.gmra.mxu0 %v1957
        %v2115 = vpop.f32.mrf.mxu0
        %v2116 = vadd.f32 %v1991, %v2115
        %v2117 = vpop.f32.mrf.mxu0
        %v2118 = vpop.f32.mrf.mxu0
        %v2119 = vadd.f32 %v1991, %v2118
        %v2120 = vpop.f32.mrf.mxu0
        %2121 = vmatprep.mubr.bf16.mxu0 0
        %2122 = vmatmul.mubr.bf16.gmra.mxu0 %v1958
        %v2123 = vpop.f32.mrf.mxu0
        %v2124 = vadd.f32 %v1991, %v2123
        %v2125 = vpop.f32.mrf.mxu0
        %v2126 = vpop.f32.mrf.mxu0
        %v2127 = vadd.f32 %v1991, %v2126
        %v2128 = vpop.f32.mrf.mxu0
        %2129 = vmatprep.mubr.bf16.mxu0 0
        %2130 = vmatmul.mubr.bf16.gmra.mxu0 %v1959
        %v2131 = vpop.f32.mrf.mxu0
        %v2132 = vadd.f32 %v1991, %v2131
        %v2133 = vpop.f32.mrf.mxu0
        %v2134 = vpop.f32.mrf.mxu0
        %v2135 = vadd.f32 %v1991, %v2134
        %v2136 = vpop.f32.mrf.mxu0
        %2137 = vmatprep.mubr.bf16.mxu0 0
        %2138 = vmatmul.mubr.bf16.gmra.mxu0 %v1960
        %v2139 = vpop.f32.mrf.mxu0
        %v2140 = vadd.f32 %v1991, %v2139
        %v2141 = vpop.f32.mrf.mxu0
        %v2142 = vpop.f32.mrf.mxu0
        %v2143 = vadd.f32 %v1991, %v2142
        %v2144 = vpop.f32.mrf.mxu0
        %2145 = vmatprep.mubr.bf16.mxu0 0
        %2146 = vmatmul.mubr.bf16.gmra.mxu0 %v1961
        %v2147 = vpop.f32.mrf.mxu0
        %v2148 = vadd.f32 %v1991, %v2147
        %v2149 = vpop.f32.mrf.mxu0
        %v2150 = vpop.f32.mrf.mxu0
        %v2151 = vadd.f32 %v1991, %v2150
        %v2152 = vpop.f32.mrf.mxu0
        %2153 = vmatprep.mubr.bf16.mxu0 0
        %2154 = vmatmul.mubr.bf16.gmra.mxu0 %v1962
        %v2155 = vpop.f32.mrf.mxu0
        %v2156 = vadd.f32 %v1991, %v2155
        %v2157 = vpop.f32.mrf.mxu0
        %v2158 = vpop.f32.mrf.mxu0
        %v2159 = vadd.f32 %v1991, %v2158
        %v2160 = vpop.f32.mrf.mxu0
        %2161 = vmatprep.mubr.bf16.mxu0 0
        %2162 = vmatmul.mubr.bf16.gmra.mxu0 %v1963
        %v2163 = vpop.f32.mrf.mxu0
        %v2164 = vadd.f32 %v1991, %v2163
        %v2165 = vpop.f32.mrf.mxu0
        %v2166 = vpop.f32.mrf.mxu0
        %v2167 = vadd.f32 %v1991, %v2166
        %v2168 = vpop.f32.mrf.mxu0
        %2169 = vmatprep.mubr.bf16.mxu0 0
        %2170 = vmatmul.mubr.bf16.gmra.mxu0 %v1964
        %v2171 = vpop.f32.mrf.mxu0
        %v2172 = vadd.f32 %v1991, %v2171
        %v2173 = vpop.f32.mrf.mxu0
        %v2174 = vpop.f32.mrf.mxu0
        %v2175 = vadd.f32 %v1991, %v2174
        %v2176 = vpop.f32.mrf.mxu0
        %2177 = vmatprep.mubr.bf16.mxu0 0
        %2178 = vmatmul.mubr.bf16.gmra.mxu0 %v1965
        %v2179 = vpop.f32.mrf.mxu0
        %v2180 = vadd.f32 %v1991, %v2179
        %v2181 = vpop.f32.mrf.mxu0
        %v2182 = vpop.f32.mrf.mxu0
        %v2183 = vadd.f32 %v1991, %v2182
        %v2184 = vpop.f32.mrf.mxu0
        %2185 = vmatprep.mubr.bf16.mxu0 0
        %2186 = vmatmul.mubr.bf16.gmra.mxu0 %v1966
        %v2187 = vpop.f32.mrf.mxu0
        %v2188 = vadd.f32 %v1991, %v2187
        %v2189 = vpop.f32.mrf.mxu0
        %v2190 = vpop.f32.mrf.mxu0
        %v2191 = vadd.f32 %v1991, %v2190
        %v2192 = vpop.f32.mrf.mxu0
        %2193 = vmatprep.mubr.bf16.mxu0 0
        %2194 = vmatmul.mubr.bf16.gmra.mxu0 %v1967
        %v2195 = vpop.f32.mrf.mxu0
        %v2196 = vadd.f32 %v1991, %v2195
        %v2197 = vpop.f32.mrf.mxu0
        %v2198 = vpop.f32.mrf.mxu0
        %v2199 = vadd.f32 %v1991, %v2198
        %v2200 = vpop.f32.mrf.mxu0
        %2201 = vdwg.mxu0
        %vm2202 = vcmp.gt.f32.partialorder %v2076, 0.0
        %vm2203 = vcmp.gt.f32.partialorder %v2079, 0.0
        %vm2204 = vcmp.gt.f32.partialorder %v2084, 0.0
        %vm2205 = vcmp.gt.f32.partialorder %v2087, 0.0
        %vm2206 = vcmp.gt.f32.partialorder %v2092, 0.0
        %vm2207 = vcmp.gt.f32.partialorder %v2095, 0.0
        %vm2208 = vcmp.gt.f32.partialorder %v2100, 0.0
        %vm2209 = vcmp.gt.f32.partialorder %v2103, 0.0
        %vm2210 = vcmp.gt.f32.partialorder %v2108, 0.0
        %vm2211 = vcmp.gt.f32.partialorder %v2111, 0.0
        %vm2212 = vcmp.gt.f32.partialorder %v2116, 0.0
        %vm2213 = vcmp.gt.f32.partialorder %v2119, 0.0
        %vm2214 = vcmp.gt.f32.partialorder %v2124, 0.0
        %vm2215 = vcmp.gt.f32.partialorder %v2127, 0.0
        %vm2216 = vcmp.gt.f32.partialorder %v2132, 0.0
        %vm2217 = vcmp.gt.f32.partialorder %v2135, 0.0
        %vm2218 = vcmp.gt.f32.partialorder %v2140, 0.0
        %vm2219 = vcmp.gt.f32.partialorder %v2143, 0.0
        %vm2220 = vcmp.gt.f32.partialorder %v2148, 0.0
        %vm2221 = vcmp.gt.f32.partialorder %v2151, 0.0
        %vm2222 = vcmp.gt.f32.partialorder %v2156, 0.0
        %vm2223 = vcmp.gt.f32.partialorder %v2159, 0.0
        %vm2224 = vcmp.gt.f32.partialorder %v2164, 0.0
        %vm2225 = vcmp.gt.f32.partialorder %v2167, 0.0
        %vm2226 = vcmp.gt.f32.partialorder %v2172, 0.0
        %vm2227 = vcmp.gt.f32.partialorder %v2175, 0.0
        %vm2228 = vcmp.gt.f32.partialorder %v2180, 0.0
        %vm2229 = vcmp.gt.f32.partialorder %v2183, 0.0
        %vm2230 = vcmp.gt.f32.partialorder %v2188, 0.0
        %vm2231 = vcmp.gt.f32.partialorder %v2191, 0.0
        %vm2232 = vcmp.gt.f32.partialorder %v2196, 0.0
        %vm2233 = vcmp.gt.f32.partialorder %v2199, 0.0
        %v2234 = vmin.f32 %v2076, 0.0
        %v2235 = vmin.f32 %v2079, 0.0
        %v2236 = vmin.f32 %v2084, 0.0
        %v2237 = vmin.f32 %v2087, 0.0
        %v2238 = vmin.f32 %v2092, 0.0
        %v2239 = vmin.f32 %v2095, 0.0
        %v2240 = vmin.f32 %v2100, 0.0
        %v2241 = vmin.f32 %v2103, 0.0
        %v2242 = vmin.f32 %v2108, 0.0
        %v2243 = vmin.f32 %v2111, 0.0
        %v2244 = vmin.f32 %v2116, 0.0
        %v2245 = vmin.f32 %v2119, 0.0
        %v2246 = vmin.f32 %v2124, 0.0
        %v2247 = vmin.f32 %v2127, 0.0
        %v2248 = vmin.f32 %v2132, 0.0
        %v2249 = vmin.f32 %v2135, 0.0
        %v2250 = vmin.f32 %v2140, 0.0
        %v2251 = vmin.f32 %v2143, 0.0
        %v2252 = vmin.f32 %v2148, 0.0
        %v2253 = vmin.f32 %v2151, 0.0
        %v2254 = vmin.f32 %v2156, 0.0
        %v2255 = vmin.f32 %v2159, 0.0
        %v2256 = vmin.f32 %v2164, 0.0
        %v2257 = vmin.f32 %v2167, 0.0
        %v2258 = vmin.f32 %v2172, 0.0
        %v2259 = vmin.f32 %v2175, 0.0
        %v2260 = vmin.f32 %v2180, 0.0
        %v2261 = vmin.f32 %v2183, 0.0
        %v2262 = vmin.f32 %v2188, 0.0
        %v2263 = vmin.f32 %v2191, 0.0
        %v2264 = vmin.f32 %v2196, 0.0
        %v2265 = vmin.f32 %v2199, 0.0
        %v2266 = vmul.f32 %v2234, 1.442695
        %v2267 = vpow.pop %v2266
        %v2268 = vmul.f32 %v2235, 1.442695
        %v2269 = vpow.pop %v2268
        %v2270 = vmul.f32 %v2236, 1.442695
        %v2271 = vpow.pop %v2270
        %v2272 = vmul.f32 %v2237, 1.442695
        %v2273 = vpow.pop %v2272
        %v2274 = vmul.f32 %v2238, 1.442695
        %v2275 = vpow.pop %v2274
        %v2276 = vmul.f32 %v2239, 1.442695
        %v2277 = vpow.pop %v2276
        %v2278 = vmul.f32 %v2240, 1.442695
        %v2279 = vpow.pop %v2278
        %v2280 = vmul.f32 %v2241, 1.442695
        %v2281 = vpow.pop %v2280
        %v2282 = vmul.f32 %v2242, 1.442695
        %v2283 = vpow.pop %v2282
        %v2284 = vmul.f32 %v2243, 1.442695
        %v2285 = vpow.pop %v2284
        %v2286 = vmul.f32 %v2244, 1.442695
        %v2287 = vpow.pop %v2286
        %v2288 = vmul.f32 %v2245, 1.442695
        %v2289 = vpow.pop %v2288
        %v2290 = vmul.f32 %v2246, 1.442695
        %v2291 = vpow.pop %v2290
        %v2292 = vmul.f32 %v2247, 1.442695
        %v2293 = vpow.pop %v2292
        %v2294 = vmul.f32 %v2248, 1.442695
        %v2295 = vpow.pop %v2294
        %v2296 = vmul.f32 %v2249, 1.442695
        %v2297 = vpow.pop %v2296
        %v2298 = vmul.f32 %v2250, 1.442695
        %v2299 = vpow.pop %v2298
        %v2300 = vmul.f32 %v2251, 1.442695
        %v2301 = vpow.pop %v2300
        %v2302 = vmul.f32 %v2252, 1.442695
        %v2303 = vpow.pop %v2302
        %v2304 = vmul.f32 %v2253, 1.442695
        %v2305 = vpow.pop %v2304
        %v2306 = vmul.f32 %v2254, 1.442695
        %v2307 = vpow.pop %v2306
        %v2308 = vmul.f32 %v2255, 1.442695
        %v2309 = vpow.pop %v2308
        %v2310 = vmul.f32 %v2256, 1.442695
        %v2311 = vpow.pop %v2310
        %v2312 = vmul.f32 %v2257, 1.442695
        %v2313 = vpow.pop %v2312
        %v2314 = vmul.f32 %v2258, 1.442695
        %v2315 = vpow.pop %v2314
        %v2316 = vmul.f32 %v2259, 1.442695
        %v2317 = vpow.pop %v2316
        %v2318 = vmul.f32 %v2260, 1.442695
        %v2319 = vpow.pop %v2318
        %v2320 = vmul.f32 %v2261, 1.442695
        %v2321 = vpow.pop %v2320
        %v2322 = vmul.f32 %v2262, 1.442695
        %v2323 = vpow.pop %v2322
        %v2324 = vmul.f32 %v2263, 1.442695
        %v2325 = vpow.pop %v2324
        %v2326 = vmul.f32 %v2264, 1.442695
        %v2327 = vpow.pop %v2326
        %v2328 = vmul.f32 %v2265, 1.442695
        %v2329 = vpow.pop %v2328
        %v2330 = vsub.f32 %v2267, 1.0
        %v2331 = vsub.f32 %v2269, 1.0
        %v2332 = vsub.f32 %v2271, 1.0
        %v2333 = vsub.f32 %v2273, 1.0
        %v2334 = vsub.f32 %v2275, 1.0
        %v2335 = vsub.f32 %v2277, 1.0
        %v2336 = vsub.f32 %v2279, 1.0
        %v2337 = vsub.f32 %v2281, 1.0
        %v2338 = vsub.f32 %v2283, 1.0
        %v2339 = vsub.f32 %v2285, 1.0
        %v2340 = vsub.f32 %v2287, 1.0
        %v2341 = vsub.f32 %v2289, 1.0
        %v2342 = vsub.f32 %v2291, 1.0
        %v2343 = vsub.f32 %v2293, 1.0
        %v2344 = vsub.f32 %v2295, 1.0
        %v2345 = vsub.f32 %v2297, 1.0
        %v2346 = vsub.f32 %v2299, 1.0
        %v2347 = vsub.f32 %v2301, 1.0
        %v2348 = vsub.f32 %v2303, 1.0
        %v2349 = vsub.f32 %v2305, 1.0
        %v2350 = vsub.f32 %v2307, 1.0
        %v2351 = vsub.f32 %v2309, 1.0
        %v2352 = vsub.f32 %v2311, 1.0
        %v2353 = vsub.f32 %v2313, 1.0
        %v2354 = vsub.f32 %v2315, 1.0
        %v2355 = vsub.f32 %v2317, 1.0
        %v2356 = vsub.f32 %v2319, 1.0
        %v2357 = vsub.f32 %v2321, 1.0
        %v2358 = vsub.f32 %v2323, 1.0
        %v2359 = vsub.f32 %v2325, 1.0
        %v2360 = vsub.f32 %v2327, 1.0
        %v2361 = vsub.f32 %v2329, 1.0
        %v2362 = vsel %vm2202, %v2076, %v2330
        %v2363 = vsel %vm2203, %v2079, %v2331
        %v2364 = vsel %vm2204, %v2084, %v2332
        %v2365 = vsel %vm2205, %v2087, %v2333
        %v2366 = vsel %vm2206, %v2092, %v2334
        %v2367 = vsel %vm2207, %v2095, %v2335
        %v2368 = vsel %vm2208, %v2100, %v2336
        %v2369 = vsel %vm2209, %v2103, %v2337
        %v2370 = vsel %vm2210, %v2108, %v2338
        %v2371 = vsel %vm2211, %v2111, %v2339
        %v2372 = vsel %vm2212, %v2116, %v2340
        %v2373 = vsel %vm2213, %v2119, %v2341
        %v2374 = vsel %vm2214, %v2124, %v2342
        %v2375 = vsel %vm2215, %v2127, %v2343
        %v2376 = vsel %vm2216, %v2132, %v2344
        %v2377 = vsel %vm2217, %v2135, %v2345
        %v2378 = vsel %vm2218, %v2140, %v2346
        %v2379 = vsel %vm2219, %v2143, %v2347
        %v2380 = vsel %vm2220, %v2148, %v2348
        %v2381 = vsel %vm2221, %v2151, %v2349
        %v2382 = vsel %vm2222, %v2156, %v2350
        %v2383 = vsel %vm2223, %v2159, %v2351
        %v2384 = vsel %vm2224, %v2164, %v2352
        %v2385 = vsel %vm2225, %v2167, %v2353
        %v2386 = vsel %vm2226, %v2172, %v2354
        %v2387 = vsel %vm2227, %v2175, %v2355
        %v2388 = vsel %vm2228, %v2180, %v2356
        %v2389 = vsel %vm2229, %v2183, %v2357
        %v2390 = vsel %vm2230, %v2188, %v2358
        %v2391 = vsel %vm2231, %v2191, %v2359
        %v2392 = vsel %vm2232, %v2196, %v2360
        %v2393 = vsel %vm2233, %v2199, %v2361
        %v2394 = vpack.c.bf16 %v2363, %v2362
        %v2395 = vpack.c.bf16 %v2365, %v2364
        %v2396 = vpack.c.bf16 %v2367, %v2366
        %v2397 = vpack.c.bf16 %v2369, %v2368
        %v2398 = vpack.c.bf16 %v2371, %v2370
        %v2399 = vpack.c.bf16 %v2373, %v2372
        %v2400 = vpack.c.bf16 %v2375, %v2374
        %v2401 = vpack.c.bf16 %v2377, %v2376
        %v2402 = vpack.c.bf16 %v2379, %v2378
        %v2403 = vpack.c.bf16 %v2381, %v2380
        %v2404 = vpack.c.bf16 %v2383, %v2382
        %v2405 = vpack.c.bf16 %v2385, %v2384
        %v2406 = vpack.c.bf16 %v2387, %v2386
        %v2407 = vpack.c.bf16 %v2389, %v2388
        %v2408 = vpack.c.bf16 %v2391, %v2390
        %v2409 = vpack.c.bf16 %v2393, %v2392
        %2410 = vmatprep.subr.bf16.mxu0 0
        %2411 = vmatpush1.bf16.msra.mxu0 %v1556
        %2412 = vmatprep.subr.bf16.mxu0 0
        %2413 = vmatpush1.bf16.msra.mxu0 %v1555
        %2414 = vmatprep.subr.bf16.mxu0 0
        %2415 = vmatpush1.bf16.msra.mxu0 %v1554
        %2416 = vmatprep.subr.bf16.mxu0 0
        %2417 = vmatpush1.bf16.msra.mxu0 %v1553
        %2418 = vmatprep.subr.bf16.mxu0 0
        %2419 = vmatpush1.bf16.msra.mxu0 %v1552
        %2420 = vmatprep.subr.bf16.mxu0 0
        %2421 = vmatpush1.bf16.msra.mxu0 %v1551
        %2422 = vmatprep.subr.bf16.mxu0 0
        %2423 = vmatpush1.bf16.msra.mxu0 %v1550
        %2424 = vmatprep.subr.bf16.mxu0 0
        %2425 = vmatpush1.bf16.msra.mxu0 %v1549
        %2426 = vmatprep.subr.bf16.mxu0 0
        %2427 = vmatpush2.bf16.msra.mxu0 0
        %2428 = vmatprep.subr.bf16.mxu0 0
        %2429 = vmatpush2.bf16.msra.mxu0 0
        %2430 = vmatprep.subr.bf16.mxu0 0
        %2431 = vmatpush2.bf16.msra.mxu0 0
        %2432 = vmatprep.subr.bf16.mxu0 0
        %2433 = vmatpush2.bf16.msra.mxu0 0
        %2434 = vmatprep.subr.bf16.mxu0 0
        %2435 = vmatpush2.bf16.msra.mxu0 0
        %2436 = vmatprep.subr.bf16.mxu0 0
        %2437 = vmatpush2.bf16.msra.mxu0 0
        %2438 = vmatprep.subr.bf16.mxu0 0
        %2439 = vmatpush2.bf16.msra.mxu0 0
        %2440 = vmatprep.subr.bf16.mxu0 0
        %2441 = vmatpush2.bf16.msra.mxu0 0
        %2442 = vmatprep.mubr.bf16.mxu0 0
        %2443 = vmatmul.mubr.bf16.gmra.mxu0 %v2394
        %v2444 = vpop.f32.mrf.mxu0
        %v2445 = vadd.f32 0.0, %v2444
        %v2446 = vpop.f32.mrf.mxu0
        %v2447 = vpop.f32.mrf.mxu0
        %v2448 = vadd.f32 0.0, %v2447
        %v2449 = vpop.f32.mrf.mxu0
        %2450 = vmatprep.mubr.bf16.mxu0 0
        %2451 = vmatmul.mubr.bf16.gmra.mxu0 %v2395
        %v2452 = vpop.f32.mrf.mxu0
        %v2453 = vadd.f32 0.0, %v2452
        %v2454 = vpop.f32.mrf.mxu0
        %v2455 = vpop.f32.mrf.mxu0
        %v2456 = vadd.f32 0.0, %v2455
        %v2457 = vpop.f32.mrf.mxu0
        %2458 = vmatprep.mubr.bf16.mxu0 0
        %2459 = vmatmul.mubr.bf16.gmra.mxu0 %v2396
        %v2460 = vpop.f32.mrf.mxu0
        %v2461 = vadd.f32 0.0, %v2460
        %v2462 = vpop.f32.mrf.mxu0
        %v2463 = vpop.f32.mrf.mxu0
        %v2464 = vadd.f32 0.0, %v2463
        %v2465 = vpop.f32.mrf.mxu0
        %2466 = vmatprep.mubr.bf16.mxu0 0
        %2467 = vmatmul.mubr.bf16.gmra.mxu0 %v2397
        %v2468 = vpop.f32.mrf.mxu0
        %v2469 = vadd.f32 0.0, %v2468
        %v2470 = vpop.f32.mrf.mxu0
        %v2471 = vpop.f32.mrf.mxu0
        %v2472 = vadd.f32 0.0, %v2471
        %v2473 = vpop.f32.mrf.mxu0
        %2474 = vmatprep.mubr.bf16.mxu0 0
        %2475 = vmatmul.mubr.bf16.gmra.mxu0 %v2398
        %v2476 = vpop.f32.mrf.mxu0
        %v2477 = vadd.f32 0.0, %v2476
        %v2478 = vpop.f32.mrf.mxu0
        %v2479 = vpop.f32.mrf.mxu0
        %v2480 = vadd.f32 0.0, %v2479
        %v2481 = vpop.f32.mrf.mxu0
        %2482 = vmatprep.mubr.bf16.mxu0 0
        %2483 = vmatmul.mubr.bf16.gmra.mxu0 %v2399
        %v2484 = vpop.f32.mrf.mxu0
        %v2485 = vadd.f32 0.0, %v2484
        %v2486 = vpop.f32.mrf.mxu0
        %v2487 = vpop.f32.mrf.mxu0
        %v2488 = vadd.f32 0.0, %v2487
        %v2489 = vpop.f32.mrf.mxu0
        %2490 = vmatprep.mubr.bf16.mxu0 0
        %2491 = vmatmul.mubr.bf16.gmra.mxu0 %v2400
        %v2492 = vpop.f32.mrf.mxu0
        %v2493 = vadd.f32 0.0, %v2492
        %v2494 = vpop.f32.mrf.mxu0
        %v2495 = vpop.f32.mrf.mxu0
        %v2496 = vadd.f32 0.0, %v2495
        %v2497 = vpop.f32.mrf.mxu0
        %2498 = vmatprep.mubr.bf16.mxu0 0
        %2499 = vmatmul.mubr.bf16.gmra.mxu0 %v2401
        %v2500 = vpop.f32.mrf.mxu0
        %v2501 = vadd.f32 0.0, %v2500
        %v2502 = vpop.f32.mrf.mxu0
        %v2503 = vpop.f32.mrf.mxu0
        %v2504 = vadd.f32 0.0, %v2503
        %v2505 = vpop.f32.mrf.mxu0
        %2506 = vmatprep.mubr.bf16.mxu0 0
        %2507 = vmatmul.mubr.bf16.gmra.mxu0 %v2402
        %v2508 = vpop.f32.mrf.mxu0
        %v2509 = vadd.f32 0.0, %v2508
        %v2510 = vpop.f32.mrf.mxu0
        %v2511 = vpop.f32.mrf.mxu0
        %v2512 = vadd.f32 0.0, %v2511
        %v2513 = vpop.f32.mrf.mxu0
        %2514 = vmatprep.mubr.bf16.mxu0 0
        %2515 = vmatmul.mubr.bf16.gmra.mxu0 %v2403
        %v2516 = vpop.f32.mrf.mxu0
        %v2517 = vadd.f32 0.0, %v2516
        %v2518 = vpop.f32.mrf.mxu0
        %v2519 = vpop.f32.mrf.mxu0
        %v2520 = vadd.f32 0.0, %v2519
        %v2521 = vpop.f32.mrf.mxu0
        %2522 = vmatprep.mubr.bf16.mxu0 0
        %2523 = vmatmul.mubr.bf16.gmra.mxu0 %v2404
        %v2524 = vpop.f32.mrf.mxu0
        %v2525 = vadd.f32 0.0, %v2524
        %v2526 = vpop.f32.mrf.mxu0
        %v2527 = vpop.f32.mrf.mxu0
        %v2528 = vadd.f32 0.0, %v2527
        %v2529 = vpop.f32.mrf.mxu0
        %2530 = vmatprep.mubr.bf16.mxu0 0
        %2531 = vmatmul.mubr.bf16.gmra.mxu0 %v2405
        %v2532 = vpop.f32.mrf.mxu0
        %v2533 = vadd.f32 0.0, %v2532
        %v2534 = vpop.f32.mrf.mxu0
        %v2535 = vpop.f32.mrf.mxu0
        %v2536 = vadd.f32 0.0, %v2535
        %v2537 = vpop.f32.mrf.mxu0
        %2538 = vmatprep.mubr.bf16.mxu0 0
        %2539 = vmatmul.mubr.bf16.gmra.mxu0 %v2406
        %v2540 = vpop.f32.mrf.mxu0
        %v2541 = vadd.f32 0.0, %v2540
        %v2542 = vpop.f32.mrf.mxu0
        %v2543 = vpop.f32.mrf.mxu0
        %v2544 = vadd.f32 0.0, %v2543
        %v2545 = vpop.f32.mrf.mxu0
        %2546 = vmatprep.mubr.bf16.mxu0 0
        %2547 = vmatmul.mubr.bf16.gmra.mxu0 %v2407
        %v2548 = vpop.f32.mrf.mxu0
        %v2549 = vadd.f32 0.0, %v2548
        %v2550 = vpop.f32.mrf.mxu0
        %v2551 = vpop.f32.mrf.mxu0
        %v2552 = vadd.f32 0.0, %v2551
        %v2553 = vpop.f32.mrf.mxu0
        %2554 = vmatprep.mubr.bf16.mxu0 0
        %2555 = vmatmul.mubr.bf16.gmra.mxu0 %v2408
        %v2556 = vpop.f32.mrf.mxu0
        %v2557 = vadd.f32 0.0, %v2556
        %v2558 = vpop.f32.mrf.mxu0
        %v2559 = vpop.f32.mrf.mxu0
        %v2560 = vadd.f32 0.0, %v2559
        %v2561 = vpop.f32.mrf.mxu0
        %2562 = vmatprep.mubr.bf16.mxu0 0
        %2563 = vmatmul.mubr.bf16.gmra.mxu0 %v2409
        %v2564 = vpop.f32.mrf.mxu0
        %v2565 = vadd.f32 0.0, %v2564
        %v2566 = vpop.f32.mrf.mxu0
        %v2567 = vpop.f32.mrf.mxu0
        %v2568 = vadd.f32 0.0, %v2567
        %v2569 = vpop.f32.mrf.mxu0
        %2570 = vdwg.mxu0
        %s2571 = scalar_lea.vmem %s1, 128
        %v2572 = vld [vmem:[%s2571] sm:$0xf]
        %v2573 = vld [vmem:[%s2571 + $0x4] sm:$0xf]
        %v2574 = vld [vmem:[%s2571 + $0x8] sm:$0xf]
        %v2575 = vld [vmem:[%s2571 + $0xc] sm:$0xf]
        %v2576 = vld [vmem:[%s2571 + $0x10] sm:$0xf]
        %v2577 = vld [vmem:[%s2571 + $0x14] sm:$0xf]
        %v2578 = vld [vmem:[%s2571 + $0x18] sm:$0xf]
        %v2579 = vld [vmem:[%s2571 + $0x1c] sm:$0xf]
        %v2580 = vld [vmem:[%s2571 + $0x20] sm:$0xf]
        %v2581 = vld [vmem:[%s2571 + $0x24] sm:$0xf]
        %v2582 = vld [vmem:[%s2571 + $0x28] sm:$0xf]
        %v2583 = vld [vmem:[%s2571 + $0x2c] sm:$0xf]
        %v2584 = vld [vmem:[%s2571 + $0x30] sm:$0xf]
        %v2585 = vld [vmem:[%s2571 + $0x34] sm:$0xf]
        %v2586 = vld [vmem:[%s2571 + $0x38] sm:$0xf]
        %v2587 = vld [vmem:[%s2571 + $0x3c] sm:$0xf]
        %v2604 = vunpack.c.l.b16 %v2572
        %v2605 = vunpack.c.l.b16 %v2573
        %v2606 = vunpack.c.l.b16 %v2574
        %v2607 = vunpack.c.l.b16 %v2575
        %v2608 = vunpack.c.l.b16 %v2576
        %v2609 = vunpack.c.l.b16 %v2577
        %v2610 = vunpack.c.l.b16 %v2578
        %v2611 = vunpack.c.l.b16 %v2579
        %v2612 = vunpack.c.l.b16 %v2580
        %v2613 = vunpack.c.l.b16 %v2581
        %v2614 = vunpack.c.l.b16 %v2582
        %v2615 = vunpack.c.l.b16 %v2583
        %v2616 = vunpack.c.l.b16 %v2584
        %v2617 = vunpack.c.l.b16 %v2585
        %v2618 = vunpack.c.l.b16 %v2586
        %v2619 = vunpack.c.l.b16 %v2587
        %v2620 = vpack.c.b16 %v2605, %v2604
        %v2621 = vpack.c.b16 %v2607, %v2606
        %v2622 = vpack.c.b16 %v2609, %v2608
        %v2623 = vpack.c.b16 %v2611, %v2610
        %v2624 = vpack.c.b16 %v2613, %v2612
        %v2625 = vpack.c.b16 %v2615, %v2614
        %v2626 = vpack.c.b16 %v2617, %v2616
        %v2627 = vpack.c.b16 %v2619, %v2618
        %2636 = vmatprep.subr.bf16.mxu0 0
        %2637 = vmatpush1.bf16.msra.mxu0 %v2627
        %2638 = vmatprep.subr.bf16.mxu0 0
        %2639 = vmatpush1.bf16.msra.mxu0 %v2626
        %2640 = vmatprep.subr.bf16.mxu0 0
        %2641 = vmatpush1.bf16.msra.mxu0 %v2625
        %2642 = vmatprep.subr.bf16.mxu0 0
        %2643 = vmatpush1.bf16.msra.mxu0 %v2624
        %2644 = vmatprep.subr.bf16.mxu0 0
        %2645 = vmatpush1.bf16.msra.mxu0 %v2623
        %2646 = vmatprep.subr.bf16.mxu0 0
        %2647 = vmatpush1.bf16.msra.mxu0 %v2622
        %2648 = vmatprep.subr.bf16.mxu0 0
        %2649 = vmatpush1.bf16.msra.mxu0 %v2621
        %2650 = vmatprep.subr.bf16.mxu0 0
        %2651 = vmatpush1.bf16.msra.mxu0 %v2620
        %2652 = vmatprep.subr.bf16.mxu0 0
        %2653 = vmatpush2.bf16.msra.mxu0 0
        %2654 = vmatprep.subr.bf16.mxu0 0
        %2655 = vmatpush2.bf16.msra.mxu0 0
        %2656 = vmatprep.subr.bf16.mxu0 0
        %2657 = vmatpush2.bf16.msra.mxu0 0
        %2658 = vmatprep.subr.bf16.mxu0 0
        %2659 = vmatpush2.bf16.msra.mxu0 0
        %2660 = vmatprep.subr.bf16.mxu0 0
        %2661 = vmatpush2.bf16.msra.mxu0 0
        %2662 = vmatprep.subr.bf16.mxu0 0
        %2663 = vmatpush2.bf16.msra.mxu0 0
        %2664 = vmatprep.subr.bf16.mxu0 0
        %2665 = vmatpush2.bf16.msra.mxu0 0
        %2666 = vmatprep.subr.bf16.mxu0 0
        %2667 = vmatpush2.bf16.msra.mxu0 0
        %2668 = vmatprep.mubr.bf16.mxu0 0
        %2669 = vmatmul.mubr.bf16.gmra.mxu0 %v804
        %v2670 = vpop.f32.mrf.mxu0
        %v2671 = vadd.f32 0.0, %v2670
        %v2672 = vpop.f32.mrf.mxu0
        %v2673 = vpop.f32.mrf.mxu0
        %v2674 = vadd.f32 0.0, %v2673
        %v2675 = vpop.f32.mrf.mxu0
        %2676 = vmatprep.mubr.bf16.mxu0 0
        %2677 = vmatmul.mubr.bf16.gmra.mxu0 %v805
        %v2678 = vpop.f32.mrf.mxu0
        %v2679 = vadd.f32 0.0, %v2678
        %v2680 = vpop.f32.mrf.mxu0
        %v2681 = vpop.f32.mrf.mxu0
        %v2682 = vadd.f32 0.0, %v2681
        %v2683 = vpop.f32.mrf.mxu0
        %2684 = vmatprep.mubr.bf16.mxu0 0
        %2685 = vmatmul.mubr.bf16.gmra.mxu0 %v806
        %v2686 = vpop.f32.mrf.mxu0
        %v2687 = vadd.f32 0.0, %v2686
        %v2688 = vpop.f32.mrf.mxu0
        %v2689 = vpop.f32.mrf.mxu0
        %v2690 = vadd.f32 0.0, %v2689
        %v2691 = vpop.f32.mrf.mxu0
        %2692 = vmatprep.mubr.bf16.mxu0 0
        %2693 = vmatmul.mubr.bf16.gmra.mxu0 %v807
        %v2694 = vpop.f32.mrf.mxu0
        %v2695 = vadd.f32 0.0, %v2694
        %v2696 = vpop.f32.mrf.mxu0
        %v2697 = vpop.f32.mrf.mxu0
        %v2698 = vadd.f32 0.0, %v2697
        %v2699 = vpop.f32.mrf.mxu0
        %2700 = vmatprep.mubr.bf16.mxu0 0
        %2701 = vmatmul.mubr.bf16.gmra.mxu0 %v808
        %v2702 = vpop.f32.mrf.mxu0
        %v2703 = vadd.f32 0.0, %v2702
        %v2704 = vpop.f32.mrf.mxu0
        %v2705 = vpop.f32.mrf.mxu0
        %v2706 = vadd.f32 0.0, %v2705
        %v2707 = vpop.f32.mrf.mxu0
        %2708 = vmatprep.mubr.bf16.mxu0 0
        %2709 = vmatmul.mubr.bf16.gmra.mxu0 %v809
        %v2710 = vpop.f32.mrf.mxu0
        %v2711 = vadd.f32 0.0, %v2710
        %v2712 = vpop.f32.mrf.mxu0
        %v2713 = vpop.f32.mrf.mxu0
        %v2714 = vadd.f32 0.0, %v2713
        %v2715 = vpop.f32.mrf.mxu0
        %2716 = vmatprep.mubr.bf16.mxu0 0
        %2717 = vmatmul.mubr.bf16.gmra.mxu0 %v810
        %v2718 = vpop.f32.mrf.mxu0
        %v2719 = vadd.f32 0.0, %v2718
        %v2720 = vpop.f32.mrf.mxu0
        %v2721 = vpop.f32.mrf.mxu0
        %v2722 = vadd.f32 0.0, %v2721
        %v2723 = vpop.f32.mrf.mxu0
        %2724 = vmatprep.mubr.bf16.mxu0 0
        %2725 = vmatmul.mubr.bf16.gmra.mxu0 %v811
        %v2726 = vpop.f32.mrf.mxu0
        %v2727 = vadd.f32 0.0, %v2726
        %v2728 = vpop.f32.mrf.mxu0
        %v2729 = vpop.f32.mrf.mxu0
        %v2730 = vadd.f32 0.0, %v2729
        %v2731 = vpop.f32.mrf.mxu0
        %2732 = vmatprep.mubr.bf16.mxu0 0
        %2733 = vmatmul.mubr.bf16.gmra.mxu0 %v812
        %v2734 = vpop.f32.mrf.mxu0
        %v2735 = vadd.f32 0.0, %v2734
        %v2736 = vpop.f32.mrf.mxu0
        %v2737 = vpop.f32.mrf.mxu0
        %v2738 = vadd.f32 0.0, %v2737
        %v2739 = vpop.f32.mrf.mxu0
        %2740 = vmatprep.mubr.bf16.mxu0 0
        %2741 = vmatmul.mubr.bf16.gmra.mxu0 %v813
        %v2742 = vpop.f32.mrf.mxu0
        %v2743 = vadd.f32 0.0, %v2742
        %v2744 = vpop.f32.mrf.mxu0
        %v2745 = vpop.f32.mrf.mxu0
        %v2746 = vadd.f32 0.0, %v2745
        %v2747 = vpop.f32.mrf.mxu0
        %2748 = vmatprep.mubr.bf16.mxu0 0
        %2749 = vmatmul.mubr.bf16.gmra.mxu0 %v814
        %v2750 = vpop.f32.mrf.mxu0
        %v2751 = vadd.f32 0.0, %v2750
        %v2752 = vpop.f32.mrf.mxu0
        %v2753 = vpop.f32.mrf.mxu0
        %v2754 = vadd.f32 0.0, %v2753
        %v2755 = vpop.f32.mrf.mxu0
        %2756 = vmatprep.mubr.bf16.mxu0 0
        %2757 = vmatmul.mubr.bf16.gmra.mxu0 %v815
        %v2758 = vpop.f32.mrf.mxu0
        %v2759 = vadd.f32 0.0, %v2758
        %v2760 = vpop.f32.mrf.mxu0
        %v2761 = vpop.f32.mrf.mxu0
        %v2762 = vadd.f32 0.0, %v2761
        %v2763 = vpop.f32.mrf.mxu0
        %2764 = vmatprep.mubr.bf16.mxu0 0
        %2765 = vmatmul.mubr.bf16.gmra.mxu0 %v816
        %v2766 = vpop.f32.mrf.mxu0
        %v2767 = vadd.f32 0.0, %v2766
        %v2768 = vpop.f32.mrf.mxu0
        %v2769 = vpop.f32.mrf.mxu0
        %v2770 = vadd.f32 0.0, %v2769
        %v2771 = vpop.f32.mrf.mxu0
        %2772 = vmatprep.mubr.bf16.mxu0 0
        %2773 = vmatmul.mubr.bf16.gmra.mxu0 %v817
        %v2774 = vpop.f32.mrf.mxu0
        %v2775 = vadd.f32 0.0, %v2774
        %v2776 = vpop.f32.mrf.mxu0
        %v2777 = vpop.f32.mrf.mxu0
        %v2778 = vadd.f32 0.0, %v2777
        %v2779 = vpop.f32.mrf.mxu0
        %2780 = vmatprep.mubr.bf16.mxu0 0
        %2781 = vmatmul.mubr.bf16.gmra.mxu0 %v818
        %v2782 = vpop.f32.mrf.mxu0
        %v2783 = vadd.f32 0.0, %v2782
        %v2784 = vpop.f32.mrf.mxu0
        %v2785 = vpop.f32.mrf.mxu0
        %v2786 = vadd.f32 0.0, %v2785
        %v2787 = vpop.f32.mrf.mxu0
        %2788 = vmatprep.mubr.bf16.mxu0 0
        %2789 = vmatmul.mubr.bf16.gmra.mxu0 %v819
        %v2790 = vpop.f32.mrf.mxu0
        %v2791 = vadd.f32 0.0, %v2790
        %v2792 = vpop.f32.mrf.mxu0
        %v2793 = vpop.f32.mrf.mxu0
        %v2794 = vadd.f32 0.0, %v2793
        %v2795 = vpop.f32.mrf.mxu0
        %2796 = vdwg.mxu0
        %v2797 = vpack.c.bf16 %v2674, %v2671
        %v2798 = vpack.c.bf16 %v2682, %v2679
        %v2799 = vpack.c.bf16 %v2690, %v2687
        %v2800 = vpack.c.bf16 %v2698, %v2695
        %v2801 = vpack.c.bf16 %v2706, %v2703
        %v2802 = vpack.c.bf16 %v2714, %v2711
        %v2803 = vpack.c.bf16 %v2722, %v2719
        %v2804 = vpack.c.bf16 %v2730, %v2727
        %v2805 = vpack.c.bf16 %v2738, %v2735
        %v2806 = vpack.c.bf16 %v2746, %v2743
        %v2807 = vpack.c.bf16 %v2754, %v2751
        %v2808 = vpack.c.bf16 %v2762, %v2759
        %v2809 = vpack.c.bf16 %v2770, %v2767
        %v2810 = vpack.c.bf16 %v2778, %v2775
        %v2811 = vpack.c.bf16 %v2786, %v2783
        %v2812 = vpack.c.bf16 %v2794, %v2791
        %s2813 = scalar_lea.vmem %s2, 128
        %v2814 = vld [vmem:[%s2813] sm:$0xf]
        %v2815 = vld [vmem:[%s2813 + $0x4] sm:$0xf]
        %v2816 = vld [vmem:[%s2813 + $0x8] sm:$0xf]
        %v2817 = vld [vmem:[%s2813 + $0xc] sm:$0xf]
        %v2818 = vld [vmem:[%s2813 + $0x10] sm:$0xf]
        %v2819 = vld [vmem:[%s2813 + $0x14] sm:$0xf]
        %v2820 = vld [vmem:[%s2813 + $0x18] sm:$0xf]
        %v2821 = vld [vmem:[%s2813 + $0x1c] sm:$0xf]
        %v2822 = vld [vmem:[%s2813 + $0x20] sm:$0xf]
        %v2823 = vld [vmem:[%s2813 + $0x24] sm:$0xf]
        %v2824 = vld [vmem:[%s2813 + $0x28] sm:$0xf]
        %v2825 = vld [vmem:[%s2813 + $0x2c] sm:$0xf]
        %v2826 = vld [vmem:[%s2813 + $0x30] sm:$0xf]
        %v2827 = vld [vmem:[%s2813 + $0x34] sm:$0xf]
        %v2828 = vld [vmem:[%s2813 + $0x38] sm:$0xf]
        %v2829 = vld [vmem:[%s2813 + $0x3c] sm:$0xf]
        %s2830 = scalar_lea.vmem %s3, 2
        %v2831 = vld [vmem:[%s2830] sm:$0x1]
        %v2833 = vlaneseq
        %v2834 = vshrl.u32 %v2833, 7
        %v2835 = vsub.s32 0, %v2834
        %v2836 = vrot.slane %v2831, %v2835
        %v2854 = vunpack.c.l.b16 %v2814
        %v2855 = vunpack.c.l.b16 %v2815
        %v2856 = vunpack.c.l.b16 %v2816
        %v2857 = vunpack.c.l.b16 %v2817
        %v2858 = vunpack.c.l.b16 %v2818
        %v2859 = vunpack.c.l.b16 %v2819
        %v2860 = vunpack.c.l.b16 %v2820
        %v2861 = vunpack.c.l.b16 %v2821
        %v2862 = vunpack.c.l.b16 %v2822
        %v2863 = vunpack.c.l.b16 %v2823
        %v2864 = vunpack.c.l.b16 %v2824
        %v2865 = vunpack.c.l.b16 %v2825
        %v2866 = vunpack.c.l.b16 %v2826
        %v2867 = vunpack.c.l.b16 %v2827
        %v2868 = vunpack.c.l.b16 %v2828
        %v2869 = vunpack.c.l.b16 %v2829
        %v2870 = vpack.c.b16 %v2855, %v2854
        %v2871 = vpack.c.b16 %v2857, %v2856
        %v2872 = vpack.c.b16 %v2859, %v2858
        %v2873 = vpack.c.b16 %v2861, %v2860
        %v2874 = vpack.c.b16 %v2863, %v2862
        %v2875 = vpack.c.b16 %v2865, %v2864
        %v2876 = vpack.c.b16 %v2867, %v2866
        %v2877 = vpack.c.b16 %v2869, %v2868
        %2886 = vmatprep.subr.bf16.mxu0 0
        %2887 = vmatpush1.bf16.msra.mxu0 %v2877
        %2888 = vmatprep.subr.bf16.mxu0 0
        %2889 = vmatpush1.bf16.msra.mxu0 %v2876
        %2890 = vmatprep.subr.bf16.mxu0 0
        %2891 = vmatpush1.bf16.msra.mxu0 %v2875
        %2892 = vmatprep.subr.bf16.mxu0 0
        %2893 = vmatpush1.bf16.msra.mxu0 %v2874
        %2894 = vmatprep.subr.bf16.mxu0 0
        %2895 = vmatpush1.bf16.msra.mxu0 %v2873
        %2896 = vmatprep.subr.bf16.mxu0 0
        %2897 = vmatpush1.bf16.msra.mxu0 %v2872
        %2898 = vmatprep.subr.bf16.mxu0 0
        %2899 = vmatpush1.bf16.msra.mxu0 %v2871
        %2900 = vmatprep.subr.bf16.mxu0 0
        %2901 = vmatpush1.bf16.msra.mxu0 %v2870
        %2902 = vmatprep.subr.bf16.mxu0 0
        %2903 = vmatpush2.bf16.msra.mxu0 0
        %2904 = vmatprep.subr.bf16.mxu0 0
        %2905 = vmatpush2.bf16.msra.mxu0 0
        %2906 = vmatprep.subr.bf16.mxu0 0
        %2907 = vmatpush2.bf16.msra.mxu0 0
        %2908 = vmatprep.subr.bf16.mxu0 0
        %2909 = vmatpush2.bf16.msra.mxu0 0
        %2910 = vmatprep.subr.bf16.mxu0 0
        %2911 = vmatpush2.bf16.msra.mxu0 0
        %2912 = vmatprep.subr.bf16.mxu0 0
        %2913 = vmatpush2.bf16.msra.mxu0 0
        %2914 = vmatprep.subr.bf16.mxu0 0
        %2915 = vmatpush2.bf16.msra.mxu0 0
        %2916 = vmatprep.subr.bf16.mxu0 0
        %2917 = vmatpush2.bf16.msra.mxu0 0
        %2918 = vmatprep.mubr.bf16.mxu0 0
        %2919 = vmatmul.mubr.bf16.gmra.mxu0 %v2797
        %v2920 = vpop.f32.mrf.mxu0
        %v2921 = vadd.f32 %v2836, %v2920
        %v2922 = vpop.f32.mrf.mxu0
        %v2923 = vpop.f32.mrf.mxu0
        %v2924 = vadd.f32 %v2836, %v2923
        %v2925 = vpop.f32.mrf.mxu0
        %2926 = vmatprep.mubr.bf16.mxu0 0
        %2927 = vmatmul.mubr.bf16.gmra.mxu0 %v2798
        %v2928 = vpop.f32.mrf.mxu0
        %v2929 = vadd.f32 %v2836, %v2928
        %v2930 = vpop.f32.mrf.mxu0
        %v2931 = vpop.f32.mrf.mxu0
        %v2932 = vadd.f32 %v2836, %v2931
        %v2933 = vpop.f32.mrf.mxu0
        %2934 = vmatprep.mubr.bf16.mxu0 0
        %2935 = vmatmul.mubr.bf16.gmra.mxu0 %v2799
        %v2936 = vpop.f32.mrf.mxu0
        %v2937 = vadd.f32 %v2836, %v2936
        %v2938 = vpop.f32.mrf.mxu0
        %v2939 = vpop.f32.mrf.mxu0
        %v2940 = vadd.f32 %v2836, %v2939
        %v2941 = vpop.f32.mrf.mxu0
        %2942 = vmatprep.mubr.bf16.mxu0 0
        %2943 = vmatmul.mubr.bf16.gmra.mxu0 %v2800
        %v2944 = vpop.f32.mrf.mxu0
        %v2945 = vadd.f32 %v2836, %v2944
        %v2946 = vpop.f32.mrf.mxu0
        %v2947 = vpop.f32.mrf.mxu0
        %v2948 = vadd.f32 %v2836, %v2947
        %v2949 = vpop.f32.mrf.mxu0
        %2950 = vmatprep.mubr.bf16.mxu0 0
        %2951 = vmatmul.mubr.bf16.gmra.mxu0 %v2801
        %v2952 = vpop.f32.mrf.mxu0
        %v2953 = vadd.f32 %v2836, %v2952
        %v2954 = vpop.f32.mrf.mxu0
        %v2955 = vpop.f32.mrf.mxu0
        %v2956 = vadd.f32 %v2836, %v2955
        %v2957 = vpop.f32.mrf.mxu0
        %2958 = vmatprep.mubr.bf16.mxu0 0
        %2959 = vmatmul.mubr.bf16.gmra.mxu0 %v2802
        %v2960 = vpop.f32.mrf.mxu0
        %v2961 = vadd.f32 %v2836, %v2960
        %v2962 = vpop.f32.mrf.mxu0
        %v2963 = vpop.f32.mrf.mxu0
        %v2964 = vadd.f32 %v2836, %v2963
        %v2965 = vpop.f32.mrf.mxu0
        %2966 = vmatprep.mubr.bf16.mxu0 0
        %2967 = vmatmul.mubr.bf16.gmra.mxu0 %v2803
        %v2968 = vpop.f32.mrf.mxu0
        %v2969 = vadd.f32 %v2836, %v2968
        %v2970 = vpop.f32.mrf.mxu0
        %v2971 = vpop.f32.mrf.mxu0
        %v2972 = vadd.f32 %v2836, %v2971
        %v2973 = vpop.f32.mrf.mxu0
        %2974 = vmatprep.mubr.bf16.mxu0 0
        %2975 = vmatmul.mubr.bf16.gmra.mxu0 %v2804
        %v2976 = vpop.f32.mrf.mxu0
        %v2977 = vadd.f32 %v2836, %v2976
        %v2978 = vpop.f32.mrf.mxu0
        %v2979 = vpop.f32.mrf.mxu0
        %v2980 = vadd.f32 %v2836, %v2979
        %v2981 = vpop.f32.mrf.mxu0
        %2982 = vmatprep.mubr.bf16.mxu0 0
        %2983 = vmatmul.mubr.bf16.gmra.mxu0 %v2805
        %v2984 = vpop.f32.mrf.mxu0
        %v2985 = vadd.f32 %v2836, %v2984
        %v2986 = vpop.f32.mrf.mxu0
        %v2987 = vpop.f32.mrf.mxu0
        %v2988 = vadd.f32 %v2836, %v2987
        %v2989 = vpop.f32.mrf.mxu0
        %2990 = vmatprep.mubr.bf16.mxu0 0
        %2991 = vmatmul.mubr.bf16.gmra.mxu0 %v2806
        %v2992 = vpop.f32.mrf.mxu0
        %v2993 = vadd.f32 %v2836, %v2992
        %v2994 = vpop.f32.mrf.mxu0
        %v2995 = vpop.f32.mrf.mxu0
        %v2996 = vadd.f32 %v2836, %v2995
        %v2997 = vpop.f32.mrf.mxu0
        %2998 = vmatprep.mubr.bf16.mxu0 0
        %2999 = vmatmul.mubr.bf16.gmra.mxu0 %v2807
        %v3000 = vpop.f32.mrf.mxu0
        %v3001 = vadd.f32 %v2836, %v3000
        %v3002 = vpop.f32.mrf.mxu0
        %v3003 = vpop.f32.mrf.mxu0
        %v3004 = vadd.f32 %v2836, %v3003
        %v3005 = vpop.f32.mrf.mxu0
        %3006 = vmatprep.mubr.bf16.mxu0 0
        %3007 = vmatmul.mubr.bf16.gmra.mxu0 %v2808
        %v3008 = vpop.f32.mrf.mxu0
        %v3009 = vadd.f32 %v2836, %v3008
        %v3010 = vpop.f32.mrf.mxu0
        %v3011 = vpop.f32.mrf.mxu0
        %v3012 = vadd.f32 %v2836, %v3011
        %v3013 = vpop.f32.mrf.mxu0
        %3014 = vmatprep.mubr.bf16.mxu0 0
        %3015 = vmatmul.mubr.bf16.gmra.mxu0 %v2809
        %v3016 = vpop.f32.mrf.mxu0
        %v3017 = vadd.f32 %v2836, %v3016
        %v3018 = vpop.f32.mrf.mxu0
        %v3019 = vpop.f32.mrf.mxu0
        %v3020 = vadd.f32 %v2836, %v3019
        %v3021 = vpop.f32.mrf.mxu0
        %3022 = vmatprep.mubr.bf16.mxu0 0
        %3023 = vmatmul.mubr.bf16.gmra.mxu0 %v2810
        %v3024 = vpop.f32.mrf.mxu0
        %v3025 = vadd.f32 %v2836, %v3024
        %v3026 = vpop.f32.mrf.mxu0
        %v3027 = vpop.f32.mrf.mxu0
        %v3028 = vadd.f32 %v2836, %v3027
        %v3029 = vpop.f32.mrf.mxu0
        %3030 = vmatprep.mubr.bf16.mxu0 0
        %3031 = vmatmul.mubr.bf16.gmra.mxu0 %v2811
        %v3032 = vpop.f32.mrf.mxu0
        %v3033 = vadd.f32 %v2836, %v3032
        %v3034 = vpop.f32.mrf.mxu0
        %v3035 = vpop.f32.mrf.mxu0
        %v3036 = vadd.f32 %v2836, %v3035
        %v3037 = vpop.f32.mrf.mxu0
        %3038 = vmatprep.mubr.bf16.mxu0 0
        %3039 = vmatmul.mubr.bf16.gmra.mxu0 %v2812
        %v3040 = vpop.f32.mrf.mxu0
        %v3041 = vadd.f32 %v2836, %v3040
        %v3042 = vpop.f32.mrf.mxu0
        %v3043 = vpop.f32.mrf.mxu0
        %v3044 = vadd.f32 %v2836, %v3043
        %v3045 = vpop.f32.mrf.mxu0
        %3046 = vdwg.mxu0
        %vm3047 = vcmp.gt.f32.partialorder %v2921, 0.0
        %vm3048 = vcmp.gt.f32.partialorder %v2924, 0.0
        %vm3049 = vcmp.gt.f32.partialorder %v2929, 0.0
        %vm3050 = vcmp.gt.f32.partialorder %v2932, 0.0
        %vm3051 = vcmp.gt.f32.partialorder %v2937, 0.0
        %vm3052 = vcmp.gt.f32.partialorder %v2940, 0.0
        %vm3053 = vcmp.gt.f32.partialorder %v2945, 0.0
        %vm3054 = vcmp.gt.f32.partialorder %v2948, 0.0
        %vm3055 = vcmp.gt.f32.partialorder %v2953, 0.0
        %vm3056 = vcmp.gt.f32.partialorder %v2956, 0.0
        %vm3057 = vcmp.gt.f32.partialorder %v2961, 0.0
        %vm3058 = vcmp.gt.f32.partialorder %v2964, 0.0
        %vm3059 = vcmp.gt.f32.partialorder %v2969, 0.0
        %vm3060 = vcmp.gt.f32.partialorder %v2972, 0.0
        %vm3061 = vcmp.gt.f32.partialorder %v2977, 0.0
        %vm3062 = vcmp.gt.f32.partialorder %v2980, 0.0
        %vm3063 = vcmp.gt.f32.partialorder %v2985, 0.0
        %vm3064 = vcmp.gt.f32.partialorder %v2988, 0.0
        %vm3065 = vcmp.gt.f32.partialorder %v2993, 0.0
        %vm3066 = vcmp.gt.f32.partialorder %v2996, 0.0
        %vm3067 = vcmp.gt.f32.partialorder %v3001, 0.0
        %vm3068 = vcmp.gt.f32.partialorder %v3004, 0.0
        %vm3069 = vcmp.gt.f32.partialorder %v3009, 0.0
        %vm3070 = vcmp.gt.f32.partialorder %v3012, 0.0
        %vm3071 = vcmp.gt.f32.partialorder %v3017, 0.0
        %vm3072 = vcmp.gt.f32.partialorder %v3020, 0.0
        %vm3073 = vcmp.gt.f32.partialorder %v3025, 0.0
        %vm3074 = vcmp.gt.f32.partialorder %v3028, 0.0
        %vm3075 = vcmp.gt.f32.partialorder %v3033, 0.0
        %vm3076 = vcmp.gt.f32.partialorder %v3036, 0.0
        %vm3077 = vcmp.gt.f32.partialorder %v3041, 0.0
        %vm3078 = vcmp.gt.f32.partialorder %v3044, 0.0
        %v3079 = vmin.f32 %v2921, 0.0
        %v3080 = vmin.f32 %v2924, 0.0
        %v3081 = vmin.f32 %v2929, 0.0
        %v3082 = vmin.f32 %v2932, 0.0
        %v3083 = vmin.f32 %v2937, 0.0
        %v3084 = vmin.f32 %v2940, 0.0
        %v3085 = vmin.f32 %v2945, 0.0
        %v3086 = vmin.f32 %v2948, 0.0
        %v3087 = vmin.f32 %v2953, 0.0
        %v3088 = vmin.f32 %v2956, 0.0
        %v3089 = vmin.f32 %v2961, 0.0
        %v3090 = vmin.f32 %v2964, 0.0
        %v3091 = vmin.f32 %v2969, 0.0
        %v3092 = vmin.f32 %v2972, 0.0
        %v3093 = vmin.f32 %v2977, 0.0
        %v3094 = vmin.f32 %v2980, 0.0
        %v3095 = vmin.f32 %v2985, 0.0
        %v3096 = vmin.f32 %v2988, 0.0
        %v3097 = vmin.f32 %v2993, 0.0
        %v3098 = vmin.f32 %v2996, 0.0
        %v3099 = vmin.f32 %v3001, 0.0
        %v3100 = vmin.f32 %v3004, 0.0
        %v3101 = vmin.f32 %v3009, 0.0
        %v3102 = vmin.f32 %v3012, 0.0
        %v3103 = vmin.f32 %v3017, 0.0
        %v3104 = vmin.f32 %v3020, 0.0
        %v3105 = vmin.f32 %v3025, 0.0
        %v3106 = vmin.f32 %v3028, 0.0
        %v3107 = vmin.f32 %v3033, 0.0
        %v3108 = vmin.f32 %v3036, 0.0
        %v3109 = vmin.f32 %v3041, 0.0
        %v3110 = vmin.f32 %v3044, 0.0
        %v3111 = vmul.f32 %v3079, 1.442695
        %v3112 = vpow.pop %v3111
        %v3113 = vmul.f32 %v3080, 1.442695
        %v3114 = vpow.pop %v3113
        %v3115 = vmul.f32 %v3081, 1.442695
        %v3116 = vpow.pop %v3115
        %v3117 = vmul.f32 %v3082, 1.442695
        %v3118 = vpow.pop %v3117
        %v3119 = vmul.f32 %v3083, 1.442695
        %v3120 = vpow.pop %v3119
        %v3121 = vmul.f32 %v3084, 1.442695
        %v3122 = vpow.pop %v3121
        %v3123 = vmul.f32 %v3085, 1.442695
        %v3124 = vpow.pop %v3123
        %v3125 = vmul.f32 %v3086, 1.442695
        %v3126 = vpow.pop %v3125
        %v3127 = vmul.f32 %v3087, 1.442695
        %v3128 = vpow.pop %v3127
        %v3129 = vmul.f32 %v3088, 1.442695
        %v3130 = vpow.pop %v3129
        %v3131 = vmul.f32 %v3089, 1.442695
        %v3132 = vpow.pop %v3131
        %v3133 = vmul.f32 %v3090, 1.442695
        %v3134 = vpow.pop %v3133
        %v3135 = vmul.f32 %v3091, 1.442695
        %v3136 = vpow.pop %v3135
        %v3137 = vmul.f32 %v3092, 1.442695
        %v3138 = vpow.pop %v3137
        %v3139 = vmul.f32 %v3093, 1.442695
        %v3140 = vpow.pop %v3139
        %v3141 = vmul.f32 %v3094, 1.442695
        %v3142 = vpow.pop %v3141
        %v3143 = vmul.f32 %v3095, 1.442695
        %v3144 = vpow.pop %v3143
        %v3145 = vmul.f32 %v3096, 1.442695
        %v3146 = vpow.pop %v3145
        %v3147 = vmul.f32 %v3097, 1.442695
        %v3148 = vpow.pop %v3147
        %v3149 = vmul.f32 %v3098, 1.442695
        %v3150 = vpow.pop %v3149
        %v3151 = vmul.f32 %v3099, 1.442695
        %v3152 = vpow.pop %v3151
        %v3153 = vmul.f32 %v3100, 1.442695
        %v3154 = vpow.pop %v3153
        %v3155 = vmul.f32 %v3101, 1.442695
        %v3156 = vpow.pop %v3155
        %v3157 = vmul.f32 %v3102, 1.442695
        %v3158 = vpow.pop %v3157
        %v3159 = vmul.f32 %v3103, 1.442695
        %v3160 = vpow.pop %v3159
        %v3161 = vmul.f32 %v3104, 1.442695
        %v3162 = vpow.pop %v3161
        %v3163 = vmul.f32 %v3105, 1.442695
        %v3164 = vpow.pop %v3163
        %v3165 = vmul.f32 %v3106, 1.442695
        %v3166 = vpow.pop %v3165
        %v3167 = vmul.f32 %v3107, 1.442695
        %v3168 = vpow.pop %v3167
        %v3169 = vmul.f32 %v3108, 1.442695
        %v3170 = vpow.pop %v3169
        %v3171 = vmul.f32 %v3109, 1.442695
        %v3172 = vpow.pop %v3171
        %v3173 = vmul.f32 %v3110, 1.442695
        %v3174 = vpow.pop %v3173
        %v3175 = vsub.f32 %v3112, 1.0
        %v3176 = vsub.f32 %v3114, 1.0
        %v3177 = vsub.f32 %v3116, 1.0
        %v3178 = vsub.f32 %v3118, 1.0
        %v3179 = vsub.f32 %v3120, 1.0
        %v3180 = vsub.f32 %v3122, 1.0
        %v3181 = vsub.f32 %v3124, 1.0
        %v3182 = vsub.f32 %v3126, 1.0
        %v3183 = vsub.f32 %v3128, 1.0
        %v3184 = vsub.f32 %v3130, 1.0
        %v3185 = vsub.f32 %v3132, 1.0
        %v3186 = vsub.f32 %v3134, 1.0
        %v3187 = vsub.f32 %v3136, 1.0
        %v3188 = vsub.f32 %v3138, 1.0
        %v3189 = vsub.f32 %v3140, 1.0
        %v3190 = vsub.f32 %v3142, 1.0
        %v3191 = vsub.f32 %v3144, 1.0
        %v3192 = vsub.f32 %v3146, 1.0
        %v3193 = vsub.f32 %v3148, 1.0
        %v3194 = vsub.f32 %v3150, 1.0
        %v3195 = vsub.f32 %v3152, 1.0
        %v3196 = vsub.f32 %v3154, 1.0
        %v3197 = vsub.f32 %v3156, 1.0
        %v3198 = vsub.f32 %v3158, 1.0
        %v3199 = vsub.f32 %v3160, 1.0
        %v3200 = vsub.f32 %v3162, 1.0
        %v3201 = vsub.f32 %v3164, 1.0
        %v3202 = vsub.f32 %v3166, 1.0
        %v3203 = vsub.f32 %v3168, 1.0
        %v3204 = vsub.f32 %v3170, 1.0
        %v3205 = vsub.f32 %v3172, 1.0
        %v3206 = vsub.f32 %v3174, 1.0
        %v3207 = vsel %vm3047, %v2921, %v3175
        %v3208 = vsel %vm3048, %v2924, %v3176
        %v3209 = vsel %vm3049, %v2929, %v3177
        %v3210 = vsel %vm3050, %v2932, %v3178
        %v3211 = vsel %vm3051, %v2937, %v3179
        %v3212 = vsel %vm3052, %v2940, %v3180
        %v3213 = vsel %vm3053, %v2945, %v3181
        %v3214 = vsel %vm3054, %v2948, %v3182
        %v3215 = vsel %vm3055, %v2953, %v3183
        %v3216 = vsel %vm3056, %v2956, %v3184
        %v3217 = vsel %vm3057, %v2961, %v3185
        %v3218 = vsel %vm3058, %v2964, %v3186
        %v3219 = vsel %vm3059, %v2969, %v3187
        %v3220 = vsel %vm3060, %v2972, %v3188
        %v3221 = vsel %vm3061, %v2977, %v3189
        %v3222 = vsel %vm3062, %v2980, %v3190
        %v3223 = vsel %vm3063, %v2985, %v3191
        %v3224 = vsel %vm3064, %v2988, %v3192
        %v3225 = vsel %vm3065, %v2993, %v3193
        %v3226 = vsel %vm3066, %v2996, %v3194
        %v3227 = vsel %vm3067, %v3001, %v3195
        %v3228 = vsel %vm3068, %v3004, %v3196
        %v3229 = vsel %vm3069, %v3009, %v3197
        %v3230 = vsel %vm3070, %v3012, %v3198
        %v3231 = vsel %vm3071, %v3017, %v3199
        %v3232 = vsel %vm3072, %v3020, %v3200
        %v3233 = vsel %vm3073, %v3025, %v3201
        %v3234 = vsel %vm3074, %v3028, %v3202
        %v3235 = vsel %vm3075, %v3033, %v3203
        %v3236 = vsel %vm3076, %v3036, %v3204
        %v3237 = vsel %vm3077, %v3041, %v3205
        %v3238 = vsel %vm3078, %v3044, %v3206
        %v3239 = vpack.c.bf16 %v3208, %v3207
        %v3240 = vpack.c.bf16 %v3210, %v3209
        %v3241 = vpack.c.bf16 %v3212, %v3211
        %v3242 = vpack.c.bf16 %v3214, %v3213
        %v3243 = vpack.c.bf16 %v3216, %v3215
        %v3244 = vpack.c.bf16 %v3218, %v3217
        %v3245 = vpack.c.bf16 %v3220, %v3219
        %v3246 = vpack.c.bf16 %v3222, %v3221
        %v3247 = vpack.c.bf16 %v3224, %v3223
        %v3248 = vpack.c.bf16 %v3226, %v3225
        %v3249 = vpack.c.bf16 %v3228, %v3227
        %v3250 = vpack.c.bf16 %v3230, %v3229
        %v3251 = vpack.c.bf16 %v3232, %v3231
        %v3252 = vpack.c.bf16 %v3234, %v3233
        %v3253 = vpack.c.bf16 %v3236, %v3235
        %v3254 = vpack.c.bf16 %v3238, %v3237
        %3255 = vmatprep.subr.bf16.mxu0 0
        %3256 = vmatpush1.bf16.msra.mxu0 %v1556
        %3257 = vmatprep.subr.bf16.mxu0 0
        %3258 = vmatpush1.bf16.msra.mxu0 %v1555
        %3259 = vmatprep.subr.bf16.mxu0 0
        %3260 = vmatpush1.bf16.msra.mxu0 %v1554
        %3261 = vmatprep.subr.bf16.mxu0 0
        %3262 = vmatpush1.bf16.msra.mxu0 %v1553
        %3263 = vmatprep.subr.bf16.mxu0 0
        %3264 = vmatpush1.bf16.msra.mxu0 %v1552
        %3265 = vmatprep.subr.bf16.mxu0 0
        %3266 = vmatpush1.bf16.msra.mxu0 %v1551
        %3267 = vmatprep.subr.bf16.mxu0 0
        %3268 = vmatpush1.bf16.msra.mxu0 %v1550
        %3269 = vmatprep.subr.bf16.mxu0 0
        %3270 = vmatpush1.bf16.msra.mxu0 %v1549
        %3271 = vmatprep.subr.bf16.mxu0 0
        %3272 = vmatpush2.bf16.msra.mxu0 0
        %3273 = vmatprep.subr.bf16.mxu0 0
        %3274 = vmatpush2.bf16.msra.mxu0 0
        %3275 = vmatprep.subr.bf16.mxu0 0
        %3276 = vmatpush2.bf16.msra.mxu0 0
        %3277 = vmatprep.subr.bf16.mxu0 0
        %3278 = vmatpush2.bf16.msra.mxu0 0
        %3279 = vmatprep.subr.bf16.mxu0 0
        %3280 = vmatpush2.bf16.msra.mxu0 0
        %3281 = vmatprep.subr.bf16.mxu0 0
        %3282 = vmatpush2.bf16.msra.mxu0 0
        %3283 = vmatprep.subr.bf16.mxu0 0
        %3284 = vmatpush2.bf16.msra.mxu0 0
        %3285 = vmatprep.subr.bf16.mxu0 0
        %3286 = vmatpush2.bf16.msra.mxu0 0
        %3287 = vmatprep.mubr.bf16.mxu0 0
        %3288 = vmatmul.mubr.bf16.gmra.mxu0 %v3239
        %v3289 = vpop.f32.mrf.mxu0
        %v3290 = vadd.f32 0.0, %v3289
        %v3291 = vpop.f32.mrf.mxu0
        %v3292 = vpop.f32.mrf.mxu0
        %v3293 = vadd.f32 0.0, %v3292
        %v3294 = vpop.f32.mrf.mxu0
        %3295 = vmatprep.mubr.bf16.mxu0 0
        %3296 = vmatmul.mubr.bf16.gmra.mxu0 %v3240
        %v3297 = vpop.f32.mrf.mxu0
        %v3298 = vadd.f32 0.0, %v3297
        %v3299 = vpop.f32.mrf.mxu0
        %v3300 = vpop.f32.mrf.mxu0
        %v3301 = vadd.f32 0.0, %v3300
        %v3302 = vpop.f32.mrf.mxu0
        %3303 = vmatprep.mubr.bf16.mxu0 0
        %3304 = vmatmul.mubr.bf16.gmra.mxu0 %v3241
        %v3305 = vpop.f32.mrf.mxu0
        %v3306 = vadd.f32 0.0, %v3305
        %v3307 = vpop.f32.mrf.mxu0
        %v3308 = vpop.f32.mrf.mxu0
        %v3309 = vadd.f32 0.0, %v3308
        %v3310 = vpop.f32.mrf.mxu0
        %3311 = vmatprep.mubr.bf16.mxu0 0
        %3312 = vmatmul.mubr.bf16.gmra.mxu0 %v3242
        %v3313 = vpop.f32.mrf.mxu0
        %v3314 = vadd.f32 0.0, %v3313
        %v3315 = vpop.f32.mrf.mxu0
        %v3316 = vpop.f32.mrf.mxu0
        %v3317 = vadd.f32 0.0, %v3316
        %v3318 = vpop.f32.mrf.mxu0
        %3319 = vmatprep.mubr.bf16.mxu0 0
        %3320 = vmatmul.mubr.bf16.gmra.mxu0 %v3243
        %v3321 = vpop.f32.mrf.mxu0
        %v3322 = vadd.f32 0.0, %v3321
        %v3323 = vpop.f32.mrf.mxu0
        %v3324 = vpop.f32.mrf.mxu0
        %v3325 = vadd.f32 0.0, %v3324
        %v3326 = vpop.f32.mrf.mxu0
        %3327 = vmatprep.mubr.bf16.mxu0 0
        %3328 = vmatmul.mubr.bf16.gmra.mxu0 %v3244
        %v3329 = vpop.f32.mrf.mxu0
        %v3330 = vadd.f32 0.0, %v3329
        %v3331 = vpop.f32.mrf.mxu0
        %v3332 = vpop.f32.mrf.mxu0
        %v3333 = vadd.f32 0.0, %v3332
        %v3334 = vpop.f32.mrf.mxu0
        %3335 = vmatprep.mubr.bf16.mxu0 0
        %3336 = vmatmul.mubr.bf16.gmra.mxu0 %v3245
        %v3337 = vpop.f32.mrf.mxu0
        %v3338 = vadd.f32 0.0, %v3337
        %v3339 = vpop.f32.mrf.mxu0
        %v3340 = vpop.f32.mrf.mxu0
        %v3341 = vadd.f32 0.0, %v3340
        %v3342 = vpop.f32.mrf.mxu0
        %3343 = vmatprep.mubr.bf16.mxu0 0
        %3344 = vmatmul.mubr.bf16.gmra.mxu0 %v3246
        %v3345 = vpop.f32.mrf.mxu0
        %v3346 = vadd.f32 0.0, %v3345
        %v3347 = vpop.f32.mrf.mxu0
        %v3348 = vpop.f32.mrf.mxu0
        %v3349 = vadd.f32 0.0, %v3348
        %v3350 = vpop.f32.mrf.mxu0
        %3351 = vmatprep.mubr.bf16.mxu0 0
        %3352 = vmatmul.mubr.bf16.gmra.mxu0 %v3247
        %v3353 = vpop.f32.mrf.mxu0
        %v3354 = vadd.f32 0.0, %v3353
        %v3355 = vpop.f32.mrf.mxu0
        %v3356 = vpop.f32.mrf.mxu0
        %v3357 = vadd.f32 0.0, %v3356
        %v3358 = vpop.f32.mrf.mxu0
        %3359 = vmatprep.mubr.bf16.mxu0 0
        %3360 = vmatmul.mubr.bf16.gmra.mxu0 %v3248
        %v3361 = vpop.f32.mrf.mxu0
        %v3362 = vadd.f32 0.0, %v3361
        %v3363 = vpop.f32.mrf.mxu0
        %v3364 = vpop.f32.mrf.mxu0
        %v3365 = vadd.f32 0.0, %v3364
        %v3366 = vpop.f32.mrf.mxu0
        %3367 = vmatprep.mubr.bf16.mxu0 0
        %3368 = vmatmul.mubr.bf16.gmra.mxu0 %v3249
        %v3369 = vpop.f32.mrf.mxu0
        %v3370 = vadd.f32 0.0, %v3369
        %v3371 = vpop.f32.mrf.mxu0
        %v3372 = vpop.f32.mrf.mxu0
        %v3373 = vadd.f32 0.0, %v3372
        %v3374 = vpop.f32.mrf.mxu0
        %3375 = vmatprep.mubr.bf16.mxu0 0
        %3376 = vmatmul.mubr.bf16.gmra.mxu0 %v3250
        %v3377 = vpop.f32.mrf.mxu0
        %v3378 = vadd.f32 0.0, %v3377
        %v3379 = vpop.f32.mrf.mxu0
        %v3380 = vpop.f32.mrf.mxu0
        %v3381 = vadd.f32 0.0, %v3380
        %v3382 = vpop.f32.mrf.mxu0
        %3383 = vmatprep.mubr.bf16.mxu0 0
        %3384 = vmatmul.mubr.bf16.gmra.mxu0 %v3251
        %v3385 = vpop.f32.mrf.mxu0
        %v3386 = vadd.f32 0.0, %v3385
        %v3387 = vpop.f32.mrf.mxu0
        %v3388 = vpop.f32.mrf.mxu0
        %v3389 = vadd.f32 0.0, %v3388
        %v3390 = vpop.f32.mrf.mxu0
        %3391 = vmatprep.mubr.bf16.mxu0 0
        %3392 = vmatmul.mubr.bf16.gmra.mxu0 %v3252
        %v3393 = vpop.f32.mrf.mxu0
        %v3394 = vadd.f32 0.0, %v3393
        %v3395 = vpop.f32.mrf.mxu0
        %v3396 = vpop.f32.mrf.mxu0
        %v3397 = vadd.f32 0.0, %v3396
        %v3398 = vpop.f32.mrf.mxu0
        %3399 = vmatprep.mubr.bf16.mxu0 0
        %3400 = vmatmul.mubr.bf16.gmra.mxu0 %v3253
        %v3401 = vpop.f32.mrf.mxu0
        %v3402 = vadd.f32 0.0, %v3401
        %v3403 = vpop.f32.mrf.mxu0
        %v3404 = vpop.f32.mrf.mxu0
        %v3405 = vadd.f32 0.0, %v3404
        %v3406 = vpop.f32.mrf.mxu0
        %3407 = vmatprep.mubr.bf16.mxu0 0
        %3408 = vmatmul.mubr.bf16.gmra.mxu0 %v3254
        %v3409 = vpop.f32.mrf.mxu0
        %v3410 = vadd.f32 0.0, %v3409
        %v3411 = vpop.f32.mrf.mxu0
        %v3412 = vpop.f32.mrf.mxu0
        %v3413 = vadd.f32 0.0, %v3412
        %v3414 = vpop.f32.mrf.mxu0
        %3415 = vdwg.mxu0
        %s3416 = scalar_lea.vmem %s1, 192
        %v3417 = vld [vmem:[%s3416] sm:$0xf]
        %v3418 = vld [vmem:[%s3416 + $0x4] sm:$0xf]
        %v3419 = vld [vmem:[%s3416 + $0x8] sm:$0xf]
        %v3420 = vld [vmem:[%s3416 + $0xc] sm:$0xf]
        %v3421 = vld [vmem:[%s3416 + $0x10] sm:$0xf]
        %v3422 = vld [vmem:[%s3416 + $0x14] sm:$0xf]
        %v3423 = vld [vmem:[%s3416 + $0x18] sm:$0xf]
        %v3424 = vld [vmem:[%s3416 + $0x1c] sm:$0xf]
        %v3425 = vld [vmem:[%s3416 + $0x20] sm:$0xf]
        %v3426 = vld [vmem:[%s3416 + $0x24] sm:$0xf]
        %v3427 = vld [vmem:[%s3416 + $0x28] sm:$0xf]
        %v3428 = vld [vmem:[%s3416 + $0x2c] sm:$0xf]
        %v3429 = vld [vmem:[%s3416 + $0x30] sm:$0xf]
        %v3430 = vld [vmem:[%s3416 + $0x34] sm:$0xf]
        %v3431 = vld [vmem:[%s3416 + $0x38] sm:$0xf]
        %v3432 = vld [vmem:[%s3416 + $0x3c] sm:$0xf]
        %v3449 = vunpack.c.l.b16 %v3417
        %v3450 = vunpack.c.l.b16 %v3418
        %v3451 = vunpack.c.l.b16 %v3419
        %v3452 = vunpack.c.l.b16 %v3420
        %v3453 = vunpack.c.l.b16 %v3421
        %v3454 = vunpack.c.l.b16 %v3422
        %v3455 = vunpack.c.l.b16 %v3423
        %v3456 = vunpack.c.l.b16 %v3424
        %v3457 = vunpack.c.l.b16 %v3425
        %v3458 = vunpack.c.l.b16 %v3426
        %v3459 = vunpack.c.l.b16 %v3427
        %v3460 = vunpack.c.l.b16 %v3428
        %v3461 = vunpack.c.l.b16 %v3429
        %v3462 = vunpack.c.l.b16 %v3430
        %v3463 = vunpack.c.l.b16 %v3431
        %v3464 = vunpack.c.l.b16 %v3432
        %v3465 = vpack.c.b16 %v3450, %v3449
        %v3466 = vpack.c.b16 %v3452, %v3451
        %v3467 = vpack.c.b16 %v3454, %v3453
        %v3468 = vpack.c.b16 %v3456, %v3455
        %v3469 = vpack.c.b16 %v3458, %v3457
        %v3470 = vpack.c.b16 %v3460, %v3459
        %v3471 = vpack.c.b16 %v3462, %v3461
        %v3472 = vpack.c.b16 %v3464, %v3463
        %3481 = vmatprep.subr.bf16.mxu0 0
        %3482 = vmatpush1.bf16.msra.mxu0 %v3472
        %3483 = vmatprep.subr.bf16.mxu0 0
        %3484 = vmatpush1.bf16.msra.mxu0 %v3471
        %3485 = vmatprep.subr.bf16.mxu0 0
        %3486 = vmatpush1.bf16.msra.mxu0 %v3470
        %3487 = vmatprep.subr.bf16.mxu0 0
        %3488 = vmatpush1.bf16.msra.mxu0 %v3469
        %3489 = vmatprep.subr.bf16.mxu0 0
        %3490 = vmatpush1.bf16.msra.mxu0 %v3468
        %3491 = vmatprep.subr.bf16.mxu0 0
        %3492 = vmatpush1.bf16.msra.mxu0 %v3467
        %3493 = vmatprep.subr.bf16.mxu0 0
        %3494 = vmatpush1.bf16.msra.mxu0 %v3466
        %3495 = vmatprep.subr.bf16.mxu0 0
        %3496 = vmatpush1.bf16.msra.mxu0 %v3465
        %3497 = vmatprep.subr.bf16.mxu0 0
        %3498 = vmatpush2.bf16.msra.mxu0 0
        %3499 = vmatprep.subr.bf16.mxu0 0
        %3500 = vmatpush2.bf16.msra.mxu0 0
        %3501 = vmatprep.subr.bf16.mxu0 0
        %3502 = vmatpush2.bf16.msra.mxu0 0
        %3503 = vmatprep.subr.bf16.mxu0 0
        %3504 = vmatpush2.bf16.msra.mxu0 0
        %3505 = vmatprep.subr.bf16.mxu0 0
        %3506 = vmatpush2.bf16.msra.mxu0 0
        %3507 = vmatprep.subr.bf16.mxu0 0
        %3508 = vmatpush2.bf16.msra.mxu0 0
        %3509 = vmatprep.subr.bf16.mxu0 0
        %3510 = vmatpush2.bf16.msra.mxu0 0
        %3511 = vmatprep.subr.bf16.mxu0 0
        %3512 = vmatpush2.bf16.msra.mxu0 0
        %3513 = vmatprep.mubr.bf16.mxu0 0
        %3514 = vmatmul.mubr.bf16.gmra.mxu0 %v804
        %v3515 = vpop.f32.mrf.mxu0
        %v3516 = vadd.f32 0.0, %v3515
        %v3517 = vpop.f32.mrf.mxu0
        %v3518 = vpop.f32.mrf.mxu0
        %v3519 = vadd.f32 0.0, %v3518
        %v3520 = vpop.f32.mrf.mxu0
        %3521 = vmatprep.mubr.bf16.mxu0 0
        %3522 = vmatmul.mubr.bf16.gmra.mxu0 %v805
        %v3523 = vpop.f32.mrf.mxu0
        %v3524 = vadd.f32 0.0, %v3523
        %v3525 = vpop.f32.mrf.mxu0
        %v3526 = vpop.f32.mrf.mxu0
        %v3527 = vadd.f32 0.0, %v3526
        %v3528 = vpop.f32.mrf.mxu0
        %3529 = vmatprep.mubr.bf16.mxu0 0
        %3530 = vmatmul.mubr.bf16.gmra.mxu0 %v806
        %v3531 = vpop.f32.mrf.mxu0
        %v3532 = vadd.f32 0.0, %v3531
        %v3533 = vpop.f32.mrf.mxu0
        %v3534 = vpop.f32.mrf.mxu0
        %v3535 = vadd.f32 0.0, %v3534
        %v3536 = vpop.f32.mrf.mxu0
        %3537 = vmatprep.mubr.bf16.mxu0 0
        %3538 = vmatmul.mubr.bf16.gmra.mxu0 %v807
        %v3539 = vpop.f32.mrf.mxu0
        %v3540 = vadd.f32 0.0, %v3539
        %v3541 = vpop.f32.mrf.mxu0
        %v3542 = vpop.f32.mrf.mxu0
        %v3543 = vadd.f32 0.0, %v3542
        %v3544 = vpop.f32.mrf.mxu0
        %3545 = vmatprep.mubr.bf16.mxu0 0
        %3546 = vmatmul.mubr.bf16.gmra.mxu0 %v808
        %v3547 = vpop.f32.mrf.mxu0
        %v3548 = vadd.f32 0.0, %v3547
        %v3549 = vpop.f32.mrf.mxu0
        %v3550 = vpop.f32.mrf.mxu0
        %v3551 = vadd.f32 0.0, %v3550
        %v3552 = vpop.f32.mrf.mxu0
        %3553 = vmatprep.mubr.bf16.mxu0 0
        %3554 = vmatmul.mubr.bf16.gmra.mxu0 %v809
        %v3555 = vpop.f32.mrf.mxu0
        %v3556 = vadd.f32 0.0, %v3555
        %v3557 = vpop.f32.mrf.mxu0
        %v3558 = vpop.f32.mrf.mxu0
        %v3559 = vadd.f32 0.0, %v3558
        %v3560 = vpop.f32.mrf.mxu0
        %3561 = vmatprep.mubr.bf16.mxu0 0
        %3562 = vmatmul.mubr.bf16.gmra.mxu0 %v810
        %v3563 = vpop.f32.mrf.mxu0
        %v3564 = vadd.f32 0.0, %v3563
        %v3565 = vpop.f32.mrf.mxu0
        %v3566 = vpop.f32.mrf.mxu0
        %v3567 = vadd.f32 0.0, %v3566
        %v3568 = vpop.f32.mrf.mxu0
        %3569 = vmatprep.mubr.bf16.mxu0 0
        %3570 = vmatmul.mubr.bf16.gmra.mxu0 %v811
        %v3571 = vpop.f32.mrf.mxu0
        %v3572 = vadd.f32 0.0, %v3571
        %v3573 = vpop.f32.mrf.mxu0
        %v3574 = vpop.f32.mrf.mxu0
        %v3575 = vadd.f32 0.0, %v3574
        %v3576 = vpop.f32.mrf.mxu0
        %3577 = vmatprep.mubr.bf16.mxu0 0
        %3578 = vmatmul.mubr.bf16.gmra.mxu0 %v812
        %v3579 = vpop.f32.mrf.mxu0
        %v3580 = vadd.f32 0.0, %v3579
        %v3581 = vpop.f32.mrf.mxu0
        %v3582 = vpop.f32.mrf.mxu0
        %v3583 = vadd.f32 0.0, %v3582
        %v3584 = vpop.f32.mrf.mxu0
        %3585 = vmatprep.mubr.bf16.mxu0 0
        %3586 = vmatmul.mubr.bf16.gmra.mxu0 %v813
        %v3587 = vpop.f32.mrf.mxu0
        %v3588 = vadd.f32 0.0, %v3587
        %v3589 = vpop.f32.mrf.mxu0
        %v3590 = vpop.f32.mrf.mxu0
        %v3591 = vadd.f32 0.0, %v3590
        %v3592 = vpop.f32.mrf.mxu0
        %3593 = vmatprep.mubr.bf16.mxu0 0
        %3594 = vmatmul.mubr.bf16.gmra.mxu0 %v814
        %v3595 = vpop.f32.mrf.mxu0
        %v3596 = vadd.f32 0.0, %v3595
        %v3597 = vpop.f32.mrf.mxu0
        %v3598 = vpop.f32.mrf.mxu0
        %v3599 = vadd.f32 0.0, %v3598
        %v3600 = vpop.f32.mrf.mxu0
        %3601 = vmatprep.mubr.bf16.mxu0 0
        %3602 = vmatmul.mubr.bf16.gmra.mxu0 %v815
        %v3603 = vpop.f32.mrf.mxu0
        %v3604 = vadd.f32 0.0, %v3603
        %v3605 = vpop.f32.mrf.mxu0
        %v3606 = vpop.f32.mrf.mxu0
        %v3607 = vadd.f32 0.0, %v3606
        %v3608 = vpop.f32.mrf.mxu0
        %3609 = vmatprep.mubr.bf16.mxu0 0
        %3610 = vmatmul.mubr.bf16.gmra.mxu0 %v816
        %v3611 = vpop.f32.mrf.mxu0
        %v3612 = vadd.f32 0.0, %v3611
        %v3613 = vpop.f32.mrf.mxu0
        %v3614 = vpop.f32.mrf.mxu0
        %v3615 = vadd.f32 0.0, %v3614
        %v3616 = vpop.f32.mrf.mxu0
        %3617 = vmatprep.mubr.bf16.mxu0 0
        %3618 = vmatmul.mubr.bf16.gmra.mxu0 %v817
        %v3619 = vpop.f32.mrf.mxu0
        %v3620 = vadd.f32 0.0, %v3619
        %v3621 = vpop.f32.mrf.mxu0
        %v3622 = vpop.f32.mrf.mxu0
        %v3623 = vadd.f32 0.0, %v3622
        %v3624 = vpop.f32.mrf.mxu0
        %3625 = vmatprep.mubr.bf16.mxu0 0
        %3626 = vmatmul.mubr.bf16.gmra.mxu0 %v818
        %v3627 = vpop.f32.mrf.mxu0
        %v3628 = vadd.f32 0.0, %v3627
        %v3629 = vpop.f32.mrf.mxu0
        %v3630 = vpop.f32.mrf.mxu0
        %v3631 = vadd.f32 0.0, %v3630
        %v3632 = vpop.f32.mrf.mxu0
        %3633 = vmatprep.mubr.bf16.mxu0 0
        %3634 = vmatmul.mubr.bf16.gmra.mxu0 %v819
        %v3635 = vpop.f32.mrf.mxu0
        %v3636 = vadd.f32 0.0, %v3635
        %v3637 = vpop.f32.mrf.mxu0
        %v3638 = vpop.f32.mrf.mxu0
        %v3639 = vadd.f32 0.0, %v3638
        %v3640 = vpop.f32.mrf.mxu0
        %3641 = vdwg.mxu0
        %v3642 = vpack.c.bf16 %v3519, %v3516
        %v3643 = vpack.c.bf16 %v3527, %v3524
        %v3644 = vpack.c.bf16 %v3535, %v3532
        %v3645 = vpack.c.bf16 %v3543, %v3540
        %v3646 = vpack.c.bf16 %v3551, %v3548
        %v3647 = vpack.c.bf16 %v3559, %v3556
        %v3648 = vpack.c.bf16 %v3567, %v3564
        %v3649 = vpack.c.bf16 %v3575, %v3572
        %v3650 = vpack.c.bf16 %v3583, %v3580
        %v3651 = vpack.c.bf16 %v3591, %v3588
        %v3652 = vpack.c.bf16 %v3599, %v3596
        %v3653 = vpack.c.bf16 %v3607, %v3604
        %v3654 = vpack.c.bf16 %v3615, %v3612
        %v3655 = vpack.c.bf16 %v3623, %v3620
        %v3656 = vpack.c.bf16 %v3631, %v3628
        %v3657 = vpack.c.bf16 %v3639, %v3636
        %s3658 = scalar_lea.vmem %s2, 192
        %v3659 = vld [vmem:[%s3658] sm:$0xf]
        %v3660 = vld [vmem:[%s3658 + $0x4] sm:$0xf]
        %v3661 = vld [vmem:[%s3658 + $0x8] sm:$0xf]
        %v3662 = vld [vmem:[%s3658 + $0xc] sm:$0xf]
        %v3663 = vld [vmem:[%s3658 + $0x10] sm:$0xf]
        %v3664 = vld [vmem:[%s3658 + $0x14] sm:$0xf]
        %v3665 = vld [vmem:[%s3658 + $0x18] sm:$0xf]
        %v3666 = vld [vmem:[%s3658 + $0x1c] sm:$0xf]
        %v3667 = vld [vmem:[%s3658 + $0x20] sm:$0xf]
        %v3668 = vld [vmem:[%s3658 + $0x24] sm:$0xf]
        %v3669 = vld [vmem:[%s3658 + $0x28] sm:$0xf]
        %v3670 = vld [vmem:[%s3658 + $0x2c] sm:$0xf]
        %v3671 = vld [vmem:[%s3658 + $0x30] sm:$0xf]
        %v3672 = vld [vmem:[%s3658 + $0x34] sm:$0xf]
        %v3673 = vld [vmem:[%s3658 + $0x38] sm:$0xf]
        %v3674 = vld [vmem:[%s3658 + $0x3c] sm:$0xf]
        %s3675 = scalar_lea.vmem %s3, 3
        %v3676 = vld [vmem:[%s3675] sm:$0x1]
        %v3678 = vlaneseq
        %v3679 = vshrl.u32 %v3678, 7
        %v3680 = vsub.s32 0, %v3679
        %v3681 = vrot.slane %v3676, %v3680
        %v3699 = vunpack.c.l.b16 %v3659
        %v3700 = vunpack.c.l.b16 %v3660
        %v3701 = vunpack.c.l.b16 %v3661
        %v3702 = vunpack.c.l.b16 %v3662
        %v3703 = vunpack.c.l.b16 %v3663
        %v3704 = vunpack.c.l.b16 %v3664
        %v3705 = vunpack.c.l.b16 %v3665
        %v3706 = vunpack.c.l.b16 %v3666
        %v3707 = vunpack.c.l.b16 %v3667
        %v3708 = vunpack.c.l.b16 %v3668
        %v3709 = vunpack.c.l.b16 %v3669
        %v3710 = vunpack.c.l.b16 %v3670
        %v3711 = vunpack.c.l.b16 %v3671
        %v3712 = vunpack.c.l.b16 %v3672
        %v3713 = vunpack.c.l.b16 %v3673
        %v3714 = vunpack.c.l.b16 %v3674
        %v3715 = vpack.c.b16 %v3700, %v3699
        %v3716 = vpack.c.b16 %v3702, %v3701
        %v3717 = vpack.c.b16 %v3704, %v3703
        %v3718 = vpack.c.b16 %v3706, %v3705
        %v3719 = vpack.c.b16 %v3708, %v3707
        %v3720 = vpack.c.b16 %v3710, %v3709
        %v3721 = vpack.c.b16 %v3712, %v3711
        %v3722 = vpack.c.b16 %v3714, %v3713
        %3731 = vmatprep.subr.bf16.mxu0 0
        %3732 = vmatpush1.bf16.msra.mxu0 %v3722
        %3733 = vmatprep.subr.bf16.mxu0 0
        %3734 = vmatpush1.bf16.msra.mxu0 %v3721
        %3735 = vmatprep.subr.bf16.mxu0 0
        %3736 = vmatpush1.bf16.msra.mxu0 %v3720
        %3737 = vmatprep.subr.bf16.mxu0 0
        %3738 = vmatpush1.bf16.msra.mxu0 %v3719
        %3739 = vmatprep.subr.bf16.mxu0 0
        %3740 = vmatpush1.bf16.msra.mxu0 %v3718
        %3741 = vmatprep.subr.bf16.mxu0 0
        %3742 = vmatpush1.bf16.msra.mxu0 %v3717
        %3743 = vmatprep.subr.bf16.mxu0 0
        %3744 = vmatpush1.bf16.msra.mxu0 %v3716
        %3745 = vmatprep.subr.bf16.mxu0 0
        %3746 = vmatpush1.bf16.msra.mxu0 %v3715
        %3747 = vmatprep.subr.bf16.mxu0 0
        %3748 = vmatpush2.bf16.msra.mxu0 0
        %3749 = vmatprep.subr.bf16.mxu0 0
        %3750 = vmatpush2.bf16.msra.mxu0 0
        %3751 = vmatprep.subr.bf16.mxu0 0
        %3752 = vmatpush2.bf16.msra.mxu0 0
        %3753 = vmatprep.subr.bf16.mxu0 0
        %3754 = vmatpush2.bf16.msra.mxu0 0
        %3755 = vmatprep.subr.bf16.mxu0 0
        %3756 = vmatpush2.bf16.msra.mxu0 0
        %3757 = vmatprep.subr.bf16.mxu0 0
        %3758 = vmatpush2.bf16.msra.mxu0 0
        %3759 = vmatprep.subr.bf16.mxu0 0
        %3760 = vmatpush2.bf16.msra.mxu0 0
        %3761 = vmatprep.subr.bf16.mxu0 0
        %3762 = vmatpush2.bf16.msra.mxu0 0
        %3763 = vmatprep.mubr.bf16.mxu0 0
        %3764 = vmatmul.mubr.bf16.gmra.mxu0 %v3642
        %v3765 = vpop.f32.mrf.mxu0
        %v3766 = vadd.f32 %v3681, %v3765
        %v3767 = vpop.f32.mrf.mxu0
        %v3768 = vpop.f32.mrf.mxu0
        %v3769 = vadd.f32 %v3681, %v3768
        %v3770 = vpop.f32.mrf.mxu0
        %3771 = vmatprep.mubr.bf16.mxu0 0
        %3772 = vmatmul.mubr.bf16.gmra.mxu0 %v3643
        %v3773 = vpop.f32.mrf.mxu0
        %v3774 = vadd.f32 %v3681, %v3773
        %v3775 = vpop.f32.mrf.mxu0
        %v3776 = vpop.f32.mrf.mxu0
        %v3777 = vadd.f32 %v3681, %v3776
        %v3778 = vpop.f32.mrf.mxu0
        %3779 = vmatprep.mubr.bf16.mxu0 0
        %3780 = vmatmul.mubr.bf16.gmra.mxu0 %v3644
        %v3781 = vpop.f32.mrf.mxu0
        %v3782 = vadd.f32 %v3681, %v3781
        %v3783 = vpop.f32.mrf.mxu0
        %v3784 = vpop.f32.mrf.mxu0
        %v3785 = vadd.f32 %v3681, %v3784
        %v3786 = vpop.f32.mrf.mxu0
        %3787 = vmatprep.mubr.bf16.mxu0 0
        %3788 = vmatmul.mubr.bf16.gmra.mxu0 %v3645
        %v3789 = vpop.f32.mrf.mxu0
        %v3790 = vadd.f32 %v3681, %v3789
        %v3791 = vpop.f32.mrf.mxu0
        %v3792 = vpop.f32.mrf.mxu0
        %v3793 = vadd.f32 %v3681, %v3792
        %v3794 = vpop.f32.mrf.mxu0
        %3795 = vmatprep.mubr.bf16.mxu0 0
        %3796 = vmatmul.mubr.bf16.gmra.mxu0 %v3646
        %v3797 = vpop.f32.mrf.mxu0
        %v3798 = vadd.f32 %v3681, %v3797
        %v3799 = vpop.f32.mrf.mxu0
        %v3800 = vpop.f32.mrf.mxu0
        %v3801 = vadd.f32 %v3681, %v3800
        %v3802 = vpop.f32.mrf.mxu0
        %3803 = vmatprep.mubr.bf16.mxu0 0
        %3804 = vmatmul.mubr.bf16.gmra.mxu0 %v3647
        %v3805 = vpop.f32.mrf.mxu0
        %v3806 = vadd.f32 %v3681, %v3805
        %v3807 = vpop.f32.mrf.mxu0
        %v3808 = vpop.f32.mrf.mxu0
        %v3809 = vadd.f32 %v3681, %v3808
        %v3810 = vpop.f32.mrf.mxu0
        %3811 = vmatprep.mubr.bf16.mxu0 0
        %3812 = vmatmul.mubr.bf16.gmra.mxu0 %v3648
        %v3813 = vpop.f32.mrf.mxu0
        %v3814 = vadd.f32 %v3681, %v3813
        %v3815 = vpop.f32.mrf.mxu0
        %v3816 = vpop.f32.mrf.mxu0
        %v3817 = vadd.f32 %v3681, %v3816
        %v3818 = vpop.f32.mrf.mxu0
        %3819 = vmatprep.mubr.bf16.mxu0 0
        %3820 = vmatmul.mubr.bf16.gmra.mxu0 %v3649
        %v3821 = vpop.f32.mrf.mxu0
        %v3822 = vadd.f32 %v3681, %v3821
        %v3823 = vpop.f32.mrf.mxu0
        %v3824 = vpop.f32.mrf.mxu0
        %v3825 = vadd.f32 %v3681, %v3824
        %v3826 = vpop.f32.mrf.mxu0
        %3827 = vmatprep.mubr.bf16.mxu0 0
        %3828 = vmatmul.mubr.bf16.gmra.mxu0 %v3650
        %v3829 = vpop.f32.mrf.mxu0
        %v3830 = vadd.f32 %v3681, %v3829
        %v3831 = vpop.f32.mrf.mxu0
        %v3832 = vpop.f32.mrf.mxu0
        %v3833 = vadd.f32 %v3681, %v3832
        %v3834 = vpop.f32.mrf.mxu0
        %3835 = vmatprep.mubr.bf16.mxu0 0
        %3836 = vmatmul.mubr.bf16.gmra.mxu0 %v3651
        %v3837 = vpop.f32.mrf.mxu0
        %v3838 = vadd.f32 %v3681, %v3837
        %v3839 = vpop.f32.mrf.mxu0
        %v3840 = vpop.f32.mrf.mxu0
        %v3841 = vadd.f32 %v3681, %v3840
        %v3842 = vpop.f32.mrf.mxu0
        %3843 = vmatprep.mubr.bf16.mxu0 0
        %3844 = vmatmul.mubr.bf16.gmra.mxu0 %v3652
        %v3845 = vpop.f32.mrf.mxu0
        %v3846 = vadd.f32 %v3681, %v3845
        %v3847 = vpop.f32.mrf.mxu0
        %v3848 = vpop.f32.mrf.mxu0
        %v3849 = vadd.f32 %v3681, %v3848
        %v3850 = vpop.f32.mrf.mxu0
        %3851 = vmatprep.mubr.bf16.mxu0 0
        %3852 = vmatmul.mubr.bf16.gmra.mxu0 %v3653
        %v3853 = vpop.f32.mrf.mxu0
        %v3854 = vadd.f32 %v3681, %v3853
        %v3855 = vpop.f32.mrf.mxu0
        %v3856 = vpop.f32.mrf.mxu0
        %v3857 = vadd.f32 %v3681, %v3856
        %v3858 = vpop.f32.mrf.mxu0
        %3859 = vmatprep.mubr.bf16.mxu0 0
        %3860 = vmatmul.mubr.bf16.gmra.mxu0 %v3654
        %v3861 = vpop.f32.mrf.mxu0
        %v3862 = vadd.f32 %v3681, %v3861
        %v3863 = vpop.f32.mrf.mxu0
        %v3864 = vpop.f32.mrf.mxu0
        %v3865 = vadd.f32 %v3681, %v3864
        %v3866 = vpop.f32.mrf.mxu0
        %3867 = vmatprep.mubr.bf16.mxu0 0
        %3868 = vmatmul.mubr.bf16.gmra.mxu0 %v3655
        %v3869 = vpop.f32.mrf.mxu0
        %v3870 = vadd.f32 %v3681, %v3869
        %v3871 = vpop.f32.mrf.mxu0
        %v3872 = vpop.f32.mrf.mxu0
        %v3873 = vadd.f32 %v3681, %v3872
        %v3874 = vpop.f32.mrf.mxu0
        %3875 = vmatprep.mubr.bf16.mxu0 0
        %3876 = vmatmul.mubr.bf16.gmra.mxu0 %v3656
        %v3877 = vpop.f32.mrf.mxu0
        %v3878 = vadd.f32 %v3681, %v3877
        %v3879 = vpop.f32.mrf.mxu0
        %v3880 = vpop.f32.mrf.mxu0
        %v3881 = vadd.f32 %v3681, %v3880
        %v3882 = vpop.f32.mrf.mxu0
        %3883 = vmatprep.mubr.bf16.mxu0 0
        %3884 = vmatmul.mubr.bf16.gmra.mxu0 %v3657
        %v3885 = vpop.f32.mrf.mxu0
        %v3886 = vadd.f32 %v3681, %v3885
        %v3887 = vpop.f32.mrf.mxu0
        %v3888 = vpop.f32.mrf.mxu0
        %v3889 = vadd.f32 %v3681, %v3888
        %v3890 = vpop.f32.mrf.mxu0
        %3891 = vdwg.mxu0
        %vm3892 = vcmp.gt.f32.partialorder %v3766, 0.0
        %vm3893 = vcmp.gt.f32.partialorder %v3769, 0.0
        %vm3894 = vcmp.gt.f32.partialorder %v3774, 0.0
        %vm3895 = vcmp.gt.f32.partialorder %v3777, 0.0
        %vm3896 = vcmp.gt.f32.partialorder %v3782, 0.0
        %vm3897 = vcmp.gt.f32.partialorder %v3785, 0.0
        %vm3898 = vcmp.gt.f32.partialorder %v3790, 0.0
        %vm3899 = vcmp.gt.f32.partialorder %v3793, 0.0
        %vm3900 = vcmp.gt.f32.partialorder %v3798, 0.0
        %vm3901 = vcmp.gt.f32.partialorder %v3801, 0.0
        %vm3902 = vcmp.gt.f32.partialorder %v3806, 0.0
        %vm3903 = vcmp.gt.f32.partialorder %v3809, 0.0
        %vm3904 = vcmp.gt.f32.partialorder %v3814, 0.0
        %vm3905 = vcmp.gt.f32.partialorder %v3817, 0.0
        %vm3906 = vcmp.gt.f32.partialorder %v3822, 0.0
        %vm3907 = vcmp.gt.f32.partialorder %v3825, 0.0
        %vm3908 = vcmp.gt.f32.partialorder %v3830, 0.0
        %vm3909 = vcmp.gt.f32.partialorder %v3833, 0.0
        %vm3910 = vcmp.gt.f32.partialorder %v3838, 0.0
        %vm3911 = vcmp.gt.f32.partialorder %v3841, 0.0
        %vm3912 = vcmp.gt.f32.partialorder %v3846, 0.0
        %vm3913 = vcmp.gt.f32.partialorder %v3849, 0.0
        %vm3914 = vcmp.gt.f32.partialorder %v3854, 0.0
        %vm3915 = vcmp.gt.f32.partialorder %v3857, 0.0
        %vm3916 = vcmp.gt.f32.partialorder %v3862, 0.0
        %vm3917 = vcmp.gt.f32.partialorder %v3865, 0.0
        %vm3918 = vcmp.gt.f32.partialorder %v3870, 0.0
        %vm3919 = vcmp.gt.f32.partialorder %v3873, 0.0
        %vm3920 = vcmp.gt.f32.partialorder %v3878, 0.0
        %vm3921 = vcmp.gt.f32.partialorder %v3881, 0.0
        %vm3922 = vcmp.gt.f32.partialorder %v3886, 0.0
        %vm3923 = vcmp.gt.f32.partialorder %v3889, 0.0
        %v3924 = vmin.f32 %v3766, 0.0
        %v3925 = vmin.f32 %v3769, 0.0
        %v3926 = vmin.f32 %v3774, 0.0
        %v3927 = vmin.f32 %v3777, 0.0
        %v3928 = vmin.f32 %v3782, 0.0
        %v3929 = vmin.f32 %v3785, 0.0
        %v3930 = vmin.f32 %v3790, 0.0
        %v3931 = vmin.f32 %v3793, 0.0
        %v3932 = vmin.f32 %v3798, 0.0
        %v3933 = vmin.f32 %v3801, 0.0
        %v3934 = vmin.f32 %v3806, 0.0
        %v3935 = vmin.f32 %v3809, 0.0
        %v3936 = vmin.f32 %v3814, 0.0
        %v3937 = vmin.f32 %v3817, 0.0
        %v3938 = vmin.f32 %v3822, 0.0
        %v3939 = vmin.f32 %v3825, 0.0
        %v3940 = vmin.f32 %v3830, 0.0
        %v3941 = vmin.f32 %v3833, 0.0
        %v3942 = vmin.f32 %v3838, 0.0
        %v3943 = vmin.f32 %v3841, 0.0
        %v3944 = vmin.f32 %v3846, 0.0
        %v3945 = vmin.f32 %v3849, 0.0
        %v3946 = vmin.f32 %v3854, 0.0
        %v3947 = vmin.f32 %v3857, 0.0
        %v3948 = vmin.f32 %v3862, 0.0
        %v3949 = vmin.f32 %v3865, 0.0
        %v3950 = vmin.f32 %v3870, 0.0
        %v3951 = vmin.f32 %v3873, 0.0
        %v3952 = vmin.f32 %v3878, 0.0
        %v3953 = vmin.f32 %v3881, 0.0
        %v3954 = vmin.f32 %v3886, 0.0
        %v3955 = vmin.f32 %v3889, 0.0
        %v3956 = vmul.f32 %v3924, 1.442695
        %v3957 = vpow.pop %v3956
        %v3958 = vmul.f32 %v3925, 1.442695
        %v3959 = vpow.pop %v3958
        %v3960 = vmul.f32 %v3926, 1.442695
        %v3961 = vpow.pop %v3960
        %v3962 = vmul.f32 %v3927, 1.442695
        %v3963 = vpow.pop %v3962
        %v3964 = vmul.f32 %v3928, 1.442695
        %v3965 = vpow.pop %v3964
        %v3966 = vmul.f32 %v3929, 1.442695
        %v3967 = vpow.pop %v3966
        %v3968 = vmul.f32 %v3930, 1.442695
        %v3969 = vpow.pop %v3968
        %v3970 = vmul.f32 %v3931, 1.442695
        %v3971 = vpow.pop %v3970
        %v3972 = vmul.f32 %v3932, 1.442695
        %v3973 = vpow.pop %v3972
        %v3974 = vmul.f32 %v3933, 1.442695
        %v3975 = vpow.pop %v3974
        %v3976 = vmul.f32 %v3934, 1.442695
        %v3977 = vpow.pop %v3976
        %v3978 = vmul.f32 %v3935, 1.442695
        %v3979 = vpow.pop %v3978
        %v3980 = vmul.f32 %v3936, 1.442695
        %v3981 = vpow.pop %v3980
        %v3982 = vmul.f32 %v3937, 1.442695
        %v3983 = vpow.pop %v3982
        %v3984 = vmul.f32 %v3938, 1.442695
        %v3985 = vpow.pop %v3984
        %v3986 = vmul.f32 %v3939, 1.442695
        %v3987 = vpow.pop %v3986
        %v3988 = vmul.f32 %v3940, 1.442695
        %v3989 = vpow.pop %v3988
        %v3990 = vmul.f32 %v3941, 1.442695
        %v3991 = vpow.pop %v3990
        %v3992 = vmul.f32 %v3942, 1.442695
        %v3993 = vpow.pop %v3992
        %v3994 = vmul.f32 %v3943, 1.442695
        %v3995 = vpow.pop %v3994
        %v3996 = vmul.f32 %v3944, 1.442695
        %v3997 = vpow.pop %v3996
        %v3998 = vmul.f32 %v3945, 1.442695
        %v3999 = vpow.pop %v3998
        %v4000 = vmul.f32 %v3946, 1.442695
        %v4001 = vpow.pop %v4000
        %v4002 = vmul.f32 %v3947, 1.442695
        %v4003 = vpow.pop %v4002
        %v4004 = vmul.f32 %v3948, 1.442695
        %v4005 = vpow.pop %v4004
        %v4006 = vmul.f32 %v3949, 1.442695
        %v4007 = vpow.pop %v4006
        %v4008 = vmul.f32 %v3950, 1.442695
        %v4009 = vpow.pop %v4008
        %v4010 = vmul.f32 %v3951, 1.442695
        %v4011 = vpow.pop %v4010
        %v4012 = vmul.f32 %v3952, 1.442695
        %v4013 = vpow.pop %v4012
        %v4014 = vmul.f32 %v3953, 1.442695
        %v4015 = vpow.pop %v4014
        %v4016 = vmul.f32 %v3954, 1.442695
        %v4017 = vpow.pop %v4016
        %v4018 = vmul.f32 %v3955, 1.442695
        %v4019 = vpow.pop %v4018
        %v4020 = vsub.f32 %v3957, 1.0
        %v4021 = vsub.f32 %v3959, 1.0
        %v4022 = vsub.f32 %v3961, 1.0
        %v4023 = vsub.f32 %v3963, 1.0
        %v4024 = vsub.f32 %v3965, 1.0
        %v4025 = vsub.f32 %v3967, 1.0
        %v4026 = vsub.f32 %v3969, 1.0
        %v4027 = vsub.f32 %v3971, 1.0
        %v4028 = vsub.f32 %v3973, 1.0
        %v4029 = vsub.f32 %v3975, 1.0
        %v4030 = vsub.f32 %v3977, 1.0
        %v4031 = vsub.f32 %v3979, 1.0
        %v4032 = vsub.f32 %v3981, 1.0
        %v4033 = vsub.f32 %v3983, 1.0
        %v4034 = vsub.f32 %v3985, 1.0
        %v4035 = vsub.f32 %v3987, 1.0
        %v4036 = vsub.f32 %v3989, 1.0
        %v4037 = vsub.f32 %v3991, 1.0
        %v4038 = vsub.f32 %v3993, 1.0
        %v4039 = vsub.f32 %v3995, 1.0
        %v4040 = vsub.f32 %v3997, 1.0
        %v4041 = vsub.f32 %v3999, 1.0
        %v4042 = vsub.f32 %v4001, 1.0
        %v4043 = vsub.f32 %v4003, 1.0
        %v4044 = vsub.f32 %v4005, 1.0
        %v4045 = vsub.f32 %v4007, 1.0
        %v4046 = vsub.f32 %v4009, 1.0
        %v4047 = vsub.f32 %v4011, 1.0
        %v4048 = vsub.f32 %v4013, 1.0
        %v4049 = vsub.f32 %v4015, 1.0
        %v4050 = vsub.f32 %v4017, 1.0
        %v4051 = vsub.f32 %v4019, 1.0
        %v4052 = vsel %vm3892, %v3766, %v4020
        %v4053 = vsel %vm3893, %v3769, %v4021
        %v4054 = vsel %vm3894, %v3774, %v4022
        %v4055 = vsel %vm3895, %v3777, %v4023
        %v4056 = vsel %vm3896, %v3782, %v4024
        %v4057 = vsel %vm3897, %v3785, %v4025
        %v4058 = vsel %vm3898, %v3790, %v4026
        %v4059 = vsel %vm3899, %v3793, %v4027
        %v4060 = vsel %vm3900, %v3798, %v4028
        %v4061 = vsel %vm3901, %v3801, %v4029
        %v4062 = vsel %vm3902, %v3806, %v4030
        %v4063 = vsel %vm3903, %v3809, %v4031
        %v4064 = vsel %vm3904, %v3814, %v4032
        %v4065 = vsel %vm3905, %v3817, %v4033
        %v4066 = vsel %vm3906, %v3822, %v4034
        %v4067 = vsel %vm3907, %v3825, %v4035
        %v4068 = vsel %vm3908, %v3830, %v4036
        %v4069 = vsel %vm3909, %v3833, %v4037
        %v4070 = vsel %vm3910, %v3838, %v4038
        %v4071 = vsel %vm3911, %v3841, %v4039
        %v4072 = vsel %vm3912, %v3846, %v4040
        %v4073 = vsel %vm3913, %v3849, %v4041
        %v4074 = vsel %vm3914, %v3854, %v4042
        %v4075 = vsel %vm3915, %v3857, %v4043
        %v4076 = vsel %vm3916, %v3862, %v4044
        %v4077 = vsel %vm3917, %v3865, %v4045
        %v4078 = vsel %vm3918, %v3870, %v4046
        %v4079 = vsel %vm3919, %v3873, %v4047
        %v4080 = vsel %vm3920, %v3878, %v4048
        %v4081 = vsel %vm3921, %v3881, %v4049
        %v4082 = vsel %vm3922, %v3886, %v4050
        %v4083 = vsel %vm3923, %v3889, %v4051
        %v4084 = vpack.c.bf16 %v4053, %v4052
        %v4085 = vpack.c.bf16 %v4055, %v4054
        %v4086 = vpack.c.bf16 %v4057, %v4056
        %v4087 = vpack.c.bf16 %v4059, %v4058
        %v4088 = vpack.c.bf16 %v4061, %v4060
        %v4089 = vpack.c.bf16 %v4063, %v4062
        %v4090 = vpack.c.bf16 %v4065, %v4064
        %v4091 = vpack.c.bf16 %v4067, %v4066
        %v4092 = vpack.c.bf16 %v4069, %v4068
        %v4093 = vpack.c.bf16 %v4071, %v4070
        %v4094 = vpack.c.bf16 %v4073, %v4072
        %v4095 = vpack.c.bf16 %v4075, %v4074
        %v4096 = vpack.c.bf16 %v4077, %v4076
        %v4097 = vpack.c.bf16 %v4079, %v4078
        %v4098 = vpack.c.bf16 %v4081, %v4080
        %v4099 = vpack.c.bf16 %v4083, %v4082
        %4100 = vmatprep.subr.bf16.mxu0 0
        %4101 = vmatpush1.bf16.msra.mxu0 %v1556
        %4102 = vmatprep.subr.bf16.mxu0 0
        %4103 = vmatpush1.bf16.msra.mxu0 %v1555
        %4104 = vmatprep.subr.bf16.mxu0 0
        %4105 = vmatpush1.bf16.msra.mxu0 %v1554
        %4106 = vmatprep.subr.bf16.mxu0 0
        %4107 = vmatpush1.bf16.msra.mxu0 %v1553
        %4108 = vmatprep.subr.bf16.mxu0 0
        %4109 = vmatpush1.bf16.msra.mxu0 %v1552
        %4110 = vmatprep.subr.bf16.mxu0 0
        %4111 = vmatpush1.bf16.msra.mxu0 %v1551
        %4112 = vmatprep.subr.bf16.mxu0 0
        %4113 = vmatpush1.bf16.msra.mxu0 %v1550
        %4114 = vmatprep.subr.bf16.mxu0 0
        %4115 = vmatpush1.bf16.msra.mxu0 %v1549
        %4116 = vmatprep.subr.bf16.mxu0 0
        %4117 = vmatpush2.bf16.msra.mxu0 0
        %4118 = vmatprep.subr.bf16.mxu0 0
        %4119 = vmatpush2.bf16.msra.mxu0 0
        %4120 = vmatprep.subr.bf16.mxu0 0
        %4121 = vmatpush2.bf16.msra.mxu0 0
        %4122 = vmatprep.subr.bf16.mxu0 0
        %4123 = vmatpush2.bf16.msra.mxu0 0
        %4124 = vmatprep.subr.bf16.mxu0 0
        %4125 = vmatpush2.bf16.msra.mxu0 0
        %4126 = vmatprep.subr.bf16.mxu0 0
        %4127 = vmatpush2.bf16.msra.mxu0 0
        %4128 = vmatprep.subr.bf16.mxu0 0
        %4129 = vmatpush2.bf16.msra.mxu0 0
        %4130 = vmatprep.subr.bf16.mxu0 0
        %4131 = vmatpush2.bf16.msra.mxu0 0
        %4132 = vmatprep.mubr.bf16.mxu0 0
        %4133 = vmatmul.mubr.bf16.gmra.mxu0 %v4084
        %v4134 = vpop.f32.mrf.mxu0
        %v4135 = vadd.f32 0.0, %v4134
        %v4136 = vpop.f32.mrf.mxu0
        %v4137 = vpop.f32.mrf.mxu0
        %v4138 = vadd.f32 0.0, %v4137
        %v4139 = vpop.f32.mrf.mxu0
        %4140 = vmatprep.mubr.bf16.mxu0 0
        %4141 = vmatmul.mubr.bf16.gmra.mxu0 %v4085
        %v4142 = vpop.f32.mrf.mxu0
        %v4143 = vadd.f32 0.0, %v4142
        %v4144 = vpop.f32.mrf.mxu0
        %v4145 = vpop.f32.mrf.mxu0
        %v4146 = vadd.f32 0.0, %v4145
        %v4147 = vpop.f32.mrf.mxu0
        %4148 = vmatprep.mubr.bf16.mxu0 0
        %4149 = vmatmul.mubr.bf16.gmra.mxu0 %v4086
        %v4150 = vpop.f32.mrf.mxu0
        %v4151 = vadd.f32 0.0, %v4150
        %v4152 = vpop.f32.mrf.mxu0
        %v4153 = vpop.f32.mrf.mxu0
        %v4154 = vadd.f32 0.0, %v4153
        %v4155 = vpop.f32.mrf.mxu0
        %4156 = vmatprep.mubr.bf16.mxu0 0
        %4157 = vmatmul.mubr.bf16.gmra.mxu0 %v4087
        %v4158 = vpop.f32.mrf.mxu0
        %v4159 = vadd.f32 0.0, %v4158
        %v4160 = vpop.f32.mrf.mxu0
        %v4161 = vpop.f32.mrf.mxu0
        %v4162 = vadd.f32 0.0, %v4161
        %v4163 = vpop.f32.mrf.mxu0
        %4164 = vmatprep.mubr.bf16.mxu0 0
        %4165 = vmatmul.mubr.bf16.gmra.mxu0 %v4088
        %v4166 = vpop.f32.mrf.mxu0
        %v4167 = vadd.f32 0.0, %v4166
        %v4168 = vpop.f32.mrf.mxu0
        %v4169 = vpop.f32.mrf.mxu0
        %v4170 = vadd.f32 0.0, %v4169
        %v4171 = vpop.f32.mrf.mxu0
        %4172 = vmatprep.mubr.bf16.mxu0 0
        %4173 = vmatmul.mubr.bf16.gmra.mxu0 %v4089
        %v4174 = vpop.f32.mrf.mxu0
        %v4175 = vadd.f32 0.0, %v4174
        %v4176 = vpop.f32.mrf.mxu0
        %v4177 = vpop.f32.mrf.mxu0
        %v4178 = vadd.f32 0.0, %v4177
        %v4179 = vpop.f32.mrf.mxu0
        %4180 = vmatprep.mubr.bf16.mxu0 0
        %4181 = vmatmul.mubr.bf16.gmra.mxu0 %v4090
        %v4182 = vpop.f32.mrf.mxu0
        %v4183 = vadd.f32 0.0, %v4182
        %v4184 = vpop.f32.mrf.mxu0
        %v4185 = vpop.f32.mrf.mxu0
        %v4186 = vadd.f32 0.0, %v4185
        %v4187 = vpop.f32.mrf.mxu0
        %4188 = vmatprep.mubr.bf16.mxu0 0
        %4189 = vmatmul.mubr.bf16.gmra.mxu0 %v4091
        %v4190 = vpop.f32.mrf.mxu0
        %v4191 = vadd.f32 0.0, %v4190
        %v4192 = vpop.f32.mrf.mxu0
        %v4193 = vpop.f32.mrf.mxu0
        %v4194 = vadd.f32 0.0, %v4193
        %v4195 = vpop.f32.mrf.mxu0
        %4196 = vmatprep.mubr.bf16.mxu0 0
        %4197 = vmatmul.mubr.bf16.gmra.mxu0 %v4092
        %v4198 = vpop.f32.mrf.mxu0
        %v4199 = vadd.f32 0.0, %v4198
        %v4200 = vpop.f32.mrf.mxu0
        %v4201 = vpop.f32.mrf.mxu0
        %v4202 = vadd.f32 0.0, %v4201
        %v4203 = vpop.f32.mrf.mxu0
        %4204 = vmatprep.mubr.bf16.mxu0 0
        %4205 = vmatmul.mubr.bf16.gmra.mxu0 %v4093
        %v4206 = vpop.f32.mrf.mxu0
        %v4207 = vadd.f32 0.0, %v4206
        %v4208 = vpop.f32.mrf.mxu0
        %v4209 = vpop.f32.mrf.mxu0
        %v4210 = vadd.f32 0.0, %v4209
        %v4211 = vpop.f32.mrf.mxu0
        %4212 = vmatprep.mubr.bf16.mxu0 0
        %4213 = vmatmul.mubr.bf16.gmra.mxu0 %v4094
        %v4214 = vpop.f32.mrf.mxu0
        %v4215 = vadd.f32 0.0, %v4214
        %v4216 = vpop.f32.mrf.mxu0
        %v4217 = vpop.f32.mrf.mxu0
        %v4218 = vadd.f32 0.0, %v4217
        %v4219 = vpop.f32.mrf.mxu0
        %4220 = vmatprep.mubr.bf16.mxu0 0
        %4221 = vmatmul.mubr.bf16.gmra.mxu0 %v4095
        %v4222 = vpop.f32.mrf.mxu0
        %v4223 = vadd.f32 0.0, %v4222
        %v4224 = vpop.f32.mrf.mxu0
        %v4225 = vpop.f32.mrf.mxu0
        %v4226 = vadd.f32 0.0, %v4225
        %v4227 = vpop.f32.mrf.mxu0
        %4228 = vmatprep.mubr.bf16.mxu0 0
        %4229 = vmatmul.mubr.bf16.gmra.mxu0 %v4096
        %v4230 = vpop.f32.mrf.mxu0
        %v4231 = vadd.f32 0.0, %v4230
        %v4232 = vpop.f32.mrf.mxu0
        %v4233 = vpop.f32.mrf.mxu0
        %v4234 = vadd.f32 0.0, %v4233
        %v4235 = vpop.f32.mrf.mxu0
        %4236 = vmatprep.mubr.bf16.mxu0 0
        %4237 = vmatmul.mubr.bf16.gmra.mxu0 %v4097
        %v4238 = vpop.f32.mrf.mxu0
        %v4239 = vadd.f32 0.0, %v4238
        %v4240 = vpop.f32.mrf.mxu0
        %v4241 = vpop.f32.mrf.mxu0
        %v4242 = vadd.f32 0.0, %v4241
        %v4243 = vpop.f32.mrf.mxu0
        %4244 = vmatprep.mubr.bf16.mxu0 0
        %4245 = vmatmul.mubr.bf16.gmra.mxu0 %v4098
        %v4246 = vpop.f32.mrf.mxu0
        %v4247 = vadd.f32 0.0, %v4246
        %v4248 = vpop.f32.mrf.mxu0
        %v4249 = vpop.f32.mrf.mxu0
        %v4250 = vadd.f32 0.0, %v4249
        %v4251 = vpop.f32.mrf.mxu0
        %4252 = vmatprep.mubr.bf16.mxu0 0
        %4253 = vmatmul.mubr.bf16.gmra.mxu0 %v4099
        %v4254 = vpop.f32.mrf.mxu0
        %v4255 = vadd.f32 0.0, %v4254
        %v4256 = vpop.f32.mrf.mxu0
        %v4257 = vpop.f32.mrf.mxu0
        %v4258 = vadd.f32 0.0, %v4257
        %v4259 = vpop.f32.mrf.mxu0
        %4260 = vdwg.mxu0
        %s4261 = scalar_lea.vmem %s1, 256
        %v4262 = vld [vmem:[%s4261] sm:$0xf]
        %v4263 = vld [vmem:[%s4261 + $0x4] sm:$0xf]
        %v4264 = vld [vmem:[%s4261 + $0x8] sm:$0xf]
        %v4265 = vld [vmem:[%s4261 + $0xc] sm:$0xf]
        %v4266 = vld [vmem:[%s4261 + $0x10] sm:$0xf]
        %v4267 = vld [vmem:[%s4261 + $0x14] sm:$0xf]
        %v4268 = vld [vmem:[%s4261 + $0x18] sm:$0xf]
        %v4269 = vld [vmem:[%s4261 + $0x1c] sm:$0xf]
        %v4270 = vld [vmem:[%s4261 + $0x20] sm:$0xf]
        %v4271 = vld [vmem:[%s4261 + $0x24] sm:$0xf]
        %v4272 = vld [vmem:[%s4261 + $0x28] sm:$0xf]
        %v4273 = vld [vmem:[%s4261 + $0x2c] sm:$0xf]
        %v4274 = vld [vmem:[%s4261 + $0x30] sm:$0xf]
        %v4275 = vld [vmem:[%s4261 + $0x34] sm:$0xf]
        %v4276 = vld [vmem:[%s4261 + $0x38] sm:$0xf]
        %v4277 = vld [vmem:[%s4261 + $0x3c] sm:$0xf]
        %v4310 = vunpack.c.l.b16 %v692
        %v4311 = vunpack.c.l.b16 %v693
        %v4312 = vunpack.c.l.b16 %v694
        %v4313 = vunpack.c.l.b16 %v695
        %v4314 = vunpack.c.l.b16 %v696
        %v4315 = vunpack.c.l.b16 %v697
        %v4316 = vunpack.c.l.b16 %v698
        %v4317 = vunpack.c.l.b16 %v699
        %v4318 = vunpack.c.l.b16 %v700
        %v4319 = vunpack.c.l.b16 %v701
        %v4320 = vunpack.c.l.b16 %v702
        %v4321 = vunpack.c.l.b16 %v703
        %v4322 = vunpack.c.l.b16 %v704
        %v4323 = vunpack.c.l.b16 %v705
        %v4324 = vunpack.c.l.b16 %v706
        %v4325 = vunpack.c.l.b16 %v707
        %v4326 = vunpack.c.l.b16 %v708
        %v4327 = vunpack.c.l.b16 %v709
        %v4328 = vunpack.c.l.b16 %v710
        %v4329 = vunpack.c.l.b16 %v711
        %v4330 = vunpack.c.l.b16 %v712
        %v4331 = vunpack.c.l.b16 %v713
        %v4332 = vunpack.c.l.b16 %v714
        %v4333 = vunpack.c.l.b16 %v715
        %v4334 = vunpack.c.l.b16 %v716
        %v4335 = vunpack.c.l.b16 %v717
        %v4336 = vunpack.c.l.b16 %v718
        %v4337 = vunpack.c.l.b16 %v719
        %v4338 = vunpack.c.l.b16 %v720
        %v4339 = vunpack.c.l.b16 %v721
        %v4340 = vunpack.c.l.b16 %v722
        %v4341 = vunpack.c.l.b16 %v723
        %v4342 = vpack.c.b16 %v4311, %v4310
        %v4343 = vpack.c.b16 %v4313, %v4312
        %v4344 = vpack.c.b16 %v4315, %v4314
        %v4345 = vpack.c.b16 %v4317, %v4316
        %v4346 = vpack.c.b16 %v4319, %v4318
        %v4347 = vpack.c.b16 %v4321, %v4320
        %v4348 = vpack.c.b16 %v4323, %v4322
        %v4349 = vpack.c.b16 %v4325, %v4324
        %v4350 = vpack.c.b16 %v4327, %v4326
        %v4351 = vpack.c.b16 %v4329, %v4328
        %v4352 = vpack.c.b16 %v4331, %v4330
        %v4353 = vpack.c.b16 %v4333, %v4332
        %v4354 = vpack.c.b16 %v4335, %v4334
        %v4355 = vpack.c.b16 %v4337, %v4336
        %v4356 = vpack.c.b16 %v4339, %v4338
        %v4357 = vpack.c.b16 %v4341, %v4340
        %v4390 = vunpack.c.l.b16 %v4262
        %v4391 = vunpack.c.l.b16 %v4263
        %v4392 = vunpack.c.l.b16 %v4264
        %v4393 = vunpack.c.l.b16 %v4265
        %v4394 = vunpack.c.l.b16 %v4266
        %v4395 = vunpack.c.l.b16 %v4267
        %v4396 = vunpack.c.l.b16 %v4268
        %v4397 = vunpack.c.l.b16 %v4269
        %v4398 = vunpack.c.l.b16 %v4270
        %v4399 = vunpack.c.l.b16 %v4271
        %v4400 = vunpack.c.l.b16 %v4272
        %v4401 = vunpack.c.l.b16 %v4273
        %v4402 = vunpack.c.l.b16 %v4274
        %v4403 = vunpack.c.l.b16 %v4275
        %v4404 = vunpack.c.l.b16 %v4276
        %v4405 = vunpack.c.l.b16 %v4277
        %v4406 = vpack.c.b16 %v4391, %v4390
        %v4407 = vpack.c.b16 %v4393, %v4392
        %v4408 = vpack.c.b16 %v4395, %v4394
        %v4409 = vpack.c.b16 %v4397, %v4396
        %v4410 = vpack.c.b16 %v4399, %v4398
        %v4411 = vpack.c.b16 %v4401, %v4400
        %v4412 = vpack.c.b16 %v4403, %v4402
        %v4413 = vpack.c.b16 %v4405, %v4404
        %4422 = vmatprep.subr.bf16.mxu0 0
        %4423 = vmatpush1.bf16.msra.mxu0 %v4413
        %4424 = vmatprep.subr.bf16.mxu0 0
        %4425 = vmatpush1.bf16.msra.mxu0 %v4412
        %4426 = vmatprep.subr.bf16.mxu0 0
        %4427 = vmatpush1.bf16.msra.mxu0 %v4411
        %4428 = vmatprep.subr.bf16.mxu0 0
        %4429 = vmatpush1.bf16.msra.mxu0 %v4410
        %4430 = vmatprep.subr.bf16.mxu0 0
        %4431 = vmatpush1.bf16.msra.mxu0 %v4409
        %4432 = vmatprep.subr.bf16.mxu0 0
        %4433 = vmatpush1.bf16.msra.mxu0 %v4408
        %4434 = vmatprep.subr.bf16.mxu0 0
        %4435 = vmatpush1.bf16.msra.mxu0 %v4407
        %4436 = vmatprep.subr.bf16.mxu0 0
        %4437 = vmatpush1.bf16.msra.mxu0 %v4406
        %4438 = vmatprep.subr.bf16.mxu0 0
        %4439 = vmatpush2.bf16.msra.mxu0 0
        %4440 = vmatprep.subr.bf16.mxu0 0
        %4441 = vmatpush2.bf16.msra.mxu0 0
        %4442 = vmatprep.subr.bf16.mxu0 0
        %4443 = vmatpush2.bf16.msra.mxu0 0
        %4444 = vmatprep.subr.bf16.mxu0 0
        %4445 = vmatpush2.bf16.msra.mxu0 0
        %4446 = vmatprep.subr.bf16.mxu0 0
        %4447 = vmatpush2.bf16.msra.mxu0 0
        %4448 = vmatprep.subr.bf16.mxu0 0
        %4449 = vmatpush2.bf16.msra.mxu0 0
        %4450 = vmatprep.subr.bf16.mxu0 0
        %4451 = vmatpush2.bf16.msra.mxu0 0
        %4452 = vmatprep.subr.bf16.mxu0 0
        %4453 = vmatpush2.bf16.msra.mxu0 0
        %4454 = vmatprep.mubr.bf16.mxu0 0
        %4455 = vmatmul.mubr.bf16.gmra.mxu0 %v4342
        %v4456 = vpop.f32.mrf.mxu0
        %v4457 = vadd.f32 0.0, %v4456
        %v4458 = vpop.f32.mrf.mxu0
        %v4459 = vpop.f32.mrf.mxu0
        %v4460 = vadd.f32 0.0, %v4459
        %v4461 = vpop.f32.mrf.mxu0
        %4462 = vmatprep.mubr.bf16.mxu0 0
        %4463 = vmatmul.mubr.bf16.gmra.mxu0 %v4343
        %v4464 = vpop.f32.mrf.mxu0
        %v4465 = vadd.f32 0.0, %v4464
        %v4466 = vpop.f32.mrf.mxu0
        %v4467 = vpop.f32.mrf.mxu0
        %v4468 = vadd.f32 0.0, %v4467
        %v4469 = vpop.f32.mrf.mxu0
        %4470 = vmatprep.mubr.bf16.mxu0 0
        %4471 = vmatmul.mubr.bf16.gmra.mxu0 %v4344
        %v4472 = vpop.f32.mrf.mxu0
        %v4473 = vadd.f32 0.0, %v4472
        %v4474 = vpop.f32.mrf.mxu0
        %v4475 = vpop.f32.mrf.mxu0
        %v4476 = vadd.f32 0.0, %v4475
        %v4477 = vpop.f32.mrf.mxu0
        %4478 = vmatprep.mubr.bf16.mxu0 0
        %4479 = vmatmul.mubr.bf16.gmra.mxu0 %v4345
        %v4480 = vpop.f32.mrf.mxu0
        %v4481 = vadd.f32 0.0, %v4480
        %v4482 = vpop.f32.mrf.mxu0
        %v4483 = vpop.f32.mrf.mxu0
        %v4484 = vadd.f32 0.0, %v4483
        %v4485 = vpop.f32.mrf.mxu0
        %4486 = vmatprep.mubr.bf16.mxu0 0
        %4487 = vmatmul.mubr.bf16.gmra.mxu0 %v4346
        %v4488 = vpop.f32.mrf.mxu0
        %v4489 = vadd.f32 0.0, %v4488
        %v4490 = vpop.f32.mrf.mxu0
        %v4491 = vpop.f32.mrf.mxu0
        %v4492 = vadd.f32 0.0, %v4491
        %v4493 = vpop.f32.mrf.mxu0
        %4494 = vmatprep.mubr.bf16.mxu0 0
        %4495 = vmatmul.mubr.bf16.gmra.mxu0 %v4347
        %v4496 = vpop.f32.mrf.mxu0
        %v4497 = vadd.f32 0.0, %v4496
        %v4498 = vpop.f32.mrf.mxu0
        %v4499 = vpop.f32.mrf.mxu0
        %v4500 = vadd.f32 0.0, %v4499
        %v4501 = vpop.f32.mrf.mxu0
        %4502 = vmatprep.mubr.bf16.mxu0 0
        %4503 = vmatmul.mubr.bf16.gmra.mxu0 %v4348
        %v4504 = vpop.f32.mrf.mxu0
        %v4505 = vadd.f32 0.0, %v4504
        %v4506 = vpop.f32.mrf.mxu0
        %v4507 = vpop.f32.mrf.mxu0
        %v4508 = vadd.f32 0.0, %v4507
        %v4509 = vpop.f32.mrf.mxu0
        %4510 = vmatprep.mubr.bf16.mxu0 0
        %4511 = vmatmul.mubr.bf16.gmra.mxu0 %v4349
        %v4512 = vpop.f32.mrf.mxu0
        %v4513 = vadd.f32 0.0, %v4512
        %v4514 = vpop.f32.mrf.mxu0
        %v4515 = vpop.f32.mrf.mxu0
        %v4516 = vadd.f32 0.0, %v4515
        %v4517 = vpop.f32.mrf.mxu0
        %4518 = vmatprep.mubr.bf16.mxu0 0
        %4519 = vmatmul.mubr.bf16.gmra.mxu0 %v4350
        %v4520 = vpop.f32.mrf.mxu0
        %v4521 = vadd.f32 0.0, %v4520
        %v4522 = vpop.f32.mrf.mxu0
        %v4523 = vpop.f32.mrf.mxu0
        %v4524 = vadd.f32 0.0, %v4523
        %v4525 = vpop.f32.mrf.mxu0
        %4526 = vmatprep.mubr.bf16.mxu0 0
        %4527 = vmatmul.mubr.bf16.gmra.mxu0 %v4351
        %v4528 = vpop.f32.mrf.mxu0
        %v4529 = vadd.f32 0.0, %v4528
        %v4530 = vpop.f32.mrf.mxu0
        %v4531 = vpop.f32.mrf.mxu0
        %v4532 = vadd.f32 0.0, %v4531
        %v4533 = vpop.f32.mrf.mxu0
        %4534 = vmatprep.mubr.bf16.mxu0 0
        %4535 = vmatmul.mubr.bf16.gmra.mxu0 %v4352
        %v4536 = vpop.f32.mrf.mxu0
        %v4537 = vadd.f32 0.0, %v4536
        %v4538 = vpop.f32.mrf.mxu0
        %v4539 = vpop.f32.mrf.mxu0
        %v4540 = vadd.f32 0.0, %v4539
        %v4541 = vpop.f32.mrf.mxu0
        %4542 = vmatprep.mubr.bf16.mxu0 0
        %4543 = vmatmul.mubr.bf16.gmra.mxu0 %v4353
        %v4544 = vpop.f32.mrf.mxu0
        %v4545 = vadd.f32 0.0, %v4544
        %v4546 = vpop.f32.mrf.mxu0
        %v4547 = vpop.f32.mrf.mxu0
        %v4548 = vadd.f32 0.0, %v4547
        %v4549 = vpop.f32.mrf.mxu0
        %4550 = vmatprep.mubr.bf16.mxu0 0
        %4551 = vmatmul.mubr.bf16.gmra.mxu0 %v4354
        %v4552 = vpop.f32.mrf.mxu0
        %v4553 = vadd.f32 0.0, %v4552
        %v4554 = vpop.f32.mrf.mxu0
        %v4555 = vpop.f32.mrf.mxu0
        %v4556 = vadd.f32 0.0, %v4555
        %v4557 = vpop.f32.mrf.mxu0
        %4558 = vmatprep.mubr.bf16.mxu0 0
        %4559 = vmatmul.mubr.bf16.gmra.mxu0 %v4355
        %v4560 = vpop.f32.mrf.mxu0
        %v4561 = vadd.f32 0.0, %v4560
        %v4562 = vpop.f32.mrf.mxu0
        %v4563 = vpop.f32.mrf.mxu0
        %v4564 = vadd.f32 0.0, %v4563
        %v4565 = vpop.f32.mrf.mxu0
        %4566 = vmatprep.mubr.bf16.mxu0 0
        %4567 = vmatmul.mubr.bf16.gmra.mxu0 %v4356
        %v4568 = vpop.f32.mrf.mxu0
        %v4569 = vadd.f32 0.0, %v4568
        %v4570 = vpop.f32.mrf.mxu0
        %v4571 = vpop.f32.mrf.mxu0
        %v4572 = vadd.f32 0.0, %v4571
        %v4573 = vpop.f32.mrf.mxu0
        %4574 = vmatprep.mubr.bf16.mxu0 0
        %4575 = vmatmul.mubr.bf16.gmra.mxu0 %v4357
        %v4576 = vpop.f32.mrf.mxu0
        %v4577 = vadd.f32 0.0, %v4576
        %v4578 = vpop.f32.mrf.mxu0
        %v4579 = vpop.f32.mrf.mxu0
        %v4580 = vadd.f32 0.0, %v4579
        %v4581 = vpop.f32.mrf.mxu0
        %4582 = vdwg.mxu0
        %v4583 = vpack.c.bf16 %v4460, %v4457
        %v4584 = vpack.c.bf16 %v4468, %v4465
        %v4585 = vpack.c.bf16 %v4476, %v4473
        %v4586 = vpack.c.bf16 %v4484, %v4481
        %v4587 = vpack.c.bf16 %v4492, %v4489
        %v4588 = vpack.c.bf16 %v4500, %v4497
        %v4589 = vpack.c.bf16 %v4508, %v4505
        %v4590 = vpack.c.bf16 %v4516, %v4513
        %v4591 = vpack.c.bf16 %v4524, %v4521
        %v4592 = vpack.c.bf16 %v4532, %v4529
        %v4593 = vpack.c.bf16 %v4540, %v4537
        %v4594 = vpack.c.bf16 %v4548, %v4545
        %v4595 = vpack.c.bf16 %v4556, %v4553
        %v4596 = vpack.c.bf16 %v4564, %v4561
        %v4597 = vpack.c.bf16 %v4572, %v4569
        %v4598 = vpack.c.bf16 %v4580, %v4577
        %s4599 = scalar_lea.vmem %s2, 256
        %v4600 = vld [vmem:[%s4599] sm:$0xf]
        %v4601 = vld [vmem:[%s4599 + $0x4] sm:$0xf]
        %v4602 = vld [vmem:[%s4599 + $0x8] sm:$0xf]
        %v4603 = vld [vmem:[%s4599 + $0xc] sm:$0xf]
        %v4604 = vld [vmem:[%s4599 + $0x10] sm:$0xf]
        %v4605 = vld [vmem:[%s4599 + $0x14] sm:$0xf]
        %v4606 = vld [vmem:[%s4599 + $0x18] sm:$0xf]
        %v4607 = vld [vmem:[%s4599 + $0x1c] sm:$0xf]
        %v4608 = vld [vmem:[%s4599 + $0x20] sm:$0xf]
        %v4609 = vld [vmem:[%s4599 + $0x24] sm:$0xf]
        %v4610 = vld [vmem:[%s4599 + $0x28] sm:$0xf]
        %v4611 = vld [vmem:[%s4599 + $0x2c] sm:$0xf]
        %v4612 = vld [vmem:[%s4599 + $0x30] sm:$0xf]
        %v4613 = vld [vmem:[%s4599 + $0x34] sm:$0xf]
        %v4614 = vld [vmem:[%s4599 + $0x38] sm:$0xf]
        %v4615 = vld [vmem:[%s4599 + $0x3c] sm:$0xf]
        %s4616 = scalar_lea.vmem %s3, 4
        %v4617 = vld [vmem:[%s4616] sm:$0x1]
        %v4619 = vlaneseq
        %v4620 = vshrl.u32 %v4619, 7
        %v4621 = vsub.s32 0, %v4620
        %v4622 = vrot.slane %v4617, %v4621
        %v4640 = vunpack.c.l.b16 %v4600
        %v4641 = vunpack.c.l.b16 %v4601
        %v4642 = vunpack.c.l.b16 %v4602
        %v4643 = vunpack.c.l.b16 %v4603
        %v4644 = vunpack.c.l.b16 %v4604
        %v4645 = vunpack.c.l.b16 %v4605
        %v4646 = vunpack.c.l.b16 %v4606
        %v4647 = vunpack.c.l.b16 %v4607
        %v4648 = vunpack.c.l.b16 %v4608
        %v4649 = vunpack.c.l.b16 %v4609
        %v4650 = vunpack.c.l.b16 %v4610
        %v4651 = vunpack.c.l.b16 %v4611
        %v4652 = vunpack.c.l.b16 %v4612
        %v4653 = vunpack.c.l.b16 %v4613
        %v4654 = vunpack.c.l.b16 %v4614
        %v4655 = vunpack.c.l.b16 %v4615
        %v4656 = vpack.c.b16 %v4641, %v4640
        %v4657 = vpack.c.b16 %v4643, %v4642
        %v4658 = vpack.c.b16 %v4645, %v4644
        %v4659 = vpack.c.b16 %v4647, %v4646
        %v4660 = vpack.c.b16 %v4649, %v4648
        %v4661 = vpack.c.b16 %v4651, %v4650
        %v4662 = vpack.c.b16 %v4653, %v4652
        %v4663 = vpack.c.b16 %v4655, %v4654
        %4672 = vmatprep.subr.bf16.mxu0 0
        %4673 = vmatpush1.bf16.msra.mxu0 %v4663
        %4674 = vmatprep.subr.bf16.mxu0 0
        %4675 = vmatpush1.bf16.msra.mxu0 %v4662
        %4676 = vmatprep.subr.bf16.mxu0 0
        %4677 = vmatpush1.bf16.msra.mxu0 %v4661
        %4678 = vmatprep.subr.bf16.mxu0 0
        %4679 = vmatpush1.bf16.msra.mxu0 %v4660
        %4680 = vmatprep.subr.bf16.mxu0 0
        %4681 = vmatpush1.bf16.msra.mxu0 %v4659
        %4682 = vmatprep.subr.bf16.mxu0 0
        %4683 = vmatpush1.bf16.msra.mxu0 %v4658
        %4684 = vmatprep.subr.bf16.mxu0 0
        %4685 = vmatpush1.bf16.msra.mxu0 %v4657
        %4686 = vmatprep.subr.bf16.mxu0 0
        %4687 = vmatpush1.bf16.msra.mxu0 %v4656
        %4688 = vmatprep.subr.bf16.mxu0 0
        %4689 = vmatpush2.bf16.msra.mxu0 0
        %4690 = vmatprep.subr.bf16.mxu0 0
        %4691 = vmatpush2.bf16.msra.mxu0 0
        %4692 = vmatprep.subr.bf16.mxu0 0
        %4693 = vmatpush2.bf16.msra.mxu0 0
        %4694 = vmatprep.subr.bf16.mxu0 0
        %4695 = vmatpush2.bf16.msra.mxu0 0
        %4696 = vmatprep.subr.bf16.mxu0 0
        %4697 = vmatpush2.bf16.msra.mxu0 0
        %4698 = vmatprep.subr.bf16.mxu0 0
        %4699 = vmatpush2.bf16.msra.mxu0 0
        %4700 = vmatprep.subr.bf16.mxu0 0
        %4701 = vmatpush2.bf16.msra.mxu0 0
        %4702 = vmatprep.subr.bf16.mxu0 0
        %4703 = vmatpush2.bf16.msra.mxu0 0
        %4704 = vmatprep.mubr.bf16.mxu0 0
        %4705 = vmatmul.mubr.bf16.gmra.mxu0 %v4583
        %v4706 = vpop.f32.mrf.mxu0
        %v4707 = vadd.f32 %v4622, %v4706
        %v4708 = vpop.f32.mrf.mxu0
        %v4709 = vpop.f32.mrf.mxu0
        %v4710 = vadd.f32 %v4622, %v4709
        %v4711 = vpop.f32.mrf.mxu0
        %4712 = vmatprep.mubr.bf16.mxu0 0
        %4713 = vmatmul.mubr.bf16.gmra.mxu0 %v4584
        %v4714 = vpop.f32.mrf.mxu0
        %v4715 = vadd.f32 %v4622, %v4714
        %v4716 = vpop.f32.mrf.mxu0
        %v4717 = vpop.f32.mrf.mxu0
        %v4718 = vadd.f32 %v4622, %v4717
        %v4719 = vpop.f32.mrf.mxu0
        %4720 = vmatprep.mubr.bf16.mxu0 0
        %4721 = vmatmul.mubr.bf16.gmra.mxu0 %v4585
        %v4722 = vpop.f32.mrf.mxu0
        %v4723 = vadd.f32 %v4622, %v4722
        %v4724 = vpop.f32.mrf.mxu0
        %v4725 = vpop.f32.mrf.mxu0
        %v4726 = vadd.f32 %v4622, %v4725
        %v4727 = vpop.f32.mrf.mxu0
        %4728 = vmatprep.mubr.bf16.mxu0 0
        %4729 = vmatmul.mubr.bf16.gmra.mxu0 %v4586
        %v4730 = vpop.f32.mrf.mxu0
        %v4731 = vadd.f32 %v4622, %v4730
        %v4732 = vpop.f32.mrf.mxu0
        %v4733 = vpop.f32.mrf.mxu0
        %v4734 = vadd.f32 %v4622, %v4733
        %v4735 = vpop.f32.mrf.mxu0
        %4736 = vmatprep.mubr.bf16.mxu0 0
        %4737 = vmatmul.mubr.bf16.gmra.mxu0 %v4587
        %v4738 = vpop.f32.mrf.mxu0
        %v4739 = vadd.f32 %v4622, %v4738
        %v4740 = vpop.f32.mrf.mxu0
        %v4741 = vpop.f32.mrf.mxu0
        %v4742 = vadd.f32 %v4622, %v4741
        %v4743 = vpop.f32.mrf.mxu0
        %4744 = vmatprep.mubr.bf16.mxu0 0
        %4745 = vmatmul.mubr.bf16.gmra.mxu0 %v4588
        %v4746 = vpop.f32.mrf.mxu0
        %v4747 = vadd.f32 %v4622, %v4746
        %v4748 = vpop.f32.mrf.mxu0
        %v4749 = vpop.f32.mrf.mxu0
        %v4750 = vadd.f32 %v4622, %v4749
        %v4751 = vpop.f32.mrf.mxu0
        %4752 = vmatprep.mubr.bf16.mxu0 0
        %4753 = vmatmul.mubr.bf16.gmra.mxu0 %v4589
        %v4754 = vpop.f32.mrf.mxu0
        %v4755 = vadd.f32 %v4622, %v4754
        %v4756 = vpop.f32.mrf.mxu0
        %v4757 = vpop.f32.mrf.mxu0
        %v4758 = vadd.f32 %v4622, %v4757
        %v4759 = vpop.f32.mrf.mxu0
        %4760 = vmatprep.mubr.bf16.mxu0 0
        %4761 = vmatmul.mubr.bf16.gmra.mxu0 %v4590
        %v4762 = vpop.f32.mrf.mxu0
        %v4763 = vadd.f32 %v4622, %v4762
        %v4764 = vpop.f32.mrf.mxu0
        %v4765 = vpop.f32.mrf.mxu0
        %v4766 = vadd.f32 %v4622, %v4765
        %v4767 = vpop.f32.mrf.mxu0
        %4768 = vmatprep.mubr.bf16.mxu0 0
        %4769 = vmatmul.mubr.bf16.gmra.mxu0 %v4591
        %v4770 = vpop.f32.mrf.mxu0
        %v4771 = vadd.f32 %v4622, %v4770
        %v4772 = vpop.f32.mrf.mxu0
        %v4773 = vpop.f32.mrf.mxu0
        %v4774 = vadd.f32 %v4622, %v4773
        %v4775 = vpop.f32.mrf.mxu0
        %4776 = vmatprep.mubr.bf16.mxu0 0
        %4777 = vmatmul.mubr.bf16.gmra.mxu0 %v4592
        %v4778 = vpop.f32.mrf.mxu0
        %v4779 = vadd.f32 %v4622, %v4778
        %v4780 = vpop.f32.mrf.mxu0
        %v4781 = vpop.f32.mrf.mxu0
        %v4782 = vadd.f32 %v4622, %v4781
        %v4783 = vpop.f32.mrf.mxu0
        %4784 = vmatprep.mubr.bf16.mxu0 0
        %4785 = vmatmul.mubr.bf16.gmra.mxu0 %v4593
        %v4786 = vpop.f32.mrf.mxu0
        %v4787 = vadd.f32 %v4622, %v4786
        %v4788 = vpop.f32.mrf.mxu0
        %v4789 = vpop.f32.mrf.mxu0
        %v4790 = vadd.f32 %v4622, %v4789
        %v4791 = vpop.f32.mrf.mxu0
        %4792 = vmatprep.mubr.bf16.mxu0 0
        %4793 = vmatmul.mubr.bf16.gmra.mxu0 %v4594
        %v4794 = vpop.f32.mrf.mxu0
        %v4795 = vadd.f32 %v4622, %v4794
        %v4796 = vpop.f32.mrf.mxu0
        %v4797 = vpop.f32.mrf.mxu0
        %v4798 = vadd.f32 %v4622, %v4797
        %v4799 = vpop.f32.mrf.mxu0
        %4800 = vmatprep.mubr.bf16.mxu0 0
        %4801 = vmatmul.mubr.bf16.gmra.mxu0 %v4595
        %v4802 = vpop.f32.mrf.mxu0
        %v4803 = vadd.f32 %v4622, %v4802
        %v4804 = vpop.f32.mrf.mxu0
        %v4805 = vpop.f32.mrf.mxu0
        %v4806 = vadd.f32 %v4622, %v4805
        %v4807 = vpop.f32.mrf.mxu0
        %4808 = vmatprep.mubr.bf16.mxu0 0
        %4809 = vmatmul.mubr.bf16.gmra.mxu0 %v4596
        %v4810 = vpop.f32.mrf.mxu0
        %v4811 = vadd.f32 %v4622, %v4810
        %v4812 = vpop.f32.mrf.mxu0
        %v4813 = vpop.f32.mrf.mxu0
        %v4814 = vadd.f32 %v4622, %v4813
        %v4815 = vpop.f32.mrf.mxu0
        %4816 = vmatprep.mubr.bf16.mxu0 0
        %4817 = vmatmul.mubr.bf16.gmra.mxu0 %v4597
        %v4818 = vpop.f32.mrf.mxu0
        %v4819 = vadd.f32 %v4622, %v4818
        %v4820 = vpop.f32.mrf.mxu0
        %v4821 = vpop.f32.mrf.mxu0
        %v4822 = vadd.f32 %v4622, %v4821
        %v4823 = vpop.f32.mrf.mxu0
        %4824 = vmatprep.mubr.bf16.mxu0 0
        %4825 = vmatmul.mubr.bf16.gmra.mxu0 %v4598
        %v4826 = vpop.f32.mrf.mxu0
        %v4827 = vadd.f32 %v4622, %v4826
        %v4828 = vpop.f32.mrf.mxu0
        %v4829 = vpop.f32.mrf.mxu0
        %v4830 = vadd.f32 %v4622, %v4829
        %v4831 = vpop.f32.mrf.mxu0
        %4832 = vdwg.mxu0
        %vm4833 = vcmp.gt.f32.partialorder %v4707, 0.0
        %vm4834 = vcmp.gt.f32.partialorder %v4710, 0.0
        %vm4835 = vcmp.gt.f32.partialorder %v4715, 0.0
        %vm4836 = vcmp.gt.f32.partialorder %v4718, 0.0
        %vm4837 = vcmp.gt.f32.partialorder %v4723, 0.0
        %vm4838 = vcmp.gt.f32.partialorder %v4726, 0.0
        %vm4839 = vcmp.gt.f32.partialorder %v4731, 0.0
        %vm4840 = vcmp.gt.f32.partialorder %v4734, 0.0
        %vm4841 = vcmp.gt.f32.partialorder %v4739, 0.0
        %vm4842 = vcmp.gt.f32.partialorder %v4742, 0.0
        %vm4843 = vcmp.gt.f32.partialorder %v4747, 0.0
        %vm4844 = vcmp.gt.f32.partialorder %v4750, 0.0
        %vm4845 = vcmp.gt.f32.partialorder %v4755, 0.0
        %vm4846 = vcmp.gt.f32.partialorder %v4758, 0.0
        %vm4847 = vcmp.gt.f32.partialorder %v4763, 0.0
        %vm4848 = vcmp.gt.f32.partialorder %v4766, 0.0
        %vm4849 = vcmp.gt.f32.partialorder %v4771, 0.0
        %vm4850 = vcmp.gt.f32.partialorder %v4774, 0.0
        %vm4851 = vcmp.gt.f32.partialorder %v4779, 0.0
        %vm4852 = vcmp.gt.f32.partialorder %v4782, 0.0
        %vm4853 = vcmp.gt.f32.partialorder %v4787, 0.0
        %vm4854 = vcmp.gt.f32.partialorder %v4790, 0.0
        %vm4855 = vcmp.gt.f32.partialorder %v4795, 0.0
        %vm4856 = vcmp.gt.f32.partialorder %v4798, 0.0
        %vm4857 = vcmp.gt.f32.partialorder %v4803, 0.0
        %vm4858 = vcmp.gt.f32.partialorder %v4806, 0.0
        %vm4859 = vcmp.gt.f32.partialorder %v4811, 0.0
        %vm4860 = vcmp.gt.f32.partialorder %v4814, 0.0
        %vm4861 = vcmp.gt.f32.partialorder %v4819, 0.0
        %vm4862 = vcmp.gt.f32.partialorder %v4822, 0.0
        %vm4863 = vcmp.gt.f32.partialorder %v4827, 0.0
        %vm4864 = vcmp.gt.f32.partialorder %v4830, 0.0
        %v4865 = vmin.f32 %v4707, 0.0
        %v4866 = vmin.f32 %v4710, 0.0
        %v4867 = vmin.f32 %v4715, 0.0
        %v4868 = vmin.f32 %v4718, 0.0
        %v4869 = vmin.f32 %v4723, 0.0
        %v4870 = vmin.f32 %v4726, 0.0
        %v4871 = vmin.f32 %v4731, 0.0
        %v4872 = vmin.f32 %v4734, 0.0
        %v4873 = vmin.f32 %v4739, 0.0
        %v4874 = vmin.f32 %v4742, 0.0
        %v4875 = vmin.f32 %v4747, 0.0
        %v4876 = vmin.f32 %v4750, 0.0
        %v4877 = vmin.f32 %v4755, 0.0
        %v4878 = vmin.f32 %v4758, 0.0
        %v4879 = vmin.f32 %v4763, 0.0
        %v4880 = vmin.f32 %v4766, 0.0
        %v4881 = vmin.f32 %v4771, 0.0
        %v4882 = vmin.f32 %v4774, 0.0
        %v4883 = vmin.f32 %v4779, 0.0
        %v4884 = vmin.f32 %v4782, 0.0
        %v4885 = vmin.f32 %v4787, 0.0
        %v4886 = vmin.f32 %v4790, 0.0
        %v4887 = vmin.f32 %v4795, 0.0
        %v4888 = vmin.f32 %v4798, 0.0
        %v4889 = vmin.f32 %v4803, 0.0
        %v4890 = vmin.f32 %v4806, 0.0
        %v4891 = vmin.f32 %v4811, 0.0
        %v4892 = vmin.f32 %v4814, 0.0
        %v4893 = vmin.f32 %v4819, 0.0
        %v4894 = vmin.f32 %v4822, 0.0
        %v4895 = vmin.f32 %v4827, 0.0
        %v4896 = vmin.f32 %v4830, 0.0
        %v4897 = vmul.f32 %v4865, 1.442695
        %v4898 = vpow.pop %v4897
        %v4899 = vmul.f32 %v4866, 1.442695
        %v4900 = vpow.pop %v4899
        %v4901 = vmul.f32 %v4867, 1.442695
        %v4902 = vpow.pop %v4901
        %v4903 = vmul.f32 %v4868, 1.442695
        %v4904 = vpow.pop %v4903
        %v4905 = vmul.f32 %v4869, 1.442695
        %v4906 = vpow.pop %v4905
        %v4907 = vmul.f32 %v4870, 1.442695
        %v4908 = vpow.pop %v4907
        %v4909 = vmul.f32 %v4871, 1.442695
        %v4910 = vpow.pop %v4909
        %v4911 = vmul.f32 %v4872, 1.442695
        %v4912 = vpow.pop %v4911
        %v4913 = vmul.f32 %v4873, 1.442695
        %v4914 = vpow.pop %v4913
        %v4915 = vmul.f32 %v4874, 1.442695
        %v4916 = vpow.pop %v4915
        %v4917 = vmul.f32 %v4875, 1.442695
        %v4918 = vpow.pop %v4917
        %v4919 = vmul.f32 %v4876, 1.442695
        %v4920 = vpow.pop %v4919
        %v4921 = vmul.f32 %v4877, 1.442695
        %v4922 = vpow.pop %v4921
        %v4923 = vmul.f32 %v4878, 1.442695
        %v4924 = vpow.pop %v4923
        %v4925 = vmul.f32 %v4879, 1.442695
        %v4926 = vpow.pop %v4925
        %v4927 = vmul.f32 %v4880, 1.442695
        %v4928 = vpow.pop %v4927
        %v4929 = vmul.f32 %v4881, 1.442695
        %v4930 = vpow.pop %v4929
        %v4931 = vmul.f32 %v4882, 1.442695
        %v4932 = vpow.pop %v4931
        %v4933 = vmul.f32 %v4883, 1.442695
        %v4934 = vpow.pop %v4933
        %v4935 = vmul.f32 %v4884, 1.442695
        %v4936 = vpow.pop %v4935
        %v4937 = vmul.f32 %v4885, 1.442695
        %v4938 = vpow.pop %v4937
        %v4939 = vmul.f32 %v4886, 1.442695
        %v4940 = vpow.pop %v4939
        %v4941 = vmul.f32 %v4887, 1.442695
        %v4942 = vpow.pop %v4941
        %v4943 = vmul.f32 %v4888, 1.442695
        %v4944 = vpow.pop %v4943
        %v4945 = vmul.f32 %v4889, 1.442695
        %v4946 = vpow.pop %v4945
        %v4947 = vmul.f32 %v4890, 1.442695
        %v4948 = vpow.pop %v4947
        %v4949 = vmul.f32 %v4891, 1.442695
        %v4950 = vpow.pop %v4949
        %v4951 = vmul.f32 %v4892, 1.442695
        %v4952 = vpow.pop %v4951
        %v4953 = vmul.f32 %v4893, 1.442695
        %v4954 = vpow.pop %v4953
        %v4955 = vmul.f32 %v4894, 1.442695
        %v4956 = vpow.pop %v4955
        %v4957 = vmul.f32 %v4895, 1.442695
        %v4958 = vpow.pop %v4957
        %v4959 = vmul.f32 %v4896, 1.442695
        %v4960 = vpow.pop %v4959
        %v4961 = vsub.f32 %v4898, 1.0
        %v4962 = vsub.f32 %v4900, 1.0
        %v4963 = vsub.f32 %v4902, 1.0
        %v4964 = vsub.f32 %v4904, 1.0
        %v4965 = vsub.f32 %v4906, 1.0
        %v4966 = vsub.f32 %v4908, 1.0
        %v4967 = vsub.f32 %v4910, 1.0
        %v4968 = vsub.f32 %v4912, 1.0
        %v4969 = vsub.f32 %v4914, 1.0
        %v4970 = vsub.f32 %v4916, 1.0
        %v4971 = vsub.f32 %v4918, 1.0
        %v4972 = vsub.f32 %v4920, 1.0
        %v4973 = vsub.f32 %v4922, 1.0
        %v4974 = vsub.f32 %v4924, 1.0
        %v4975 = vsub.f32 %v4926, 1.0
        %v4976 = vsub.f32 %v4928, 1.0
        %v4977 = vsub.f32 %v4930, 1.0
        %v4978 = vsub.f32 %v4932, 1.0
        %v4979 = vsub.f32 %v4934, 1.0
        %v4980 = vsub.f32 %v4936, 1.0
        %v4981 = vsub.f32 %v4938, 1.0
        %v4982 = vsub.f32 %v4940, 1.0
        %v4983 = vsub.f32 %v4942, 1.0
        %v4984 = vsub.f32 %v4944, 1.0
        %v4985 = vsub.f32 %v4946, 1.0
        %v4986 = vsub.f32 %v4948, 1.0
        %v4987 = vsub.f32 %v4950, 1.0
        %v4988 = vsub.f32 %v4952, 1.0
        %v4989 = vsub.f32 %v4954, 1.0
        %v4990 = vsub.f32 %v4956, 1.0
        %v4991 = vsub.f32 %v4958, 1.0
        %v4992 = vsub.f32 %v4960, 1.0
        %v4993 = vsel %vm4833, %v4707, %v4961
        %v4994 = vsel %vm4834, %v4710, %v4962
        %v4995 = vsel %vm4835, %v4715, %v4963
        %v4996 = vsel %vm4836, %v4718, %v4964
        %v4997 = vsel %vm4837, %v4723, %v4965
        %v4998 = vsel %vm4838, %v4726, %v4966
        %v4999 = vsel %vm4839, %v4731, %v4967
        %v5000 = vsel %vm4840, %v4734, %v4968
        %v5001 = vsel %vm4841, %v4739, %v4969
        %v5002 = vsel %vm4842, %v4742, %v4970
        %v5003 = vsel %vm4843, %v4747, %v4971
        %v5004 = vsel %vm4844, %v4750, %v4972
        %v5005 = vsel %vm4845, %v4755, %v4973
        %v5006 = vsel %vm4846, %v4758, %v4974
        %v5007 = vsel %vm4847, %v4763, %v4975
        %v5008 = vsel %vm4848, %v4766, %v4976
        %v5009 = vsel %vm4849, %v4771, %v4977
        %v5010 = vsel %vm4850, %v4774, %v4978
        %v5011 = vsel %vm4851, %v4779, %v4979
        %v5012 = vsel %vm4852, %v4782, %v4980
        %v5013 = vsel %vm4853, %v4787, %v4981
        %v5014 = vsel %vm4854, %v4790, %v4982
        %v5015 = vsel %vm4855, %v4795, %v4983
        %v5016 = vsel %vm4856, %v4798, %v4984
        %v5017 = vsel %vm4857, %v4803, %v4985
        %v5018 = vsel %vm4858, %v4806, %v4986
        %v5019 = vsel %vm4859, %v4811, %v4987
        %v5020 = vsel %vm4860, %v4814, %v4988
        %v5021 = vsel %vm4861, %v4819, %v4989
        %v5022 = vsel %vm4862, %v4822, %v4990
        %v5023 = vsel %vm4863, %v4827, %v4991
        %v5024 = vsel %vm4864, %v4830, %v4992
        %v5025 = vpack.c.bf16 %v4994, %v4993
        %v5026 = vpack.c.bf16 %v4996, %v4995
        %v5027 = vpack.c.bf16 %v4998, %v4997
        %v5028 = vpack.c.bf16 %v5000, %v4999
        %v5029 = vpack.c.bf16 %v5002, %v5001
        %v5030 = vpack.c.bf16 %v5004, %v5003
        %v5031 = vpack.c.bf16 %v5006, %v5005
        %v5032 = vpack.c.bf16 %v5008, %v5007
        %v5033 = vpack.c.bf16 %v5010, %v5009
        %v5034 = vpack.c.bf16 %v5012, %v5011
        %v5035 = vpack.c.bf16 %v5014, %v5013
        %v5036 = vpack.c.bf16 %v5016, %v5015
        %v5037 = vpack.c.bf16 %v5018, %v5017
        %v5038 = vpack.c.bf16 %v5020, %v5019
        %v5039 = vpack.c.bf16 %v5022, %v5021
        %v5040 = vpack.c.bf16 %v5024, %v5023
        %5041 = vmatprep.subr.bf16.mxu0 0
        %5042 = vmatpush1.bf16.msra.mxu0 %v1556
        %5043 = vmatprep.subr.bf16.mxu0 0
        %5044 = vmatpush1.bf16.msra.mxu0 %v1555
        %5045 = vmatprep.subr.bf16.mxu0 0
        %5046 = vmatpush1.bf16.msra.mxu0 %v1554
        %5047 = vmatprep.subr.bf16.mxu0 0
        %5048 = vmatpush1.bf16.msra.mxu0 %v1553
        %5049 = vmatprep.subr.bf16.mxu0 0
        %5050 = vmatpush1.bf16.msra.mxu0 %v1552
        %5051 = vmatprep.subr.bf16.mxu0 0
        %5052 = vmatpush1.bf16.msra.mxu0 %v1551
        %5053 = vmatprep.subr.bf16.mxu0 0
        %5054 = vmatpush1.bf16.msra.mxu0 %v1550
        %5055 = vmatprep.subr.bf16.mxu0 0
        %5056 = vmatpush1.bf16.msra.mxu0 %v1549
        %5057 = vmatprep.subr.bf16.mxu0 0
        %5058 = vmatpush2.bf16.msra.mxu0 0
        %5059 = vmatprep.subr.bf16.mxu0 0
        %5060 = vmatpush2.bf16.msra.mxu0 0
        %5061 = vmatprep.subr.bf16.mxu0 0
        %5062 = vmatpush2.bf16.msra.mxu0 0
        %5063 = vmatprep.subr.bf16.mxu0 0
        %5064 = vmatpush2.bf16.msra.mxu0 0
        %5065 = vmatprep.subr.bf16.mxu0 0
        %5066 = vmatpush2.bf16.msra.mxu0 0
        %5067 = vmatprep.subr.bf16.mxu0 0
        %5068 = vmatpush2.bf16.msra.mxu0 0
        %5069 = vmatprep.subr.bf16.mxu0 0
        %5070 = vmatpush2.bf16.msra.mxu0 0
        %5071 = vmatprep.subr.bf16.mxu0 0
        %5072 = vmatpush2.bf16.msra.mxu0 0
        %5073 = vmatprep.mubr.bf16.mxu0 0
        %5074 = vmatmul.mubr.bf16.gmra.mxu0 %v5025
        %v5075 = vpop.f32.mrf.mxu0
        %v5076 = vadd.f32 0.0, %v5075
        %v5077 = vpop.f32.mrf.mxu0
        %v5078 = vpop.f32.mrf.mxu0
        %v5079 = vadd.f32 0.0, %v5078
        %v5080 = vpop.f32.mrf.mxu0
        %5081 = vmatprep.mubr.bf16.mxu0 0
        %5082 = vmatmul.mubr.bf16.gmra.mxu0 %v5026
        %v5083 = vpop.f32.mrf.mxu0
        %v5084 = vadd.f32 0.0, %v5083
        %v5085 = vpop.f32.mrf.mxu0
        %v5086 = vpop.f32.mrf.mxu0
        %v5087 = vadd.f32 0.0, %v5086
        %v5088 = vpop.f32.mrf.mxu0
        %5089 = vmatprep.mubr.bf16.mxu0 0
        %5090 = vmatmul.mubr.bf16.gmra.mxu0 %v5027
        %v5091 = vpop.f32.mrf.mxu0
        %v5092 = vadd.f32 0.0, %v5091
        %v5093 = vpop.f32.mrf.mxu0
        %v5094 = vpop.f32.mrf.mxu0
        %v5095 = vadd.f32 0.0, %v5094
        %v5096 = vpop.f32.mrf.mxu0
        %5097 = vmatprep.mubr.bf16.mxu0 0
        %5098 = vmatmul.mubr.bf16.gmra.mxu0 %v5028
        %v5099 = vpop.f32.mrf.mxu0
        %v5100 = vadd.f32 0.0, %v5099
        %v5101 = vpop.f32.mrf.mxu0
        %v5102 = vpop.f32.mrf.mxu0
        %v5103 = vadd.f32 0.0, %v5102
        %v5104 = vpop.f32.mrf.mxu0
        %5105 = vmatprep.mubr.bf16.mxu0 0
        %5106 = vmatmul.mubr.bf16.gmra.mxu0 %v5029
        %v5107 = vpop.f32.mrf.mxu0
        %v5108 = vadd.f32 0.0, %v5107
        %v5109 = vpop.f32.mrf.mxu0
        %v5110 = vpop.f32.mrf.mxu0
        %v5111 = vadd.f32 0.0, %v5110
        %v5112 = vpop.f32.mrf.mxu0
        %5113 = vmatprep.mubr.bf16.mxu0 0
        %5114 = vmatmul.mubr.bf16.gmra.mxu0 %v5030
        %v5115 = vpop.f32.mrf.mxu0
        %v5116 = vadd.f32 0.0, %v5115
        %v5117 = vpop.f32.mrf.mxu0
        %v5118 = vpop.f32.mrf.mxu0
        %v5119 = vadd.f32 0.0, %v5118
        %v5120 = vpop.f32.mrf.mxu0
        %5121 = vmatprep.mubr.bf16.mxu0 0
        %5122 = vmatmul.mubr.bf16.gmra.mxu0 %v5031
        %v5123 = vpop.f32.mrf.mxu0
        %v5124 = vadd.f32 0.0, %v5123
        %v5125 = vpop.f32.mrf.mxu0
        %v5126 = vpop.f32.mrf.mxu0
        %v5127 = vadd.f32 0.0, %v5126
        %v5128 = vpop.f32.mrf.mxu0
        %5129 = vmatprep.mubr.bf16.mxu0 0
        %5130 = vmatmul.mubr.bf16.gmra.mxu0 %v5032
        %v5131 = vpop.f32.mrf.mxu0
        %v5132 = vadd.f32 0.0, %v5131
        %v5133 = vpop.f32.mrf.mxu0
        %v5134 = vpop.f32.mrf.mxu0
        %v5135 = vadd.f32 0.0, %v5134
        %v5136 = vpop.f32.mrf.mxu0
        %5137 = vmatprep.mubr.bf16.mxu0 0
        %5138 = vmatmul.mubr.bf16.gmra.mxu0 %v5033
        %v5139 = vpop.f32.mrf.mxu0
        %v5140 = vadd.f32 0.0, %v5139
        %v5141 = vpop.f32.mrf.mxu0
        %v5142 = vpop.f32.mrf.mxu0
        %v5143 = vadd.f32 0.0, %v5142
        %v5144 = vpop.f32.mrf.mxu0
        %5145 = vmatprep.mubr.bf16.mxu0 0
        %5146 = vmatmul.mubr.bf16.gmra.mxu0 %v5034
        %v5147 = vpop.f32.mrf.mxu0
        %v5148 = vadd.f32 0.0, %v5147
        %v5149 = vpop.f32.mrf.mxu0
        %v5150 = vpop.f32.mrf.mxu0
        %v5151 = vadd.f32 0.0, %v5150
        %v5152 = vpop.f32.mrf.mxu0
        %5153 = vmatprep.mubr.bf16.mxu0 0
        %5154 = vmatmul.mubr.bf16.gmra.mxu0 %v5035
        %v5155 = vpop.f32.mrf.mxu0
        %v5156 = vadd.f32 0.0, %v5155
        %v5157 = vpop.f32.mrf.mxu0
        %v5158 = vpop.f32.mrf.mxu0
        %v5159 = vadd.f32 0.0, %v5158
        %v5160 = vpop.f32.mrf.mxu0
        %5161 = vmatprep.mubr.bf16.mxu0 0
        %5162 = vmatmul.mubr.bf16.gmra.mxu0 %v5036
        %v5163 = vpop.f32.mrf.mxu0
        %v5164 = vadd.f32 0.0, %v5163
        %v5165 = vpop.f32.mrf.mxu0
        %v5166 = vpop.f32.mrf.mxu0
        %v5167 = vadd.f32 0.0, %v5166
        %v5168 = vpop.f32.mrf.mxu0
        %5169 = vmatprep.mubr.bf16.mxu0 0
        %5170 = vmatmul.mubr.bf16.gmra.mxu0 %v5037
        %v5171 = vpop.f32.mrf.mxu0
        %v5172 = vadd.f32 0.0, %v5171
        %v5173 = vpop.f32.mrf.mxu0
        %v5174 = vpop.f32.mrf.mxu0
        %v5175 = vadd.f32 0.0, %v5174
        %v5176 = vpop.f32.mrf.mxu0
        %5177 = vmatprep.mubr.bf16.mxu0 0
        %5178 = vmatmul.mubr.bf16.gmra.mxu0 %v5038
        %v5179 = vpop.f32.mrf.mxu0
        %v5180 = vadd.f32 0.0, %v5179
        %v5181 = vpop.f32.mrf.mxu0
        %v5182 = vpop.f32.mrf.mxu0
        %v5183 = vadd.f32 0.0, %v5182
        %v5184 = vpop.f32.mrf.mxu0
        %5185 = vmatprep.mubr.bf16.mxu0 0
        %5186 = vmatmul.mubr.bf16.gmra.mxu0 %v5039
        %v5187 = vpop.f32.mrf.mxu0
        %v5188 = vadd.f32 0.0, %v5187
        %v5189 = vpop.f32.mrf.mxu0
        %v5190 = vpop.f32.mrf.mxu0
        %v5191 = vadd.f32 0.0, %v5190
        %v5192 = vpop.f32.mrf.mxu0
        %5193 = vmatprep.mubr.bf16.mxu0 0
        %5194 = vmatmul.mubr.bf16.gmra.mxu0 %v5040
        %v5195 = vpop.f32.mrf.mxu0
        %v5196 = vadd.f32 0.0, %v5195
        %v5197 = vpop.f32.mrf.mxu0
        %v5198 = vpop.f32.mrf.mxu0
        %v5199 = vadd.f32 0.0, %v5198
        %v5200 = vpop.f32.mrf.mxu0
        %5201 = vdwg.mxu0
        %s5202 = scalar_lea.vmem %s1, 320
        %v5203 = vld [vmem:[%s5202] sm:$0xf]
        %v5204 = vld [vmem:[%s5202 + $0x4] sm:$0xf]
        %v5205 = vld [vmem:[%s5202 + $0x8] sm:$0xf]
        %v5206 = vld [vmem:[%s5202 + $0xc] sm:$0xf]
        %v5207 = vld [vmem:[%s5202 + $0x10] sm:$0xf]
        %v5208 = vld [vmem:[%s5202 + $0x14] sm:$0xf]
        %v5209 = vld [vmem:[%s5202 + $0x18] sm:$0xf]
        %v5210 = vld [vmem:[%s5202 + $0x1c] sm:$0xf]
        %v5211 = vld [vmem:[%s5202 + $0x20] sm:$0xf]
        %v5212 = vld [vmem:[%s5202 + $0x24] sm:$0xf]
        %v5213 = vld [vmem:[%s5202 + $0x28] sm:$0xf]
        %v5214 = vld [vmem:[%s5202 + $0x2c] sm:$0xf]
        %v5215 = vld [vmem:[%s5202 + $0x30] sm:$0xf]
        %v5216 = vld [vmem:[%s5202 + $0x34] sm:$0xf]
        %v5217 = vld [vmem:[%s5202 + $0x38] sm:$0xf]
        %v5218 = vld [vmem:[%s5202 + $0x3c] sm:$0xf]
        %v5235 = vunpack.c.l.b16 %v5203
        %v5236 = vunpack.c.l.b16 %v5204
        %v5237 = vunpack.c.l.b16 %v5205
        %v5238 = vunpack.c.l.b16 %v5206
        %v5239 = vunpack.c.l.b16 %v5207
        %v5240 = vunpack.c.l.b16 %v5208
        %v5241 = vunpack.c.l.b16 %v5209
        %v5242 = vunpack.c.l.b16 %v5210
        %v5243 = vunpack.c.l.b16 %v5211
        %v5244 = vunpack.c.l.b16 %v5212
        %v5245 = vunpack.c.l.b16 %v5213
        %v5246 = vunpack.c.l.b16 %v5214
        %v5247 = vunpack.c.l.b16 %v5215
        %v5248 = vunpack.c.l.b16 %v5216
        %v5249 = vunpack.c.l.b16 %v5217
        %v5250 = vunpack.c.l.b16 %v5218
        %v5251 = vpack.c.b16 %v5236, %v5235
        %v5252 = vpack.c.b16 %v5238, %v5237
        %v5253 = vpack.c.b16 %v5240, %v5239
        %v5254 = vpack.c.b16 %v5242, %v5241
        %v5255 = vpack.c.b16 %v5244, %v5243
        %v5256 = vpack.c.b16 %v5246, %v5245
        %v5257 = vpack.c.b16 %v5248, %v5247
        %v5258 = vpack.c.b16 %v5250, %v5249
        %5267 = vmatprep.subr.bf16.mxu0 0
        %5268 = vmatpush1.bf16.msra.mxu0 %v5258
        %5269 = vmatprep.subr.bf16.mxu0 0
        %5270 = vmatpush1.bf16.msra.mxu0 %v5257
        %5271 = vmatprep.subr.bf16.mxu0 0
        %5272 = vmatpush1.bf16.msra.mxu0 %v5256
        %5273 = vmatprep.subr.bf16.mxu0 0
        %5274 = vmatpush1.bf16.msra.mxu0 %v5255
        %5275 = vmatprep.subr.bf16.mxu0 0
        %5276 = vmatpush1.bf16.msra.mxu0 %v5254
        %5277 = vmatprep.subr.bf16.mxu0 0
        %5278 = vmatpush1.bf16.msra.mxu0 %v5253
        %5279 = vmatprep.subr.bf16.mxu0 0
        %5280 = vmatpush1.bf16.msra.mxu0 %v5252
        %5281 = vmatprep.subr.bf16.mxu0 0
        %5282 = vmatpush1.bf16.msra.mxu0 %v5251
        %5283 = vmatprep.subr.bf16.mxu0 0
        %5284 = vmatpush2.bf16.msra.mxu0 0
        %5285 = vmatprep.subr.bf16.mxu0 0
        %5286 = vmatpush2.bf16.msra.mxu0 0
        %5287 = vmatprep.subr.bf16.mxu0 0
        %5288 = vmatpush2.bf16.msra.mxu0 0
        %5289 = vmatprep.subr.bf16.mxu0 0
        %5290 = vmatpush2.bf16.msra.mxu0 0
        %5291 = vmatprep.subr.bf16.mxu0 0
        %5292 = vmatpush2.bf16.msra.mxu0 0
        %5293 = vmatprep.subr.bf16.mxu0 0
        %5294 = vmatpush2.bf16.msra.mxu0 0
        %5295 = vmatprep.subr.bf16.mxu0 0
        %5296 = vmatpush2.bf16.msra.mxu0 0
        %5297 = vmatprep.subr.bf16.mxu0 0
        %5298 = vmatpush2.bf16.msra.mxu0 0
        %5299 = vmatprep.mubr.bf16.mxu0 0
        %5300 = vmatmul.mubr.bf16.gmra.mxu0 %v4342
        %v5301 = vpop.f32.mrf.mxu0
        %v5302 = vadd.f32 0.0, %v5301
        %v5303 = vpop.f32.mrf.mxu0
        %v5304 = vpop.f32.mrf.mxu0
        %v5305 = vadd.f32 0.0, %v5304
        %v5306 = vpop.f32.mrf.mxu0
        %5307 = vmatprep.mubr.bf16.mxu0 0
        %5308 = vmatmul.mubr.bf16.gmra.mxu0 %v4343
        %v5309 = vpop.f32.mrf.mxu0
        %v5310 = vadd.f32 0.0, %v5309
        %v5311 = vpop.f32.mrf.mxu0
        %v5312 = vpop.f32.mrf.mxu0
        %v5313 = vadd.f32 0.0, %v5312
        %v5314 = vpop.f32.mrf.mxu0
        %5315 = vmatprep.mubr.bf16.mxu0 0
        %5316 = vmatmul.mubr.bf16.gmra.mxu0 %v4344
        %v5317 = vpop.f32.mrf.mxu0
        %v5318 = vadd.f32 0.0, %v5317
        %v5319 = vpop.f32.mrf.mxu0
        %v5320 = vpop.f32.mrf.mxu0
        %v5321 = vadd.f32 0.0, %v5320
        %v5322 = vpop.f32.mrf.mxu0
        %5323 = vmatprep.mubr.bf16.mxu0 0
        %5324 = vmatmul.mubr.bf16.gmra.mxu0 %v4345
        %v5325 = vpop.f32.mrf.mxu0
        %v5326 = vadd.f32 0.0, %v5325
        %v5327 = vpop.f32.mrf.mxu0
        %v5328 = vpop.f32.mrf.mxu0
        %v5329 = vadd.f32 0.0, %v5328
        %v5330 = vpop.f32.mrf.mxu0
        %5331 = vmatprep.mubr.bf16.mxu0 0
        %5332 = vmatmul.mubr.bf16.gmra.mxu0 %v4346
        %v5333 = vpop.f32.mrf.mxu0
        %v5334 = vadd.f32 0.0, %v5333
        %v5335 = vpop.f32.mrf.mxu0
        %v5336 = vpop.f32.mrf.mxu0
        %v5337 = vadd.f32 0.0, %v5336
        %v5338 = vpop.f32.mrf.mxu0
        %5339 = vmatprep.mubr.bf16.mxu0 0
        %5340 = vmatmul.mubr.bf16.gmra.mxu0 %v4347
        %v5341 = vpop.f32.mrf.mxu0
        %v5342 = vadd.f32 0.0, %v5341
        %v5343 = vpop.f32.mrf.mxu0
        %v5344 = vpop.f32.mrf.mxu0
        %v5345 = vadd.f32 0.0, %v5344
        %v5346 = vpop.f32.mrf.mxu0
        %5347 = vmatprep.mubr.bf16.mxu0 0
        %5348 = vmatmul.mubr.bf16.gmra.mxu0 %v4348
        %v5349 = vpop.f32.mrf.mxu0
        %v5350 = vadd.f32 0.0, %v5349
        %v5351 = vpop.f32.mrf.mxu0
        %v5352 = vpop.f32.mrf.mxu0
        %v5353 = vadd.f32 0.0, %v5352
        %v5354 = vpop.f32.mrf.mxu0
        %5355 = vmatprep.mubr.bf16.mxu0 0
        %5356 = vmatmul.mubr.bf16.gmra.mxu0 %v4349
        %v5357 = vpop.f32.mrf.mxu0
        %v5358 = vadd.f32 0.0, %v5357
        %v5359 = vpop.f32.mrf.mxu0
        %v5360 = vpop.f32.mrf.mxu0
        %v5361 = vadd.f32 0.0, %v5360
        %v5362 = vpop.f32.mrf.mxu0
        %5363 = vmatprep.mubr.bf16.mxu0 0
        %5364 = vmatmul.mubr.bf16.gmra.mxu0 %v4350
        %v5365 = vpop.f32.mrf.mxu0
        %v5366 = vadd.f32 0.0, %v5365
        %v5367 = vpop.f32.mrf.mxu0
        %v5368 = vpop.f32.mrf.mxu0
        %v5369 = vadd.f32 0.0, %v5368
        %v5370 = vpop.f32.mrf.mxu0
        %5371 = vmatprep.mubr.bf16.mxu0 0
        %5372 = vmatmul.mubr.bf16.gmra.mxu0 %v4351
        %v5373 = vpop.f32.mrf.mxu0
        %v5374 = vadd.f32 0.0, %v5373
        %v5375 = vpop.f32.mrf.mxu0
        %v5376 = vpop.f32.mrf.mxu0
        %v5377 = vadd.f32 0.0, %v5376
        %v5378 = vpop.f32.mrf.mxu0
        %5379 = vmatprep.mubr.bf16.mxu0 0
        %5380 = vmatmul.mubr.bf16.gmra.mxu0 %v4352
        %v5381 = vpop.f32.mrf.mxu0
        %v5382 = vadd.f32 0.0, %v5381
        %v5383 = vpop.f32.mrf.mxu0
        %v5384 = vpop.f32.mrf.mxu0
        %v5385 = vadd.f32 0.0, %v5384
        %v5386 = vpop.f32.mrf.mxu0
        %5387 = vmatprep.mubr.bf16.mxu0 0
        %5388 = vmatmul.mubr.bf16.gmra.mxu0 %v4353
        %v5389 = vpop.f32.mrf.mxu0
        %v5390 = vadd.f32 0.0, %v5389
        %v5391 = vpop.f32.mrf.mxu0
        %v5392 = vpop.f32.mrf.mxu0
        %v5393 = vadd.f32 0.0, %v5392
        %v5394 = vpop.f32.mrf.mxu0
        %5395 = vmatprep.mubr.bf16.mxu0 0
        %5396 = vmatmul.mubr.bf16.gmra.mxu0 %v4354
        %v5397 = vpop.f32.mrf.mxu0
        %v5398 = vadd.f32 0.0, %v5397
        %v5399 = vpop.f32.mrf.mxu0
        %v5400 = vpop.f32.mrf.mxu0
        %v5401 = vadd.f32 0.0, %v5400
        %v5402 = vpop.f32.mrf.mxu0
        %5403 = vmatprep.mubr.bf16.mxu0 0
        %5404 = vmatmul.mubr.bf16.gmra.mxu0 %v4355
        %v5405 = vpop.f32.mrf.mxu0
        %v5406 = vadd.f32 0.0, %v5405
        %v5407 = vpop.f32.mrf.mxu0
        %v5408 = vpop.f32.mrf.mxu0
        %v5409 = vadd.f32 0.0, %v5408
        %v5410 = vpop.f32.mrf.mxu0
        %5411 = vmatprep.mubr.bf16.mxu0 0
        %5412 = vmatmul.mubr.bf16.gmra.mxu0 %v4356
        %v5413 = vpop.f32.mrf.mxu0
        %v5414 = vadd.f32 0.0, %v5413
        %v5415 = vpop.f32.mrf.mxu0
        %v5416 = vpop.f32.mrf.mxu0
        %v5417 = vadd.f32 0.0, %v5416
        %v5418 = vpop.f32.mrf.mxu0
        %5419 = vmatprep.mubr.bf16.mxu0 0
        %5420 = vmatmul.mubr.bf16.gmra.mxu0 %v4357
        %v5421 = vpop.f32.mrf.mxu0
        %v5422 = vadd.f32 0.0, %v5421
        %v5423 = vpop.f32.mrf.mxu0
        %v5424 = vpop.f32.mrf.mxu0
        %v5425 = vadd.f32 0.0, %v5424
        %v5426 = vpop.f32.mrf.mxu0
        %5427 = vdwg.mxu0
        %v5428 = vpack.c.bf16 %v5305, %v5302
        %v5429 = vpack.c.bf16 %v5313, %v5310
        %v5430 = vpack.c.bf16 %v5321, %v5318
        %v5431 = vpack.c.bf16 %v5329, %v5326
        %v5432 = vpack.c.bf16 %v5337, %v5334
        %v5433 = vpack.c.bf16 %v5345, %v5342
        %v5434 = vpack.c.bf16 %v5353, %v5350
        %v5435 = vpack.c.bf16 %v5361, %v5358
        %v5436 = vpack.c.bf16 %v5369, %v5366
        %v5437 = vpack.c.bf16 %v5377, %v5374
        %v5438 = vpack.c.bf16 %v5385, %v5382
        %v5439 = vpack.c.bf16 %v5393, %v5390
        %v5440 = vpack.c.bf16 %v5401, %v5398
        %v5441 = vpack.c.bf16 %v5409, %v5406
        %v5442 = vpack.c.bf16 %v5417, %v5414
        %v5443 = vpack.c.bf16 %v5425, %v5422
        %s5444 = scalar_lea.vmem %s2, 320
        %v5445 = vld [vmem:[%s5444] sm:$0xf]
        %v5446 = vld [vmem:[%s5444 + $0x4] sm:$0xf]
        %v5447 = vld [vmem:[%s5444 + $0x8] sm:$0xf]
        %v5448 = vld [vmem:[%s5444 + $0xc] sm:$0xf]
        %v5449 = vld [vmem:[%s5444 + $0x10] sm:$0xf]
        %v5450 = vld [vmem:[%s5444 + $0x14] sm:$0xf]
        %v5451 = vld [vmem:[%s5444 + $0x18] sm:$0xf]
        %v5452 = vld [vmem:[%s5444 + $0x1c] sm:$0xf]
        %v5453 = vld [vmem:[%s5444 + $0x20] sm:$0xf]
        %v5454 = vld [vmem:[%s5444 + $0x24] sm:$0xf]
        %v5455 = vld [vmem:[%s5444 + $0x28] sm:$0xf]
        %v5456 = vld [vmem:[%s5444 + $0x2c] sm:$0xf]
        %v5457 = vld [vmem:[%s5444 + $0x30] sm:$0xf]
        %v5458 = vld [vmem:[%s5444 + $0x34] sm:$0xf]
        %v5459 = vld [vmem:[%s5444 + $0x38] sm:$0xf]
        %v5460 = vld [vmem:[%s5444 + $0x3c] sm:$0xf]
        %s5461 = scalar_lea.vmem %s3, 5
        %v5462 = vld [vmem:[%s5461] sm:$0x1]
        %v5464 = vlaneseq
        %v5465 = vshrl.u32 %v5464, 7
        %v5466 = vsub.s32 0, %v5465
        %v5467 = vrot.slane %v5462, %v5466
        %v5485 = vunpack.c.l.b16 %v5445
        %v5486 = vunpack.c.l.b16 %v5446
        %v5487 = vunpack.c.l.b16 %v5447
        %v5488 = vunpack.c.l.b16 %v5448
        %v5489 = vunpack.c.l.b16 %v5449
        %v5490 = vunpack.c.l.b16 %v5450
        %v5491 = vunpack.c.l.b16 %v5451
        %v5492 = vunpack.c.l.b16 %v5452
        %v5493 = vunpack.c.l.b16 %v5453
        %v5494 = vunpack.c.l.b16 %v5454
        %v5495 = vunpack.c.l.b16 %v5455
        %v5496 = vunpack.c.l.b16 %v5456
        %v5497 = vunpack.c.l.b16 %v5457
        %v5498 = vunpack.c.l.b16 %v5458
        %v5499 = vunpack.c.l.b16 %v5459
        %v5500 = vunpack.c.l.b16 %v5460
        %v5501 = vpack.c.b16 %v5486, %v5485
        %v5502 = vpack.c.b16 %v5488, %v5487
        %v5503 = vpack.c.b16 %v5490, %v5489
        %v5504 = vpack.c.b16 %v5492, %v5491
        %v5505 = vpack.c.b16 %v5494, %v5493
        %v5506 = vpack.c.b16 %v5496, %v5495
        %v5507 = vpack.c.b16 %v5498, %v5497
        %v5508 = vpack.c.b16 %v5500, %v5499
        %5517 = vmatprep.subr.bf16.mxu0 0
        %5518 = vmatpush1.bf16.msra.mxu0 %v5508
        %5519 = vmatprep.subr.bf16.mxu0 0
        %5520 = vmatpush1.bf16.msra.mxu0 %v5507
        %5521 = vmatprep.subr.bf16.mxu0 0
        %5522 = vmatpush1.bf16.msra.mxu0 %v5506
        %5523 = vmatprep.subr.bf16.mxu0 0
        %5524 = vmatpush1.bf16.msra.mxu0 %v5505
        %5525 = vmatprep.subr.bf16.mxu0 0
        %5526 = vmatpush1.bf16.msra.mxu0 %v5504
        %5527 = vmatprep.subr.bf16.mxu0 0
        %5528 = vmatpush1.bf16.msra.mxu0 %v5503
        %5529 = vmatprep.subr.bf16.mxu0 0
        %5530 = vmatpush1.bf16.msra.mxu0 %v5502
        %5531 = vmatprep.subr.bf16.mxu0 0
        %5532 = vmatpush1.bf16.msra.mxu0 %v5501
        %5533 = vmatprep.subr.bf16.mxu0 0
        %5534 = vmatpush2.bf16.msra.mxu0 0
        %5535 = vmatprep.subr.bf16.mxu0 0
        %5536 = vmatpush2.bf16.msra.mxu0 0
        %5537 = vmatprep.subr.bf16.mxu0 0
        %5538 = vmatpush2.bf16.msra.mxu0 0
        %5539 = vmatprep.subr.bf16.mxu0 0
        %5540 = vmatpush2.bf16.msra.mxu0 0
        %5541 = vmatprep.subr.bf16.mxu0 0
        %5542 = vmatpush2.bf16.msra.mxu0 0
        %5543 = vmatprep.subr.bf16.mxu0 0
        %5544 = vmatpush2.bf16.msra.mxu0 0
        %5545 = vmatprep.subr.bf16.mxu0 0
        %5546 = vmatpush2.bf16.msra.mxu0 0
        %5547 = vmatprep.subr.bf16.mxu0 0
        %5548 = vmatpush2.bf16.msra.mxu0 0
        %5549 = vmatprep.mubr.bf16.mxu0 0
        %5550 = vmatmul.mubr.bf16.gmra.mxu0 %v5428
        %v5551 = vpop.f32.mrf.mxu0
        %v5552 = vadd.f32 %v5467, %v5551
        %v5553 = vpop.f32.mrf.mxu0
        %v5554 = vpop.f32.mrf.mxu0
        %v5555 = vadd.f32 %v5467, %v5554
        %v5556 = vpop.f32.mrf.mxu0
        %5557 = vmatprep.mubr.bf16.mxu0 0
        %5558 = vmatmul.mubr.bf16.gmra.mxu0 %v5429
        %v5559 = vpop.f32.mrf.mxu0
        %v5560 = vadd.f32 %v5467, %v5559
        %v5561 = vpop.f32.mrf.mxu0
        %v5562 = vpop.f32.mrf.mxu0
        %v5563 = vadd.f32 %v5467, %v5562
        %v5564 = vpop.f32.mrf.mxu0
        %5565 = vmatprep.mubr.bf16.mxu0 0
        %5566 = vmatmul.mubr.bf16.gmra.mxu0 %v5430
        %v5567 = vpop.f32.mrf.mxu0
        %v5568 = vadd.f32 %v5467, %v5567
        %v5569 = vpop.f32.mrf.mxu0
        %v5570 = vpop.f32.mrf.mxu0
        %v5571 = vadd.f32 %v5467, %v5570
        %v5572 = vpop.f32.mrf.mxu0
        %5573 = vmatprep.mubr.bf16.mxu0 0
        %5574 = vmatmul.mubr.bf16.gmra.mxu0 %v5431
        %v5575 = vpop.f32.mrf.mxu0
        %v5576 = vadd.f32 %v5467, %v5575
        %v5577 = vpop.f32.mrf.mxu0
        %v5578 = vpop.f32.mrf.mxu0
        %v5579 = vadd.f32 %v5467, %v5578
        %v5580 = vpop.f32.mrf.mxu0
        %5581 = vmatprep.mubr.bf16.mxu0 0
        %5582 = vmatmul.mubr.bf16.gmra.mxu0 %v5432
        %v5583 = vpop.f32.mrf.mxu0
        %v5584 = vadd.f32 %v5467, %v5583
        %v5585 = vpop.f32.mrf.mxu0
        %v5586 = vpop.f32.mrf.mxu0
        %v5587 = vadd.f32 %v5467, %v5586
        %v5588 = vpop.f32.mrf.mxu0
        %5589 = vmatprep.mubr.bf16.mxu0 0
        %5590 = vmatmul.mubr.bf16.gmra.mxu0 %v5433
        %v5591 = vpop.f32.mrf.mxu0
        %v5592 = vadd.f32 %v5467, %v5591
        %v5593 = vpop.f32.mrf.mxu0
        %v5594 = vpop.f32.mrf.mxu0
        %v5595 = vadd.f32 %v5467, %v5594
        %v5596 = vpop.f32.mrf.mxu0
        %5597 = vmatprep.mubr.bf16.mxu0 0
        %5598 = vmatmul.mubr.bf16.gmra.mxu0 %v5434
        %v5599 = vpop.f32.mrf.mxu0
        %v5600 = vadd.f32 %v5467, %v5599
        %v5601 = vpop.f32.mrf.mxu0
        %v5602 = vpop.f32.mrf.mxu0
        %v5603 = vadd.f32 %v5467, %v5602
        %v5604 = vpop.f32.mrf.mxu0
        %5605 = vmatprep.mubr.bf16.mxu0 0
        %5606 = vmatmul.mubr.bf16.gmra.mxu0 %v5435
        %v5607 = vpop.f32.mrf.mxu0
        %v5608 = vadd.f32 %v5467, %v5607
        %v5609 = vpop.f32.mrf.mxu0
        %v5610 = vpop.f32.mrf.mxu0
        %v5611 = vadd.f32 %v5467, %v5610
        %v5612 = vpop.f32.mrf.mxu0
        %5613 = vmatprep.mubr.bf16.mxu0 0
        %5614 = vmatmul.mubr.bf16.gmra.mxu0 %v5436
        %v5615 = vpop.f32.mrf.mxu0
        %v5616 = vadd.f32 %v5467, %v5615
        %v5617 = vpop.f32.mrf.mxu0
        %v5618 = vpop.f32.mrf.mxu0
        %v5619 = vadd.f32 %v5467, %v5618
        %v5620 = vpop.f32.mrf.mxu0
        %5621 = vmatprep.mubr.bf16.mxu0 0
        %5622 = vmatmul.mubr.bf16.gmra.mxu0 %v5437
        %v5623 = vpop.f32.mrf.mxu0
        %v5624 = vadd.f32 %v5467, %v5623
        %v5625 = vpop.f32.mrf.mxu0
        %v5626 = vpop.f32.mrf.mxu0
        %v5627 = vadd.f32 %v5467, %v5626
        %v5628 = vpop.f32.mrf.mxu0
        %5629 = vmatprep.mubr.bf16.mxu0 0
        %5630 = vmatmul.mubr.bf16.gmra.mxu0 %v5438
        %v5631 = vpop.f32.mrf.mxu0
        %v5632 = vadd.f32 %v5467, %v5631
        %v5633 = vpop.f32.mrf.mxu0
        %v5634 = vpop.f32.mrf.mxu0
        %v5635 = vadd.f32 %v5467, %v5634
        %v5636 = vpop.f32.mrf.mxu0
        %5637 = vmatprep.mubr.bf16.mxu0 0
        %5638 = vmatmul.mubr.bf16.gmra.mxu0 %v5439
        %v5639 = vpop.f32.mrf.mxu0
        %v5640 = vadd.f32 %v5467, %v5639
        %v5641 = vpop.f32.mrf.mxu0
        %v5642 = vpop.f32.mrf.mxu0
        %v5643 = vadd.f32 %v5467, %v5642
        %v5644 = vpop.f32.mrf.mxu0
        %5645 = vmatprep.mubr.bf16.mxu0 0
        %5646 = vmatmul.mubr.bf16.gmra.mxu0 %v5440
        %v5647 = vpop.f32.mrf.mxu0
        %v5648 = vadd.f32 %v5467, %v5647
        %v5649 = vpop.f32.mrf.mxu0
        %v5650 = vpop.f32.mrf.mxu0
        %v5651 = vadd.f32 %v5467, %v5650
        %v5652 = vpop.f32.mrf.mxu0
        %5653 = vmatprep.mubr.bf16.mxu0 0
        %5654 = vmatmul.mubr.bf16.gmra.mxu0 %v5441
        %v5655 = vpop.f32.mrf.mxu0
        %v5656 = vadd.f32 %v5467, %v5655
        %v5657 = vpop.f32.mrf.mxu0
        %v5658 = vpop.f32.mrf.mxu0
        %v5659 = vadd.f32 %v5467, %v5658
        %v5660 = vpop.f32.mrf.mxu0
        %5661 = vmatprep.mubr.bf16.mxu0 0
        %5662 = vmatmul.mubr.bf16.gmra.mxu0 %v5442
        %v5663 = vpop.f32.mrf.mxu0
        %v5664 = vadd.f32 %v5467, %v5663
        %v5665 = vpop.f32.mrf.mxu0
        %v5666 = vpop.f32.mrf.mxu0
        %v5667 = vadd.f32 %v5467, %v5666
        %v5668 = vpop.f32.mrf.mxu0
        %5669 = vmatprep.mubr.bf16.mxu0 0
        %5670 = vmatmul.mubr.bf16.gmra.mxu0 %v5443
        %v5671 = vpop.f32.mrf.mxu0
        %v5672 = vadd.f32 %v5467, %v5671
        %v5673 = vpop.f32.mrf.mxu0
        %v5674 = vpop.f32.mrf.mxu0
        %v5675 = vadd.f32 %v5467, %v5674
        %v5676 = vpop.f32.mrf.mxu0
        %5677 = vdwg.mxu0
        %vm5678 = vcmp.gt.f32.partialorder %v5552, 0.0
        %vm5679 = vcmp.gt.f32.partialorder %v5555, 0.0
        %vm5680 = vcmp.gt.f32.partialorder %v5560, 0.0
        %vm5681 = vcmp.gt.f32.partialorder %v5563, 0.0
        %vm5682 = vcmp.gt.f32.partialorder %v5568, 0.0
        %vm5683 = vcmp.gt.f32.partialorder %v5571, 0.0
        %vm5684 = vcmp.gt.f32.partialorder %v5576, 0.0
        %vm5685 = vcmp.gt.f32.partialorder %v5579, 0.0
        %vm5686 = vcmp.gt.f32.partialorder %v5584, 0.0
        %vm5687 = vcmp.gt.f32.partialorder %v5587, 0.0
        %vm5688 = vcmp.gt.f32.partialorder %v5592, 0.0
        %vm5689 = vcmp.gt.f32.partialorder %v5595, 0.0
        %vm5690 = vcmp.gt.f32.partialorder %v5600, 0.0
        %vm5691 = vcmp.gt.f32.partialorder %v5603, 0.0
        %vm5692 = vcmp.gt.f32.partialorder %v5608, 0.0
        %vm5693 = vcmp.gt.f32.partialorder %v5611, 0.0
        %vm5694 = vcmp.gt.f32.partialorder %v5616, 0.0
        %vm5695 = vcmp.gt.f32.partialorder %v5619, 0.0
        %vm5696 = vcmp.gt.f32.partialorder %v5624, 0.0
        %vm5697 = vcmp.gt.f32.partialorder %v5627, 0.0
        %vm5698 = vcmp.gt.f32.partialorder %v5632, 0.0
        %vm5699 = vcmp.gt.f32.partialorder %v5635, 0.0
        %vm5700 = vcmp.gt.f32.partialorder %v5640, 0.0
        %vm5701 = vcmp.gt.f32.partialorder %v5643, 0.0
        %vm5702 = vcmp.gt.f32.partialorder %v5648, 0.0
        %vm5703 = vcmp.gt.f32.partialorder %v5651, 0.0
        %vm5704 = vcmp.gt.f32.partialorder %v5656, 0.0
        %vm5705 = vcmp.gt.f32.partialorder %v5659, 0.0
        %vm5706 = vcmp.gt.f32.partialorder %v5664, 0.0
        %vm5707 = vcmp.gt.f32.partialorder %v5667, 0.0
        %vm5708 = vcmp.gt.f32.partialorder %v5672, 0.0
        %vm5709 = vcmp.gt.f32.partialorder %v5675, 0.0
        %v5710 = vmin.f32 %v5552, 0.0
        %v5711 = vmin.f32 %v5555, 0.0
        %v5712 = vmin.f32 %v5560, 0.0
        %v5713 = vmin.f32 %v5563, 0.0
        %v5714 = vmin.f32 %v5568, 0.0
        %v5715 = vmin.f32 %v5571, 0.0
        %v5716 = vmin.f32 %v5576, 0.0
        %v5717 = vmin.f32 %v5579, 0.0
        %v5718 = vmin.f32 %v5584, 0.0
        %v5719 = vmin.f32 %v5587, 0.0
        %v5720 = vmin.f32 %v5592, 0.0
        %v5721 = vmin.f32 %v5595, 0.0
        %v5722 = vmin.f32 %v5600, 0.0
        %v5723 = vmin.f32 %v5603, 0.0
        %v5724 = vmin.f32 %v5608, 0.0
        %v5725 = vmin.f32 %v5611, 0.0
        %v5726 = vmin.f32 %v5616, 0.0
        %v5727 = vmin.f32 %v5619, 0.0
        %v5728 = vmin.f32 %v5624, 0.0
        %v5729 = vmin.f32 %v5627, 0.0
        %v5730 = vmin.f32 %v5632, 0.0
        %v5731 = vmin.f32 %v5635, 0.0
        %v5732 = vmin.f32 %v5640, 0.0
        %v5733 = vmin.f32 %v5643, 0.0
        %v5734 = vmin.f32 %v5648, 0.0
        %v5735 = vmin.f32 %v5651, 0.0
        %v5736 = vmin.f32 %v5656, 0.0
        %v5737 = vmin.f32 %v5659, 0.0
        %v5738 = vmin.f32 %v5664, 0.0
        %v5739 = vmin.f32 %v5667, 0.0
        %v5740 = vmin.f32 %v5672, 0.0
        %v5741 = vmin.f32 %v5675, 0.0
        %v5742 = vmul.f32 %v5710, 1.442695
        %v5743 = vpow.pop %v5742
        %v5744 = vmul.f32 %v5711, 1.442695
        %v5745 = vpow.pop %v5744
        %v5746 = vmul.f32 %v5712, 1.442695
        %v5747 = vpow.pop %v5746
        %v5748 = vmul.f32 %v5713, 1.442695
        %v5749 = vpow.pop %v5748
        %v5750 = vmul.f32 %v5714, 1.442695
        %v5751 = vpow.pop %v5750
        %v5752 = vmul.f32 %v5715, 1.442695
        %v5753 = vpow.pop %v5752
        %v5754 = vmul.f32 %v5716, 1.442695
        %v5755 = vpow.pop %v5754
        %v5756 = vmul.f32 %v5717, 1.442695
        %v5757 = vpow.pop %v5756
        %v5758 = vmul.f32 %v5718, 1.442695
        %v5759 = vpow.pop %v5758
        %v5760 = vmul.f32 %v5719, 1.442695
        %v5761 = vpow.pop %v5760
        %v5762 = vmul.f32 %v5720, 1.442695
        %v5763 = vpow.pop %v5762
        %v5764 = vmul.f32 %v5721, 1.442695
        %v5765 = vpow.pop %v5764
        %v5766 = vmul.f32 %v5722, 1.442695
        %v5767 = vpow.pop %v5766
        %v5768 = vmul.f32 %v5723, 1.442695
        %v5769 = vpow.pop %v5768
        %v5770 = vmul.f32 %v5724, 1.442695
        %v5771 = vpow.pop %v5770
        %v5772 = vmul.f32 %v5725, 1.442695
        %v5773 = vpow.pop %v5772
        %v5774 = vmul.f32 %v5726, 1.442695
        %v5775 = vpow.pop %v5774
        %v5776 = vmul.f32 %v5727, 1.442695
        %v5777 = vpow.pop %v5776
        %v5778 = vmul.f32 %v5728, 1.442695
        %v5779 = vpow.pop %v5778
        %v5780 = vmul.f32 %v5729, 1.442695
        %v5781 = vpow.pop %v5780
        %v5782 = vmul.f32 %v5730, 1.442695
        %v5783 = vpow.pop %v5782
        %v5784 = vmul.f32 %v5731, 1.442695
        %v5785 = vpow.pop %v5784
        %v5786 = vmul.f32 %v5732, 1.442695
        %v5787 = vpow.pop %v5786
        %v5788 = vmul.f32 %v5733, 1.442695
        %v5789 = vpow.pop %v5788
        %v5790 = vmul.f32 %v5734, 1.442695
        %v5791 = vpow.pop %v5790
        %v5792 = vmul.f32 %v5735, 1.442695
        %v5793 = vpow.pop %v5792
        %v5794 = vmul.f32 %v5736, 1.442695
        %v5795 = vpow.pop %v5794
        %v5796 = vmul.f32 %v5737, 1.442695
        %v5797 = vpow.pop %v5796
        %v5798 = vmul.f32 %v5738, 1.442695
        %v5799 = vpow.pop %v5798
        %v5800 = vmul.f32 %v5739, 1.442695
        %v5801 = vpow.pop %v5800
        %v5802 = vmul.f32 %v5740, 1.442695
        %v5803 = vpow.pop %v5802
        %v5804 = vmul.f32 %v5741, 1.442695
        %v5805 = vpow.pop %v5804
        %v5806 = vsub.f32 %v5743, 1.0
        %v5807 = vsub.f32 %v5745, 1.0
        %v5808 = vsub.f32 %v5747, 1.0
        %v5809 = vsub.f32 %v5749, 1.0
        %v5810 = vsub.f32 %v5751, 1.0
        %v5811 = vsub.f32 %v5753, 1.0
        %v5812 = vsub.f32 %v5755, 1.0
        %v5813 = vsub.f32 %v5757, 1.0
        %v5814 = vsub.f32 %v5759, 1.0
        %v5815 = vsub.f32 %v5761, 1.0
        %v5816 = vsub.f32 %v5763, 1.0
        %v5817 = vsub.f32 %v5765, 1.0
        %v5818 = vsub.f32 %v5767, 1.0
        %v5819 = vsub.f32 %v5769, 1.0
        %v5820 = vsub.f32 %v5771, 1.0
        %v5821 = vsub.f32 %v5773, 1.0
        %v5822 = vsub.f32 %v5775, 1.0
        %v5823 = vsub.f32 %v5777, 1.0
        %v5824 = vsub.f32 %v5779, 1.0
        %v5825 = vsub.f32 %v5781, 1.0
        %v5826 = vsub.f32 %v5783, 1.0
        %v5827 = vsub.f32 %v5785, 1.0
        %v5828 = vsub.f32 %v5787, 1.0
        %v5829 = vsub.f32 %v5789, 1.0
        %v5830 = vsub.f32 %v5791, 1.0
        %v5831 = vsub.f32 %v5793, 1.0
        %v5832 = vsub.f32 %v5795, 1.0
        %v5833 = vsub.f32 %v5797, 1.0
        %v5834 = vsub.f32 %v5799, 1.0
        %v5835 = vsub.f32 %v5801, 1.0
        %v5836 = vsub.f32 %v5803, 1.0
        %v5837 = vsub.f32 %v5805, 1.0
        %v5838 = vsel %vm5678, %v5552, %v5806
        %v5839 = vsel %vm5679, %v5555, %v5807
        %v5840 = vsel %vm5680, %v5560, %v5808
        %v5841 = vsel %vm5681, %v5563, %v5809
        %v5842 = vsel %vm5682, %v5568, %v5810
        %v5843 = vsel %vm5683, %v5571, %v5811
        %v5844 = vsel %vm5684, %v5576, %v5812
        %v5845 = vsel %vm5685, %v5579, %v5813
        %v5846 = vsel %vm5686, %v5584, %v5814
        %v5847 = vsel %vm5687, %v5587, %v5815
        %v5848 = vsel %vm5688, %v5592, %v5816
        %v5849 = vsel %vm5689, %v5595, %v5817
        %v5850 = vsel %vm5690, %v5600, %v5818
        %v5851 = vsel %vm5691, %v5603, %v5819
        %v5852 = vsel %vm5692, %v5608, %v5820
        %v5853 = vsel %vm5693, %v5611, %v5821
        %v5854 = vsel %vm5694, %v5616, %v5822
        %v5855 = vsel %vm5695, %v5619, %v5823
        %v5856 = vsel %vm5696, %v5624, %v5824
        %v5857 = vsel %vm5697, %v5627, %v5825
        %v5858 = vsel %vm5698, %v5632, %v5826
        %v5859 = vsel %vm5699, %v5635, %v5827
        %v5860 = vsel %vm5700, %v5640, %v5828
        %v5861 = vsel %vm5701, %v5643, %v5829
        %v5862 = vsel %vm5702, %v5648, %v5830
        %v5863 = vsel %vm5703, %v5651, %v5831
        %v5864 = vsel %vm5704, %v5656, %v5832
        %v5865 = vsel %vm5705, %v5659, %v5833
        %v5866 = vsel %vm5706, %v5664, %v5834
        %v5867 = vsel %vm5707, %v5667, %v5835
        %v5868 = vsel %vm5708, %v5672, %v5836
        %v5869 = vsel %vm5709, %v5675, %v5837
        %v5870 = vpack.c.bf16 %v5839, %v5838
        %v5871 = vpack.c.bf16 %v5841, %v5840
        %v5872 = vpack.c.bf16 %v5843, %v5842
        %v5873 = vpack.c.bf16 %v5845, %v5844
        %v5874 = vpack.c.bf16 %v5847, %v5846
        %v5875 = vpack.c.bf16 %v5849, %v5848
        %v5876 = vpack.c.bf16 %v5851, %v5850
        %v5877 = vpack.c.bf16 %v5853, %v5852
        %v5878 = vpack.c.bf16 %v5855, %v5854
        %v5879 = vpack.c.bf16 %v5857, %v5856
        %v5880 = vpack.c.bf16 %v5859, %v5858
        %v5881 = vpack.c.bf16 %v5861, %v5860
        %v5882 = vpack.c.bf16 %v5863, %v5862
        %v5883 = vpack.c.bf16 %v5865, %v5864
        %v5884 = vpack.c.bf16 %v5867, %v5866
        %v5885 = vpack.c.bf16 %v5869, %v5868
        %5886 = vmatprep.subr.bf16.mxu0 0
        %5887 = vmatpush1.bf16.msra.mxu0 %v1556
        %5888 = vmatprep.subr.bf16.mxu0 0
        %5889 = vmatpush1.bf16.msra.mxu0 %v1555
        %5890 = vmatprep.subr.bf16.mxu0 0
        %5891 = vmatpush1.bf16.msra.mxu0 %v1554
        %5892 = vmatprep.subr.bf16.mxu0 0
        %5893 = vmatpush1.bf16.msra.mxu0 %v1553
        %5894 = vmatprep.subr.bf16.mxu0 0
        %5895 = vmatpush1.bf16.msra.mxu0 %v1552
        %5896 = vmatprep.subr.bf16.mxu0 0
        %5897 = vmatpush1.bf16.msra.mxu0 %v1551
        %5898 = vmatprep.subr.bf16.mxu0 0
        %5899 = vmatpush1.bf16.msra.mxu0 %v1550
        %5900 = vmatprep.subr.bf16.mxu0 0
        %5901 = vmatpush1.bf16.msra.mxu0 %v1549
        %5902 = vmatprep.subr.bf16.mxu0 0
        %5903 = vmatpush2.bf16.msra.mxu0 0
        %5904 = vmatprep.subr.bf16.mxu0 0
        %5905 = vmatpush2.bf16.msra.mxu0 0
        %5906 = vmatprep.subr.bf16.mxu0 0
        %5907 = vmatpush2.bf16.msra.mxu0 0
        %5908 = vmatprep.subr.bf16.mxu0 0
        %5909 = vmatpush2.bf16.msra.mxu0 0
        %5910 = vmatprep.subr.bf16.mxu0 0
        %5911 = vmatpush2.bf16.msra.mxu0 0
        %5912 = vmatprep.subr.bf16.mxu0 0
        %5913 = vmatpush2.bf16.msra.mxu0 0
        %5914 = vmatprep.subr.bf16.mxu0 0
        %5915 = vmatpush2.bf16.msra.mxu0 0
        %5916 = vmatprep.subr.bf16.mxu0 0
        %5917 = vmatpush2.bf16.msra.mxu0 0
        %5918 = vmatprep.mubr.bf16.mxu0 0
        %5919 = vmatmul.mubr.bf16.gmra.mxu0 %v5870
        %v5920 = vpop.f32.mrf.mxu0
        %v5921 = vadd.f32 0.0, %v5920
        %v5922 = vpop.f32.mrf.mxu0
        %v5923 = vpop.f32.mrf.mxu0
        %v5924 = vadd.f32 0.0, %v5923
        %v5925 = vpop.f32.mrf.mxu0
        %5926 = vmatprep.mubr.bf16.mxu0 0
        %5927 = vmatmul.mubr.bf16.gmra.mxu0 %v5871
        %v5928 = vpop.f32.mrf.mxu0
        %v5929 = vadd.f32 0.0, %v5928
        %v5930 = vpop.f32.mrf.mxu0
        %v5931 = vpop.f32.mrf.mxu0
        %v5932 = vadd.f32 0.0, %v5931
        %v5933 = vpop.f32.mrf.mxu0
        %5934 = vmatprep.mubr.bf16.mxu0 0
        %5935 = vmatmul.mubr.bf16.gmra.mxu0 %v5872
        %v5936 = vpop.f32.mrf.mxu0
        %v5937 = vadd.f32 0.0, %v5936
        %v5938 = vpop.f32.mrf.mxu0
        %v5939 = vpop.f32.mrf.mxu0
        %v5940 = vadd.f32 0.0, %v5939
        %v5941 = vpop.f32.mrf.mxu0
        %5942 = vmatprep.mubr.bf16.mxu0 0
        %5943 = vmatmul.mubr.bf16.gmra.mxu0 %v5873
        %v5944 = vpop.f32.mrf.mxu0
        %v5945 = vadd.f32 0.0, %v5944
        %v5946 = vpop.f32.mrf.mxu0
        %v5947 = vpop.f32.mrf.mxu0
        %v5948 = vadd.f32 0.0, %v5947
        %v5949 = vpop.f32.mrf.mxu0
        %5950 = vmatprep.mubr.bf16.mxu0 0
        %5951 = vmatmul.mubr.bf16.gmra.mxu0 %v5874
        %v5952 = vpop.f32.mrf.mxu0
        %v5953 = vadd.f32 0.0, %v5952
        %v5954 = vpop.f32.mrf.mxu0
        %v5955 = vpop.f32.mrf.mxu0
        %v5956 = vadd.f32 0.0, %v5955
        %v5957 = vpop.f32.mrf.mxu0
        %5958 = vmatprep.mubr.bf16.mxu0 0
        %5959 = vmatmul.mubr.bf16.gmra.mxu0 %v5875
        %v5960 = vpop.f32.mrf.mxu0
        %v5961 = vadd.f32 0.0, %v5960
        %v5962 = vpop.f32.mrf.mxu0
        %v5963 = vpop.f32.mrf.mxu0
        %v5964 = vadd.f32 0.0, %v5963
        %v5965 = vpop.f32.mrf.mxu0
        %5966 = vmatprep.mubr.bf16.mxu0 0
        %5967 = vmatmul.mubr.bf16.gmra.mxu0 %v5876
        %v5968 = vpop.f32.mrf.mxu0
        %v5969 = vadd.f32 0.0, %v5968
        %v5970 = vpop.f32.mrf.mxu0
        %v5971 = vpop.f32.mrf.mxu0
        %v5972 = vadd.f32 0.0, %v5971
        %v5973 = vpop.f32.mrf.mxu0
        %5974 = vmatprep.mubr.bf16.mxu0 0
        %5975 = vmatmul.mubr.bf16.gmra.mxu0 %v5877
        %v5976 = vpop.f32.mrf.mxu0
        %v5977 = vadd.f32 0.0, %v5976
        %v5978 = vpop.f32.mrf.mxu0
        %v5979 = vpop.f32.mrf.mxu0
        %v5980 = vadd.f32 0.0, %v5979
        %v5981 = vpop.f32.mrf.mxu0
        %5982 = vmatprep.mubr.bf16.mxu0 0
        %5983 = vmatmul.mubr.bf16.gmra.mxu0 %v5878
        %v5984 = vpop.f32.mrf.mxu0
        %v5985 = vadd.f32 0.0, %v5984
        %v5986 = vpop.f32.mrf.mxu0
        %v5987 = vpop.f32.mrf.mxu0
        %v5988 = vadd.f32 0.0, %v5987
        %v5989 = vpop.f32.mrf.mxu0
        %5990 = vmatprep.mubr.bf16.mxu0 0
        %5991 = vmatmul.mubr.bf16.gmra.mxu0 %v5879
        %v5992 = vpop.f32.mrf.mxu0
        %v5993 = vadd.f32 0.0, %v5992
        %v5994 = vpop.f32.mrf.mxu0
        %v5995 = vpop.f32.mrf.mxu0
        %v5996 = vadd.f32 0.0, %v5995
        %v5997 = vpop.f32.mrf.mxu0
        %5998 = vmatprep.mubr.bf16.mxu0 0
        %5999 = vmatmul.mubr.bf16.gmra.mxu0 %v5880
        %v6000 = vpop.f32.mrf.mxu0
        %v6001 = vadd.f32 0.0, %v6000
        %v6002 = vpop.f32.mrf.mxu0
        %v6003 = vpop.f32.mrf.mxu0
        %v6004 = vadd.f32 0.0, %v6003
        %v6005 = vpop.f32.mrf.mxu0
        %6006 = vmatprep.mubr.bf16.mxu0 0
        %6007 = vmatmul.mubr.bf16.gmra.mxu0 %v5881
        %v6008 = vpop.f32.mrf.mxu0
        %v6009 = vadd.f32 0.0, %v6008
        %v6010 = vpop.f32.mrf.mxu0
        %v6011 = vpop.f32.mrf.mxu0
        %v6012 = vadd.f32 0.0, %v6011
        %v6013 = vpop.f32.mrf.mxu0
        %6014 = vmatprep.mubr.bf16.mxu0 0
        %6015 = vmatmul.mubr.bf16.gmra.mxu0 %v5882
        %v6016 = vpop.f32.mrf.mxu0
        %v6017 = vadd.f32 0.0, %v6016
        %v6018 = vpop.f32.mrf.mxu0
        %v6019 = vpop.f32.mrf.mxu0
        %v6020 = vadd.f32 0.0, %v6019
        %v6021 = vpop.f32.mrf.mxu0
        %6022 = vmatprep.mubr.bf16.mxu0 0
        %6023 = vmatmul.mubr.bf16.gmra.mxu0 %v5883
        %v6024 = vpop.f32.mrf.mxu0
        %v6025 = vadd.f32 0.0, %v6024
        %v6026 = vpop.f32.mrf.mxu0
        %v6027 = vpop.f32.mrf.mxu0
        %v6028 = vadd.f32 0.0, %v6027
        %v6029 = vpop.f32.mrf.mxu0
        %6030 = vmatprep.mubr.bf16.mxu0 0
        %6031 = vmatmul.mubr.bf16.gmra.mxu0 %v5884
        %v6032 = vpop.f32.mrf.mxu0
        %v6033 = vadd.f32 0.0, %v6032
        %v6034 = vpop.f32.mrf.mxu0
        %v6035 = vpop.f32.mrf.mxu0
        %v6036 = vadd.f32 0.0, %v6035
        %v6037 = vpop.f32.mrf.mxu0
        %6038 = vmatprep.mubr.bf16.mxu0 0
        %6039 = vmatmul.mubr.bf16.gmra.mxu0 %v5885
        %v6040 = vpop.f32.mrf.mxu0
        %v6041 = vadd.f32 0.0, %v6040
        %v6042 = vpop.f32.mrf.mxu0
        %v6043 = vpop.f32.mrf.mxu0
        %v6044 = vadd.f32 0.0, %v6043
        %v6045 = vpop.f32.mrf.mxu0
        %6046 = vdwg.mxu0
        %s6047 = scalar_lea.vmem %s1, 384
        %v6048 = vld [vmem:[%s6047] sm:$0xf]
        %v6049 = vld [vmem:[%s6047 + $0x4] sm:$0xf]
        %v6050 = vld [vmem:[%s6047 + $0x8] sm:$0xf]
        %v6051 = vld [vmem:[%s6047 + $0xc] sm:$0xf]
        %v6052 = vld [vmem:[%s6047 + $0x10] sm:$0xf]
        %v6053 = vld [vmem:[%s6047 + $0x14] sm:$0xf]
        %v6054 = vld [vmem:[%s6047 + $0x18] sm:$0xf]
        %v6055 = vld [vmem:[%s6047 + $0x1c] sm:$0xf]
        %v6056 = vld [vmem:[%s6047 + $0x20] sm:$0xf]
        %v6057 = vld [vmem:[%s6047 + $0x24] sm:$0xf]
        %v6058 = vld [vmem:[%s6047 + $0x28] sm:$0xf]
        %v6059 = vld [vmem:[%s6047 + $0x2c] sm:$0xf]
        %v6060 = vld [vmem:[%s6047 + $0x30] sm:$0xf]
        %v6061 = vld [vmem:[%s6047 + $0x34] sm:$0xf]
        %v6062 = vld [vmem:[%s6047 + $0x38] sm:$0xf]
        %v6063 = vld [vmem:[%s6047 + $0x3c] sm:$0xf]
        %v6080 = vunpack.c.l.b16 %v6048
        %v6081 = vunpack.c.l.b16 %v6049
        %v6082 = vunpack.c.l.b16 %v6050
        %v6083 = vunpack.c.l.b16 %v6051
        %v6084 = vunpack.c.l.b16 %v6052
        %v6085 = vunpack.c.l.b16 %v6053
        %v6086 = vunpack.c.l.b16 %v6054
        %v6087 = vunpack.c.l.b16 %v6055
        %v6088 = vunpack.c.l.b16 %v6056
        %v6089 = vunpack.c.l.b16 %v6057
        %v6090 = vunpack.c.l.b16 %v6058
        %v6091 = vunpack.c.l.b16 %v6059
        %v6092 = vunpack.c.l.b16 %v6060
        %v6093 = vunpack.c.l.b16 %v6061
        %v6094 = vunpack.c.l.b16 %v6062
        %v6095 = vunpack.c.l.b16 %v6063
        %v6096 = vpack.c.b16 %v6081, %v6080
        %v6097 = vpack.c.b16 %v6083, %v6082
        %v6098 = vpack.c.b16 %v6085, %v6084
        %v6099 = vpack.c.b16 %v6087, %v6086
        %v6100 = vpack.c.b16 %v6089, %v6088
        %v6101 = vpack.c.b16 %v6091, %v6090
        %v6102 = vpack.c.b16 %v6093, %v6092
        %v6103 = vpack.c.b16 %v6095, %v6094
        %6112 = vmatprep.subr.bf16.mxu0 0
        %6113 = vmatpush1.bf16.msra.mxu0 %v6103
        %6114 = vmatprep.subr.bf16.mxu0 0
        %6115 = vmatpush1.bf16.msra.mxu0 %v6102
        %6116 = vmatprep.subr.bf16.mxu0 0
        %6117 = vmatpush1.bf16.msra.mxu0 %v6101
        %6118 = vmatprep.subr.bf16.mxu0 0
        %6119 = vmatpush1.bf16.msra.mxu0 %v6100
        %6120 = vmatprep.subr.bf16.mxu0 0
        %6121 = vmatpush1.bf16.msra.mxu0 %v6099
        %6122 = vmatprep.subr.bf16.mxu0 0
        %6123 = vmatpush1.bf16.msra.mxu0 %v6098
        %6124 = vmatprep.subr.bf16.mxu0 0
        %6125 = vmatpush1.bf16.msra.mxu0 %v6097
        %6126 = vmatprep.subr.bf16.mxu0 0
        %6127 = vmatpush1.bf16.msra.mxu0 %v6096
        %6128 = vmatprep.subr.bf16.mxu0 0
        %6129 = vmatpush2.bf16.msra.mxu0 0
        %6130 = vmatprep.subr.bf16.mxu0 0
        %6131 = vmatpush2.bf16.msra.mxu0 0
        %6132 = vmatprep.subr.bf16.mxu0 0
        %6133 = vmatpush2.bf16.msra.mxu0 0
        %6134 = vmatprep.subr.bf16.mxu0 0
        %6135 = vmatpush2.bf16.msra.mxu0 0
        %6136 = vmatprep.subr.bf16.mxu0 0
        %6137 = vmatpush2.bf16.msra.mxu0 0
        %6138 = vmatprep.subr.bf16.mxu0 0
        %6139 = vmatpush2.bf16.msra.mxu0 0
        %6140 = vmatprep.subr.bf16.mxu0 0
        %6141 = vmatpush2.bf16.msra.mxu0 0
        %6142 = vmatprep.subr.bf16.mxu0 0
        %6143 = vmatpush2.bf16.msra.mxu0 0
        %6144 = vmatprep.mubr.bf16.mxu0 0
        %6145 = vmatmul.mubr.bf16.gmra.mxu0 %v4342
        %v6146 = vpop.f32.mrf.mxu0
        %v6147 = vadd.f32 0.0, %v6146
        %v6148 = vpop.f32.mrf.mxu0
        %v6149 = vpop.f32.mrf.mxu0
        %v6150 = vadd.f32 0.0, %v6149
        %v6151 = vpop.f32.mrf.mxu0
        %6152 = vmatprep.mubr.bf16.mxu0 0
        %6153 = vmatmul.mubr.bf16.gmra.mxu0 %v4343
        %v6154 = vpop.f32.mrf.mxu0
        %v6155 = vadd.f32 0.0, %v6154
        %v6156 = vpop.f32.mrf.mxu0
        %v6157 = vpop.f32.mrf.mxu0
        %v6158 = vadd.f32 0.0, %v6157
        %v6159 = vpop.f32.mrf.mxu0
        %6160 = vmatprep.mubr.bf16.mxu0 0
        %6161 = vmatmul.mubr.bf16.gmra.mxu0 %v4344
        %v6162 = vpop.f32.mrf.mxu0
        %v6163 = vadd.f32 0.0, %v6162
        %v6164 = vpop.f32.mrf.mxu0
        %v6165 = vpop.f32.mrf.mxu0
        %v6166 = vadd.f32 0.0, %v6165
        %v6167 = vpop.f32.mrf.mxu0
        %6168 = vmatprep.mubr.bf16.mxu0 0
        %6169 = vmatmul.mubr.bf16.gmra.mxu0 %v4345
        %v6170 = vpop.f32.mrf.mxu0
        %v6171 = vadd.f32 0.0, %v6170
        %v6172 = vpop.f32.mrf.mxu0
        %v6173 = vpop.f32.mrf.mxu0
        %v6174 = vadd.f32 0.0, %v6173
        %v6175 = vpop.f32.mrf.mxu0
        %6176 = vmatprep.mubr.bf16.mxu0 0
        %6177 = vmatmul.mubr.bf16.gmra.mxu0 %v4346
        %v6178 = vpop.f32.mrf.mxu0
        %v6179 = vadd.f32 0.0, %v6178
        %v6180 = vpop.f32.mrf.mxu0
        %v6181 = vpop.f32.mrf.mxu0
        %v6182 = vadd.f32 0.0, %v6181
        %v6183 = vpop.f32.mrf.mxu0
        %6184 = vmatprep.mubr.bf16.mxu0 0
        %6185 = vmatmul.mubr.bf16.gmra.mxu0 %v4347
        %v6186 = vpop.f32.mrf.mxu0
        %v6187 = vadd.f32 0.0, %v6186
        %v6188 = vpop.f32.mrf.mxu0
        %v6189 = vpop.f32.mrf.mxu0
        %v6190 = vadd.f32 0.0, %v6189
        %v6191 = vpop.f32.mrf.mxu0
        %6192 = vmatprep.mubr.bf16.mxu0 0
        %6193 = vmatmul.mubr.bf16.gmra.mxu0 %v4348
        %v6194 = vpop.f32.mrf.mxu0
        %v6195 = vadd.f32 0.0, %v6194
        %v6196 = vpop.f32.mrf.mxu0
        %v6197 = vpop.f32.mrf.mxu0
        %v6198 = vadd.f32 0.0, %v6197
        %v6199 = vpop.f32.mrf.mxu0
        %6200 = vmatprep.mubr.bf16.mxu0 0
        %6201 = vmatmul.mubr.bf16.gmra.mxu0 %v4349
        %v6202 = vpop.f32.mrf.mxu0
        %v6203 = vadd.f32 0.0, %v6202
        %v6204 = vpop.f32.mrf.mxu0
        %v6205 = vpop.f32.mrf.mxu0
        %v6206 = vadd.f32 0.0, %v6205
        %v6207 = vpop.f32.mrf.mxu0
        %6208 = vmatprep.mubr.bf16.mxu0 0
        %6209 = vmatmul.mubr.bf16.gmra.mxu0 %v4350
        %v6210 = vpop.f32.mrf.mxu0
        %v6211 = vadd.f32 0.0, %v6210
        %v6212 = vpop.f32.mrf.mxu0
        %v6213 = vpop.f32.mrf.mxu0
        %v6214 = vadd.f32 0.0, %v6213
        %v6215 = vpop.f32.mrf.mxu0
        %6216 = vmatprep.mubr.bf16.mxu0 0
        %6217 = vmatmul.mubr.bf16.gmra.mxu0 %v4351
        %v6218 = vpop.f32.mrf.mxu0
        %v6219 = vadd.f32 0.0, %v6218
        %v6220 = vpop.f32.mrf.mxu0
        %v6221 = vpop.f32.mrf.mxu0
        %v6222 = vadd.f32 0.0, %v6221
        %v6223 = vpop.f32.mrf.mxu0
        %6224 = vmatprep.mubr.bf16.mxu0 0
        %6225 = vmatmul.mubr.bf16.gmra.mxu0 %v4352
        %v6226 = vpop.f32.mrf.mxu0
        %v6227 = vadd.f32 0.0, %v6226
        %v6228 = vpop.f32.mrf.mxu0
        %v6229 = vpop.f32.mrf.mxu0
        %v6230 = vadd.f32 0.0, %v6229
        %v6231 = vpop.f32.mrf.mxu0
        %6232 = vmatprep.mubr.bf16.mxu0 0
        %6233 = vmatmul.mubr.bf16.gmra.mxu0 %v4353
        %v6234 = vpop.f32.mrf.mxu0
        %v6235 = vadd.f32 0.0, %v6234
        %v6236 = vpop.f32.mrf.mxu0
        %v6237 = vpop.f32.mrf.mxu0
        %v6238 = vadd.f32 0.0, %v6237
        %v6239 = vpop.f32.mrf.mxu0
        %6240 = vmatprep.mubr.bf16.mxu0 0
        %6241 = vmatmul.mubr.bf16.gmra.mxu0 %v4354
        %v6242 = vpop.f32.mrf.mxu0
        %v6243 = vadd.f32 0.0, %v6242
        %v6244 = vpop.f32.mrf.mxu0
        %v6245 = vpop.f32.mrf.mxu0
        %v6246 = vadd.f32 0.0, %v6245
        %v6247 = vpop.f32.mrf.mxu0
        %6248 = vmatprep.mubr.bf16.mxu0 0
        %6249 = vmatmul.mubr.bf16.gmra.mxu0 %v4355
        %v6250 = vpop.f32.mrf.mxu0
        %v6251 = vadd.f32 0.0, %v6250
        %v6252 = vpop.f32.mrf.mxu0
        %v6253 = vpop.f32.mrf.mxu0
        %v6254 = vadd.f32 0.0, %v6253
        %v6255 = vpop.f32.mrf.mxu0
        %6256 = vmatprep.mubr.bf16.mxu0 0
        %6257 = vmatmul.mubr.bf16.gmra.mxu0 %v4356
        %v6258 = vpop.f32.mrf.mxu0
        %v6259 = vadd.f32 0.0, %v6258
        %v6260 = vpop.f32.mrf.mxu0
        %v6261 = vpop.f32.mrf.mxu0
        %v6262 = vadd.f32 0.0, %v6261
        %v6263 = vpop.f32.mrf.mxu0
        %6264 = vmatprep.mubr.bf16.mxu0 0
        %6265 = vmatmul.mubr.bf16.gmra.mxu0 %v4357
        %v6266 = vpop.f32.mrf.mxu0
        %v6267 = vadd.f32 0.0, %v6266
        %v6268 = vpop.f32.mrf.mxu0
        %v6269 = vpop.f32.mrf.mxu0
        %v6270 = vadd.f32 0.0, %v6269
        %v6271 = vpop.f32.mrf.mxu0
        %6272 = vdwg.mxu0
        %v6273 = vpack.c.bf16 %v6150, %v6147
        %v6274 = vpack.c.bf16 %v6158, %v6155
        %v6275 = vpack.c.bf16 %v6166, %v6163
        %v6276 = vpack.c.bf16 %v6174, %v6171
        %v6277 = vpack.c.bf16 %v6182, %v6179
        %v6278 = vpack.c.bf16 %v6190, %v6187
        %v6279 = vpack.c.bf16 %v6198, %v6195
        %v6280 = vpack.c.bf16 %v6206, %v6203
        %v6281 = vpack.c.bf16 %v6214, %v6211
        %v6282 = vpack.c.bf16 %v6222, %v6219
        %v6283 = vpack.c.bf16 %v6230, %v6227
        %v6284 = vpack.c.bf16 %v6238, %v6235
        %v6285 = vpack.c.bf16 %v6246, %v6243
        %v6286 = vpack.c.bf16 %v6254, %v6251
        %v6287 = vpack.c.bf16 %v6262, %v6259
        %v6288 = vpack.c.bf16 %v6270, %v6267
        %s6289 = scalar_lea.vmem %s2, 384
        %v6290 = vld [vmem:[%s6289] sm:$0xf]
        %v6291 = vld [vmem:[%s6289 + $0x4] sm:$0xf]
        %v6292 = vld [vmem:[%s6289 + $0x8] sm:$0xf]
        %v6293 = vld [vmem:[%s6289 + $0xc] sm:$0xf]
        %v6294 = vld [vmem:[%s6289 + $0x10] sm:$0xf]
        %v6295 = vld [vmem:[%s6289 + $0x14] sm:$0xf]
        %v6296 = vld [vmem:[%s6289 + $0x18] sm:$0xf]
        %v6297 = vld [vmem:[%s6289 + $0x1c] sm:$0xf]
        %v6298 = vld [vmem:[%s6289 + $0x20] sm:$0xf]
        %v6299 = vld [vmem:[%s6289 + $0x24] sm:$0xf]
        %v6300 = vld [vmem:[%s6289 + $0x28] sm:$0xf]
        %v6301 = vld [vmem:[%s6289 + $0x2c] sm:$0xf]
        %v6302 = vld [vmem:[%s6289 + $0x30] sm:$0xf]
        %v6303 = vld [vmem:[%s6289 + $0x34] sm:$0xf]
        %v6304 = vld [vmem:[%s6289 + $0x38] sm:$0xf]
        %v6305 = vld [vmem:[%s6289 + $0x3c] sm:$0xf]
        %s6306 = scalar_lea.vmem %s3, 6
        %v6307 = vld [vmem:[%s6306] sm:$0x1]
        %v6309 = vlaneseq
        %v6310 = vshrl.u32 %v6309, 7
        %v6311 = vsub.s32 0, %v6310
        %v6312 = vrot.slane %v6307, %v6311
        %v6330 = vunpack.c.l.b16 %v6290
        %v6331 = vunpack.c.l.b16 %v6291
        %v6332 = vunpack.c.l.b16 %v6292
        %v6333 = vunpack.c.l.b16 %v6293
        %v6334 = vunpack.c.l.b16 %v6294
        %v6335 = vunpack.c.l.b16 %v6295
        %v6336 = vunpack.c.l.b16 %v6296
        %v6337 = vunpack.c.l.b16 %v6297
        %v6338 = vunpack.c.l.b16 %v6298
        %v6339 = vunpack.c.l.b16 %v6299
        %v6340 = vunpack.c.l.b16 %v6300
        %v6341 = vunpack.c.l.b16 %v6301
        %v6342 = vunpack.c.l.b16 %v6302
        %v6343 = vunpack.c.l.b16 %v6303
        %v6344 = vunpack.c.l.b16 %v6304
        %v6345 = vunpack.c.l.b16 %v6305
        %v6346 = vpack.c.b16 %v6331, %v6330
        %v6347 = vpack.c.b16 %v6333, %v6332
        %v6348 = vpack.c.b16 %v6335, %v6334
        %v6349 = vpack.c.b16 %v6337, %v6336
        %v6350 = vpack.c.b16 %v6339, %v6338
        %v6351 = vpack.c.b16 %v6341, %v6340
        %v6352 = vpack.c.b16 %v6343, %v6342
        %v6353 = vpack.c.b16 %v6345, %v6344
        %6362 = vmatprep.subr.bf16.mxu0 0
        %6363 = vmatpush1.bf16.msra.mxu0 %v6353
        %6364 = vmatprep.subr.bf16.mxu0 0
        %6365 = vmatpush1.bf16.msra.mxu0 %v6352
        %6366 = vmatprep.subr.bf16.mxu0 0
        %6367 = vmatpush1.bf16.msra.mxu0 %v6351
        %6368 = vmatprep.subr.bf16.mxu0 0
        %6369 = vmatpush1.bf16.msra.mxu0 %v6350
        %6370 = vmatprep.subr.bf16.mxu0 0
        %6371 = vmatpush1.bf16.msra.mxu0 %v6349
        %6372 = vmatprep.subr.bf16.mxu0 0
        %6373 = vmatpush1.bf16.msra.mxu0 %v6348
        %6374 = vmatprep.subr.bf16.mxu0 0
        %6375 = vmatpush1.bf16.msra.mxu0 %v6347
        %6376 = vmatprep.subr.bf16.mxu0 0
        %6377 = vmatpush1.bf16.msra.mxu0 %v6346
        %6378 = vmatprep.subr.bf16.mxu0 0
        %6379 = vmatpush2.bf16.msra.mxu0 0
        %6380 = vmatprep.subr.bf16.mxu0 0
        %6381 = vmatpush2.bf16.msra.mxu0 0
        %6382 = vmatprep.subr.bf16.mxu0 0
        %6383 = vmatpush2.bf16.msra.mxu0 0
        %6384 = vmatprep.subr.bf16.mxu0 0
        %6385 = vmatpush2.bf16.msra.mxu0 0
        %6386 = vmatprep.subr.bf16.mxu0 0
        %6387 = vmatpush2.bf16.msra.mxu0 0
        %6388 = vmatprep.subr.bf16.mxu0 0
        %6389 = vmatpush2.bf16.msra.mxu0 0
        %6390 = vmatprep.subr.bf16.mxu0 0
        %6391 = vmatpush2.bf16.msra.mxu0 0
        %6392 = vmatprep.subr.bf16.mxu0 0
        %6393 = vmatpush2.bf16.msra.mxu0 0
        %6394 = vmatprep.mubr.bf16.mxu0 0
        %6395 = vmatmul.mubr.bf16.gmra.mxu0 %v6273
        %v6396 = vpop.f32.mrf.mxu0
        %v6397 = vadd.f32 %v6312, %v6396
        %v6398 = vpop.f32.mrf.mxu0
        %v6399 = vpop.f32.mrf.mxu0
        %v6400 = vadd.f32 %v6312, %v6399
        %v6401 = vpop.f32.mrf.mxu0
        %6402 = vmatprep.mubr.bf16.mxu0 0
        %6403 = vmatmul.mubr.bf16.gmra.mxu0 %v6274
        %v6404 = vpop.f32.mrf.mxu0
        %v6405 = vadd.f32 %v6312, %v6404
        %v6406 = vpop.f32.mrf.mxu0
        %v6407 = vpop.f32.mrf.mxu0
        %v6408 = vadd.f32 %v6312, %v6407
        %v6409 = vpop.f32.mrf.mxu0
        %6410 = vmatprep.mubr.bf16.mxu0 0
        %6411 = vmatmul.mubr.bf16.gmra.mxu0 %v6275
        %v6412 = vpop.f32.mrf.mxu0
        %v6413 = vadd.f32 %v6312, %v6412
        %v6414 = vpop.f32.mrf.mxu0
        %v6415 = vpop.f32.mrf.mxu0
        %v6416 = vadd.f32 %v6312, %v6415
        %v6417 = vpop.f32.mrf.mxu0
        %6418 = vmatprep.mubr.bf16.mxu0 0
        %6419 = vmatmul.mubr.bf16.gmra.mxu0 %v6276
        %v6420 = vpop.f32.mrf.mxu0
        %v6421 = vadd.f32 %v6312, %v6420
        %v6422 = vpop.f32.mrf.mxu0
        %v6423 = vpop.f32.mrf.mxu0
        %v6424 = vadd.f32 %v6312, %v6423
        %v6425 = vpop.f32.mrf.mxu0
        %6426 = vmatprep.mubr.bf16.mxu0 0
        %6427 = vmatmul.mubr.bf16.gmra.mxu0 %v6277
        %v6428 = vpop.f32.mrf.mxu0
        %v6429 = vadd.f32 %v6312, %v6428
        %v6430 = vpop.f32.mrf.mxu0
        %v6431 = vpop.f32.mrf.mxu0
        %v6432 = vadd.f32 %v6312, %v6431
        %v6433 = vpop.f32.mrf.mxu0
        %6434 = vmatprep.mubr.bf16.mxu0 0
        %6435 = vmatmul.mubr.bf16.gmra.mxu0 %v6278
        %v6436 = vpop.f32.mrf.mxu0
        %v6437 = vadd.f32 %v6312, %v6436
        %v6438 = vpop.f32.mrf.mxu0
        %v6439 = vpop.f32.mrf.mxu0
        %v6440 = vadd.f32 %v6312, %v6439
        %v6441 = vpop.f32.mrf.mxu0
        %6442 = vmatprep.mubr.bf16.mxu0 0
        %6443 = vmatmul.mubr.bf16.gmra.mxu0 %v6279
        %v6444 = vpop.f32.mrf.mxu0
        %v6445 = vadd.f32 %v6312, %v6444
        %v6446 = vpop.f32.mrf.mxu0
        %v6447 = vpop.f32.mrf.mxu0
        %v6448 = vadd.f32 %v6312, %v6447
        %v6449 = vpop.f32.mrf.mxu0
        %6450 = vmatprep.mubr.bf16.mxu0 0
        %6451 = vmatmul.mubr.bf16.gmra.mxu0 %v6280
        %v6452 = vpop.f32.mrf.mxu0
        %v6453 = vadd.f32 %v6312, %v6452
        %v6454 = vpop.f32.mrf.mxu0
        %v6455 = vpop.f32.mrf.mxu0
        %v6456 = vadd.f32 %v6312, %v6455
        %v6457 = vpop.f32.mrf.mxu0
        %6458 = vmatprep.mubr.bf16.mxu0 0
        %6459 = vmatmul.mubr.bf16.gmra.mxu0 %v6281
        %v6460 = vpop.f32.mrf.mxu0
        %v6461 = vadd.f32 %v6312, %v6460
        %v6462 = vpop.f32.mrf.mxu0
        %v6463 = vpop.f32.mrf.mxu0
        %v6464 = vadd.f32 %v6312, %v6463
        %v6465 = vpop.f32.mrf.mxu0
        %6466 = vmatprep.mubr.bf16.mxu0 0
        %6467 = vmatmul.mubr.bf16.gmra.mxu0 %v6282
        %v6468 = vpop.f32.mrf.mxu0
        %v6469 = vadd.f32 %v6312, %v6468
        %v6470 = vpop.f32.mrf.mxu0
        %v6471 = vpop.f32.mrf.mxu0
        %v6472 = vadd.f32 %v6312, %v6471
        %v6473 = vpop.f32.mrf.mxu0
        %6474 = vmatprep.mubr.bf16.mxu0 0
        %6475 = vmatmul.mubr.bf16.gmra.mxu0 %v6283
        %v6476 = vpop.f32.mrf.mxu0
        %v6477 = vadd.f32 %v6312, %v6476
        %v6478 = vpop.f32.mrf.mxu0
        %v6479 = vpop.f32.mrf.mxu0
        %v6480 = vadd.f32 %v6312, %v6479
        %v6481 = vpop.f32.mrf.mxu0
        %6482 = vmatprep.mubr.bf16.mxu0 0
        %6483 = vmatmul.mubr.bf16.gmra.mxu0 %v6284
        %v6484 = vpop.f32.mrf.mxu0
        %v6485 = vadd.f32 %v6312, %v6484
        %v6486 = vpop.f32.mrf.mxu0
        %v6487 = vpop.f32.mrf.mxu0
        %v6488 = vadd.f32 %v6312, %v6487
        %v6489 = vpop.f32.mrf.mxu0
        %6490 = vmatprep.mubr.bf16.mxu0 0
        %6491 = vmatmul.mubr.bf16.gmra.mxu0 %v6285
        %v6492 = vpop.f32.mrf.mxu0
        %v6493 = vadd.f32 %v6312, %v6492
        %v6494 = vpop.f32.mrf.mxu0
        %v6495 = vpop.f32.mrf.mxu0
        %v6496 = vadd.f32 %v6312, %v6495
        %v6497 = vpop.f32.mrf.mxu0
        %6498 = vmatprep.mubr.bf16.mxu0 0
        %6499 = vmatmul.mubr.bf16.gmra.mxu0 %v6286
        %v6500 = vpop.f32.mrf.mxu0
        %v6501 = vadd.f32 %v6312, %v6500
        %v6502 = vpop.f32.mrf.mxu0
        %v6503 = vpop.f32.mrf.mxu0
        %v6504 = vadd.f32 %v6312, %v6503
        %v6505 = vpop.f32.mrf.mxu0
        %6506 = vmatprep.mubr.bf16.mxu0 0
        %6507 = vmatmul.mubr.bf16.gmra.mxu0 %v6287
        %v6508 = vpop.f32.mrf.mxu0
        %v6509 = vadd.f32 %v6312, %v6508
        %v6510 = vpop.f32.mrf.mxu0
        %v6511 = vpop.f32.mrf.mxu0
        %v6512 = vadd.f32 %v6312, %v6511
        %v6513 = vpop.f32.mrf.mxu0
        %6514 = vmatprep.mubr.bf16.mxu0 0
        %6515 = vmatmul.mubr.bf16.gmra.mxu0 %v6288
        %v6516 = vpop.f32.mrf.mxu0
        %v6517 = vadd.f32 %v6312, %v6516
        %v6518 = vpop.f32.mrf.mxu0
        %v6519 = vpop.f32.mrf.mxu0
        %v6520 = vadd.f32 %v6312, %v6519
        %v6521 = vpop.f32.mrf.mxu0
        %6522 = vdwg.mxu0
        %vm6523 = vcmp.gt.f32.partialorder %v6397, 0.0
        %vm6524 = vcmp.gt.f32.partialorder %v6400, 0.0
        %vm6525 = vcmp.gt.f32.partialorder %v6405, 0.0
        %vm6526 = vcmp.gt.f32.partialorder %v6408, 0.0
        %vm6527 = vcmp.gt.f32.partialorder %v6413, 0.0
        %vm6528 = vcmp.gt.f32.partialorder %v6416, 0.0
        %vm6529 = vcmp.gt.f32.partialorder %v6421, 0.0
        %vm6530 = vcmp.gt.f32.partialorder %v6424, 0.0
        %vm6531 = vcmp.gt.f32.partialorder %v6429, 0.0
        %vm6532 = vcmp.gt.f32.partialorder %v6432, 0.0
        %vm6533 = vcmp.gt.f32.partialorder %v6437, 0.0
        %vm6534 = vcmp.gt.f32.partialorder %v6440, 0.0
        %vm6535 = vcmp.gt.f32.partialorder %v6445, 0.0
        %vm6536 = vcmp.gt.f32.partialorder %v6448, 0.0
        %vm6537 = vcmp.gt.f32.partialorder %v6453, 0.0
        %vm6538 = vcmp.gt.f32.partialorder %v6456, 0.0
        %vm6539 = vcmp.gt.f32.partialorder %v6461, 0.0
        %vm6540 = vcmp.gt.f32.partialorder %v6464, 0.0
        %vm6541 = vcmp.gt.f32.partialorder %v6469, 0.0
        %vm6542 = vcmp.gt.f32.partialorder %v6472, 0.0
        %vm6543 = vcmp.gt.f32.partialorder %v6477, 0.0
        %vm6544 = vcmp.gt.f32.partialorder %v6480, 0.0
        %vm6545 = vcmp.gt.f32.partialorder %v6485, 0.0
        %vm6546 = vcmp.gt.f32.partialorder %v6488, 0.0
        %vm6547 = vcmp.gt.f32.partialorder %v6493, 0.0
        %vm6548 = vcmp.gt.f32.partialorder %v6496, 0.0
        %vm6549 = vcmp.gt.f32.partialorder %v6501, 0.0
        %vm6550 = vcmp.gt.f32.partialorder %v6504, 0.0
        %vm6551 = vcmp.gt.f32.partialorder %v6509, 0.0
        %vm6552 = vcmp.gt.f32.partialorder %v6512, 0.0
        %vm6553 = vcmp.gt.f32.partialorder %v6517, 0.0
        %vm6554 = vcmp.gt.f32.partialorder %v6520, 0.0
        %v6555 = vmin.f32 %v6397, 0.0
        %v6556 = vmin.f32 %v6400, 0.0
        %v6557 = vmin.f32 %v6405, 0.0
        %v6558 = vmin.f32 %v6408, 0.0
        %v6559 = vmin.f32 %v6413, 0.0
        %v6560 = vmin.f32 %v6416, 0.0
        %v6561 = vmin.f32 %v6421, 0.0
        %v6562 = vmin.f32 %v6424, 0.0
        %v6563 = vmin.f32 %v6429, 0.0
        %v6564 = vmin.f32 %v6432, 0.0
        %v6565 = vmin.f32 %v6437, 0.0
        %v6566 = vmin.f32 %v6440, 0.0
        %v6567 = vmin.f32 %v6445, 0.0
        %v6568 = vmin.f32 %v6448, 0.0
        %v6569 = vmin.f32 %v6453, 0.0
        %v6570 = vmin.f32 %v6456, 0.0
        %v6571 = vmin.f32 %v6461, 0.0
        %v6572 = vmin.f32 %v6464, 0.0
        %v6573 = vmin.f32 %v6469, 0.0
        %v6574 = vmin.f32 %v6472, 0.0
        %v6575 = vmin.f32 %v6477, 0.0
        %v6576 = vmin.f32 %v6480, 0.0
        %v6577 = vmin.f32 %v6485, 0.0
        %v6578 = vmin.f32 %v6488, 0.0
        %v6579 = vmin.f32 %v6493, 0.0
        %v6580 = vmin.f32 %v6496, 0.0
        %v6581 = vmin.f32 %v6501, 0.0
        %v6582 = vmin.f32 %v6504, 0.0
        %v6583 = vmin.f32 %v6509, 0.0
        %v6584 = vmin.f32 %v6512, 0.0
        %v6585 = vmin.f32 %v6517, 0.0
        %v6586 = vmin.f32 %v6520, 0.0
        %v6587 = vmul.f32 %v6555, 1.442695
        %v6588 = vpow.pop %v6587
        %v6589 = vmul.f32 %v6556, 1.442695
        %v6590 = vpow.pop %v6589
        %v6591 = vmul.f32 %v6557, 1.442695
        %v6592 = vpow.pop %v6591
        %v6593 = vmul.f32 %v6558, 1.442695
        %v6594 = vpow.pop %v6593
        %v6595 = vmul.f32 %v6559, 1.442695
        %v6596 = vpow.pop %v6595
        %v6597 = vmul.f32 %v6560, 1.442695
        %v6598 = vpow.pop %v6597
        %v6599 = vmul.f32 %v6561, 1.442695
        %v6600 = vpow.pop %v6599
        %v6601 = vmul.f32 %v6562, 1.442695
        %v6602 = vpow.pop %v6601
        %v6603 = vmul.f32 %v6563, 1.442695
        %v6604 = vpow.pop %v6603
        %v6605 = vmul.f32 %v6564, 1.442695
        %v6606 = vpow.pop %v6605
        %v6607 = vmul.f32 %v6565, 1.442695
        %v6608 = vpow.pop %v6607
        %v6609 = vmul.f32 %v6566, 1.442695
        %v6610 = vpow.pop %v6609
        %v6611 = vmul.f32 %v6567, 1.442695
        %v6612 = vpow.pop %v6611
        %v6613 = vmul.f32 %v6568, 1.442695
        %v6614 = vpow.pop %v6613
        %v6615 = vmul.f32 %v6569, 1.442695
        %v6616 = vpow.pop %v6615
        %v6617 = vmul.f32 %v6570, 1.442695
        %v6618 = vpow.pop %v6617
        %v6619 = vmul.f32 %v6571, 1.442695
        %v6620 = vpow.pop %v6619
        %v6621 = vmul.f32 %v6572, 1.442695
        %v6622 = vpow.pop %v6621
        %v6623 = vmul.f32 %v6573, 1.442695
        %v6624 = vpow.pop %v6623
        %v6625 = vmul.f32 %v6574, 1.442695
        %v6626 = vpow.pop %v6625
        %v6627 = vmul.f32 %v6575, 1.442695
        %v6628 = vpow.pop %v6627
        %v6629 = vmul.f32 %v6576, 1.442695
        %v6630 = vpow.pop %v6629
        %v6631 = vmul.f32 %v6577, 1.442695
        %v6632 = vpow.pop %v6631
        %v6633 = vmul.f32 %v6578, 1.442695
        %v6634 = vpow.pop %v6633
        %v6635 = vmul.f32 %v6579, 1.442695
        %v6636 = vpow.pop %v6635
        %v6637 = vmul.f32 %v6580, 1.442695
        %v6638 = vpow.pop %v6637
        %v6639 = vmul.f32 %v6581, 1.442695
        %v6640 = vpow.pop %v6639
        %v6641 = vmul.f32 %v6582, 1.442695
        %v6642 = vpow.pop %v6641
        %v6643 = vmul.f32 %v6583, 1.442695
        %v6644 = vpow.pop %v6643
        %v6645 = vmul.f32 %v6584, 1.442695
        %v6646 = vpow.pop %v6645
        %v6647 = vmul.f32 %v6585, 1.442695
        %v6648 = vpow.pop %v6647
        %v6649 = vmul.f32 %v6586, 1.442695
        %v6650 = vpow.pop %v6649
        %v6651 = vsub.f32 %v6588, 1.0
        %v6652 = vsub.f32 %v6590, 1.0
        %v6653 = vsub.f32 %v6592, 1.0
        %v6654 = vsub.f32 %v6594, 1.0
        %v6655 = vsub.f32 %v6596, 1.0
        %v6656 = vsub.f32 %v6598, 1.0
        %v6657 = vsub.f32 %v6600, 1.0
        %v6658 = vsub.f32 %v6602, 1.0
        %v6659 = vsub.f32 %v6604, 1.0
        %v6660 = vsub.f32 %v6606, 1.0
        %v6661 = vsub.f32 %v6608, 1.0
        %v6662 = vsub.f32 %v6610, 1.0
        %v6663 = vsub.f32 %v6612, 1.0
        %v6664 = vsub.f32 %v6614, 1.0
        %v6665 = vsub.f32 %v6616, 1.0
        %v6666 = vsub.f32 %v6618, 1.0
        %v6667 = vsub.f32 %v6620, 1.0
        %v6668 = vsub.f32 %v6622, 1.0
        %v6669 = vsub.f32 %v6624, 1.0
        %v6670 = vsub.f32 %v6626, 1.0
        %v6671 = vsub.f32 %v6628, 1.0
        %v6672 = vsub.f32 %v6630, 1.0
        %v6673 = vsub.f32 %v6632, 1.0
        %v6674 = vsub.f32 %v6634, 1.0
        %v6675 = vsub.f32 %v6636, 1.0
        %v6676 = vsub.f32 %v6638, 1.0
        %v6677 = vsub.f32 %v6640, 1.0
        %v6678 = vsub.f32 %v6642, 1.0
        %v6679 = vsub.f32 %v6644, 1.0
        %v6680 = vsub.f32 %v6646, 1.0
        %v6681 = vsub.f32 %v6648, 1.0
        %v6682 = vsub.f32 %v6650, 1.0
        %v6683 = vsel %vm6523, %v6397, %v6651
        %v6684 = vsel %vm6524, %v6400, %v6652
        %v6685 = vsel %vm6525, %v6405, %v6653
        %v6686 = vsel %vm6526, %v6408, %v6654
        %v6687 = vsel %vm6527, %v6413, %v6655
        %v6688 = vsel %vm6528, %v6416, %v6656
        %v6689 = vsel %vm6529, %v6421, %v6657
        %v6690 = vsel %vm6530, %v6424, %v6658
        %v6691 = vsel %vm6531, %v6429, %v6659
        %v6692 = vsel %vm6532, %v6432, %v6660
        %v6693 = vsel %vm6533, %v6437, %v6661
        %v6694 = vsel %vm6534, %v6440, %v6662
        %v6695 = vsel %vm6535, %v6445, %v6663
        %v6696 = vsel %vm6536, %v6448, %v6664
        %v6697 = vsel %vm6537, %v6453, %v6665
        %v6698 = vsel %vm6538, %v6456, %v6666
        %v6699 = vsel %vm6539, %v6461, %v6667
        %v6700 = vsel %vm6540, %v6464, %v6668
        %v6701 = vsel %vm6541, %v6469, %v6669
        %v6702 = vsel %vm6542, %v6472, %v6670
        %v6703 = vsel %vm6543, %v6477, %v6671
        %v6704 = vsel %vm6544, %v6480, %v6672
        %v6705 = vsel %vm6545, %v6485, %v6673
        %v6706 = vsel %vm6546, %v6488, %v6674
        %v6707 = vsel %vm6547, %v6493, %v6675
        %v6708 = vsel %vm6548, %v6496, %v6676
        %v6709 = vsel %vm6549, %v6501, %v6677
        %v6710 = vsel %vm6550, %v6504, %v6678
        %v6711 = vsel %vm6551, %v6509, %v6679
        %v6712 = vsel %vm6552, %v6512, %v6680
        %v6713 = vsel %vm6553, %v6517, %v6681
        %v6714 = vsel %vm6554, %v6520, %v6682
        %v6715 = vpack.c.bf16 %v6684, %v6683
        %v6716 = vpack.c.bf16 %v6686, %v6685
        %v6717 = vpack.c.bf16 %v6688, %v6687
        %v6718 = vpack.c.bf16 %v6690, %v6689
        %v6719 = vpack.c.bf16 %v6692, %v6691
        %v6720 = vpack.c.bf16 %v6694, %v6693
        %v6721 = vpack.c.bf16 %v6696, %v6695
        %v6722 = vpack.c.bf16 %v6698, %v6697
        %v6723 = vpack.c.bf16 %v6700, %v6699
        %v6724 = vpack.c.bf16 %v6702, %v6701
        %v6725 = vpack.c.bf16 %v6704, %v6703
        %v6726 = vpack.c.bf16 %v6706, %v6705
        %v6727 = vpack.c.bf16 %v6708, %v6707
        %v6728 = vpack.c.bf16 %v6710, %v6709
        %v6729 = vpack.c.bf16 %v6712, %v6711
        %v6730 = vpack.c.bf16 %v6714, %v6713
        %6731 = vmatprep.subr.bf16.mxu0 0
        %6732 = vmatpush1.bf16.msra.mxu0 %v1556
        %6733 = vmatprep.subr.bf16.mxu0 0
        %6734 = vmatpush1.bf16.msra.mxu0 %v1555
        %6735 = vmatprep.subr.bf16.mxu0 0
        %6736 = vmatpush1.bf16.msra.mxu0 %v1554
        %6737 = vmatprep.subr.bf16.mxu0 0
        %6738 = vmatpush1.bf16.msra.mxu0 %v1553
        %6739 = vmatprep.subr.bf16.mxu0 0
        %6740 = vmatpush1.bf16.msra.mxu0 %v1552
        %6741 = vmatprep.subr.bf16.mxu0 0
        %6742 = vmatpush1.bf16.msra.mxu0 %v1551
        %6743 = vmatprep.subr.bf16.mxu0 0
        %6744 = vmatpush1.bf16.msra.mxu0 %v1550
        %6745 = vmatprep.subr.bf16.mxu0 0
        %6746 = vmatpush1.bf16.msra.mxu0 %v1549
        %6747 = vmatprep.subr.bf16.mxu0 0
        %6748 = vmatpush2.bf16.msra.mxu0 0
        %6749 = vmatprep.subr.bf16.mxu0 0
        %6750 = vmatpush2.bf16.msra.mxu0 0
        %6751 = vmatprep.subr.bf16.mxu0 0
        %6752 = vmatpush2.bf16.msra.mxu0 0
        %6753 = vmatprep.subr.bf16.mxu0 0
        %6754 = vmatpush2.bf16.msra.mxu0 0
        %6755 = vmatprep.subr.bf16.mxu0 0
        %6756 = vmatpush2.bf16.msra.mxu0 0
        %6757 = vmatprep.subr.bf16.mxu0 0
        %6758 = vmatpush2.bf16.msra.mxu0 0
        %6759 = vmatprep.subr.bf16.mxu0 0
        %6760 = vmatpush2.bf16.msra.mxu0 0
        %6761 = vmatprep.subr.bf16.mxu0 0
        %6762 = vmatpush2.bf16.msra.mxu0 0
        %6763 = vmatprep.mubr.bf16.mxu0 0
        %6764 = vmatmul.mubr.bf16.gmra.mxu0 %v6715
        %v6765 = vpop.f32.mrf.mxu0
        %v6766 = vadd.f32 0.0, %v6765
        %v6767 = vpop.f32.mrf.mxu0
        %v6768 = vpop.f32.mrf.mxu0
        %v6769 = vadd.f32 0.0, %v6768
        %v6770 = vpop.f32.mrf.mxu0
        %6771 = vmatprep.mubr.bf16.mxu0 0
        %6772 = vmatmul.mubr.bf16.gmra.mxu0 %v6716
        %v6773 = vpop.f32.mrf.mxu0
        %v6774 = vadd.f32 0.0, %v6773
        %v6775 = vpop.f32.mrf.mxu0
        %v6776 = vpop.f32.mrf.mxu0
        %v6777 = vadd.f32 0.0, %v6776
        %v6778 = vpop.f32.mrf.mxu0
        %6779 = vmatprep.mubr.bf16.mxu0 0
        %6780 = vmatmul.mubr.bf16.gmra.mxu0 %v6717
        %v6781 = vpop.f32.mrf.mxu0
        %v6782 = vadd.f32 0.0, %v6781
        %v6783 = vpop.f32.mrf.mxu0
        %v6784 = vpop.f32.mrf.mxu0
        %v6785 = vadd.f32 0.0, %v6784
        %v6786 = vpop.f32.mrf.mxu0
        %6787 = vmatprep.mubr.bf16.mxu0 0
        %6788 = vmatmul.mubr.bf16.gmra.mxu0 %v6718
        %v6789 = vpop.f32.mrf.mxu0
        %v6790 = vadd.f32 0.0, %v6789
        %v6791 = vpop.f32.mrf.mxu0
        %v6792 = vpop.f32.mrf.mxu0
        %v6793 = vadd.f32 0.0, %v6792
        %v6794 = vpop.f32.mrf.mxu0
        %6795 = vmatprep.mubr.bf16.mxu0 0
        %6796 = vmatmul.mubr.bf16.gmra.mxu0 %v6719
        %v6797 = vpop.f32.mrf.mxu0
        %v6798 = vadd.f32 0.0, %v6797
        %v6799 = vpop.f32.mrf.mxu0
        %v6800 = vpop.f32.mrf.mxu0
        %v6801 = vadd.f32 0.0, %v6800
        %v6802 = vpop.f32.mrf.mxu0
        %6803 = vmatprep.mubr.bf16.mxu0 0
        %6804 = vmatmul.mubr.bf16.gmra.mxu0 %v6720
        %v6805 = vpop.f32.mrf.mxu0
        %v6806 = vadd.f32 0.0, %v6805
        %v6807 = vpop.f32.mrf.mxu0
        %v6808 = vpop.f32.mrf.mxu0
        %v6809 = vadd.f32 0.0, %v6808
        %v6810 = vpop.f32.mrf.mxu0
        %6811 = vmatprep.mubr.bf16.mxu0 0
        %6812 = vmatmul.mubr.bf16.gmra.mxu0 %v6721
        %v6813 = vpop.f32.mrf.mxu0
        %v6814 = vadd.f32 0.0, %v6813
        %v6815 = vpop.f32.mrf.mxu0
        %v6816 = vpop.f32.mrf.mxu0
        %v6817 = vadd.f32 0.0, %v6816
        %v6818 = vpop.f32.mrf.mxu0
        %6819 = vmatprep.mubr.bf16.mxu0 0
        %6820 = vmatmul.mubr.bf16.gmra.mxu0 %v6722
        %v6821 = vpop.f32.mrf.mxu0
        %v6822 = vadd.f32 0.0, %v6821
        %v6823 = vpop.f32.mrf.mxu0
        %v6824 = vpop.f32.mrf.mxu0
        %v6825 = vadd.f32 0.0, %v6824
        %v6826 = vpop.f32.mrf.mxu0
        %6827 = vmatprep.mubr.bf16.mxu0 0
        %6828 = vmatmul.mubr.bf16.gmra.mxu0 %v6723
        %v6829 = vpop.f32.mrf.mxu0
        %v6830 = vadd.f32 0.0, %v6829
        %v6831 = vpop.f32.mrf.mxu0
        %v6832 = vpop.f32.mrf.mxu0
        %v6833 = vadd.f32 0.0, %v6832
        %v6834 = vpop.f32.mrf.mxu0
        %6835 = vmatprep.mubr.bf16.mxu0 0
        %6836 = vmatmul.mubr.bf16.gmra.mxu0 %v6724
        %v6837 = vpop.f32.mrf.mxu0
        %v6838 = vadd.f32 0.0, %v6837
        %v6839 = vpop.f32.mrf.mxu0
        %v6840 = vpop.f32.mrf.mxu0
        %v6841 = vadd.f32 0.0, %v6840
        %v6842 = vpop.f32.mrf.mxu0
        %6843 = vmatprep.mubr.bf16.mxu0 0
        %6844 = vmatmul.mubr.bf16.gmra.mxu0 %v6725
        %v6845 = vpop.f32.mrf.mxu0
        %v6846 = vadd.f32 0.0, %v6845
        %v6847 = vpop.f32.mrf.mxu0
        %v6848 = vpop.f32.mrf.mxu0
        %v6849 = vadd.f32 0.0, %v6848
        %v6850 = vpop.f32.mrf.mxu0
        %6851 = vmatprep.mubr.bf16.mxu0 0
        %6852 = vmatmul.mubr.bf16.gmra.mxu0 %v6726
        %v6853 = vpop.f32.mrf.mxu0
        %v6854 = vadd.f32 0.0, %v6853
        %v6855 = vpop.f32.mrf.mxu0
        %v6856 = vpop.f32.mrf.mxu0
        %v6857 = vadd.f32 0.0, %v6856
        %v6858 = vpop.f32.mrf.mxu0
        %6859 = vmatprep.mubr.bf16.mxu0 0
        %6860 = vmatmul.mubr.bf16.gmra.mxu0 %v6727
        %v6861 = vpop.f32.mrf.mxu0
        %v6862 = vadd.f32 0.0, %v6861
        %v6863 = vpop.f32.mrf.mxu0
        %v6864 = vpop.f32.mrf.mxu0
        %v6865 = vadd.f32 0.0, %v6864
        %v6866 = vpop.f32.mrf.mxu0
        %6867 = vmatprep.mubr.bf16.mxu0 0
        %6868 = vmatmul.mubr.bf16.gmra.mxu0 %v6728
        %v6869 = vpop.f32.mrf.mxu0
        %v6870 = vadd.f32 0.0, %v6869
        %v6871 = vpop.f32.mrf.mxu0
        %v6872 = vpop.f32.mrf.mxu0
        %v6873 = vadd.f32 0.0, %v6872
        %v6874 = vpop.f32.mrf.mxu0
        %6875 = vmatprep.mubr.bf16.mxu0 0
        %6876 = vmatmul.mubr.bf16.gmra.mxu0 %v6729
        %v6877 = vpop.f32.mrf.mxu0
        %v6878 = vadd.f32 0.0, %v6877
        %v6879 = vpop.f32.mrf.mxu0
        %v6880 = vpop.f32.mrf.mxu0
        %v6881 = vadd.f32 0.0, %v6880
        %v6882 = vpop.f32.mrf.mxu0
        %6883 = vmatprep.mubr.bf16.mxu0 0
        %6884 = vmatmul.mubr.bf16.gmra.mxu0 %v6730
        %v6885 = vpop.f32.mrf.mxu0
        %v6886 = vadd.f32 0.0, %v6885
        %v6887 = vpop.f32.mrf.mxu0
        %v6888 = vpop.f32.mrf.mxu0
        %v6889 = vadd.f32 0.0, %v6888
        %v6890 = vpop.f32.mrf.mxu0
        %6891 = vdwg.mxu0
        %s6892 = scalar_lea.vmem %s1, 448
        %v6893 = vld [vmem:[%s6892] sm:$0xf]
        %v6894 = vld [vmem:[%s6892 + $0x4] sm:$0xf]
        %v6895 = vld [vmem:[%s6892 + $0x8] sm:$0xf]
        %v6896 = vld [vmem:[%s6892 + $0xc] sm:$0xf]
        %v6897 = vld [vmem:[%s6892 + $0x10] sm:$0xf]
        %v6898 = vld [vmem:[%s6892 + $0x14] sm:$0xf]
        %v6899 = vld [vmem:[%s6892 + $0x18] sm:$0xf]
        %v6900 = vld [vmem:[%s6892 + $0x1c] sm:$0xf]
        %v6901 = vld [vmem:[%s6892 + $0x20] sm:$0xf]
        %v6902 = vld [vmem:[%s6892 + $0x24] sm:$0xf]
        %v6903 = vld [vmem:[%s6892 + $0x28] sm:$0xf]
        %v6904 = vld [vmem:[%s6892 + $0x2c] sm:$0xf]
        %v6905 = vld [vmem:[%s6892 + $0x30] sm:$0xf]
        %v6906 = vld [vmem:[%s6892 + $0x34] sm:$0xf]
        %v6907 = vld [vmem:[%s6892 + $0x38] sm:$0xf]
        %v6908 = vld [vmem:[%s6892 + $0x3c] sm:$0xf]
        %v6925 = vunpack.c.l.b16 %v6893
        %v6926 = vunpack.c.l.b16 %v6894
        %v6927 = vunpack.c.l.b16 %v6895
        %v6928 = vunpack.c.l.b16 %v6896
        %v6929 = vunpack.c.l.b16 %v6897
        %v6930 = vunpack.c.l.b16 %v6898
        %v6931 = vunpack.c.l.b16 %v6899
        %v6932 = vunpack.c.l.b16 %v6900
        %v6933 = vunpack.c.l.b16 %v6901
        %v6934 = vunpack.c.l.b16 %v6902
        %v6935 = vunpack.c.l.b16 %v6903
        %v6936 = vunpack.c.l.b16 %v6904
        %v6937 = vunpack.c.l.b16 %v6905
        %v6938 = vunpack.c.l.b16 %v6906
        %v6939 = vunpack.c.l.b16 %v6907
        %v6940 = vunpack.c.l.b16 %v6908
        %v6941 = vpack.c.b16 %v6926, %v6925
        %v6942 = vpack.c.b16 %v6928, %v6927
        %v6943 = vpack.c.b16 %v6930, %v6929
        %v6944 = vpack.c.b16 %v6932, %v6931
        %v6945 = vpack.c.b16 %v6934, %v6933
        %v6946 = vpack.c.b16 %v6936, %v6935
        %v6947 = vpack.c.b16 %v6938, %v6937
        %v6948 = vpack.c.b16 %v6940, %v6939
        %6957 = vmatprep.subr.bf16.mxu0 0
        %6958 = vmatpush1.bf16.msra.mxu0 %v6948
        %6959 = vmatprep.subr.bf16.mxu0 0
        %6960 = vmatpush1.bf16.msra.mxu0 %v6947
        %6961 = vmatprep.subr.bf16.mxu0 0
        %6962 = vmatpush1.bf16.msra.mxu0 %v6946
        %6963 = vmatprep.subr.bf16.mxu0 0
        %6964 = vmatpush1.bf16.msra.mxu0 %v6945
        %6965 = vmatprep.subr.bf16.mxu0 0
        %6966 = vmatpush1.bf16.msra.mxu0 %v6944
        %6967 = vmatprep.subr.bf16.mxu0 0
        %6968 = vmatpush1.bf16.msra.mxu0 %v6943
        %6969 = vmatprep.subr.bf16.mxu0 0
        %6970 = vmatpush1.bf16.msra.mxu0 %v6942
        %6971 = vmatprep.subr.bf16.mxu0 0
        %6972 = vmatpush1.bf16.msra.mxu0 %v6941
        %6973 = vmatprep.subr.bf16.mxu0 0
        %6974 = vmatpush2.bf16.msra.mxu0 0
        %6975 = vmatprep.subr.bf16.mxu0 0
        %6976 = vmatpush2.bf16.msra.mxu0 0
        %6977 = vmatprep.subr.bf16.mxu0 0
        %6978 = vmatpush2.bf16.msra.mxu0 0
        %6979 = vmatprep.subr.bf16.mxu0 0
        %6980 = vmatpush2.bf16.msra.mxu0 0
        %6981 = vmatprep.subr.bf16.mxu0 0
        %6982 = vmatpush2.bf16.msra.mxu0 0
        %6983 = vmatprep.subr.bf16.mxu0 0
        %6984 = vmatpush2.bf16.msra.mxu0 0
        %6985 = vmatprep.subr.bf16.mxu0 0
        %6986 = vmatpush2.bf16.msra.mxu0 0
        %6987 = vmatprep.subr.bf16.mxu0 0
        %6988 = vmatpush2.bf16.msra.mxu0 0
        %6989 = vmatprep.mubr.bf16.mxu0 0
        %6990 = vmatmul.mubr.bf16.gmra.mxu0 %v4342
        %v6991 = vpop.f32.mrf.mxu0
        %v6992 = vadd.f32 0.0, %v6991
        %v6993 = vpop.f32.mrf.mxu0
        %v6994 = vpop.f32.mrf.mxu0
        %v6995 = vadd.f32 0.0, %v6994
        %v6996 = vpop.f32.mrf.mxu0
        %6997 = vmatprep.mubr.bf16.mxu0 0
        %6998 = vmatmul.mubr.bf16.gmra.mxu0 %v4343
        %v6999 = vpop.f32.mrf.mxu0
        %v7000 = vadd.f32 0.0, %v6999
        %v7001 = vpop.f32.mrf.mxu0
        %v7002 = vpop.f32.mrf.mxu0
        %v7003 = vadd.f32 0.0, %v7002
        %v7004 = vpop.f32.mrf.mxu0
        %7005 = vmatprep.mubr.bf16.mxu0 0
        %7006 = vmatmul.mubr.bf16.gmra.mxu0 %v4344
        %v7007 = vpop.f32.mrf.mxu0
        %v7008 = vadd.f32 0.0, %v7007
        %v7009 = vpop.f32.mrf.mxu0
        %v7010 = vpop.f32.mrf.mxu0
        %v7011 = vadd.f32 0.0, %v7010
        %v7012 = vpop.f32.mrf.mxu0
        %7013 = vmatprep.mubr.bf16.mxu0 0
        %7014 = vmatmul.mubr.bf16.gmra.mxu0 %v4345
        %v7015 = vpop.f32.mrf.mxu0
        %v7016 = vadd.f32 0.0, %v7015
        %v7017 = vpop.f32.mrf.mxu0
        %v7018 = vpop.f32.mrf.mxu0
        %v7019 = vadd.f32 0.0, %v7018
        %v7020 = vpop.f32.mrf.mxu0
        %7021 = vmatprep.mubr.bf16.mxu0 0
        %7022 = vmatmul.mubr.bf16.gmra.mxu0 %v4346
        %v7023 = vpop.f32.mrf.mxu0
        %v7024 = vadd.f32 0.0, %v7023
        %v7025 = vpop.f32.mrf.mxu0
        %v7026 = vpop.f32.mrf.mxu0
        %v7027 = vadd.f32 0.0, %v7026
        %v7028 = vpop.f32.mrf.mxu0
        %7029 = vmatprep.mubr.bf16.mxu0 0
        %7030 = vmatmul.mubr.bf16.gmra.mxu0 %v4347
        %v7031 = vpop.f32.mrf.mxu0
        %v7032 = vadd.f32 0.0, %v7031
        %v7033 = vpop.f32.mrf.mxu0
        %v7034 = vpop.f32.mrf.mxu0
        %v7035 = vadd.f32 0.0, %v7034
        %v7036 = vpop.f32.mrf.mxu0
        %7037 = vmatprep.mubr.bf16.mxu0 0
        %7038 = vmatmul.mubr.bf16.gmra.mxu0 %v4348
        %v7039 = vpop.f32.mrf.mxu0
        %v7040 = vadd.f32 0.0, %v7039
        %v7041 = vpop.f32.mrf.mxu0
        %v7042 = vpop.f32.mrf.mxu0
        %v7043 = vadd.f32 0.0, %v7042
        %v7044 = vpop.f32.mrf.mxu0
        %7045 = vmatprep.mubr.bf16.mxu0 0
        %7046 = vmatmul.mubr.bf16.gmra.mxu0 %v4349
        %v7047 = vpop.f32.mrf.mxu0
        %v7048 = vadd.f32 0.0, %v7047
        %v7049 = vpop.f32.mrf.mxu0
        %v7050 = vpop.f32.mrf.mxu0
        %v7051 = vadd.f32 0.0, %v7050
        %v7052 = vpop.f32.mrf.mxu0
        %7053 = vmatprep.mubr.bf16.mxu0 0
        %7054 = vmatmul.mubr.bf16.gmra.mxu0 %v4350
        %v7055 = vpop.f32.mrf.mxu0
        %v7056 = vadd.f32 0.0, %v7055
        %v7057 = vpop.f32.mrf.mxu0
        %v7058 = vpop.f32.mrf.mxu0
        %v7059 = vadd.f32 0.0, %v7058
        %v7060 = vpop.f32.mrf.mxu0
        %7061 = vmatprep.mubr.bf16.mxu0 0
        %7062 = vmatmul.mubr.bf16.gmra.mxu0 %v4351
        %v7063 = vpop.f32.mrf.mxu0
        %v7064 = vadd.f32 0.0, %v7063
        %v7065 = vpop.f32.mrf.mxu0
        %v7066 = vpop.f32.mrf.mxu0
        %v7067 = vadd.f32 0.0, %v7066
        %v7068 = vpop.f32.mrf.mxu0
        %7069 = vmatprep.mubr.bf16.mxu0 0
        %7070 = vmatmul.mubr.bf16.gmra.mxu0 %v4352
        %v7071 = vpop.f32.mrf.mxu0
        %v7072 = vadd.f32 0.0, %v7071
        %v7073 = vpop.f32.mrf.mxu0
        %v7074 = vpop.f32.mrf.mxu0
        %v7075 = vadd.f32 0.0, %v7074
        %v7076 = vpop.f32.mrf.mxu0
        %7077 = vmatprep.mubr.bf16.mxu0 0
        %7078 = vmatmul.mubr.bf16.gmra.mxu0 %v4353
        %v7079 = vpop.f32.mrf.mxu0
        %v7080 = vadd.f32 0.0, %v7079
        %v7081 = vpop.f32.mrf.mxu0
        %v7082 = vpop.f32.mrf.mxu0
        %v7083 = vadd.f32 0.0, %v7082
        %v7084 = vpop.f32.mrf.mxu0
        %7085 = vmatprep.mubr.bf16.mxu0 0
        %7086 = vmatmul.mubr.bf16.gmra.mxu0 %v4354
        %v7087 = vpop.f32.mrf.mxu0
        %v7088 = vadd.f32 0.0, %v7087
        %v7089 = vpop.f32.mrf.mxu0
        %v7090 = vpop.f32.mrf.mxu0
        %v7091 = vadd.f32 0.0, %v7090
        %v7092 = vpop.f32.mrf.mxu0
        %7093 = vmatprep.mubr.bf16.mxu0 0
        %7094 = vmatmul.mubr.bf16.gmra.mxu0 %v4355
        %v7095 = vpop.f32.mrf.mxu0
        %v7096 = vadd.f32 0.0, %v7095
        %v7097 = vpop.f32.mrf.mxu0
        %v7098 = vpop.f32.mrf.mxu0
        %v7099 = vadd.f32 0.0, %v7098
        %v7100 = vpop.f32.mrf.mxu0
        %7101 = vmatprep.mubr.bf16.mxu0 0
        %7102 = vmatmul.mubr.bf16.gmra.mxu0 %v4356
        %v7103 = vpop.f32.mrf.mxu0
        %v7104 = vadd.f32 0.0, %v7103
        %v7105 = vpop.f32.mrf.mxu0
        %v7106 = vpop.f32.mrf.mxu0
        %v7107 = vadd.f32 0.0, %v7106
        %v7108 = vpop.f32.mrf.mxu0
        %7109 = vmatprep.mubr.bf16.mxu0 0
        %7110 = vmatmul.mubr.bf16.gmra.mxu0 %v4357
        %v7111 = vpop.f32.mrf.mxu0
        %v7112 = vadd.f32 0.0, %v7111
        %v7113 = vpop.f32.mrf.mxu0
        %v7114 = vpop.f32.mrf.mxu0
        %v7115 = vadd.f32 0.0, %v7114
        %v7116 = vpop.f32.mrf.mxu0
        %7117 = vdwg.mxu0
        %v7118 = vpack.c.bf16 %v6995, %v6992
        %v7119 = vpack.c.bf16 %v7003, %v7000
        %v7120 = vpack.c.bf16 %v7011, %v7008
        %v7121 = vpack.c.bf16 %v7019, %v7016
        %v7122 = vpack.c.bf16 %v7027, %v7024
        %v7123 = vpack.c.bf16 %v7035, %v7032
        %v7124 = vpack.c.bf16 %v7043, %v7040
        %v7125 = vpack.c.bf16 %v7051, %v7048
        %v7126 = vpack.c.bf16 %v7059, %v7056
        %v7127 = vpack.c.bf16 %v7067, %v7064
        %v7128 = vpack.c.bf16 %v7075, %v7072
        %v7129 = vpack.c.bf16 %v7083, %v7080
        %v7130 = vpack.c.bf16 %v7091, %v7088
        %v7131 = vpack.c.bf16 %v7099, %v7096
        %v7132 = vpack.c.bf16 %v7107, %v7104
        %v7133 = vpack.c.bf16 %v7115, %v7112
        %s7134 = scalar_lea.vmem %s2, 448
        %v7135 = vld [vmem:[%s7134] sm:$0xf]
        %v7136 = vld [vmem:[%s7134 + $0x4] sm:$0xf]
        %v7137 = vld [vmem:[%s7134 + $0x8] sm:$0xf]
        %v7138 = vld [vmem:[%s7134 + $0xc] sm:$0xf]
        %v7139 = vld [vmem:[%s7134 + $0x10] sm:$0xf]
        %v7140 = vld [vmem:[%s7134 + $0x14] sm:$0xf]
        %v7141 = vld [vmem:[%s7134 + $0x18] sm:$0xf]
        %v7142 = vld [vmem:[%s7134 + $0x1c] sm:$0xf]
        %v7143 = vld [vmem:[%s7134 + $0x20] sm:$0xf]
        %v7144 = vld [vmem:[%s7134 + $0x24] sm:$0xf]
        %v7145 = vld [vmem:[%s7134 + $0x28] sm:$0xf]
        %v7146 = vld [vmem:[%s7134 + $0x2c] sm:$0xf]
        %v7147 = vld [vmem:[%s7134 + $0x30] sm:$0xf]
        %v7148 = vld [vmem:[%s7134 + $0x34] sm:$0xf]
        %v7149 = vld [vmem:[%s7134 + $0x38] sm:$0xf]
        %v7150 = vld [vmem:[%s7134 + $0x3c] sm:$0xf]
        %s7151 = scalar_lea.vmem %s3, 7
        %v7152 = vld [vmem:[%s7151] sm:$0x1]
        %v7154 = vlaneseq
        %v7155 = vshrl.u32 %v7154, 7
        %v7156 = vsub.s32 0, %v7155
        %v7157 = vrot.slane %v7152, %v7156
        %v7175 = vunpack.c.l.b16 %v7135
        %v7176 = vunpack.c.l.b16 %v7136
        %v7177 = vunpack.c.l.b16 %v7137
        %v7178 = vunpack.c.l.b16 %v7138
        %v7179 = vunpack.c.l.b16 %v7139
        %v7180 = vunpack.c.l.b16 %v7140
        %v7181 = vunpack.c.l.b16 %v7141
        %v7182 = vunpack.c.l.b16 %v7142
        %v7183 = vunpack.c.l.b16 %v7143
        %v7184 = vunpack.c.l.b16 %v7144
        %v7185 = vunpack.c.l.b16 %v7145
        %v7186 = vunpack.c.l.b16 %v7146
        %v7187 = vunpack.c.l.b16 %v7147
        %v7188 = vunpack.c.l.b16 %v7148
        %v7189 = vunpack.c.l.b16 %v7149
        %v7190 = vunpack.c.l.b16 %v7150
        %v7191 = vpack.c.b16 %v7176, %v7175
        %v7192 = vpack.c.b16 %v7178, %v7177
        %v7193 = vpack.c.b16 %v7180, %v7179
        %v7194 = vpack.c.b16 %v7182, %v7181
        %v7195 = vpack.c.b16 %v7184, %v7183
        %v7196 = vpack.c.b16 %v7186, %v7185
        %v7197 = vpack.c.b16 %v7188, %v7187
        %v7198 = vpack.c.b16 %v7190, %v7189
        %7207 = vmatprep.subr.bf16.mxu0 0
        %7208 = vmatpush1.bf16.msra.mxu0 %v7198
        %7209 = vmatprep.subr.bf16.mxu0 0
        %7210 = vmatpush1.bf16.msra.mxu0 %v7197
        %7211 = vmatprep.subr.bf16.mxu0 0
        %7212 = vmatpush1.bf16.msra.mxu0 %v7196
        %7213 = vmatprep.subr.bf16.mxu0 0
        %7214 = vmatpush1.bf16.msra.mxu0 %v7195
        %7215 = vmatprep.subr.bf16.mxu0 0
        %7216 = vmatpush1.bf16.msra.mxu0 %v7194
        %7217 = vmatprep.subr.bf16.mxu0 0
        %7218 = vmatpush1.bf16.msra.mxu0 %v7193
        %7219 = vmatprep.subr.bf16.mxu0 0
        %7220 = vmatpush1.bf16.msra.mxu0 %v7192
        %7221 = vmatprep.subr.bf16.mxu0 0
        %7222 = vmatpush1.bf16.msra.mxu0 %v7191
        %7223 = vmatprep.subr.bf16.mxu0 0
        %7224 = vmatpush2.bf16.msra.mxu0 0
        %7225 = vmatprep.subr.bf16.mxu0 0
        %7226 = vmatpush2.bf16.msra.mxu0 0
        %7227 = vmatprep.subr.bf16.mxu0 0
        %7228 = vmatpush2.bf16.msra.mxu0 0
        %7229 = vmatprep.subr.bf16.mxu0 0
        %7230 = vmatpush2.bf16.msra.mxu0 0
        %7231 = vmatprep.subr.bf16.mxu0 0
        %7232 = vmatpush2.bf16.msra.mxu0 0
        %7233 = vmatprep.subr.bf16.mxu0 0
        %7234 = vmatpush2.bf16.msra.mxu0 0
        %7235 = vmatprep.subr.bf16.mxu0 0
        %7236 = vmatpush2.bf16.msra.mxu0 0
        %7237 = vmatprep.subr.bf16.mxu0 0
        %7238 = vmatpush2.bf16.msra.mxu0 0
        %7239 = vmatprep.mubr.bf16.mxu0 0
        %7240 = vmatmul.mubr.bf16.gmra.mxu0 %v7118
        %v7241 = vpop.f32.mrf.mxu0
        %v7242 = vadd.f32 %v7157, %v7241
        %v7243 = vpop.f32.mrf.mxu0
        %v7244 = vpop.f32.mrf.mxu0
        %v7245 = vadd.f32 %v7157, %v7244
        %v7246 = vpop.f32.mrf.mxu0
        %7247 = vmatprep.mubr.bf16.mxu0 0
        %7248 = vmatmul.mubr.bf16.gmra.mxu0 %v7119
        %v7249 = vpop.f32.mrf.mxu0
        %v7250 = vadd.f32 %v7157, %v7249
        %v7251 = vpop.f32.mrf.mxu0
        %v7252 = vpop.f32.mrf.mxu0
        %v7253 = vadd.f32 %v7157, %v7252
        %v7254 = vpop.f32.mrf.mxu0
        %7255 = vmatprep.mubr.bf16.mxu0 0
        %7256 = vmatmul.mubr.bf16.gmra.mxu0 %v7120
        %v7257 = vpop.f32.mrf.mxu0
        %v7258 = vadd.f32 %v7157, %v7257
        %v7259 = vpop.f32.mrf.mxu0
        %v7260 = vpop.f32.mrf.mxu0
        %v7261 = vadd.f32 %v7157, %v7260
        %v7262 = vpop.f32.mrf.mxu0
        %7263 = vmatprep.mubr.bf16.mxu0 0
        %7264 = vmatmul.mubr.bf16.gmra.mxu0 %v7121
        %v7265 = vpop.f32.mrf.mxu0
        %v7266 = vadd.f32 %v7157, %v7265
        %v7267 = vpop.f32.mrf.mxu0
        %v7268 = vpop.f32.mrf.mxu0
        %v7269 = vadd.f32 %v7157, %v7268
        %v7270 = vpop.f32.mrf.mxu0
        %7271 = vmatprep.mubr.bf16.mxu0 0
        %7272 = vmatmul.mubr.bf16.gmra.mxu0 %v7122
        %v7273 = vpop.f32.mrf.mxu0
        %v7274 = vadd.f32 %v7157, %v7273
        %v7275 = vpop.f32.mrf.mxu0
        %v7276 = vpop.f32.mrf.mxu0
        %v7277 = vadd.f32 %v7157, %v7276
        %v7278 = vpop.f32.mrf.mxu0
        %7279 = vmatprep.mubr.bf16.mxu0 0
        %7280 = vmatmul.mubr.bf16.gmra.mxu0 %v7123
        %v7281 = vpop.f32.mrf.mxu0
        %v7282 = vadd.f32 %v7157, %v7281
        %v7283 = vpop.f32.mrf.mxu0
        %v7284 = vpop.f32.mrf.mxu0
        %v7285 = vadd.f32 %v7157, %v7284
        %v7286 = vpop.f32.mrf.mxu0
        %7287 = vmatprep.mubr.bf16.mxu0 0
        %7288 = vmatmul.mubr.bf16.gmra.mxu0 %v7124
        %v7289 = vpop.f32.mrf.mxu0
        %v7290 = vadd.f32 %v7157, %v7289
        %v7291 = vpop.f32.mrf.mxu0
        %v7292 = vpop.f32.mrf.mxu0
        %v7293 = vadd.f32 %v7157, %v7292
        %v7294 = vpop.f32.mrf.mxu0
        %7295 = vmatprep.mubr.bf16.mxu0 0
        %7296 = vmatmul.mubr.bf16.gmra.mxu0 %v7125
        %v7297 = vpop.f32.mrf.mxu0
        %v7298 = vadd.f32 %v7157, %v7297
        %v7299 = vpop.f32.mrf.mxu0
        %v7300 = vpop.f32.mrf.mxu0
        %v7301 = vadd.f32 %v7157, %v7300
        %v7302 = vpop.f32.mrf.mxu0
        %7303 = vmatprep.mubr.bf16.mxu0 0
        %7304 = vmatmul.mubr.bf16.gmra.mxu0 %v7126
        %v7305 = vpop.f32.mrf.mxu0
        %v7306 = vadd.f32 %v7157, %v7305
        %v7307 = vpop.f32.mrf.mxu0
        %v7308 = vpop.f32.mrf.mxu0
        %v7309 = vadd.f32 %v7157, %v7308
        %v7310 = vpop.f32.mrf.mxu0
        %7311 = vmatprep.mubr.bf16.mxu0 0
        %7312 = vmatmul.mubr.bf16.gmra.mxu0 %v7127
        %v7313 = vpop.f32.mrf.mxu0
        %v7314 = vadd.f32 %v7157, %v7313
        %v7315 = vpop.f32.mrf.mxu0
        %v7316 = vpop.f32.mrf.mxu0
        %v7317 = vadd.f32 %v7157, %v7316
        %v7318 = vpop.f32.mrf.mxu0
        %7319 = vmatprep.mubr.bf16.mxu0 0
        %7320 = vmatmul.mubr.bf16.gmra.mxu0 %v7128
        %v7321 = vpop.f32.mrf.mxu0
        %v7322 = vadd.f32 %v7157, %v7321
        %v7323 = vpop.f32.mrf.mxu0
        %v7324 = vpop.f32.mrf.mxu0
        %v7325 = vadd.f32 %v7157, %v7324
        %v7326 = vpop.f32.mrf.mxu0
        %7327 = vmatprep.mubr.bf16.mxu0 0
        %7328 = vmatmul.mubr.bf16.gmra.mxu0 %v7129
        %v7329 = vpop.f32.mrf.mxu0
        %v7330 = vadd.f32 %v7157, %v7329
        %v7331 = vpop.f32.mrf.mxu0
        %v7332 = vpop.f32.mrf.mxu0
        %v7333 = vadd.f32 %v7157, %v7332
        %v7334 = vpop.f32.mrf.mxu0
        %7335 = vmatprep.mubr.bf16.mxu0 0
        %7336 = vmatmul.mubr.bf16.gmra.mxu0 %v7130
        %v7337 = vpop.f32.mrf.mxu0
        %v7338 = vadd.f32 %v7157, %v7337
        %v7339 = vpop.f32.mrf.mxu0
        %v7340 = vpop.f32.mrf.mxu0
        %v7341 = vadd.f32 %v7157, %v7340
        %v7342 = vpop.f32.mrf.mxu0
        %7343 = vmatprep.mubr.bf16.mxu0 0
        %7344 = vmatmul.mubr.bf16.gmra.mxu0 %v7131
        %v7345 = vpop.f32.mrf.mxu0
        %v7346 = vadd.f32 %v7157, %v7345
        %v7347 = vpop.f32.mrf.mxu0
        %v7348 = vpop.f32.mrf.mxu0
        %v7349 = vadd.f32 %v7157, %v7348
        %v7350 = vpop.f32.mrf.mxu0
        %7351 = vmatprep.mubr.bf16.mxu0 0
        %7352 = vmatmul.mubr.bf16.gmra.mxu0 %v7132
        %v7353 = vpop.f32.mrf.mxu0
        %v7354 = vadd.f32 %v7157, %v7353
        %v7355 = vpop.f32.mrf.mxu0
        %v7356 = vpop.f32.mrf.mxu0
        %v7357 = vadd.f32 %v7157, %v7356
        %v7358 = vpop.f32.mrf.mxu0
        %7359 = vmatprep.mubr.bf16.mxu0 0
        %7360 = vmatmul.mubr.bf16.gmra.mxu0 %v7133
        %v7361 = vpop.f32.mrf.mxu0
        %v7362 = vadd.f32 %v7157, %v7361
        %v7363 = vpop.f32.mrf.mxu0
        %v7364 = vpop.f32.mrf.mxu0
        %v7365 = vadd.f32 %v7157, %v7364
        %v7366 = vpop.f32.mrf.mxu0
        %7367 = vdwg.mxu0
        %vm7368 = vcmp.gt.f32.partialorder %v7242, 0.0
        %vm7369 = vcmp.gt.f32.partialorder %v7245, 0.0
        %vm7370 = vcmp.gt.f32.partialorder %v7250, 0.0
        %vm7371 = vcmp.gt.f32.partialorder %v7253, 0.0
        %vm7372 = vcmp.gt.f32.partialorder %v7258, 0.0
        %vm7373 = vcmp.gt.f32.partialorder %v7261, 0.0
        %vm7374 = vcmp.gt.f32.partialorder %v7266, 0.0
        %vm7375 = vcmp.gt.f32.partialorder %v7269, 0.0
        %vm7376 = vcmp.gt.f32.partialorder %v7274, 0.0
        %vm7377 = vcmp.gt.f32.partialorder %v7277, 0.0
        %vm7378 = vcmp.gt.f32.partialorder %v7282, 0.0
        %vm7379 = vcmp.gt.f32.partialorder %v7285, 0.0
        %vm7380 = vcmp.gt.f32.partialorder %v7290, 0.0
        %vm7381 = vcmp.gt.f32.partialorder %v7293, 0.0
        %vm7382 = vcmp.gt.f32.partialorder %v7298, 0.0
        %vm7383 = vcmp.gt.f32.partialorder %v7301, 0.0
        %vm7384 = vcmp.gt.f32.partialorder %v7306, 0.0
        %vm7385 = vcmp.gt.f32.partialorder %v7309, 0.0
        %vm7386 = vcmp.gt.f32.partialorder %v7314, 0.0
        %vm7387 = vcmp.gt.f32.partialorder %v7317, 0.0
        %vm7388 = vcmp.gt.f32.partialorder %v7322, 0.0
        %vm7389 = vcmp.gt.f32.partialorder %v7325, 0.0
        %vm7390 = vcmp.gt.f32.partialorder %v7330, 0.0
        %vm7391 = vcmp.gt.f32.partialorder %v7333, 0.0
        %vm7392 = vcmp.gt.f32.partialorder %v7338, 0.0
        %vm7393 = vcmp.gt.f32.partialorder %v7341, 0.0
        %vm7394 = vcmp.gt.f32.partialorder %v7346, 0.0
        %vm7395 = vcmp.gt.f32.partialorder %v7349, 0.0
        %vm7396 = vcmp.gt.f32.partialorder %v7354, 0.0
        %vm7397 = vcmp.gt.f32.partialorder %v7357, 0.0
        %vm7398 = vcmp.gt.f32.partialorder %v7362, 0.0
        %vm7399 = vcmp.gt.f32.partialorder %v7365, 0.0
        %v7400 = vmin.f32 %v7242, 0.0
        %v7401 = vmin.f32 %v7245, 0.0
        %v7402 = vmin.f32 %v7250, 0.0
        %v7403 = vmin.f32 %v7253, 0.0
        %v7404 = vmin.f32 %v7258, 0.0
        %v7405 = vmin.f32 %v7261, 0.0
        %v7406 = vmin.f32 %v7266, 0.0
        %v7407 = vmin.f32 %v7269, 0.0
        %v7408 = vmin.f32 %v7274, 0.0
        %v7409 = vmin.f32 %v7277, 0.0
        %v7410 = vmin.f32 %v7282, 0.0
        %v7411 = vmin.f32 %v7285, 0.0
        %v7412 = vmin.f32 %v7290, 0.0
        %v7413 = vmin.f32 %v7293, 0.0
        %v7414 = vmin.f32 %v7298, 0.0
        %v7415 = vmin.f32 %v7301, 0.0
        %v7416 = vmin.f32 %v7306, 0.0
        %v7417 = vmin.f32 %v7309, 0.0
        %v7418 = vmin.f32 %v7314, 0.0
        %v7419 = vmin.f32 %v7317, 0.0
        %v7420 = vmin.f32 %v7322, 0.0
        %v7421 = vmin.f32 %v7325, 0.0
        %v7422 = vmin.f32 %v7330, 0.0
        %v7423 = vmin.f32 %v7333, 0.0
        %v7424 = vmin.f32 %v7338, 0.0
        %v7425 = vmin.f32 %v7341, 0.0
        %v7426 = vmin.f32 %v7346, 0.0
        %v7427 = vmin.f32 %v7349, 0.0
        %v7428 = vmin.f32 %v7354, 0.0
        %v7429 = vmin.f32 %v7357, 0.0
        %v7430 = vmin.f32 %v7362, 0.0
        %v7431 = vmin.f32 %v7365, 0.0
        %v7432 = vmul.f32 %v7400, 1.442695
        %v7433 = vpow.pop %v7432
        %v7434 = vmul.f32 %v7401, 1.442695
        %v7435 = vpow.pop %v7434
        %v7436 = vmul.f32 %v7402, 1.442695
        %v7437 = vpow.pop %v7436
        %v7438 = vmul.f32 %v7403, 1.442695
        %v7439 = vpow.pop %v7438
        %v7440 = vmul.f32 %v7404, 1.442695
        %v7441 = vpow.pop %v7440
        %v7442 = vmul.f32 %v7405, 1.442695
        %v7443 = vpow.pop %v7442
        %v7444 = vmul.f32 %v7406, 1.442695
        %v7445 = vpow.pop %v7444
        %v7446 = vmul.f32 %v7407, 1.442695
        %v7447 = vpow.pop %v7446
        %v7448 = vmul.f32 %v7408, 1.442695
        %v7449 = vpow.pop %v7448
        %v7450 = vmul.f32 %v7409, 1.442695
        %v7451 = vpow.pop %v7450
        %v7452 = vmul.f32 %v7410, 1.442695
        %v7453 = vpow.pop %v7452
        %v7454 = vmul.f32 %v7411, 1.442695
        %v7455 = vpow.pop %v7454
        %v7456 = vmul.f32 %v7412, 1.442695
        %v7457 = vpow.pop %v7456
        %v7458 = vmul.f32 %v7413, 1.442695
        %v7459 = vpow.pop %v7458
        %v7460 = vmul.f32 %v7414, 1.442695
        %v7461 = vpow.pop %v7460
        %v7462 = vmul.f32 %v7415, 1.442695
        %v7463 = vpow.pop %v7462
        %v7464 = vmul.f32 %v7416, 1.442695
        %v7465 = vpow.pop %v7464
        %v7466 = vmul.f32 %v7417, 1.442695
        %v7467 = vpow.pop %v7466
        %v7468 = vmul.f32 %v7418, 1.442695
        %v7469 = vpow.pop %v7468
        %v7470 = vmul.f32 %v7419, 1.442695
        %v7471 = vpow.pop %v7470
        %v7472 = vmul.f32 %v7420, 1.442695
        %v7473 = vpow.pop %v7472
        %v7474 = vmul.f32 %v7421, 1.442695
        %v7475 = vpow.pop %v7474
        %v7476 = vmul.f32 %v7422, 1.442695
        %v7477 = vpow.pop %v7476
        %v7478 = vmul.f32 %v7423, 1.442695
        %v7479 = vpow.pop %v7478
        %v7480 = vmul.f32 %v7424, 1.442695
        %v7481 = vpow.pop %v7480
        %v7482 = vmul.f32 %v7425, 1.442695
        %v7483 = vpow.pop %v7482
        %v7484 = vmul.f32 %v7426, 1.442695
        %v7485 = vpow.pop %v7484
        %v7486 = vmul.f32 %v7427, 1.442695
        %v7487 = vpow.pop %v7486
        %v7488 = vmul.f32 %v7428, 1.442695
        %v7489 = vpow.pop %v7488
        %v7490 = vmul.f32 %v7429, 1.442695
        %v7491 = vpow.pop %v7490
        %v7492 = vmul.f32 %v7430, 1.442695
        %v7493 = vpow.pop %v7492
        %v7494 = vmul.f32 %v7431, 1.442695
        %v7495 = vpow.pop %v7494
        %v7496 = vsub.f32 %v7433, 1.0
        %v7497 = vsub.f32 %v7435, 1.0
        %v7498 = vsub.f32 %v7437, 1.0
        %v7499 = vsub.f32 %v7439, 1.0
        %v7500 = vsub.f32 %v7441, 1.0
        %v7501 = vsub.f32 %v7443, 1.0
        %v7502 = vsub.f32 %v7445, 1.0
        %v7503 = vsub.f32 %v7447, 1.0
        %v7504 = vsub.f32 %v7449, 1.0
        %v7505 = vsub.f32 %v7451, 1.0
        %v7506 = vsub.f32 %v7453, 1.0
        %v7507 = vsub.f32 %v7455, 1.0
        %v7508 = vsub.f32 %v7457, 1.0
        %v7509 = vsub.f32 %v7459, 1.0
        %v7510 = vsub.f32 %v7461, 1.0
        %v7511 = vsub.f32 %v7463, 1.0
        %v7512 = vsub.f32 %v7465, 1.0
        %v7513 = vsub.f32 %v7467, 1.0
        %v7514 = vsub.f32 %v7469, 1.0
        %v7515 = vsub.f32 %v7471, 1.0
        %v7516 = vsub.f32 %v7473, 1.0
        %v7517 = vsub.f32 %v7475, 1.0
        %v7518 = vsub.f32 %v7477, 1.0
        %v7519 = vsub.f32 %v7479, 1.0
        %v7520 = vsub.f32 %v7481, 1.0
        %v7521 = vsub.f32 %v7483, 1.0
        %v7522 = vsub.f32 %v7485, 1.0
        %v7523 = vsub.f32 %v7487, 1.0
        %v7524 = vsub.f32 %v7489, 1.0
        %v7525 = vsub.f32 %v7491, 1.0
        %v7526 = vsub.f32 %v7493, 1.0
        %v7527 = vsub.f32 %v7495, 1.0
        %v7528 = vsel %vm7368, %v7242, %v7496
        %v7529 = vsel %vm7369, %v7245, %v7497
        %v7530 = vsel %vm7370, %v7250, %v7498
        %v7531 = vsel %vm7371, %v7253, %v7499
        %v7532 = vsel %vm7372, %v7258, %v7500
        %v7533 = vsel %vm7373, %v7261, %v7501
        %v7534 = vsel %vm7374, %v7266, %v7502
        %v7535 = vsel %vm7375, %v7269, %v7503
        %v7536 = vsel %vm7376, %v7274, %v7504
        %v7537 = vsel %vm7377, %v7277, %v7505
        %v7538 = vsel %vm7378, %v7282, %v7506
        %v7539 = vsel %vm7379, %v7285, %v7507
        %v7540 = vsel %vm7380, %v7290, %v7508
        %v7541 = vsel %vm7381, %v7293, %v7509
        %v7542 = vsel %vm7382, %v7298, %v7510
        %v7543 = vsel %vm7383, %v7301, %v7511
        %v7544 = vsel %vm7384, %v7306, %v7512
        %v7545 = vsel %vm7385, %v7309, %v7513
        %v7546 = vsel %vm7386, %v7314, %v7514
        %v7547 = vsel %vm7387, %v7317, %v7515
        %v7548 = vsel %vm7388, %v7322, %v7516
        %v7549 = vsel %vm7389, %v7325, %v7517
        %v7550 = vsel %vm7390, %v7330, %v7518
        %v7551 = vsel %vm7391, %v7333, %v7519
        %v7552 = vsel %vm7392, %v7338, %v7520
        %v7553 = vsel %vm7393, %v7341, %v7521
        %v7554 = vsel %vm7394, %v7346, %v7522
        %v7555 = vsel %vm7395, %v7349, %v7523
        %v7556 = vsel %vm7396, %v7354, %v7524
        %v7557 = vsel %vm7397, %v7357, %v7525
        %v7558 = vsel %vm7398, %v7362, %v7526
        %v7559 = vsel %vm7399, %v7365, %v7527
        %v7560 = vpack.c.bf16 %v7529, %v7528
        %v7561 = vpack.c.bf16 %v7531, %v7530
        %v7562 = vpack.c.bf16 %v7533, %v7532
        %v7563 = vpack.c.bf16 %v7535, %v7534
        %v7564 = vpack.c.bf16 %v7537, %v7536
        %v7565 = vpack.c.bf16 %v7539, %v7538
        %v7566 = vpack.c.bf16 %v7541, %v7540
        %v7567 = vpack.c.bf16 %v7543, %v7542
        %v7568 = vpack.c.bf16 %v7545, %v7544
        %v7569 = vpack.c.bf16 %v7547, %v7546
        %v7570 = vpack.c.bf16 %v7549, %v7548
        %v7571 = vpack.c.bf16 %v7551, %v7550
        %v7572 = vpack.c.bf16 %v7553, %v7552
        %v7573 = vpack.c.bf16 %v7555, %v7554
        %v7574 = vpack.c.bf16 %v7557, %v7556
        %v7575 = vpack.c.bf16 %v7559, %v7558
        %7576 = vmatprep.subr.bf16.mxu0 0
        %7577 = vmatpush1.bf16.msra.mxu0 %v1556
        %7578 = vmatprep.subr.bf16.mxu0 0
        %7579 = vmatpush1.bf16.msra.mxu0 %v1555
        %7580 = vmatprep.subr.bf16.mxu0 0
        %7581 = vmatpush1.bf16.msra.mxu0 %v1554
        %7582 = vmatprep.subr.bf16.mxu0 0
        %7583 = vmatpush1.bf16.msra.mxu0 %v1553
        %7584 = vmatprep.subr.bf16.mxu0 0
        %7585 = vmatpush1.bf16.msra.mxu0 %v1552
        %7586 = vmatprep.subr.bf16.mxu0 0
        %7587 = vmatpush1.bf16.msra.mxu0 %v1551
        %7588 = vmatprep.subr.bf16.mxu0 0
        %7589 = vmatpush1.bf16.msra.mxu0 %v1550
        %7590 = vmatprep.subr.bf16.mxu0 0
        %7591 = vmatpush1.bf16.msra.mxu0 %v1549
        %7592 = vmatprep.subr.bf16.mxu0 0
        %7593 = vmatpush2.bf16.msra.mxu0 0
        %7594 = vmatprep.subr.bf16.mxu0 0
        %7595 = vmatpush2.bf16.msra.mxu0 0
        %7596 = vmatprep.subr.bf16.mxu0 0
        %7597 = vmatpush2.bf16.msra.mxu0 0
        %7598 = vmatprep.subr.bf16.mxu0 0
        %7599 = vmatpush2.bf16.msra.mxu0 0
        %7600 = vmatprep.subr.bf16.mxu0 0
        %7601 = vmatpush2.bf16.msra.mxu0 0
        %7602 = vmatprep.subr.bf16.mxu0 0
        %7603 = vmatpush2.bf16.msra.mxu0 0
        %7604 = vmatprep.subr.bf16.mxu0 0
        %7605 = vmatpush2.bf16.msra.mxu0 0
        %7606 = vmatprep.subr.bf16.mxu0 0
        %7607 = vmatpush2.bf16.msra.mxu0 0
        %7608 = vmatprep.mubr.bf16.mxu0 0
        %7609 = vmatmul.mubr.bf16.gmra.mxu0 %v7560
        %v7610 = vpop.f32.mrf.mxu0
        %v7611 = vadd.f32 0.0, %v7610
        %v7612 = vpop.f32.mrf.mxu0
        %v7613 = vpop.f32.mrf.mxu0
        %v7614 = vadd.f32 0.0, %v7613
        %v7615 = vpop.f32.mrf.mxu0
        %7616 = vmatprep.mubr.bf16.mxu0 0
        %7617 = vmatmul.mubr.bf16.gmra.mxu0 %v7561
        %v7618 = vpop.f32.mrf.mxu0
        %v7619 = vadd.f32 0.0, %v7618
        %v7620 = vpop.f32.mrf.mxu0
        %v7621 = vpop.f32.mrf.mxu0
        %v7622 = vadd.f32 0.0, %v7621
        %v7623 = vpop.f32.mrf.mxu0
        %7624 = vmatprep.mubr.bf16.mxu0 0
        %7625 = vmatmul.mubr.bf16.gmra.mxu0 %v7562
        %v7626 = vpop.f32.mrf.mxu0
        %v7627 = vadd.f32 0.0, %v7626
        %v7628 = vpop.f32.mrf.mxu0
        %v7629 = vpop.f32.mrf.mxu0
        %v7630 = vadd.f32 0.0, %v7629
        %v7631 = vpop.f32.mrf.mxu0
        %7632 = vmatprep.mubr.bf16.mxu0 0
        %7633 = vmatmul.mubr.bf16.gmra.mxu0 %v7563
        %v7634 = vpop.f32.mrf.mxu0
        %v7635 = vadd.f32 0.0, %v7634
        %v7636 = vpop.f32.mrf.mxu0
        %v7637 = vpop.f32.mrf.mxu0
        %v7638 = vadd.f32 0.0, %v7637
        %v7639 = vpop.f32.mrf.mxu0
        %7640 = vmatprep.mubr.bf16.mxu0 0
        %7641 = vmatmul.mubr.bf16.gmra.mxu0 %v7564
        %v7642 = vpop.f32.mrf.mxu0
        %v7643 = vadd.f32 0.0, %v7642
        %v7644 = vpop.f32.mrf.mxu0
        %v7645 = vpop.f32.mrf.mxu0
        %v7646 = vadd.f32 0.0, %v7645
        %v7647 = vpop.f32.mrf.mxu0
        %7648 = vmatprep.mubr.bf16.mxu0 0
        %7649 = vmatmul.mubr.bf16.gmra.mxu0 %v7565
        %v7650 = vpop.f32.mrf.mxu0
        %v7651 = vadd.f32 0.0, %v7650
        %v7652 = vpop.f32.mrf.mxu0
        %v7653 = vpop.f32.mrf.mxu0
        %v7654 = vadd.f32 0.0, %v7653
        %v7655 = vpop.f32.mrf.mxu0
        %7656 = vmatprep.mubr.bf16.mxu0 0
        %7657 = vmatmul.mubr.bf16.gmra.mxu0 %v7566
        %v7658 = vpop.f32.mrf.mxu0
        %v7659 = vadd.f32 0.0, %v7658
        %v7660 = vpop.f32.mrf.mxu0
        %v7661 = vpop.f32.mrf.mxu0
        %v7662 = vadd.f32 0.0, %v7661
        %v7663 = vpop.f32.mrf.mxu0
        %7664 = vmatprep.mubr.bf16.mxu0 0
        %7665 = vmatmul.mubr.bf16.gmra.mxu0 %v7567
        %v7666 = vpop.f32.mrf.mxu0
        %v7667 = vadd.f32 0.0, %v7666
        %v7668 = vpop.f32.mrf.mxu0
        %v7669 = vpop.f32.mrf.mxu0
        %v7670 = vadd.f32 0.0, %v7669
        %v7671 = vpop.f32.mrf.mxu0
        %7672 = vmatprep.mubr.bf16.mxu0 0
        %7673 = vmatmul.mubr.bf16.gmra.mxu0 %v7568
        %v7674 = vpop.f32.mrf.mxu0
        %v7675 = vadd.f32 0.0, %v7674
        %v7676 = vpop.f32.mrf.mxu0
        %v7677 = vpop.f32.mrf.mxu0
        %v7678 = vadd.f32 0.0, %v7677
        %v7679 = vpop.f32.mrf.mxu0
        %7680 = vmatprep.mubr.bf16.mxu0 0
        %7681 = vmatmul.mubr.bf16.gmra.mxu0 %v7569
        %v7682 = vpop.f32.mrf.mxu0
        %v7683 = vadd.f32 0.0, %v7682
        %v7684 = vpop.f32.mrf.mxu0
        %v7685 = vpop.f32.mrf.mxu0
        %v7686 = vadd.f32 0.0, %v7685
        %v7687 = vpop.f32.mrf.mxu0
        %7688 = vmatprep.mubr.bf16.mxu0 0
        %7689 = vmatmul.mubr.bf16.gmra.mxu0 %v7570
        %v7690 = vpop.f32.mrf.mxu0
        %v7691 = vadd.f32 0.0, %v7690
        %v7692 = vpop.f32.mrf.mxu0
        %v7693 = vpop.f32.mrf.mxu0
        %v7694 = vadd.f32 0.0, %v7693
        %v7695 = vpop.f32.mrf.mxu0
        %7696 = vmatprep.mubr.bf16.mxu0 0
        %7697 = vmatmul.mubr.bf16.gmra.mxu0 %v7571
        %v7698 = vpop.f32.mrf.mxu0
        %v7699 = vadd.f32 0.0, %v7698
        %v7700 = vpop.f32.mrf.mxu0
        %v7701 = vpop.f32.mrf.mxu0
        %v7702 = vadd.f32 0.0, %v7701
        %v7703 = vpop.f32.mrf.mxu0
        %7704 = vmatprep.mubr.bf16.mxu0 0
        %7705 = vmatmul.mubr.bf16.gmra.mxu0 %v7572
        %v7706 = vpop.f32.mrf.mxu0
        %v7707 = vadd.f32 0.0, %v7706
        %v7708 = vpop.f32.mrf.mxu0
        %v7709 = vpop.f32.mrf.mxu0
        %v7710 = vadd.f32 0.0, %v7709
        %v7711 = vpop.f32.mrf.mxu0
        %7712 = vmatprep.mubr.bf16.mxu0 0
        %7713 = vmatmul.mubr.bf16.gmra.mxu0 %v7573
        %v7714 = vpop.f32.mrf.mxu0
        %v7715 = vadd.f32 0.0, %v7714
        %v7716 = vpop.f32.mrf.mxu0
        %v7717 = vpop.f32.mrf.mxu0
        %v7718 = vadd.f32 0.0, %v7717
        %v7719 = vpop.f32.mrf.mxu0
        %7720 = vmatprep.mubr.bf16.mxu0 0
        %7721 = vmatmul.mubr.bf16.gmra.mxu0 %v7574
        %v7722 = vpop.f32.mrf.mxu0
        %v7723 = vadd.f32 0.0, %v7722
        %v7724 = vpop.f32.mrf.mxu0
        %v7725 = vpop.f32.mrf.mxu0
        %v7726 = vadd.f32 0.0, %v7725
        %v7727 = vpop.f32.mrf.mxu0
        %7728 = vmatprep.mubr.bf16.mxu0 0
        %7729 = vmatmul.mubr.bf16.gmra.mxu0 %v7575
        %v7730 = vpop.f32.mrf.mxu0
        %v7731 = vadd.f32 0.0, %v7730
        %v7732 = vpop.f32.mrf.mxu0
        %v7733 = vpop.f32.mrf.mxu0
        %v7734 = vadd.f32 0.0, %v7733
        %v7735 = vpop.f32.mrf.mxu0
        %7736 = vdwg.mxu0
        %7769 = vrot.lane.b32.xlu0 %v2445, 32
        %v7770 = vpop.permute.xlu0 %7769
        %7771 = vrot.lane.b32.xlu0 %v2448, 32
        %v7772 = vpop.permute.xlu0 %7771
        %7773 = vrot.lane.b32.xlu0 %v2453, 32
        %v7774 = vpop.permute.xlu0 %7773
        %7775 = vrot.lane.b32.xlu0 %v2456, 32
        %v7776 = vpop.permute.xlu0 %7775
        %7777 = vrot.lane.b32.xlu0 %v2461, 32
        %v7778 = vpop.permute.xlu0 %7777
        %7779 = vrot.lane.b32.xlu0 %v2464, 32
        %v7780 = vpop.permute.xlu0 %7779
        %7781 = vrot.lane.b32.xlu0 %v2469, 32
        %v7782 = vpop.permute.xlu0 %7781
        %7783 = vrot.lane.b32.xlu0 %v2472, 32
        %v7784 = vpop.permute.xlu0 %7783
        %7785 = vrot.lane.b32.xlu0 %v2477, 32
        %v7786 = vpop.permute.xlu0 %7785
        %7787 = vrot.lane.b32.xlu0 %v2480, 32
        %v7788 = vpop.permute.xlu0 %7787
        %7789 = vrot.lane.b32.xlu0 %v2485, 32
        %v7790 = vpop.permute.xlu0 %7789
        %7791 = vrot.lane.b32.xlu0 %v2488, 32
        %v7792 = vpop.permute.xlu0 %7791
        %7793 = vrot.lane.b32.xlu0 %v2493, 32
        %v7794 = vpop.permute.xlu0 %7793
        %7795 = vrot.lane.b32.xlu0 %v2496, 32
        %v7796 = vpop.permute.xlu0 %7795
        %7797 = vrot.lane.b32.xlu0 %v2501, 32
        %v7798 = vpop.permute.xlu0 %7797
        %7799 = vrot.lane.b32.xlu0 %v2504, 32
        %v7800 = vpop.permute.xlu0 %7799
        %7801 = vrot.lane.b32.xlu0 %v2509, 32
        %v7802 = vpop.permute.xlu0 %7801
        %7803 = vrot.lane.b32.xlu0 %v2512, 32
        %v7804 = vpop.permute.xlu0 %7803
        %7805 = vrot.lane.b32.xlu0 %v2517, 32
        %v7806 = vpop.permute.xlu0 %7805
        %7807 = vrot.lane.b32.xlu0 %v2520, 32
        %v7808 = vpop.permute.xlu0 %7807
        %7809 = vrot.lane.b32.xlu0 %v2525, 32
        %v7810 = vpop.permute.xlu0 %7809
        %7811 = vrot.lane.b32.xlu0 %v2528, 32
        %v7812 = vpop.permute.xlu0 %7811
        %7813 = vrot.lane.b32.xlu0 %v2533, 32
        %v7814 = vpop.permute.xlu0 %7813
        %7815 = vrot.lane.b32.xlu0 %v2536, 32
        %v7816 = vpop.permute.xlu0 %7815
        %7817 = vrot.lane.b32.xlu0 %v2541, 32
        %v7818 = vpop.permute.xlu0 %7817
        %7819 = vrot.lane.b32.xlu0 %v2544, 32
        %v7820 = vpop.permute.xlu0 %7819
        %7821 = vrot.lane.b32.xlu0 %v2549, 32
        %v7822 = vpop.permute.xlu0 %7821
        %7823 = vrot.lane.b32.xlu0 %v2552, 32
        %v7824 = vpop.permute.xlu0 %7823
        %7825 = vrot.lane.b32.xlu0 %v2557, 32
        %v7826 = vpop.permute.xlu0 %7825
        %7827 = vrot.lane.b32.xlu0 %v2560, 32
        %v7828 = vpop.permute.xlu0 %7827
        %7829 = vrot.lane.b32.xlu0 %v2565, 32
        %v7830 = vpop.permute.xlu0 %7829
        %7831 = vrot.lane.b32.xlu0 %v2568, 32
        %v7832 = vpop.permute.xlu0 %7831
        %7897 = vrot.lane.b32.xlu0 %v3290, 64
        %v7898 = vpop.permute.xlu0 %7897
        %7899 = vrot.lane.b32.xlu0 %v3293, 64
        %v7900 = vpop.permute.xlu0 %7899
        %7901 = vrot.lane.b32.xlu0 %v3298, 64
        %v7902 = vpop.permute.xlu0 %7901
        %7903 = vrot.lane.b32.xlu0 %v3301, 64
        %v7904 = vpop.permute.xlu0 %7903
        %7905 = vrot.lane.b32.xlu0 %v3306, 64
        %v7906 = vpop.permute.xlu0 %7905
        %7907 = vrot.lane.b32.xlu0 %v3309, 64
        %v7908 = vpop.permute.xlu0 %7907
        %7909 = vrot.lane.b32.xlu0 %v3314, 64
        %v7910 = vpop.permute.xlu0 %7909
        %7911 = vrot.lane.b32.xlu0 %v3317, 64
        %v7912 = vpop.permute.xlu0 %7911
        %7913 = vrot.lane.b32.xlu0 %v3322, 64
        %v7914 = vpop.permute.xlu0 %7913
        %7915 = vrot.lane.b32.xlu0 %v3325, 64
        %v7916 = vpop.permute.xlu0 %7915
        %7917 = vrot.lane.b32.xlu0 %v3330, 64
        %v7918 = vpop.permute.xlu0 %7917
        %7919 = vrot.lane.b32.xlu0 %v3333, 64
        %v7920 = vpop.permute.xlu0 %7919
        %7921 = vrot.lane.b32.xlu0 %v3338, 64
        %v7922 = vpop.permute.xlu0 %7921
        %7923 = vrot.lane.b32.xlu0 %v3341, 64
        %v7924 = vpop.permute.xlu0 %7923
        %7925 = vrot.lane.b32.xlu0 %v3346, 64
        %v7926 = vpop.permute.xlu0 %7925
        %7927 = vrot.lane.b32.xlu0 %v3349, 64
        %v7928 = vpop.permute.xlu0 %7927
        %7929 = vrot.lane.b32.xlu0 %v3354, 64
        %v7930 = vpop.permute.xlu0 %7929
        %7931 = vrot.lane.b32.xlu0 %v3357, 64
        %v7932 = vpop.permute.xlu0 %7931
        %7933 = vrot.lane.b32.xlu0 %v3362, 64
        %v7934 = vpop.permute.xlu0 %7933
        %7935 = vrot.lane.b32.xlu0 %v3365, 64
        %v7936 = vpop.permute.xlu0 %7935
        %7937 = vrot.lane.b32.xlu0 %v3370, 64
        %v7938 = vpop.permute.xlu0 %7937
        %7939 = vrot.lane.b32.xlu0 %v3373, 64
        %v7940 = vpop.permute.xlu0 %7939
        %7941 = vrot.lane.b32.xlu0 %v3378, 64
        %v7942 = vpop.permute.xlu0 %7941
        %7943 = vrot.lane.b32.xlu0 %v3381, 64
        %v7944 = vpop.permute.xlu0 %7943
        %7945 = vrot.lane.b32.xlu0 %v3386, 64
        %v7946 = vpop.permute.xlu0 %7945
        %7947 = vrot.lane.b32.xlu0 %v3389, 64
        %v7948 = vpop.permute.xlu0 %7947
        %7949 = vrot.lane.b32.xlu0 %v3394, 64
        %v7950 = vpop.permute.xlu0 %7949
        %7951 = vrot.lane.b32.xlu0 %v3397, 64
        %v7952 = vpop.permute.xlu0 %7951
        %7953 = vrot.lane.b32.xlu0 %v3402, 64
        %v7954 = vpop.permute.xlu0 %7953
        %7955 = vrot.lane.b32.xlu0 %v3405, 64
        %v7956 = vpop.permute.xlu0 %7955
        %7957 = vrot.lane.b32.xlu0 %v3410, 64
        %v7958 = vpop.permute.xlu0 %7957
        %7959 = vrot.lane.b32.xlu0 %v3413, 64
        %v7960 = vpop.permute.xlu0 %7959
        %8025 = vrot.lane.b32.xlu0 %v4135, 96
        %v8026 = vpop.permute.xlu0 %8025
        %8027 = vrot.lane.b32.xlu0 %v4138, 96
        %v8028 = vpop.permute.xlu0 %8027
        %8029 = vrot.lane.b32.xlu0 %v4143, 96
        %v8030 = vpop.permute.xlu0 %8029
        %8031 = vrot.lane.b32.xlu0 %v4146, 96
        %v8032 = vpop.permute.xlu0 %8031
        %8033 = vrot.lane.b32.xlu0 %v4151, 96
        %v8034 = vpop.permute.xlu0 %8033
        %8035 = vrot.lane.b32.xlu0 %v4154, 96
        %v8036 = vpop.permute.xlu0 %8035
        %8037 = vrot.lane.b32.xlu0 %v4159, 96
        %v8038 = vpop.permute.xlu0 %8037
        %8039 = vrot.lane.b32.xlu0 %v4162, 96
        %v8040 = vpop.permute.xlu0 %8039
        %8041 = vrot.lane.b32.xlu0 %v4167, 96
        %v8042 = vpop.permute.xlu0 %8041
        %8043 = vrot.lane.b32.xlu0 %v4170, 96
        %v8044 = vpop.permute.xlu0 %8043
        %8045 = vrot.lane.b32.xlu0 %v4175, 96
        %v8046 = vpop.permute.xlu0 %8045
        %8047 = vrot.lane.b32.xlu0 %v4178, 96
        %v8048 = vpop.permute.xlu0 %8047
        %8049 = vrot.lane.b32.xlu0 %v4183, 96
        %v8050 = vpop.permute.xlu0 %8049
        %8051 = vrot.lane.b32.xlu0 %v4186, 96
        %v8052 = vpop.permute.xlu0 %8051
        %8053 = vrot.lane.b32.xlu0 %v4191, 96
        %v8054 = vpop.permute.xlu0 %8053
        %8055 = vrot.lane.b32.xlu0 %v4194, 96
        %v8056 = vpop.permute.xlu0 %8055
        %8057 = vrot.lane.b32.xlu0 %v4199, 96
        %v8058 = vpop.permute.xlu0 %8057
        %8059 = vrot.lane.b32.xlu0 %v4202, 96
        %v8060 = vpop.permute.xlu0 %8059
        %8061 = vrot.lane.b32.xlu0 %v4207, 96
        %v8062 = vpop.permute.xlu0 %8061
        %8063 = vrot.lane.b32.xlu0 %v4210, 96
        %v8064 = vpop.permute.xlu0 %8063
        %8065 = vrot.lane.b32.xlu0 %v4215, 96
        %v8066 = vpop.permute.xlu0 %8065
        %8067 = vrot.lane.b32.xlu0 %v4218, 96
        %v8068 = vpop.permute.xlu0 %8067
        %8069 = vrot.lane.b32.xlu0 %v4223, 96
        %v8070 = vpop.permute.xlu0 %8069
        %8071 = vrot.lane.b32.xlu0 %v4226, 96
        %v8072 = vpop.permute.xlu0 %8071
        %8073 = vrot.lane.b32.xlu0 %v4231, 96
        %v8074 = vpop.permute.xlu0 %8073
        %8075 = vrot.lane.b32.xlu0 %v4234, 96
        %v8076 = vpop.permute.xlu0 %8075
        %8077 = vrot.lane.b32.xlu0 %v4239, 96
        %v8078 = vpop.permute.xlu0 %8077
        %8079 = vrot.lane.b32.xlu0 %v4242, 96
        %v8080 = vpop.permute.xlu0 %8079
        %8081 = vrot.lane.b32.xlu0 %v4247, 96
        %v8082 = vpop.permute.xlu0 %8081
        %8083 = vrot.lane.b32.xlu0 %v4250, 96
        %v8084 = vpop.permute.xlu0 %8083
        %8085 = vrot.lane.b32.xlu0 %v4255, 96
        %v8086 = vpop.permute.xlu0 %8085
        %8087 = vrot.lane.b32.xlu0 %v4258, 96
        %v8088 = vpop.permute.xlu0 %8087
        %8153 = vrot.lane.b32.xlu0 %v5921, 32
        %v8154 = vpop.permute.xlu0 %8153
        %8155 = vrot.lane.b32.xlu0 %v5924, 32
        %v8156 = vpop.permute.xlu0 %8155
        %8157 = vrot.lane.b32.xlu0 %v5929, 32
        %v8158 = vpop.permute.xlu0 %8157
        %8159 = vrot.lane.b32.xlu0 %v5932, 32
        %v8160 = vpop.permute.xlu0 %8159
        %8161 = vrot.lane.b32.xlu0 %v5937, 32
        %v8162 = vpop.permute.xlu0 %8161
        %8163 = vrot.lane.b32.xlu0 %v5940, 32
        %v8164 = vpop.permute.xlu0 %8163
        %8165 = vrot.lane.b32.xlu0 %v5945, 32
        %v8166 = vpop.permute.xlu0 %8165
        %8167 = vrot.lane.b32.xlu0 %v5948, 32
        %v8168 = vpop.permute.xlu0 %8167
        %8169 = vrot.lane.b32.xlu0 %v5953, 32
        %v8170 = vpop.permute.xlu0 %8169
        %8171 = vrot.lane.b32.xlu0 %v5956, 32
        %v8172 = vpop.permute.xlu0 %8171
        %8173 = vrot.lane.b32.xlu0 %v5961, 32
        %v8174 = vpop.permute.xlu0 %8173
        %8175 = vrot.lane.b32.xlu0 %v5964, 32
        %v8176 = vpop.permute.xlu0 %8175
        %8177 = vrot.lane.b32.xlu0 %v5969, 32
        %v8178 = vpop.permute.xlu0 %8177
        %8179 = vrot.lane.b32.xlu0 %v5972, 32
        %v8180 = vpop.permute.xlu0 %8179
        %8181 = vrot.lane.b32.xlu0 %v5977, 32
        %v8182 = vpop.permute.xlu0 %8181
        %8183 = vrot.lane.b32.xlu0 %v5980, 32
        %v8184 = vpop.permute.xlu0 %8183
        %8185 = vrot.lane.b32.xlu0 %v5985, 32
        %v8186 = vpop.permute.xlu0 %8185
        %8187 = vrot.lane.b32.xlu0 %v5988, 32
        %v8188 = vpop.permute.xlu0 %8187
        %8189 = vrot.lane.b32.xlu0 %v5993, 32
        %v8190 = vpop.permute.xlu0 %8189
        %8191 = vrot.lane.b32.xlu0 %v5996, 32
        %v8192 = vpop.permute.xlu0 %8191
        %8193 = vrot.lane.b32.xlu0 %v6001, 32
        %v8194 = vpop.permute.xlu0 %8193
        %8195 = vrot.lane.b32.xlu0 %v6004, 32
        %v8196 = vpop.permute.xlu0 %8195
        %8197 = vrot.lane.b32.xlu0 %v6009, 32
        %v8198 = vpop.permute.xlu0 %8197
        %8199 = vrot.lane.b32.xlu0 %v6012, 32
        %v8200 = vpop.permute.xlu0 %8199
        %8201 = vrot.lane.b32.xlu0 %v6017, 32
        %v8202 = vpop.permute.xlu0 %8201
        %8203 = vrot.lane.b32.xlu0 %v6020, 32
        %v8204 = vpop.permute.xlu0 %8203
        %8205 = vrot.lane.b32.xlu0 %v6025, 32
        %v8206 = vpop.permute.xlu0 %8205
        %8207 = vrot.lane.b32.xlu0 %v6028, 32
        %v8208 = vpop.permute.xlu0 %8207
        %8209 = vrot.lane.b32.xlu0 %v6033, 32
        %v8210 = vpop.permute.xlu0 %8209
        %8211 = vrot.lane.b32.xlu0 %v6036, 32
        %v8212 = vpop.permute.xlu0 %8211
        %8213 = vrot.lane.b32.xlu0 %v6041, 32
        %v8214 = vpop.permute.xlu0 %8213
        %8215 = vrot.lane.b32.xlu0 %v6044, 32
        %v8216 = vpop.permute.xlu0 %8215
        %8281 = vrot.lane.b32.xlu0 %v6766, 64
        %v8282 = vpop.permute.xlu0 %8281
        %8283 = vrot.lane.b32.xlu0 %v6769, 64
        %v8284 = vpop.permute.xlu0 %8283
        %8285 = vrot.lane.b32.xlu0 %v6774, 64
        %v8286 = vpop.permute.xlu0 %8285
        %8287 = vrot.lane.b32.xlu0 %v6777, 64
        %v8288 = vpop.permute.xlu0 %8287
        %8289 = vrot.lane.b32.xlu0 %v6782, 64
        %v8290 = vpop.permute.xlu0 %8289
        %8291 = vrot.lane.b32.xlu0 %v6785, 64
        %v8292 = vpop.permute.xlu0 %8291
        %8293 = vrot.lane.b32.xlu0 %v6790, 64
        %v8294 = vpop.permute.xlu0 %8293
        %8295 = vrot.lane.b32.xlu0 %v6793, 64
        %v8296 = vpop.permute.xlu0 %8295
        %8297 = vrot.lane.b32.xlu0 %v6798, 64
        %v8298 = vpop.permute.xlu0 %8297
        %8299 = vrot.lane.b32.xlu0 %v6801, 64
        %v8300 = vpop.permute.xlu0 %8299
        %8301 = vrot.lane.b32.xlu0 %v6806, 64
        %v8302 = vpop.permute.xlu0 %8301
        %8303 = vrot.lane.b32.xlu0 %v6809, 64
        %v8304 = vpop.permute.xlu0 %8303
        %8305 = vrot.lane.b32.xlu0 %v6814, 64
        %v8306 = vpop.permute.xlu0 %8305
        %8307 = vrot.lane.b32.xlu0 %v6817, 64
        %v8308 = vpop.permute.xlu0 %8307
        %8309 = vrot.lane.b32.xlu0 %v6822, 64
        %v8310 = vpop.permute.xlu0 %8309
        %8311 = vrot.lane.b32.xlu0 %v6825, 64
        %v8312 = vpop.permute.xlu0 %8311
        %8313 = vrot.lane.b32.xlu0 %v6830, 64
        %v8314 = vpop.permute.xlu0 %8313
        %8315 = vrot.lane.b32.xlu0 %v6833, 64
        %v8316 = vpop.permute.xlu0 %8315
        %8317 = vrot.lane.b32.xlu0 %v6838, 64
        %v8318 = vpop.permute.xlu0 %8317
        %8319 = vrot.lane.b32.xlu0 %v6841, 64
        %v8320 = vpop.permute.xlu0 %8319
        %8321 = vrot.lane.b32.xlu0 %v6846, 64
        %v8322 = vpop.permute.xlu0 %8321
        %8323 = vrot.lane.b32.xlu0 %v6849, 64
        %v8324 = vpop.permute.xlu0 %8323
        %8325 = vrot.lane.b32.xlu0 %v6854, 64
        %v8326 = vpop.permute.xlu0 %8325
        %8327 = vrot.lane.b32.xlu0 %v6857, 64
        %v8328 = vpop.permute.xlu0 %8327
        %8329 = vrot.lane.b32.xlu0 %v6862, 64
        %v8330 = vpop.permute.xlu0 %8329
        %8331 = vrot.lane.b32.xlu0 %v6865, 64
        %v8332 = vpop.permute.xlu0 %8331
        %8333 = vrot.lane.b32.xlu0 %v6870, 64
        %v8334 = vpop.permute.xlu0 %8333
        %8335 = vrot.lane.b32.xlu0 %v6873, 64
        %v8336 = vpop.permute.xlu0 %8335
        %8337 = vrot.lane.b32.xlu0 %v6878, 64
        %v8338 = vpop.permute.xlu0 %8337
        %8339 = vrot.lane.b32.xlu0 %v6881, 64
        %v8340 = vpop.permute.xlu0 %8339
        %8341 = vrot.lane.b32.xlu0 %v6886, 64
        %v8342 = vpop.permute.xlu0 %8341
        %8343 = vrot.lane.b32.xlu0 %v6889, 64
        %v8344 = vpop.permute.xlu0 %8343
        %8409 = vrot.lane.b32.xlu0 %v7611, 96
        %v8410 = vpop.permute.xlu0 %8409
        %8411 = vrot.lane.b32.xlu0 %v7614, 96
        %v8412 = vpop.permute.xlu0 %8411
        %8413 = vrot.lane.b32.xlu0 %v7619, 96
        %v8414 = vpop.permute.xlu0 %8413
        %8415 = vrot.lane.b32.xlu0 %v7622, 96
        %v8416 = vpop.permute.xlu0 %8415
        %8417 = vrot.lane.b32.xlu0 %v7627, 96
        %v8418 = vpop.permute.xlu0 %8417
        %8419 = vrot.lane.b32.xlu0 %v7630, 96
        %v8420 = vpop.permute.xlu0 %8419
        %8421 = vrot.lane.b32.xlu0 %v7635, 96
        %v8422 = vpop.permute.xlu0 %8421
        %8423 = vrot.lane.b32.xlu0 %v7638, 96
        %v8424 = vpop.permute.xlu0 %8423
        %8425 = vrot.lane.b32.xlu0 %v7643, 96
        %v8426 = vpop.permute.xlu0 %8425
        %8427 = vrot.lane.b32.xlu0 %v7646, 96
        %v8428 = vpop.permute.xlu0 %8427
        %8429 = vrot.lane.b32.xlu0 %v7651, 96
        %v8430 = vpop.permute.xlu0 %8429
        %8431 = vrot.lane.b32.xlu0 %v7654, 96
        %v8432 = vpop.permute.xlu0 %8431
        %8433 = vrot.lane.b32.xlu0 %v7659, 96
        %v8434 = vpop.permute.xlu0 %8433
        %8435 = vrot.lane.b32.xlu0 %v7662, 96
        %v8436 = vpop.permute.xlu0 %8435
        %8437 = vrot.lane.b32.xlu0 %v7667, 96
        %v8438 = vpop.permute.xlu0 %8437
        %8439 = vrot.lane.b32.xlu0 %v7670, 96
        %v8440 = vpop.permute.xlu0 %8439
        %8441 = vrot.lane.b32.xlu0 %v7675, 96
        %v8442 = vpop.permute.xlu0 %8441
        %8443 = vrot.lane.b32.xlu0 %v7678, 96
        %v8444 = vpop.permute.xlu0 %8443
        %8445 = vrot.lane.b32.xlu0 %v7683, 96
        %v8446 = vpop.permute.xlu0 %8445
        %8447 = vrot.lane.b32.xlu0 %v7686, 96
        %v8448 = vpop.permute.xlu0 %8447
        %8449 = vrot.lane.b32.xlu0 %v7691, 96
        %v8450 = vpop.permute.xlu0 %8449
        %8451 = vrot.lane.b32.xlu0 %v7694, 96
        %v8452 = vpop.permute.xlu0 %8451
        %8453 = vrot.lane.b32.xlu0 %v7699, 96
        %v8454 = vpop.permute.xlu0 %8453
        %8455 = vrot.lane.b32.xlu0 %v7702, 96
        %v8456 = vpop.permute.xlu0 %8455
        %8457 = vrot.lane.b32.xlu0 %v7707, 96
        %v8458 = vpop.permute.xlu0 %8457
        %8459 = vrot.lane.b32.xlu0 %v7710, 96
        %v8460 = vpop.permute.xlu0 %8459
        %8461 = vrot.lane.b32.xlu0 %v7715, 96
        %v8462 = vpop.permute.xlu0 %8461
        %8463 = vrot.lane.b32.xlu0 %v7718, 96
        %v8464 = vpop.permute.xlu0 %8463
        %8465 = vrot.lane.b32.xlu0 %v7723, 96
        %v8466 = vpop.permute.xlu0 %8465
        %8467 = vrot.lane.b32.xlu0 %v7726, 96
        %v8468 = vpop.permute.xlu0 %8467
        %8469 = vrot.lane.b32.xlu0 %v7731, 96
        %v8470 = vpop.permute.xlu0 %8469
        %8471 = vrot.lane.b32.xlu0 %v7734, 96
        %v8472 = vpop.permute.xlu0 %8471
        %vm8505 = vcmask 261120
        %v8506 = vsel %vm8505, %v1600, %v7770
        %v8507 = vsel %vm8505, %v1603, %v7772
        %v8508 = vsel %vm8505, %v1608, %v7774
        %v8509 = vsel %vm8505, %v1611, %v7776
        %v8510 = vsel %vm8505, %v1616, %v7778
        %v8511 = vsel %vm8505, %v1619, %v7780
        %v8512 = vsel %vm8505, %v1624, %v7782
        %v8513 = vsel %vm8505, %v1627, %v7784
        %v8514 = vsel %vm8505, %v1632, %v7786
        %v8515 = vsel %vm8505, %v1635, %v7788
        %v8516 = vsel %vm8505, %v1640, %v7790
        %v8517 = vsel %vm8505, %v1643, %v7792
        %v8518 = vsel %vm8505, %v1648, %v7794
        %v8519 = vsel %vm8505, %v1651, %v7796
        %v8520 = vsel %vm8505, %v1656, %v7798
        %v8521 = vsel %vm8505, %v1659, %v7800
        %v8522 = vsel %vm8505, %v1664, %v7802
        %v8523 = vsel %vm8505, %v1667, %v7804
        %v8524 = vsel %vm8505, %v1672, %v7806
        %v8525 = vsel %vm8505, %v1675, %v7808
        %v8526 = vsel %vm8505, %v1680, %v7810
        %v8527 = vsel %vm8505, %v1683, %v7812
        %v8528 = vsel %vm8505, %v1688, %v7814
        %v8529 = vsel %vm8505, %v1691, %v7816
        %v8530 = vsel %vm8505, %v1696, %v7818
        %v8531 = vsel %vm8505, %v1699, %v7820
        %v8532 = vsel %vm8505, %v1704, %v7822
        %v8533 = vsel %vm8505, %v1707, %v7824
        %v8534 = vsel %vm8505, %v1712, %v7826
        %v8535 = vsel %vm8505, %v1715, %v7828
        %v8536 = vsel %vm8505, %v1720, %v7830
        %v8537 = vsel %vm8505, %v1723, %v7832
        %vm8538 = vcmask 523264
        %v8539 = vsel %vm8538, %v8506, %v7898
        %v8540 = vsel %vm8538, %v8507, %v7900
        %v8541 = vsel %vm8538, %v8508, %v7902
        %v8542 = vsel %vm8538, %v8509, %v7904
        %v8543 = vsel %vm8538, %v8510, %v7906
        %v8544 = vsel %vm8538, %v8511, %v7908
        %v8545 = vsel %vm8538, %v8512, %v7910
        %v8546 = vsel %vm8538, %v8513, %v7912
        %v8547 = vsel %vm8538, %v8514, %v7914
        %v8548 = vsel %vm8538, %v8515, %v7916
        %v8549 = vsel %vm8538, %v8516, %v7918
        %v8550 = vsel %vm8538, %v8517, %v7920
        %v8551 = vsel %vm8538, %v8518, %v7922
        %v8552 = vsel %vm8538, %v8519, %v7924
        %v8553 = vsel %vm8538, %v8520, %v7926
        %v8554 = vsel %vm8538, %v8521, %v7928
        %v8555 = vsel %vm8538, %v8522, %v7930
        %v8556 = vsel %vm8538, %v8523, %v7932
        %v8557 = vsel %vm8538, %v8524, %v7934
        %v8558 = vsel %vm8538, %v8525, %v7936
        %v8559 = vsel %vm8538, %v8526, %v7938
        %v8560 = vsel %vm8538, %v8527, %v7940
        %v8561 = vsel %vm8538, %v8528, %v7942
        %v8562 = vsel %vm8538, %v8529, %v7944
        %v8563 = vsel %vm8538, %v8530, %v7946
        %v8564 = vsel %vm8538, %v8531, %v7948
        %v8565 = vsel %vm8538, %v8532, %v7950
        %v8566 = vsel %vm8538, %v8533, %v7952
        %v8567 = vsel %vm8538, %v8534, %v7954
        %v8568 = vsel %vm8538, %v8535, %v7956
        %v8569 = vsel %vm8538, %v8536, %v7958
        %v8570 = vsel %vm8538, %v8537, %v7960
        %vm8571 = vcmask 785408
        %v8572 = vsel %vm8571, %v8539, %v8026
        %v8573 = vsel %vm8571, %v8540, %v8028
        %v8574 = vsel %vm8571, %v8541, %v8030
        %v8575 = vsel %vm8571, %v8542, %v8032
        %v8576 = vsel %vm8571, %v8543, %v8034
        %v8577 = vsel %vm8571, %v8544, %v8036
        %v8578 = vsel %vm8571, %v8545, %v8038
        %v8579 = vsel %vm8571, %v8546, %v8040
        %v8580 = vsel %vm8571, %v8547, %v8042
        %v8581 = vsel %vm8571, %v8548, %v8044
        %v8582 = vsel %vm8571, %v8549, %v8046
        %v8583 = vsel %vm8571, %v8550, %v8048
        %v8584 = vsel %vm8571, %v8551, %v8050
        %v8585 = vsel %vm8571, %v8552, %v8052
        %v8586 = vsel %vm8571, %v8553, %v8054
        %v8587 = vsel %vm8571, %v8554, %v8056
        %v8588 = vsel %vm8571, %v8555, %v8058
        %v8589 = vsel %vm8571, %v8556, %v8060
        %v8590 = vsel %vm8571, %v8557, %v8062
        %v8591 = vsel %vm8571, %v8558, %v8064
        %v8592 = vsel %vm8571, %v8559, %v8066
        %v8593 = vsel %vm8571, %v8560, %v8068
        %v8594 = vsel %vm8571, %v8561, %v8070
        %v8595 = vsel %vm8571, %v8562, %v8072
        %v8596 = vsel %vm8571, %v8563, %v8074
        %v8597 = vsel %vm8571, %v8564, %v8076
        %v8598 = vsel %vm8571, %v8565, %v8078
        %v8599 = vsel %vm8571, %v8566, %v8080
        %v8600 = vsel %vm8571, %v8567, %v8082
        %v8601 = vsel %vm8571, %v8568, %v8084
        %v8602 = vsel %vm8571, %v8569, %v8086
        %v8603 = vsel %vm8571, %v8570, %v8088
        %v8604 = vsel %vm8505, %v5076, %v8154
        %v8605 = vsel %vm8505, %v5079, %v8156
        %v8606 = vsel %vm8505, %v5084, %v8158
        %v8607 = vsel %vm8505, %v5087, %v8160
        %v8608 = vsel %vm8505, %v5092, %v8162
        %v8609 = vsel %vm8505, %v5095, %v8164
        %v8610 = vsel %vm8505, %v5100, %v8166
        %v8611 = vsel %vm8505, %v5103, %v8168
        %v8612 = vsel %vm8505, %v5108, %v8170
        %v8613 = vsel %vm8505, %v5111, %v8172
        %v8614 = vsel %vm8505, %v5116, %v8174
        %v8615 = vsel %vm8505, %v5119, %v8176
        %v8616 = vsel %vm8505, %v5124, %v8178
        %v8617 = vsel %vm8505, %v5127, %v8180
        %v8618 = vsel %vm8505, %v5132, %v8182
        %v8619 = vsel %vm8505, %v5135, %v8184
        %v8620 = vsel %vm8505, %v5140, %v8186
        %v8621 = vsel %vm8505, %v5143, %v8188
        %v8622 = vsel %vm8505, %v5148, %v8190
        %v8623 = vsel %vm8505, %v5151, %v8192
        %v8624 = vsel %vm8505, %v5156, %v8194
        %v8625 = vsel %vm8505, %v5159, %v8196
        %v8626 = vsel %vm8505, %v5164, %v8198
        %v8627 = vsel %vm8505, %v5167, %v8200
        %v8628 = vsel %vm8505, %v5172, %v8202
        %v8629 = vsel %vm8505, %v5175, %v8204
        %v8630 = vsel %vm8505, %v5180, %v8206
        %v8631 = vsel %vm8505, %v5183, %v8208
        %v8632 = vsel %vm8505, %v5188, %v8210
        %v8633 = vsel %vm8505, %v5191, %v8212
        %v8634 = vsel %vm8505, %v5196, %v8214
        %v8635 = vsel %vm8505, %v5199, %v8216
        %v8636 = vsel %vm8538, %v8604, %v8282
        %v8637 = vsel %vm8538, %v8605, %v8284
        %v8638 = vsel %vm8538, %v8606, %v8286
        %v8639 = vsel %vm8538, %v8607, %v8288
        %v8640 = vsel %vm8538, %v8608, %v8290
        %v8641 = vsel %vm8538, %v8609, %v8292
        %v8642 = vsel %vm8538, %v8610, %v8294
        %v8643 = vsel %vm8538, %v8611, %v8296
        %v8644 = vsel %vm8538, %v8612, %v8298
        %v8645 = vsel %vm8538, %v8613, %v8300
        %v8646 = vsel %vm8538, %v8614, %v8302
        %v8647 = vsel %vm8538, %v8615, %v8304
        %v8648 = vsel %vm8538, %v8616, %v8306
        %v8649 = vsel %vm8538, %v8617, %v8308
        %v8650 = vsel %vm8538, %v8618, %v8310
        %v8651 = vsel %vm8538, %v8619, %v8312
        %v8652 = vsel %vm8538, %v8620, %v8314
        %v8653 = vsel %vm8538, %v8621, %v8316
        %v8654 = vsel %vm8538, %v8622, %v8318
        %v8655 = vsel %vm8538, %v8623, %v8320
        %v8656 = vsel %vm8538, %v8624, %v8322
        %v8657 = vsel %vm8538, %v8625, %v8324
        %v8658 = vsel %vm8538, %v8626, %v8326
        %v8659 = vsel %vm8538, %v8627, %v8328
        %v8660 = vsel %vm8538, %v8628, %v8330
        %v8661 = vsel %vm8538, %v8629, %v8332
        %v8662 = vsel %vm8538, %v8630, %v8334
        %v8663 = vsel %vm8538, %v8631, %v8336
        %v8664 = vsel %vm8538, %v8632, %v8338
        %v8665 = vsel %vm8538, %v8633, %v8340
        %v8666 = vsel %vm8538, %v8634, %v8342
        %v8667 = vsel %vm8538, %v8635, %v8344
        %v8668 = vsel %vm8571, %v8636, %v8410
        %v8669 = vsel %vm8571, %v8637, %v8412
        %v8670 = vsel %vm8571, %v8638, %v8414
        %v8671 = vsel %vm8571, %v8639, %v8416
        %v8672 = vsel %vm8571, %v8640, %v8418
        %v8673 = vsel %vm8571, %v8641, %v8420
        %v8674 = vsel %vm8571, %v8642, %v8422
        %v8675 = vsel %vm8571, %v8643, %v8424
        %v8676 = vsel %vm8571, %v8644, %v8426
        %v8677 = vsel %vm8571, %v8645, %v8428
        %v8678 = vsel %vm8571, %v8646, %v8430
        %v8679 = vsel %vm8571, %v8647, %v8432
        %v8680 = vsel %vm8571, %v8648, %v8434
        %v8681 = vsel %vm8571, %v8649, %v8436
        %v8682 = vsel %vm8571, %v8650, %v8438
        %v8683 = vsel %vm8571, %v8651, %v8440
        %v8684 = vsel %vm8571, %v8652, %v8442
        %v8685 = vsel %vm8571, %v8653, %v8444
        %v8686 = vsel %vm8571, %v8654, %v8446
        %v8687 = vsel %vm8571, %v8655, %v8448
        %v8688 = vsel %vm8571, %v8656, %v8450
        %v8689 = vsel %vm8571, %v8657, %v8452
        %v8690 = vsel %vm8571, %v8658, %v8454
        %v8691 = vsel %vm8571, %v8659, %v8456
        %v8692 = vsel %vm8571, %v8660, %v8458
        %v8693 = vsel %vm8571, %v8661, %v8460
        %v8694 = vsel %vm8571, %v8662, %v8462
        %v8695 = vsel %vm8571, %v8663, %v8464
        %v8696 = vsel %vm8571, %v8664, %v8466
        %v8697 = vsel %vm8571, %v8665, %v8468
        %v8698 = vsel %vm8571, %v8666, %v8470
        %v8699 = vsel %vm8571, %v8667, %v8472
        %v8700 = vrot.slane %v8572, 1
        %v8701 = vrot.slane %v8668, 1
        %v8702 = vrot.slane %v8573, 1
        %v8703 = vrot.slane %v8669, 1
        %v8704 = vrot.slane %v8574, 1
        %v8705 = vrot.slane %v8670, 1
        %v8706 = vrot.slane %v8575, 1
        %v8707 = vrot.slane %v8671, 1
        %v8708 = vrot.slane %v8576, 1
        %v8709 = vrot.slane %v8672, 1
        %v8710 = vrot.slane %v8577, 1
        %v8711 = vrot.slane %v8673, 1
        %v8712 = vrot.slane %v8578, 1
        %v8713 = vrot.slane %v8674, 1
        %v8714 = vrot.slane %v8579, 1
        %v8715 = vrot.slane %v8675, 1
        %v8716 = vrot.slane %v8580, 1
        %v8717 = vrot.slane %v8676, 1
        %v8718 = vrot.slane %v8581, 1
        %v8719 = vrot.slane %v8677, 1
        %v8720 = vrot.slane %v8582, 1
        %v8721 = vrot.slane %v8678, 1
        %v8722 = vrot.slane %v8583, 1
        %v8723 = vrot.slane %v8679, 1
        %v8724 = vrot.slane %v8584, 1
        %v8725 = vrot.slane %v8680, 1
        %v8726 = vrot.slane %v8585, 1
        %v8727 = vrot.slane %v8681, 1
        %v8728 = vrot.slane %v8586, 1
        %v8729 = vrot.slane %v8682, 1
        %v8730 = vrot.slane %v8587, 1
        %v8731 = vrot.slane %v8683, 1
        %v8732 = vrot.slane %v8588, 1
        %v8733 = vrot.slane %v8684, 1
        %v8734 = vrot.slane %v8589, 1
        %v8735 = vrot.slane %v8685, 1
        %v8736 = vrot.slane %v8590, 1
        %v8737 = vrot.slane %v8686, 1
        %v8738 = vrot.slane %v8591, 1
        %v8739 = vrot.slane %v8687, 1
        %v8740 = vrot.slane %v8592, 1
        %v8741 = vrot.slane %v8688, 1
        %v8742 = vrot.slane %v8593, 1
        %v8743 = vrot.slane %v8689, 1
        %v8744 = vrot.slane %v8594, 1
        %v8745 = vrot.slane %v8690, 1
        %v8746 = vrot.slane %v8595, 1
        %v8747 = vrot.slane %v8691, 1
        %v8748 = vrot.slane %v8596, 1
        %v8749 = vrot.slane %v8692, 1
        %v8750 = vrot.slane %v8597, 1
        %v8751 = vrot.slane %v8693, 1
        %v8752 = vrot.slane %v8598, 1
        %v8753 = vrot.slane %v8694, 1
        %v8754 = vrot.slane %v8599, 1
        %v8755 = vrot.slane %v8695, 1
        %v8756 = vrot.slane %v8600, 1
        %v8757 = vrot.slane %v8696, 1
        %v8758 = vrot.slane %v8601, 1
        %v8759 = vrot.slane %v8697, 1
        %v8760 = vrot.slane %v8602, 1
        %v8761 = vrot.slane %v8698, 1
        %v8762 = vrot.slane %v8603, 1
        %v8763 = vrot.slane %v8699, 1
        %v8764 = vlaneseq
        %v8765 = vshrl.u32 %v8764, 7
        %vm8766 = vcmp.lt.s32.totalorder %v8765, 7
        %v8767 = vsel %vm8766, %v8760, %v8762
        %v8768 = vsel %vm8766, %v8761, %v8763
        %v8769 = vsel %vm8766, %v8758, %v8760
        %v8770 = vsel %vm8766, %v8759, %v8761
        %v8771 = vsel %vm8766, %v8756, %v8758
        %v8772 = vsel %vm8766, %v8757, %v8759
        %v8773 = vsel %vm8766, %v8754, %v8756
        %v8774 = vsel %vm8766, %v8755, %v8757
        %v8775 = vsel %vm8766, %v8752, %v8754
        %v8776 = vsel %vm8766, %v8753, %v8755
        %v8777 = vsel %vm8766, %v8750, %v8752
        %v8778 = vsel %vm8766, %v8751, %v8753
        %v8779 = vsel %vm8766, %v8748, %v8750
        %v8780 = vsel %vm8766, %v8749, %v8751
        %v8781 = vsel %vm8766, %v8746, %v8748
        %v8782 = vsel %vm8766, %v8747, %v8749
        %v8783 = vsel %vm8766, %v8744, %v8746
        %v8784 = vsel %vm8766, %v8745, %v8747
        %v8785 = vsel %vm8766, %v8742, %v8744
        %v8786 = vsel %vm8766, %v8743, %v8745
        %v8787 = vsel %vm8766, %v8740, %v8742
        %v8788 = vsel %vm8766, %v8741, %v8743
        %v8789 = vsel %vm8766, %v8738, %v8740
        %v8790 = vsel %vm8766, %v8739, %v8741
        %v8791 = vsel %vm8766, %v8736, %v8738
        %v8792 = vsel %vm8766, %v8737, %v8739
        %v8793 = vsel %vm8766, %v8734, %v8736
        %v8794 = vsel %vm8766, %v8735, %v8737
        %v8795 = vsel %vm8766, %v8732, %v8734
        %v8796 = vsel %vm8766, %v8733, %v8735
        %v8797 = vsel %vm8766, %v8730, %v8732
        %v8798 = vsel %vm8766, %v8731, %v8733
        %v8799 = vsel %vm8766, %v8728, %v8730
        %v8800 = vsel %vm8766, %v8729, %v8731
        %v8801 = vsel %vm8766, %v8726, %v8728
        %v8802 = vsel %vm8766, %v8727, %v8729
        %v8803 = vsel %vm8766, %v8724, %v8726
        %v8804 = vsel %vm8766, %v8725, %v8727
        %v8805 = vsel %vm8766, %v8722, %v8724
        %v8806 = vsel %vm8766, %v8723, %v8725
        %v8807 = vsel %vm8766, %v8720, %v8722
        %v8808 = vsel %vm8766, %v8721, %v8723
        %v8809 = vsel %vm8766, %v8718, %v8720
        %v8810 = vsel %vm8766, %v8719, %v8721
        %v8811 = vsel %vm8766, %v8716, %v8718
        %v8812 = vsel %vm8766, %v8717, %v8719
        %v8813 = vsel %vm8766, %v8714, %v8716
        %v8814 = vsel %vm8766, %v8715, %v8717
        %v8815 = vsel %vm8766, %v8712, %v8714
        %v8816 = vsel %vm8766, %v8713, %v8715
        %v8817 = vsel %vm8766, %v8710, %v8712
        %v8818 = vsel %vm8766, %v8711, %v8713
        %v8819 = vsel %vm8766, %v8708, %v8710
        %v8820 = vsel %vm8766, %v8709, %v8711
        %v8821 = vsel %vm8766, %v8706, %v8708
        %v8822 = vsel %vm8766, %v8707, %v8709
        %v8823 = vsel %vm8766, %v8704, %v8706
        %v8824 = vsel %vm8766, %v8705, %v8707
        %v8825 = vsel %vm8766, %v8702, %v8704
        %v8826 = vsel %vm8766, %v8703, %v8705
        %v8827 = vsel %vm8766, %v8700, %v8702
        %v8828 = vsel %vm8766, %v8701, %v8703
        %v8829 = vsel %vm8766, %v8762, %v8700
        %v8830 = vsel %vm8766, %v8763, %v8701
        %v8831 = vrot.slane %v8572, 2
        %v8832 = vrot.slane %v8668, 2
        %v8833 = vrot.slane %v8573, 2
        %v8834 = vrot.slane %v8669, 2
        %v8835 = vrot.slane %v8574, 2
        %v8836 = vrot.slane %v8670, 2
        %v8837 = vrot.slane %v8575, 2
        %v8838 = vrot.slane %v8671, 2
        %v8839 = vrot.slane %v8576, 2
        %v8840 = vrot.slane %v8672, 2
        %v8841 = vrot.slane %v8577, 2
        %v8842 = vrot.slane %v8673, 2
        %v8843 = vrot.slane %v8578, 2
        %v8844 = vrot.slane %v8674, 2
        %v8845 = vrot.slane %v8579, 2
        %v8846 = vrot.slane %v8675, 2
        %v8847 = vrot.slane %v8580, 2
        %v8848 = vrot.slane %v8676, 2
        %v8849 = vrot.slane %v8581, 2
        %v8850 = vrot.slane %v8677, 2
        %v8851 = vrot.slane %v8582, 2
        %v8852 = vrot.slane %v8678, 2
        %v8853 = vrot.slane %v8583, 2
        %v8854 = vrot.slane %v8679, 2
        %v8855 = vrot.slane %v8584, 2
        %v8856 = vrot.slane %v8680, 2
        %v8857 = vrot.slane %v8585, 2
        %v8858 = vrot.slane %v8681, 2
        %v8859 = vrot.slane %v8586, 2
        %v8860 = vrot.slane %v8682, 2
        %v8861 = vrot.slane %v8587, 2
        %v8862 = vrot.slane %v8683, 2
        %v8863 = vrot.slane %v8588, 2
        %v8864 = vrot.slane %v8684, 2
        %v8865 = vrot.slane %v8589, 2
        %v8866 = vrot.slane %v8685, 2
        %v8867 = vrot.slane %v8590, 2
        %v8868 = vrot.slane %v8686, 2
        %v8869 = vrot.slane %v8591, 2
        %v8870 = vrot.slane %v8687, 2
        %v8871 = vrot.slane %v8592, 2
        %v8872 = vrot.slane %v8688, 2
        %v8873 = vrot.slane %v8593, 2
        %v8874 = vrot.slane %v8689, 2
        %v8875 = vrot.slane %v8594, 2
        %v8876 = vrot.slane %v8690, 2
        %v8877 = vrot.slane %v8595, 2
        %v8878 = vrot.slane %v8691, 2
        %v8879 = vrot.slane %v8596, 2
        %v8880 = vrot.slane %v8692, 2
        %v8881 = vrot.slane %v8597, 2
        %v8882 = vrot.slane %v8693, 2
        %v8883 = vrot.slane %v8598, 2
        %v8884 = vrot.slane %v8694, 2
        %v8885 = vrot.slane %v8599, 2
        %v8886 = vrot.slane %v8695, 2
        %v8887 = vrot.slane %v8600, 2
        %v8888 = vrot.slane %v8696, 2
        %v8889 = vrot.slane %v8601, 2
        %v8890 = vrot.slane %v8697, 2
        %v8891 = vrot.slane %v8602, 2
        %v8892 = vrot.slane %v8698, 2
        %v8893 = vrot.slane %v8603, 2
        %v8894 = vrot.slane %v8699, 2
        %vm8895 = vcmp.lt.s32.totalorder %v8765, 6
        %v8896 = vsel %vm8895, %v8891, %v8893
        %v8897 = vsel %vm8895, %v8892, %v8894
        %v8898 = vsel %vm8895, %v8889, %v8891
        %v8899 = vsel %vm8895, %v8890, %v8892
        %v8900 = vsel %vm8895, %v8887, %v8889
        %v8901 = vsel %vm8895, %v8888, %v8890
        %v8902 = vsel %vm8895, %v8885, %v8887
        %v8903 = vsel %vm8895, %v8886, %v8888
        %v8904 = vsel %vm8895, %v8883, %v8885
        %v8905 = vsel %vm8895, %v8884, %v8886
        %v8906 = vsel %vm8895, %v8881, %v8883
        %v8907 = vsel %vm8895, %v8882, %v8884
        %v8908 = vsel %vm8895, %v8879, %v8881
        %v8909 = vsel %vm8895, %v8880, %v8882
        %v8910 = vsel %vm8895, %v8877, %v8879
        %v8911 = vsel %vm8895, %v8878, %v8880
        %v8912 = vsel %vm8895, %v8875, %v8877
        %v8913 = vsel %vm8895, %v8876, %v8878
        %v8914 = vsel %vm8895, %v8873, %v8875
        %v8915 = vsel %vm8895, %v8874, %v8876
        %v8916 = vsel %vm8895, %v8871, %v8873
        %v8917 = vsel %vm8895, %v8872, %v8874
        %v8918 = vsel %vm8895, %v8869, %v8871
        %v8919 = vsel %vm8895, %v8870, %v8872
        %v8920 = vsel %vm8895, %v8867, %v8869
        %v8921 = vsel %vm8895, %v8868, %v8870
        %v8922 = vsel %vm8895, %v8865, %v8867
        %v8923 = vsel %vm8895, %v8866, %v8868
        %v8924 = vsel %vm8895, %v8863, %v8865
        %v8925 = vsel %vm8895, %v8864, %v8866
        %v8926 = vsel %vm8895, %v8861, %v8863
        %v8927 = vsel %vm8895, %v8862, %v8864
        %v8928 = vsel %vm8895, %v8859, %v8861
        %v8929 = vsel %vm8895, %v8860, %v8862
        %v8930 = vsel %vm8895, %v8857, %v8859
        %v8931 = vsel %vm8895, %v8858, %v8860
        %v8932 = vsel %vm8895, %v8855, %v8857
        %v8933 = vsel %vm8895, %v8856, %v8858
        %v8934 = vsel %vm8895, %v8853, %v8855
        %v8935 = vsel %vm8895, %v8854, %v8856
        %v8936 = vsel %vm8895, %v8851, %v8853
        %v8937 = vsel %vm8895, %v8852, %v8854
        %v8938 = vsel %vm8895, %v8849, %v8851
        %v8939 = vsel %vm8895, %v8850, %v8852
        %v8940 = vsel %vm8895, %v8847, %v8849
        %v8941 = vsel %vm8895, %v8848, %v8850
        %v8942 = vsel %vm8895, %v8845, %v8847
        %v8943 = vsel %vm8895, %v8846, %v8848
        %v8944 = vsel %vm8895, %v8843, %v8845
        %v8945 = vsel %vm8895, %v8844, %v8846
        %v8946 = vsel %vm8895, %v8841, %v8843
        %v8947 = vsel %vm8895, %v8842, %v8844
        %v8948 = vsel %vm8895, %v8839, %v8841
        %v8949 = vsel %vm8895, %v8840, %v8842
        %v8950 = vsel %vm8895, %v8837, %v8839
        %v8951 = vsel %vm8895, %v8838, %v8840
        %v8952 = vsel %vm8895, %v8835, %v8837
        %v8953 = vsel %vm8895, %v8836, %v8838
        %v8954 = vsel %vm8895, %v8833, %v8835
        %v8955 = vsel %vm8895, %v8834, %v8836
        %v8956 = vsel %vm8895, %v8831, %v8833
        %v8957 = vsel %vm8895, %v8832, %v8834
        %v8958 = vsel %vm8895, %v8893, %v8831
        %v8959 = vsel %vm8895, %v8894, %v8832
        %v8960 = vpack.c.bf16 %v8573, %v8572
        %v8961 = vpack.c.bf16 %v8669, %v8668
        %v8962 = vpack.c.bf16 %v8825, %v8827
        %v8963 = vpack.c.bf16 %v8826, %v8828
        %v8964 = vpack.c.bf16 %v8954, %v8956
        %v8965 = vpack.c.bf16 %v8955, %v8957
        %v8966 = vpack.c.bf16 %v8575, %v8574
        %v8967 = vpack.c.bf16 %v8671, %v8670
        %v8968 = vpack.c.bf16 %v8821, %v8823
        %v8969 = vpack.c.bf16 %v8822, %v8824
        %v8970 = vpack.c.bf16 %v8950, %v8952
        %v8971 = vpack.c.bf16 %v8951, %v8953
        %v8972 = vpack.c.bf16 %v8577, %v8576
        %v8973 = vpack.c.bf16 %v8673, %v8672
        %v8974 = vpack.c.bf16 %v8817, %v8819
        %v8975 = vpack.c.bf16 %v8818, %v8820
        %v8976 = vpack.c.bf16 %v8946, %v8948
        %v8977 = vpack.c.bf16 %v8947, %v8949
        %v8978 = vpack.c.bf16 %v8579, %v8578
        %v8979 = vpack.c.bf16 %v8675, %v8674
        %v8980 = vpack.c.bf16 %v8813, %v8815
        %v8981 = vpack.c.bf16 %v8814, %v8816
        %v8982 = vpack.c.bf16 %v8942, %v8944
        %v8983 = vpack.c.bf16 %v8943, %v8945
        %v8984 = vpack.c.bf16 %v8581, %v8580
        %v8985 = vpack.c.bf16 %v8677, %v8676
        %v8986 = vpack.c.bf16 %v8809, %v8811
        %v8987 = vpack.c.bf16 %v8810, %v8812
        %v8988 = vpack.c.bf16 %v8938, %v8940
        %v8989 = vpack.c.bf16 %v8939, %v8941
        %v8990 = vpack.c.bf16 %v8583, %v8582
        %v8991 = vpack.c.bf16 %v8679, %v8678
        %v8992 = vpack.c.bf16 %v8805, %v8807
        %v8993 = vpack.c.bf16 %v8806, %v8808
        %v8994 = vpack.c.bf16 %v8934, %v8936
        %v8995 = vpack.c.bf16 %v8935, %v8937
        %v8996 = vpack.c.bf16 %v8585, %v8584
        %v8997 = vpack.c.bf16 %v8681, %v8680
        %v8998 = vpack.c.bf16 %v8801, %v8803
        %v8999 = vpack.c.bf16 %v8802, %v8804
        %v9000 = vpack.c.bf16 %v8930, %v8932
        %v9001 = vpack.c.bf16 %v8931, %v8933
        %v9002 = vpack.c.bf16 %v8587, %v8586
        %v9003 = vpack.c.bf16 %v8683, %v8682
        %v9004 = vpack.c.bf16 %v8797, %v8799
        %v9005 = vpack.c.bf16 %v8798, %v8800
        %v9006 = vpack.c.bf16 %v8926, %v8928
        %v9007 = vpack.c.bf16 %v8927, %v8929
        %v9008 = vpack.c.bf16 %v8589, %v8588
        %v9009 = vpack.c.bf16 %v8685, %v8684
        %v9010 = vpack.c.bf16 %v8793, %v8795
        %v9011 = vpack.c.bf16 %v8794, %v8796
        %v9012 = vpack.c.bf16 %v8922, %v8924
        %v9013 = vpack.c.bf16 %v8923, %v8925
        %v9014 = vpack.c.bf16 %v8591, %v8590
        %v9015 = vpack.c.bf16 %v8687, %v8686
        %v9016 = vpack.c.bf16 %v8789, %v8791
        %v9017 = vpack.c.bf16 %v8790, %v8792
        %v9018 = vpack.c.bf16 %v8918, %v8920
        %v9019 = vpack.c.bf16 %v8919, %v8921
        %v9020 = vpack.c.bf16 %v8593, %v8592
        %v9021 = vpack.c.bf16 %v8689, %v8688
        %v9022 = vpack.c.bf16 %v8785, %v8787
        %v9023 = vpack.c.bf16 %v8786, %v8788
        %v9024 = vpack.c.bf16 %v8914, %v8916
        %v9025 = vpack.c.bf16 %v8915, %v8917
        %v9026 = vpack.c.bf16 %v8595, %v8594
        %v9027 = vpack.c.bf16 %v8691, %v8690
        %v9028 = vpack.c.bf16 %v8781, %v8783
        %v9029 = vpack.c.bf16 %v8782, %v8784
        %v9030 = vpack.c.bf16 %v8910, %v8912
        %v9031 = vpack.c.bf16 %v8911, %v8913
        %v9032 = vpack.c.bf16 %v8597, %v8596
        %v9033 = vpack.c.bf16 %v8693, %v8692
        %v9034 = vpack.c.bf16 %v8777, %v8779
        %v9035 = vpack.c.bf16 %v8778, %v8780
        %v9036 = vpack.c.bf16 %v8906, %v8908
        %v9037 = vpack.c.bf16 %v8907, %v8909
        %v9038 = vpack.c.bf16 %v8599, %v8598
        %v9039 = vpack.c.bf16 %v8695, %v8694
        %v9040 = vpack.c.bf16 %v8773, %v8775
        %v9041 = vpack.c.bf16 %v8774, %v8776
        %v9042 = vpack.c.bf16 %v8902, %v8904
        %v9043 = vpack.c.bf16 %v8903, %v8905
        %v9044 = vpack.c.bf16 %v8601, %v8600
        %v9045 = vpack.c.bf16 %v8697, %v8696
        %v9046 = vpack.c.bf16 %v8769, %v8771
        %v9047 = vpack.c.bf16 %v8770, %v8772
        %v9048 = vpack.c.bf16 %v8898, %v8900
        %v9049 = vpack.c.bf16 %v8899, %v8901
        %v9050 = vpack.c.bf16 %v8603, %v8602
        %v9051 = vpack.c.bf16 %v8699, %v8698
        %v9052 = vpack.c.bf16 %v8829, %v8767
        %v9053 = vpack.c.bf16 %v8830, %v8768
        %v9054 = vpack.c.bf16 %v8958, %v8896
        %v9055 = vpack.c.bf16 %v8959, %v8897
        %v9056 = vld [vmem:[%s5] sm:$0xff]
        %v9057 = vld [vmem:[%s5 + $0x8] sm:$0xff]
        %v9058 = vld [vmem:[%s5 + $0x10] sm:$0xff]
        %v9059 = vld [vmem:[%s5 + $0x18] sm:$0xff]
        %v9060 = vld [vmem:[%s5 + $0x20] sm:$0xff]
        %v9061 = vld [vmem:[%s5 + $0x28] sm:$0xff]
        %v9062 = vld [vmem:[%s5 + $0x30] sm:$0xff]
        %v9063 = vld [vmem:[%s5 + $0x38] sm:$0xff]
        %v9064 = vld [vmem:[%s5 + $0x40] sm:$0xff]
        %v9065 = vld [vmem:[%s5 + $0x48] sm:$0xff]
        %v9066 = vld [vmem:[%s5 + $0x50] sm:$0xff]
        %v9067 = vld [vmem:[%s5 + $0x58] sm:$0xff]
        %v9068 = vld [vmem:[%s5 + $0x60] sm:$0xff]
        %v9069 = vld [vmem:[%s5 + $0x68] sm:$0xff]
        %v9070 = vld [vmem:[%s5 + $0x70] sm:$0xff]
        %v9071 = vld [vmem:[%s5 + $0x78] sm:$0xff]
        %v9072 = vld [vmem:[%s5 + $0x80] sm:$0xff]
        %v9073 = vld [vmem:[%s5 + $0x88] sm:$0xff]
        %v9074 = vld [vmem:[%s5 + $0x90] sm:$0xff]
        %v9075 = vld [vmem:[%s5 + $0x98] sm:$0xff]
        %v9076 = vld [vmem:[%s5 + $0xa0] sm:$0xff]
        %v9077 = vld [vmem:[%s5 + $0xa8] sm:$0xff]
        %v9078 = vld [vmem:[%s5 + $0xb0] sm:$0xff]
        %v9079 = vld [vmem:[%s5 + $0xb8] sm:$0xff]
        %v9080 = vld [vmem:[%s5 + $0xc0] sm:$0xff]
        %v9081 = vld [vmem:[%s5 + $0xc8] sm:$0xff]
        %v9082 = vld [vmem:[%s5 + $0xd0] sm:$0xff]
        %v9083 = vld [vmem:[%s5 + $0xd8] sm:$0xff]
        %v9084 = vld [vmem:[%s5 + $0xe0] sm:$0xff]
        %v9085 = vld [vmem:[%s5 + $0xe8] sm:$0xff]
        %v9086 = vld [vmem:[%s5 + $0xf0] sm:$0xff]
        %v9087 = vld [vmem:[%s5 + $0xf8] sm:$0xff]
        %v9088 = vld [vmem:[%s5 + $0x100] sm:$0xff]
        %v9089 = vld [vmem:[%s5 + $0x108] sm:$0xff]
        %v9090 = vld [vmem:[%s5 + $0x110] sm:$0xff]
        %v9091 = vld [vmem:[%s5 + $0x118] sm:$0xff]
        %v9092 = vld [vmem:[%s5 + $0x120] sm:$0xff]
        %v9093 = vld [vmem:[%s5 + $0x128] sm:$0xff]
        %v9094 = vld [vmem:[%s5 + $0x130] sm:$0xff]
        %v9095 = vld [vmem:[%s5 + $0x138] sm:$0xff]
        %v9096 = vld [vmem:[%s5 + $0x140] sm:$0xff]
        %v9097 = vld [vmem:[%s5 + $0x148] sm:$0xff]
        %v9098 = vld [vmem:[%s5 + $0x150] sm:$0xff]
        %v9099 = vld [vmem:[%s5 + $0x158] sm:$0xff]
        %v9100 = vld [vmem:[%s5 + $0x160] sm:$0xff]
        %v9101 = vld [vmem:[%s5 + $0x168] sm:$0xff]
        %v9102 = vld [vmem:[%s5 + $0x170] sm:$0xff]
        %v9103 = vld [vmem:[%s5 + $0x178] sm:$0xff]
        %v9104 = vld [vmem:[%s5 + $0x180] sm:$0xff]
        %v9105 = vld [vmem:[%s5 + $0x188] sm:$0xff]
        %v9106 = vld [vmem:[%s5 + $0x190] sm:$0xff]
        %v9107 = vld [vmem:[%s5 + $0x198] sm:$0xff]
        %v9108 = vld [vmem:[%s5 + $0x1a0] sm:$0xff]
        %v9109 = vld [vmem:[%s5 + $0x1a8] sm:$0xff]
        %v9110 = vld [vmem:[%s5 + $0x1b0] sm:$0xff]
        %v9111 = vld [vmem:[%s5 + $0x1b8] sm:$0xff]
        %v9112 = vld [vmem:[%s5 + $0x1c0] sm:$0xff]
        %v9113 = vld [vmem:[%s5 + $0x1c8] sm:$0xff]
        %v9114 = vld [vmem:[%s5 + $0x1d0] sm:$0xff]
        %v9115 = vld [vmem:[%s5 + $0x1d8] sm:$0xff]
        %v9116 = vld [vmem:[%s5 + $0x1e0] sm:$0xff]
        %v9117 = vld [vmem:[%s5 + $0x1e8] sm:$0xff]
        %v9118 = vld [vmem:[%s5 + $0x1f0] sm:$0xff]
        %v9119 = vld [vmem:[%s5 + $0x1f8] sm:$0xff]
        %v9120 = vld [vmem:[%s5 + $0x200] sm:$0xff]
        %v9121 = vld [vmem:[%s5 + $0x208] sm:$0xff]
        %v9122 = vld [vmem:[%s5 + $0x210] sm:$0xff]
        %v9123 = vld [vmem:[%s5 + $0x218] sm:$0xff]
        %v9124 = vld [vmem:[%s5 + $0x220] sm:$0xff]
        %v9125 = vld [vmem:[%s5 + $0x228] sm:$0xff]
        %v9126 = vld [vmem:[%s5 + $0x230] sm:$0xff]
        %v9127 = vld [vmem:[%s5 + $0x238] sm:$0xff]
        %v9128 = vld [vmem:[%s5 + $0x240] sm:$0xff]
        %v9129 = vld [vmem:[%s5 + $0x248] sm:$0xff]
        %v9130 = vld [vmem:[%s5 + $0x250] sm:$0xff]
        %v9131 = vld [vmem:[%s5 + $0x258] sm:$0xff]
        %v9132 = vld [vmem:[%s5 + $0x260] sm:$0xff]
        %v9133 = vld [vmem:[%s5 + $0x268] sm:$0xff]
        %v9134 = vld [vmem:[%s5 + $0x270] sm:$0xff]
        %v9135 = vld [vmem:[%s5 + $0x278] sm:$0xff]
        %v9136 = vld [vmem:[%s5 + $0x280] sm:$0xff]
        %v9137 = vld [vmem:[%s5 + $0x288] sm:$0xff]
        %v9138 = vld [vmem:[%s5 + $0x290] sm:$0xff]
        %v9139 = vld [vmem:[%s5 + $0x298] sm:$0xff]
        %v9140 = vld [vmem:[%s5 + $0x2a0] sm:$0xff]
        %v9141 = vld [vmem:[%s5 + $0x2a8] sm:$0xff]
        %v9142 = vld [vmem:[%s5 + $0x2b0] sm:$0xff]
        %v9143 = vld [vmem:[%s5 + $0x2b8] sm:$0xff]
        %v9144 = vld [vmem:[%s5 + $0x2c0] sm:$0xff]
        %v9145 = vld [vmem:[%s5 + $0x2c8] sm:$0xff]
        %v9146 = vld [vmem:[%s5 + $0x2d0] sm:$0xff]
        %v9147 = vld [vmem:[%s5 + $0x2d8] sm:$0xff]
        %v9148 = vld [vmem:[%s5 + $0x2e0] sm:$0xff]
        %v9149 = vld [vmem:[%s5 + $0x2e8] sm:$0xff]
        %v9150 = vld [vmem:[%s5 + $0x2f0] sm:$0xff]
        %v9151 = vld [vmem:[%s5 + $0x2f8] sm:$0xff]
        %v9152 = vld [vmem:[%s6] sm:$0x3]
        %v9154 = vlaneseq
        %v9155 = vshrl.u32 %v9154, 7
        %v9156 = vsub.s32 0, %v9155
        %v9157 = vrot.slane %v9152, %v9156
        %v9158 = vlaneseq
        %v9159 = vshrl.u32 %v9158, 7
        %v9160 = vsub.s32 1, %v9159
        %v9161 = vrot.slane %v9152, %v9160
        %v9260 = vunpack.c.l.b16 %v9056
        %v9261 = vunpack.c.h.b16 %v9056
        %v9262 = vunpack.c.l.b16 %v9057
        %v9263 = vunpack.c.h.b16 %v9057
        %v9264 = vunpack.c.l.b16 %v9058
        %v9265 = vunpack.c.h.b16 %v9058
        %v9266 = vunpack.c.l.b16 %v9059
        %v9267 = vunpack.c.h.b16 %v9059
        %v9268 = vunpack.c.l.b16 %v9060
        %v9269 = vunpack.c.h.b16 %v9060
        %v9270 = vunpack.c.l.b16 %v9061
        %v9271 = vunpack.c.h.b16 %v9061
        %v9272 = vunpack.c.l.b16 %v9062
        %v9273 = vunpack.c.h.b16 %v9062
        %v9274 = vunpack.c.l.b16 %v9063
        %v9275 = vunpack.c.h.b16 %v9063
        %v9276 = vunpack.c.l.b16 %v9064
        %v9277 = vunpack.c.h.b16 %v9064
        %v9278 = vunpack.c.l.b16 %v9065
        %v9279 = vunpack.c.h.b16 %v9065
        %v9280 = vunpack.c.l.b16 %v9066
        %v9281 = vunpack.c.h.b16 %v9066
        %v9282 = vunpack.c.l.b16 %v9067
        %v9283 = vunpack.c.h.b16 %v9067
        %v9284 = vunpack.c.l.b16 %v9068
        %v9285 = vunpack.c.h.b16 %v9068
        %v9286 = vunpack.c.l.b16 %v9069
        %v9287 = vunpack.c.h.b16 %v9069
        %v9288 = vunpack.c.l.b16 %v9070
        %v9289 = vunpack.c.h.b16 %v9070
        %v9290 = vunpack.c.l.b16 %v9071
        %v9291 = vunpack.c.h.b16 %v9071
        %v9292 = vunpack.c.l.b16 %v9072
        %v9293 = vunpack.c.h.b16 %v9072
        %v9294 = vunpack.c.l.b16 %v9073
        %v9295 = vunpack.c.h.b16 %v9073
        %v9296 = vunpack.c.l.b16 %v9074
        %v9297 = vunpack.c.h.b16 %v9074
        %v9298 = vunpack.c.l.b16 %v9075
        %v9299 = vunpack.c.h.b16 %v9075
        %v9300 = vunpack.c.l.b16 %v9076
        %v9301 = vunpack.c.h.b16 %v9076
        %v9302 = vunpack.c.l.b16 %v9077
        %v9303 = vunpack.c.h.b16 %v9077
        %v9304 = vunpack.c.l.b16 %v9078
        %v9305 = vunpack.c.h.b16 %v9078
        %v9306 = vunpack.c.l.b16 %v9079
        %v9307 = vunpack.c.h.b16 %v9079
        %v9308 = vunpack.c.l.b16 %v9080
        %v9309 = vunpack.c.h.b16 %v9080
        %v9310 = vunpack.c.l.b16 %v9081
        %v9311 = vunpack.c.h.b16 %v9081
        %v9312 = vunpack.c.l.b16 %v9082
        %v9313 = vunpack.c.h.b16 %v9082
        %v9314 = vunpack.c.l.b16 %v9083
        %v9315 = vunpack.c.h.b16 %v9083
        %v9316 = vunpack.c.l.b16 %v9084
        %v9317 = vunpack.c.h.b16 %v9084
        %v9318 = vunpack.c.l.b16 %v9085
        %v9319 = vunpack.c.h.b16 %v9085
        %v9320 = vunpack.c.l.b16 %v9086
        %v9321 = vunpack.c.h.b16 %v9086
        %v9322 = vunpack.c.l.b16 %v9087
        %v9323 = vunpack.c.h.b16 %v9087
        %v9324 = vunpack.c.l.b16 %v9088
        %v9325 = vunpack.c.h.b16 %v9088
        %v9326 = vunpack.c.l.b16 %v9089
        %v9327 = vunpack.c.h.b16 %v9089
        %v9328 = vunpack.c.l.b16 %v9090
        %v9329 = vunpack.c.h.b16 %v9090
        %v9330 = vunpack.c.l.b16 %v9091
        %v9331 = vunpack.c.h.b16 %v9091
        %v9332 = vunpack.c.l.b16 %v9092
        %v9333 = vunpack.c.h.b16 %v9092
        %v9334 = vunpack.c.l.b16 %v9093
        %v9335 = vunpack.c.h.b16 %v9093
        %v9336 = vunpack.c.l.b16 %v9094
        %v9337 = vunpack.c.h.b16 %v9094
        %v9338 = vunpack.c.l.b16 %v9095
        %v9339 = vunpack.c.h.b16 %v9095
        %v9340 = vunpack.c.l.b16 %v9096
        %v9341 = vunpack.c.h.b16 %v9096
        %v9342 = vunpack.c.l.b16 %v9097
        %v9343 = vunpack.c.h.b16 %v9097
        %v9344 = vunpack.c.l.b16 %v9098
        %v9345 = vunpack.c.h.b16 %v9098
        %v9346 = vunpack.c.l.b16 %v9099
        %v9347 = vunpack.c.h.b16 %v9099
        %v9348 = vunpack.c.l.b16 %v9100
        %v9349 = vunpack.c.h.b16 %v9100
        %v9350 = vunpack.c.l.b16 %v9101
        %v9351 = vunpack.c.h.b16 %v9101
        %v9352 = vunpack.c.l.b16 %v9102
        %v9353 = vunpack.c.h.b16 %v9102
        %v9354 = vunpack.c.l.b16 %v9103
        %v9355 = vunpack.c.h.b16 %v9103
        %v9356 = vunpack.c.l.b16 %v9104
        %v9357 = vunpack.c.h.b16 %v9104
        %v9358 = vunpack.c.l.b16 %v9105
        %v9359 = vunpack.c.h.b16 %v9105
        %v9360 = vunpack.c.l.b16 %v9106
        %v9361 = vunpack.c.h.b16 %v9106
        %v9362 = vunpack.c.l.b16 %v9107
        %v9363 = vunpack.c.h.b16 %v9107
        %v9364 = vunpack.c.l.b16 %v9108
        %v9365 = vunpack.c.h.b16 %v9108
        %v9366 = vunpack.c.l.b16 %v9109
        %v9367 = vunpack.c.h.b16 %v9109
        %v9368 = vunpack.c.l.b16 %v9110
        %v9369 = vunpack.c.h.b16 %v9110
        %v9370 = vunpack.c.l.b16 %v9111
        %v9371 = vunpack.c.h.b16 %v9111
        %v9372 = vunpack.c.l.b16 %v9112
        %v9373 = vunpack.c.h.b16 %v9112
        %v9374 = vunpack.c.l.b16 %v9113
        %v9375 = vunpack.c.h.b16 %v9113
        %v9376 = vunpack.c.l.b16 %v9114
        %v9377 = vunpack.c.h.b16 %v9114
        %v9378 = vunpack.c.l.b16 %v9115
        %v9379 = vunpack.c.h.b16 %v9115
        %v9380 = vunpack.c.l.b16 %v9116
        %v9381 = vunpack.c.h.b16 %v9116
        %v9382 = vunpack.c.l.b16 %v9117
        %v9383 = vunpack.c.h.b16 %v9117
        %v9384 = vunpack.c.l.b16 %v9118
        %v9385 = vunpack.c.h.b16 %v9118
        %v9386 = vunpack.c.l.b16 %v9119
        %v9387 = vunpack.c.h.b16 %v9119
        %v9388 = vunpack.c.l.b16 %v9120
        %v9389 = vunpack.c.h.b16 %v9120
        %v9390 = vunpack.c.l.b16 %v9121
        %v9391 = vunpack.c.h.b16 %v9121
        %v9392 = vunpack.c.l.b16 %v9122
        %v9393 = vunpack.c.h.b16 %v9122
        %v9394 = vunpack.c.l.b16 %v9123
        %v9395 = vunpack.c.h.b16 %v9123
        %v9396 = vunpack.c.l.b16 %v9124
        %v9397 = vunpack.c.h.b16 %v9124
        %v9398 = vunpack.c.l.b16 %v9125
        %v9399 = vunpack.c.h.b16 %v9125
        %v9400 = vunpack.c.l.b16 %v9126
        %v9401 = vunpack.c.h.b16 %v9126
        %v9402 = vunpack.c.l.b16 %v9127
        %v9403 = vunpack.c.h.b16 %v9127
        %v9404 = vunpack.c.l.b16 %v9128
        %v9405 = vunpack.c.h.b16 %v9128
        %v9406 = vunpack.c.l.b16 %v9129
        %v9407 = vunpack.c.h.b16 %v9129
        %v9408 = vunpack.c.l.b16 %v9130
        %v9409 = vunpack.c.h.b16 %v9130
        %v9410 = vunpack.c.l.b16 %v9131
        %v9411 = vunpack.c.h.b16 %v9131
        %v9412 = vunpack.c.l.b16 %v9132
        %v9413 = vunpack.c.h.b16 %v9132
        %v9414 = vunpack.c.l.b16 %v9133
        %v9415 = vunpack.c.h.b16 %v9133
        %v9416 = vunpack.c.l.b16 %v9134
        %v9417 = vunpack.c.h.b16 %v9134
        %v9418 = vunpack.c.l.b16 %v9135
        %v9419 = vunpack.c.h.b16 %v9135
        %v9420 = vunpack.c.l.b16 %v9136
        %v9421 = vunpack.c.h.b16 %v9136
        %v9422 = vunpack.c.l.b16 %v9137
        %v9423 = vunpack.c.h.b16 %v9137
        %v9424 = vunpack.c.l.b16 %v9138
        %v9425 = vunpack.c.h.b16 %v9138
        %v9426 = vunpack.c.l.b16 %v9139
        %v9427 = vunpack.c.h.b16 %v9139
        %v9428 = vunpack.c.l.b16 %v9140
        %v9429 = vunpack.c.h.b16 %v9140
        %v9430 = vunpack.c.l.b16 %v9141
        %v9431 = vunpack.c.h.b16 %v9141
        %v9432 = vunpack.c.l.b16 %v9142
        %v9433 = vunpack.c.h.b16 %v9142
        %v9434 = vunpack.c.l.b16 %v9143
        %v9435 = vunpack.c.h.b16 %v9143
        %v9436 = vunpack.c.l.b16 %v9144
        %v9437 = vunpack.c.h.b16 %v9144
        %v9438 = vunpack.c.l.b16 %v9145
        %v9439 = vunpack.c.h.b16 %v9145
        %v9440 = vunpack.c.l.b16 %v9146
        %v9441 = vunpack.c.h.b16 %v9146
        %v9442 = vunpack.c.l.b16 %v9147
        %v9443 = vunpack.c.h.b16 %v9147
        %v9444 = vunpack.c.l.b16 %v9148
        %v9445 = vunpack.c.h.b16 %v9148
        %v9446 = vunpack.c.l.b16 %v9149
        %v9447 = vunpack.c.h.b16 %v9149
        %v9448 = vunpack.c.l.b16 %v9150
        %v9449 = vunpack.c.h.b16 %v9150
        %v9450 = vunpack.c.l.b16 %v9151
        %v9451 = vunpack.c.h.b16 %v9151
        %v9452 = vpack.c.b16 %v9262, %v9260
        %v9453 = vpack.c.b16 %v9263, %v9261
        %v9454 = vpack.c.b16 %v9266, %v9264
        %v9455 = vpack.c.b16 %v9267, %v9265
        %v9456 = vpack.c.b16 %v9270, %v9268
        %v9457 = vpack.c.b16 %v9271, %v9269
        %v9458 = vpack.c.b16 %v9274, %v9272
        %v9459 = vpack.c.b16 %v9275, %v9273
        %v9460 = vpack.c.b16 %v9278, %v9276
        %v9461 = vpack.c.b16 %v9279, %v9277
        %v9462 = vpack.c.b16 %v9282, %v9280
        %v9463 = vpack.c.b16 %v9283, %v9281
        %v9464 = vpack.c.b16 %v9286, %v9284
        %v9465 = vpack.c.b16 %v9287, %v9285
        %v9466 = vpack.c.b16 %v9290, %v9288
        %v9467 = vpack.c.b16 %v9291, %v9289
        %v9468 = vpack.c.b16 %v9294, %v9292
        %v9469 = vpack.c.b16 %v9295, %v9293
        %v9470 = vpack.c.b16 %v9298, %v9296
        %v9471 = vpack.c.b16 %v9299, %v9297
        %v9472 = vpack.c.b16 %v9302, %v9300
        %v9473 = vpack.c.b16 %v9303, %v9301
        %v9474 = vpack.c.b16 %v9306, %v9304
        %v9475 = vpack.c.b16 %v9307, %v9305
        %v9476 = vpack.c.b16 %v9310, %v9308
        %v9477 = vpack.c.b16 %v9311, %v9309
        %v9478 = vpack.c.b16 %v9314, %v9312
        %v9479 = vpack.c.b16 %v9315, %v9313
        %v9480 = vpack.c.b16 %v9318, %v9316
        %v9481 = vpack.c.b16 %v9319, %v9317
        %v9482 = vpack.c.b16 %v9322, %v9320
        %v9483 = vpack.c.b16 %v9323, %v9321
        %v9484 = vpack.c.b16 %v9326, %v9324
        %v9485 = vpack.c.b16 %v9327, %v9325
        %v9486 = vpack.c.b16 %v9330, %v9328
        %v9487 = vpack.c.b16 %v9331, %v9329
        %v9488 = vpack.c.b16 %v9334, %v9332
        %v9489 = vpack.c.b16 %v9335, %v9333
        %v9490 = vpack.c.b16 %v9338, %v9336
        %v9491 = vpack.c.b16 %v9339, %v9337
        %v9492 = vpack.c.b16 %v9342, %v9340
        %v9493 = vpack.c.b16 %v9343, %v9341
        %v9494 = vpack.c.b16 %v9346, %v9344
        %v9495 = vpack.c.b16 %v9347, %v9345
        %v9496 = vpack.c.b16 %v9350, %v9348
        %v9497 = vpack.c.b16 %v9351, %v9349
        %v9498 = vpack.c.b16 %v9354, %v9352
        %v9499 = vpack.c.b16 %v9355, %v9353
        %v9500 = vpack.c.b16 %v9358, %v9356
        %v9501 = vpack.c.b16 %v9359, %v9357
        %v9502 = vpack.c.b16 %v9362, %v9360
        %v9503 = vpack.c.b16 %v9363, %v9361
        %v9504 = vpack.c.b16 %v9366, %v9364
        %v9505 = vpack.c.b16 %v9367, %v9365
        %v9506 = vpack.c.b16 %v9370, %v9368
        %v9507 = vpack.c.b16 %v9371, %v9369
        %v9508 = vpack.c.b16 %v9374, %v9372
        %v9509 = vpack.c.b16 %v9375, %v9373
        %v9510 = vpack.c.b16 %v9378, %v9376
        %v9511 = vpack.c.b16 %v9379, %v9377
        %v9512 = vpack.c.b16 %v9382, %v9380
        %v9513 = vpack.c.b16 %v9383, %v9381
        %v9514 = vpack.c.b16 %v9386, %v9384
        %v9515 = vpack.c.b16 %v9387, %v9385
        %v9516 = vpack.c.b16 %v9390, %v9388
        %v9517 = vpack.c.b16 %v9391, %v9389
        %v9518 = vpack.c.b16 %v9394, %v9392
        %v9519 = vpack.c.b16 %v9395, %v9393
        %v9520 = vpack.c.b16 %v9398, %v9396
        %v9521 = vpack.c.b16 %v9399, %v9397
        %v9522 = vpack.c.b16 %v9402, %v9400
        %v9523 = vpack.c.b16 %v9403, %v9401
        %v9524 = vpack.c.b16 %v9406, %v9404
        %v9525 = vpack.c.b16 %v9407, %v9405
        %v9526 = vpack.c.b16 %v9410, %v9408
        %v9527 = vpack.c.b16 %v9411, %v9409
        %v9528 = vpack.c.b16 %v9414, %v9412
        %v9529 = vpack.c.b16 %v9415, %v9413
        %v9530 = vpack.c.b16 %v9418, %v9416
        %v9531 = vpack.c.b16 %v9419, %v9417
        %v9532 = vpack.c.b16 %v9422, %v9420
        %v9533 = vpack.c.b16 %v9423, %v9421
        %v9534 = vpack.c.b16 %v9426, %v9424
        %v9535 = vpack.c.b16 %v9427, %v9425
        %v9536 = vpack.c.b16 %v9430, %v9428
        %v9537 = vpack.c.b16 %v9431, %v9429
        %v9538 = vpack.c.b16 %v9434, %v9432
        %v9539 = vpack.c.b16 %v9435, %v9433
        %v9540 = vpack.c.b16 %v9438, %v9436
        %v9541 = vpack.c.b16 %v9439, %v9437
        %v9542 = vpack.c.b16 %v9442, %v9440
        %v9543 = vpack.c.b16 %v9443, %v9441
        %v9544 = vpack.c.b16 %v9446, %v9444
        %v9545 = vpack.c.b16 %v9447, %v9445
        %v9546 = vpack.c.b16 %v9450, %v9448
        %v9547 = vpack.c.b16 %v9451, %v9449
        %9644 = vmatprep.subr.bf16.mxu0 %v9467
        %9645 = vmatpush1.bf16.msra.mxu0 %v9466
        %9646 = vmatprep.subr.bf16.mxu0 %v9465
        %9647 = vmatpush1.bf16.msra.mxu0 %v9464
        %9648 = vmatprep.subr.bf16.mxu0 %v9463
        %9649 = vmatpush1.bf16.msra.mxu0 %v9462
        %9650 = vmatprep.subr.bf16.mxu0 %v9461
        %9651 = vmatpush1.bf16.msra.mxu0 %v9460
        %9652 = vmatprep.subr.bf16.mxu0 %v9459
        %9653 = vmatpush1.bf16.msra.mxu0 %v9458
        %9654 = vmatprep.subr.bf16.mxu0 %v9457
        %9655 = vmatpush1.bf16.msra.mxu0 %v9456
        %9656 = vmatprep.subr.bf16.mxu0 %v9455
        %9657 = vmatpush1.bf16.msra.mxu0 %v9454
        %9658 = vmatprep.subr.bf16.mxu0 %v9453
        %9659 = vmatpush1.bf16.msra.mxu0 %v9452
        %9660 = vmatprep.subr.bf16.mxu0 %v9483
        %9661 = vmatpush2.bf16.msra.mxu0 %v9482
        %9662 = vmatprep.subr.bf16.mxu0 %v9481
        %9663 = vmatpush2.bf16.msra.mxu0 %v9480
        %9664 = vmatprep.subr.bf16.mxu0 %v9479
        %9665 = vmatpush2.bf16.msra.mxu0 %v9478
        %9666 = vmatprep.subr.bf16.mxu0 %v9477
        %9667 = vmatpush2.bf16.msra.mxu0 %v9476
        %9668 = vmatprep.subr.bf16.mxu0 %v9475
        %9669 = vmatpush2.bf16.msra.mxu0 %v9474
        %9670 = vmatprep.subr.bf16.mxu0 %v9473
        %9671 = vmatpush2.bf16.msra.mxu0 %v9472
        %9672 = vmatprep.subr.bf16.mxu0 %v9471
        %9673 = vmatpush2.bf16.msra.mxu0 %v9470
        %9674 = vmatprep.subr.bf16.mxu0 %v9469
        %9675 = vmatpush2.bf16.msra.mxu0 %v9468
        %9676 = vmatprep.mubr.bf16.mxu0 %v8961
        %9677 = vmatmul.mubr.bf16.gmra.mxu0 %v8960
        %v9678 = vpop.f32.mrf.mxu0
        %v9679 = vadd.f32 %v9157, %v9678
        %v9680 = vpop.f32.mrf.mxu0
        %v9681 = vadd.f32 %v9161, %v9680
        %v9682 = vpop.f32.mrf.mxu0
        %v9683 = vadd.f32 %v9157, %v9682
        %v9684 = vpop.f32.mrf.mxu0
        %v9685 = vadd.f32 %v9161, %v9684
        %9686 = vmatprep.mubr.bf16.mxu0 %v8967
        %9687 = vmatmul.mubr.bf16.gmra.mxu0 %v8966
        %v9688 = vpop.f32.mrf.mxu0
        %v9689 = vadd.f32 %v9157, %v9688
        %v9690 = vpop.f32.mrf.mxu0
        %v9691 = vadd.f32 %v9161, %v9690
        %v9692 = vpop.f32.mrf.mxu0
        %v9693 = vadd.f32 %v9157, %v9692
        %v9694 = vpop.f32.mrf.mxu0
        %v9695 = vadd.f32 %v9161, %v9694
        %9696 = vmatprep.mubr.bf16.mxu0 %v8973
        %9697 = vmatmul.mubr.bf16.gmra.mxu0 %v8972
        %v9698 = vpop.f32.mrf.mxu0
        %v9699 = vadd.f32 %v9157, %v9698
        %v9700 = vpop.f32.mrf.mxu0
        %v9701 = vadd.f32 %v9161, %v9700
        %v9702 = vpop.f32.mrf.mxu0
        %v9703 = vadd.f32 %v9157, %v9702
        %v9704 = vpop.f32.mrf.mxu0
        %v9705 = vadd.f32 %v9161, %v9704
        %9706 = vmatprep.mubr.bf16.mxu0 %v8979
        %9707 = vmatmul.mubr.bf16.gmra.mxu0 %v8978
        %v9708 = vpop.f32.mrf.mxu0
        %v9709 = vadd.f32 %v9157, %v9708
        %v9710 = vpop.f32.mrf.mxu0
        %v9711 = vadd.f32 %v9161, %v9710
        %v9712 = vpop.f32.mrf.mxu0
        %v9713 = vadd.f32 %v9157, %v9712
        %v9714 = vpop.f32.mrf.mxu0
        %v9715 = vadd.f32 %v9161, %v9714
        %9716 = vmatprep.mubr.bf16.mxu0 %v8985
        %9717 = vmatmul.mubr.bf16.gmra.mxu0 %v8984
        %v9718 = vpop.f32.mrf.mxu0
        %v9719 = vadd.f32 %v9157, %v9718
        %v9720 = vpop.f32.mrf.mxu0
        %v9721 = vadd.f32 %v9161, %v9720
        %v9722 = vpop.f32.mrf.mxu0
        %v9723 = vadd.f32 %v9157, %v9722
        %v9724 = vpop.f32.mrf.mxu0
        %v9725 = vadd.f32 %v9161, %v9724
        %9726 = vmatprep.mubr.bf16.mxu0 %v8991
        %9727 = vmatmul.mubr.bf16.gmra.mxu0 %v8990
        %v9728 = vpop.f32.mrf.mxu0
        %v9729 = vadd.f32 %v9157, %v9728
        %v9730 = vpop.f32.mrf.mxu0
        %v9731 = vadd.f32 %v9161, %v9730
        %v9732 = vpop.f32.mrf.mxu0
        %v9733 = vadd.f32 %v9157, %v9732
        %v9734 = vpop.f32.mrf.mxu0
        %v9735 = vadd.f32 %v9161, %v9734
        %9736 = vmatprep.mubr.bf16.mxu0 %v8997
        %9737 = vmatmul.mubr.bf16.gmra.mxu0 %v8996
        %v9738 = vpop.f32.mrf.mxu0
        %v9739 = vadd.f32 %v9157, %v9738
        %v9740 = vpop.f32.mrf.mxu0
        %v9741 = vadd.f32 %v9161, %v9740
        %v9742 = vpop.f32.mrf.mxu0
        %v9743 = vadd.f32 %v9157, %v9742
        %v9744 = vpop.f32.mrf.mxu0
        %v9745 = vadd.f32 %v9161, %v9744
        %9746 = vmatprep.mubr.bf16.mxu0 %v9003
        %9747 = vmatmul.mubr.bf16.gmra.mxu0 %v9002
        %v9748 = vpop.f32.mrf.mxu0
        %v9749 = vadd.f32 %v9157, %v9748
        %v9750 = vpop.f32.mrf.mxu0
        %v9751 = vadd.f32 %v9161, %v9750
        %v9752 = vpop.f32.mrf.mxu0
        %v9753 = vadd.f32 %v9157, %v9752
        %v9754 = vpop.f32.mrf.mxu0
        %v9755 = vadd.f32 %v9161, %v9754
        %9756 = vmatprep.mubr.bf16.mxu0 %v9009
        %9757 = vmatmul.mubr.bf16.gmra.mxu0 %v9008
        %v9758 = vpop.f32.mrf.mxu0
        %v9759 = vadd.f32 %v9157, %v9758
        %v9760 = vpop.f32.mrf.mxu0
        %v9761 = vadd.f32 %v9161, %v9760
        %v9762 = vpop.f32.mrf.mxu0
        %v9763 = vadd.f32 %v9157, %v9762
        %v9764 = vpop.f32.mrf.mxu0
        %v9765 = vadd.f32 %v9161, %v9764
        %9766 = vmatprep.mubr.bf16.mxu0 %v9015
        %9767 = vmatmul.mubr.bf16.gmra.mxu0 %v9014
        %v9768 = vpop.f32.mrf.mxu0
        %v9769 = vadd.f32 %v9157, %v9768
        %v9770 = vpop.f32.mrf.mxu0
        %v9771 = vadd.f32 %v9161, %v9770
        %v9772 = vpop.f32.mrf.mxu0
        %v9773 = vadd.f32 %v9157, %v9772
        %v9774 = vpop.f32.mrf.mxu0
        %v9775 = vadd.f32 %v9161, %v9774
        %9776 = vmatprep.mubr.bf16.mxu0 %v9021
        %9777 = vmatmul.mubr.bf16.gmra.mxu0 %v9020
        %v9778 = vpop.f32.mrf.mxu0
        %v9779 = vadd.f32 %v9157, %v9778
        %v9780 = vpop.f32.mrf.mxu0
        %v9781 = vadd.f32 %v9161, %v9780
        %v9782 = vpop.f32.mrf.mxu0
        %v9783 = vadd.f32 %v9157, %v9782
        %v9784 = vpop.f32.mrf.mxu0
        %v9785 = vadd.f32 %v9161, %v9784
        %9786 = vmatprep.mubr.bf16.mxu0 %v9027
        %9787 = vmatmul.mubr.bf16.gmra.mxu0 %v9026
        %v9788 = vpop.f32.mrf.mxu0
        %v9789 = vadd.f32 %v9157, %v9788
        %v9790 = vpop.f32.mrf.mxu0
        %v9791 = vadd.f32 %v9161, %v9790
        %v9792 = vpop.f32.mrf.mxu0
        %v9793 = vadd.f32 %v9157, %v9792
        %v9794 = vpop.f32.mrf.mxu0
        %v9795 = vadd.f32 %v9161, %v9794
        %9796 = vmatprep.mubr.bf16.mxu0 %v9033
        %9797 = vmatmul.mubr.bf16.gmra.mxu0 %v9032
        %v9798 = vpop.f32.mrf.mxu0
        %v9799 = vadd.f32 %v9157, %v9798
        %v9800 = vpop.f32.mrf.mxu0
        %v9801 = vadd.f32 %v9161, %v9800
        %v9802 = vpop.f32.mrf.mxu0
        %v9803 = vadd.f32 %v9157, %v9802
        %v9804 = vpop.f32.mrf.mxu0
        %v9805 = vadd.f32 %v9161, %v9804
        %9806 = vmatprep.mubr.bf16.mxu0 %v9039
        %9807 = vmatmul.mubr.bf16.gmra.mxu0 %v9038
        %v9808 = vpop.f32.mrf.mxu0
        %v9809 = vadd.f32 %v9157, %v9808
        %v9810 = vpop.f32.mrf.mxu0
        %v9811 = vadd.f32 %v9161, %v9810
        %v9812 = vpop.f32.mrf.mxu0
        %v9813 = vadd.f32 %v9157, %v9812
        %v9814 = vpop.f32.mrf.mxu0
        %v9815 = vadd.f32 %v9161, %v9814
        %9816 = vmatprep.mubr.bf16.mxu0 %v9045
        %9817 = vmatmul.mubr.bf16.gmra.mxu0 %v9044
        %v9818 = vpop.f32.mrf.mxu0
        %v9819 = vadd.f32 %v9157, %v9818
        %v9820 = vpop.f32.mrf.mxu0
        %v9821 = vadd.f32 %v9161, %v9820
        %v9822 = vpop.f32.mrf.mxu0
        %v9823 = vadd.f32 %v9157, %v9822
        %v9824 = vpop.f32.mrf.mxu0
        %v9825 = vadd.f32 %v9161, %v9824
        %9826 = vmatprep.mubr.bf16.mxu0 %v9051
        %9827 = vmatmul.mubr.bf16.gmra.mxu0 %v9050
        %v9828 = vpop.f32.mrf.mxu0
        %v9829 = vadd.f32 %v9157, %v9828
        %v9830 = vpop.f32.mrf.mxu0
        %v9831 = vadd.f32 %v9161, %v9830
        %v9832 = vpop.f32.mrf.mxu0
        %v9833 = vadd.f32 %v9157, %v9832
        %v9834 = vpop.f32.mrf.mxu0
        %v9835 = vadd.f32 %v9161, %v9834
        %9836 = vdwg.mxu0
        %9837 = vmatprep.subr.bf16.mxu0 %v9499
        %9838 = vmatpush1.bf16.msra.mxu0 %v9498
        %9839 = vmatprep.subr.bf16.mxu0 %v9497
        %9840 = vmatpush1.bf16.msra.mxu0 %v9496
        %9841 = vmatprep.subr.bf16.mxu0 %v9495
        %9842 = vmatpush1.bf16.msra.mxu0 %v9494
        %9843 = vmatprep.subr.bf16.mxu0 %v9493
        %9844 = vmatpush1.bf16.msra.mxu0 %v9492
        %9845 = vmatprep.subr.bf16.mxu0 %v9491
        %9846 = vmatpush1.bf16.msra.mxu0 %v9490
        %9847 = vmatprep.subr.bf16.mxu0 %v9489
        %9848 = vmatpush1.bf16.msra.mxu0 %v9488
        %9849 = vmatprep.subr.bf16.mxu0 %v9487
        %9850 = vmatpush1.bf16.msra.mxu0 %v9486
        %9851 = vmatprep.subr.bf16.mxu0 %v9485
        %9852 = vmatpush1.bf16.msra.mxu0 %v9484
        %9853 = vmatprep.subr.bf16.mxu0 %v9515
        %9854 = vmatpush2.bf16.msra.mxu0 %v9514
        %9855 = vmatprep.subr.bf16.mxu0 %v9513
        %9856 = vmatpush2.bf16.msra.mxu0 %v9512
        %9857 = vmatprep.subr.bf16.mxu0 %v9511
        %9858 = vmatpush2.bf16.msra.mxu0 %v9510
        %9859 = vmatprep.subr.bf16.mxu0 %v9509
        %9860 = vmatpush2.bf16.msra.mxu0 %v9508
        %9861 = vmatprep.subr.bf16.mxu0 %v9507
        %9862 = vmatpush2.bf16.msra.mxu0 %v9506
        %9863 = vmatprep.subr.bf16.mxu0 %v9505
        %9864 = vmatpush2.bf16.msra.mxu0 %v9504
        %9865 = vmatprep.subr.bf16.mxu0 %v9503
        %9866 = vmatpush2.bf16.msra.mxu0 %v9502
        %9867 = vmatprep.subr.bf16.mxu0 %v9501
        %9868 = vmatpush2.bf16.msra.mxu0 %v9500
        %9869 = vmatprep.mubr.bf16.mxu0 %v8963
        %9870 = vmatmul.mubr.bf16.gmra.mxu0 %v8962
        %v9871 = vpop.f32.mrf.mxu0
        %v9872 = vadd.f32 %v9679, %v9871
        %v9873 = vpop.f32.mrf.mxu0
        %v9874 = vadd.f32 %v9681, %v9873
        %v9875 = vpop.f32.mrf.mxu0
        %v9876 = vadd.f32 %v9683, %v9875
        %v9877 = vpop.f32.mrf.mxu0
        %v9878 = vadd.f32 %v9685, %v9877
        %9879 = vmatprep.mubr.bf16.mxu0 %v8969
        %9880 = vmatmul.mubr.bf16.gmra.mxu0 %v8968
        %v9881 = vpop.f32.mrf.mxu0
        %v9882 = vadd.f32 %v9689, %v9881
        %v9883 = vpop.f32.mrf.mxu0
        %v9884 = vadd.f32 %v9691, %v9883
        %v9885 = vpop.f32.mrf.mxu0
        %v9886 = vadd.f32 %v9693, %v9885
        %v9887 = vpop.f32.mrf.mxu0
        %v9888 = vadd.f32 %v9695, %v9887
        %9889 = vmatprep.mubr.bf16.mxu0 %v8975
        %9890 = vmatmul.mubr.bf16.gmra.mxu0 %v8974
        %v9891 = vpop.f32.mrf.mxu0
        %v9892 = vadd.f32 %v9699, %v9891
        %v9893 = vpop.f32.mrf.mxu0
        %v9894 = vadd.f32 %v9701, %v9893
        %v9895 = vpop.f32.mrf.mxu0
        %v9896 = vadd.f32 %v9703, %v9895
        %v9897 = vpop.f32.mrf.mxu0
        %v9898 = vadd.f32 %v9705, %v9897
        %9899 = vmatprep.mubr.bf16.mxu0 %v8981
        %9900 = vmatmul.mubr.bf16.gmra.mxu0 %v8980
        %v9901 = vpop.f32.mrf.mxu0
        %v9902 = vadd.f32 %v9709, %v9901
        %v9903 = vpop.f32.mrf.mxu0
        %v9904 = vadd.f32 %v9711, %v9903
        %v9905 = vpop.f32.mrf.mxu0
        %v9906 = vadd.f32 %v9713, %v9905
        %v9907 = vpop.f32.mrf.mxu0
        %v9908 = vadd.f32 %v9715, %v9907
        %9909 = vmatprep.mubr.bf16.mxu0 %v8987
        %9910 = vmatmul.mubr.bf16.gmra.mxu0 %v8986
        %v9911 = vpop.f32.mrf.mxu0
        %v9912 = vadd.f32 %v9719, %v9911
        %v9913 = vpop.f32.mrf.mxu0
        %v9914 = vadd.f32 %v9721, %v9913
        %v9915 = vpop.f32.mrf.mxu0
        %v9916 = vadd.f32 %v9723, %v9915
        %v9917 = vpop.f32.mrf.mxu0
        %v9918 = vadd.f32 %v9725, %v9917
        %9919 = vmatprep.mubr.bf16.mxu0 %v8993
        %9920 = vmatmul.mubr.bf16.gmra.mxu0 %v8992
        %v9921 = vpop.f32.mrf.mxu0
        %v9922 = vadd.f32 %v9729, %v9921
        %v9923 = vpop.f32.mrf.mxu0
        %v9924 = vadd.f32 %v9731, %v9923
        %v9925 = vpop.f32.mrf.mxu0
        %v9926 = vadd.f32 %v9733, %v9925
        %v9927 = vpop.f32.mrf.mxu0
        %v9928 = vadd.f32 %v9735, %v9927
        %9929 = vmatprep.mubr.bf16.mxu0 %v8999
        %9930 = vmatmul.mubr.bf16.gmra.mxu0 %v8998
        %v9931 = vpop.f32.mrf.mxu0
        %v9932 = vadd.f32 %v9739, %v9931
        %v9933 = vpop.f32.mrf.mxu0
        %v9934 = vadd.f32 %v9741, %v9933
        %v9935 = vpop.f32.mrf.mxu0
        %v9936 = vadd.f32 %v9743, %v9935
        %v9937 = vpop.f32.mrf.mxu0
        %v9938 = vadd.f32 %v9745, %v9937
        %9939 = vmatprep.mubr.bf16.mxu0 %v9005
        %9940 = vmatmul.mubr.bf16.gmra.mxu0 %v9004
        %v9941 = vpop.f32.mrf.mxu0
        %v9942 = vadd.f32 %v9749, %v9941
        %v9943 = vpop.f32.mrf.mxu0
        %v9944 = vadd.f32 %v9751, %v9943
        %v9945 = vpop.f32.mrf.mxu0
        %v9946 = vadd.f32 %v9753, %v9945
        %v9947 = vpop.f32.mrf.mxu0
        %v9948 = vadd.f32 %v9755, %v9947
        %9949 = vmatprep.mubr.bf16.mxu0 %v9011
        %9950 = vmatmul.mubr.bf16.gmra.mxu0 %v9010
        %v9951 = vpop.f32.mrf.mxu0
        %v9952 = vadd.f32 %v9759, %v9951
        %v9953 = vpop.f32.mrf.mxu0
        %v9954 = vadd.f32 %v9761, %v9953
        %v9955 = vpop.f32.mrf.mxu0
        %v9956 = vadd.f32 %v9763, %v9955
        %v9957 = vpop.f32.mrf.mxu0
        %v9958 = vadd.f32 %v9765, %v9957
        %9959 = vmatprep.mubr.bf16.mxu0 %v9017
        %9960 = vmatmul.mubr.bf16.gmra.mxu0 %v9016
        %v9961 = vpop.f32.mrf.mxu0
        %v9962 = vadd.f32 %v9769, %v9961
        %v9963 = vpop.f32.mrf.mxu0
        %v9964 = vadd.f32 %v9771, %v9963
        %v9965 = vpop.f32.mrf.mxu0
        %v9966 = vadd.f32 %v9773, %v9965
        %v9967 = vpop.f32.mrf.mxu0
        %v9968 = vadd.f32 %v9775, %v9967
        %9969 = vmatprep.mubr.bf16.mxu0 %v9023
        %9970 = vmatmul.mubr.bf16.gmra.mxu0 %v9022
        %v9971 = vpop.f32.mrf.mxu0
        %v9972 = vadd.f32 %v9779, %v9971
        %v9973 = vpop.f32.mrf.mxu0
        %v9974 = vadd.f32 %v9781, %v9973
        %v9975 = vpop.f32.mrf.mxu0
        %v9976 = vadd.f32 %v9783, %v9975
        %v9977 = vpop.f32.mrf.mxu0
        %v9978 = vadd.f32 %v9785, %v9977
        %9979 = vmatprep.mubr.bf16.mxu0 %v9029
        %9980 = vmatmul.mubr.bf16.gmra.mxu0 %v9028
        %v9981 = vpop.f32.mrf.mxu0
        %v9982 = vadd.f32 %v9789, %v9981
        %v9983 = vpop.f32.mrf.mxu0
        %v9984 = vadd.f32 %v9791, %v9983
        %v9985 = vpop.f32.mrf.mxu0
        %v9986 = vadd.f32 %v9793, %v9985
        %v9987 = vpop.f32.mrf.mxu0
        %v9988 = vadd.f32 %v9795, %v9987
        %9989 = vmatprep.mubr.bf16.mxu0 %v9035
        %9990 = vmatmul.mubr.bf16.gmra.mxu0 %v9034
        %v9991 = vpop.f32.mrf.mxu0
        %v9992 = vadd.f32 %v9799, %v9991
        %v9993 = vpop.f32.mrf.mxu0
        %v9994 = vadd.f32 %v9801, %v9993
        %v9995 = vpop.f32.mrf.mxu0
        %v9996 = vadd.f32 %v9803, %v9995
        %v9997 = vpop.f32.mrf.mxu0
        %v9998 = vadd.f32 %v9805, %v9997
        %9999 = vmatprep.mubr.bf16.mxu0 %v9041
        %10000 = vmatmul.mubr.bf16.gmra.mxu0 %v9040
        %v10001 = vpop.f32.mrf.mxu0
        %v10002 = vadd.f32 %v9809, %v10001
        %v10003 = vpop.f32.mrf.mxu0
        %v10004 = vadd.f32 %v9811, %v10003
        %v10005 = vpop.f32.mrf.mxu0
        %v10006 = vadd.f32 %v9813, %v10005
        %v10007 = vpop.f32.mrf.mxu0
        %v10008 = vadd.f32 %v9815, %v10007
        %10009 = vmatprep.mubr.bf16.mxu0 %v9047
        %10010 = vmatmul.mubr.bf16.gmra.mxu0 %v9046
        %v10011 = vpop.f32.mrf.mxu0
        %v10012 = vadd.f32 %v9819, %v10011
        %v10013 = vpop.f32.mrf.mxu0
        %v10014 = vadd.f32 %v9821, %v10013
        %v10015 = vpop.f32.mrf.mxu0
        %v10016 = vadd.f32 %v9823, %v10015
        %v10017 = vpop.f32.mrf.mxu0
        %v10018 = vadd.f32 %v9825, %v10017
        %10019 = vmatprep.mubr.bf16.mxu0 %v9053
        %10020 = vmatmul.mubr.bf16.gmra.mxu0 %v9052
        %v10021 = vpop.f32.mrf.mxu0
        %v10022 = vadd.f32 %v9829, %v10021
        %v10023 = vpop.f32.mrf.mxu0
        %v10024 = vadd.f32 %v9831, %v10023
        %v10025 = vpop.f32.mrf.mxu0
        %v10026 = vadd.f32 %v9833, %v10025
        %v10027 = vpop.f32.mrf.mxu0
        %v10028 = vadd.f32 %v9835, %v10027
        %10029 = vdwg.mxu0
        %10030 = vmatprep.subr.bf16.mxu0 %v9531
        %10031 = vmatpush1.bf16.msra.mxu0 %v9530
        %10032 = vmatprep.subr.bf16.mxu0 %v9529
        %10033 = vmatpush1.bf16.msra.mxu0 %v9528
        %10034 = vmatprep.subr.bf16.mxu0 %v9527
        %10035 = vmatpush1.bf16.msra.mxu0 %v9526
        %10036 = vmatprep.subr.bf16.mxu0 %v9525
        %10037 = vmatpush1.bf16.msra.mxu0 %v9524
        %10038 = vmatprep.subr.bf16.mxu0 %v9523
        %10039 = vmatpush1.bf16.msra.mxu0 %v9522
        %10040 = vmatprep.subr.bf16.mxu0 %v9521
        %10041 = vmatpush1.bf16.msra.mxu0 %v9520
        %10042 = vmatprep.subr.bf16.mxu0 %v9519
        %10043 = vmatpush1.bf16.msra.mxu0 %v9518
        %10044 = vmatprep.subr.bf16.mxu0 %v9517
        %10045 = vmatpush1.bf16.msra.mxu0 %v9516
        %10046 = vmatprep.subr.bf16.mxu0 %v9547
        %10047 = vmatpush2.bf16.msra.mxu0 %v9546
        %10048 = vmatprep.subr.bf16.mxu0 %v9545
        %10049 = vmatpush2.bf16.msra.mxu0 %v9544
        %10050 = vmatprep.subr.bf16.mxu0 %v9543
        %10051 = vmatpush2.bf16.msra.mxu0 %v9542
        %10052 = vmatprep.subr.bf16.mxu0 %v9541
        %10053 = vmatpush2.bf16.msra.mxu0 %v9540
        %10054 = vmatprep.subr.bf16.mxu0 %v9539
        %10055 = vmatpush2.bf16.msra.mxu0 %v9538
        %10056 = vmatprep.subr.bf16.mxu0 %v9537
        %10057 = vmatpush2.bf16.msra.mxu0 %v9536
        %10058 = vmatprep.subr.bf16.mxu0 %v9535
        %10059 = vmatpush2.bf16.msra.mxu0 %v9534
        %10060 = vmatprep.subr.bf16.mxu0 %v9533
        %10061 = vmatpush2.bf16.msra.mxu0 %v9532
        %10062 = vmatprep.mubr.bf16.mxu0 %v8965
        %10063 = vmatmul.mubr.bf16.gmra.mxu0 %v8964
        %v10064 = vpop.f32.mrf.mxu0
        %v10065 = vadd.f32 %v9872, %v10064
        %v10066 = vpop.f32.mrf.mxu0
        %v10067 = vadd.f32 %v9874, %v10066
        %v10068 = vpop.f32.mrf.mxu0
        %v10069 = vadd.f32 %v9876, %v10068
        %v10070 = vpop.f32.mrf.mxu0
        %v10071 = vadd.f32 %v9878, %v10070
        %10072 = vmatprep.mubr.bf16.mxu0 %v8971
        %10073 = vmatmul.mubr.bf16.gmra.mxu0 %v8970
        %v10074 = vpop.f32.mrf.mxu0
        %v10075 = vadd.f32 %v9882, %v10074
        %v10076 = vpop.f32.mrf.mxu0
        %v10077 = vadd.f32 %v9884, %v10076
        %v10078 = vpop.f32.mrf.mxu0
        %v10079 = vadd.f32 %v9886, %v10078
        %v10080 = vpop.f32.mrf.mxu0
        %v10081 = vadd.f32 %v9888, %v10080
        %10082 = vmatprep.mubr.bf16.mxu0 %v8977
        %10083 = vmatmul.mubr.bf16.gmra.mxu0 %v8976
        %v10084 = vpop.f32.mrf.mxu0
        %v10085 = vadd.f32 %v9892, %v10084
        %v10086 = vpop.f32.mrf.mxu0
        %v10087 = vadd.f32 %v9894, %v10086
        %v10088 = vpop.f32.mrf.mxu0
        %v10089 = vadd.f32 %v9896, %v10088
        %v10090 = vpop.f32.mrf.mxu0
        %v10091 = vadd.f32 %v9898, %v10090
        %10092 = vmatprep.mubr.bf16.mxu0 %v8983
        %10093 = vmatmul.mubr.bf16.gmra.mxu0 %v8982
        %v10094 = vpop.f32.mrf.mxu0
        %v10095 = vadd.f32 %v9902, %v10094
        %v10096 = vpop.f32.mrf.mxu0
        %v10097 = vadd.f32 %v9904, %v10096
        %v10098 = vpop.f32.mrf.mxu0
        %v10099 = vadd.f32 %v9906, %v10098
        %v10100 = vpop.f32.mrf.mxu0
        %v10101 = vadd.f32 %v9908, %v10100
        %10102 = vmatprep.mubr.bf16.mxu0 %v8989
        %10103 = vmatmul.mubr.bf16.gmra.mxu0 %v8988
        %v10104 = vpop.f32.mrf.mxu0
        %v10105 = vadd.f32 %v9912, %v10104
        %v10106 = vpop.f32.mrf.mxu0
        %v10107 = vadd.f32 %v9914, %v10106
        %v10108 = vpop.f32.mrf.mxu0
        %v10109 = vadd.f32 %v9916, %v10108
        %v10110 = vpop.f32.mrf.mxu0
        %v10111 = vadd.f32 %v9918, %v10110
        %10112 = vmatprep.mubr.bf16.mxu0 %v8995
        %10113 = vmatmul.mubr.bf16.gmra.mxu0 %v8994
        %v10114 = vpop.f32.mrf.mxu0
        %v10115 = vadd.f32 %v9922, %v10114
        %v10116 = vpop.f32.mrf.mxu0
        %v10117 = vadd.f32 %v9924, %v10116
        %v10118 = vpop.f32.mrf.mxu0
        %v10119 = vadd.f32 %v9926, %v10118
        %v10120 = vpop.f32.mrf.mxu0
        %v10121 = vadd.f32 %v9928, %v10120
        %10122 = vmatprep.mubr.bf16.mxu0 %v9001
        %10123 = vmatmul.mubr.bf16.gmra.mxu0 %v9000
        %v10124 = vpop.f32.mrf.mxu0
        %v10125 = vadd.f32 %v9932, %v10124
        %v10126 = vpop.f32.mrf.mxu0
        %v10127 = vadd.f32 %v9934, %v10126
        %v10128 = vpop.f32.mrf.mxu0
        %v10129 = vadd.f32 %v9936, %v10128
        %v10130 = vpop.f32.mrf.mxu0
        %v10131 = vadd.f32 %v9938, %v10130
        %10132 = vmatprep.mubr.bf16.mxu0 %v9007
        %10133 = vmatmul.mubr.bf16.gmra.mxu0 %v9006
        %v10134 = vpop.f32.mrf.mxu0
        %v10135 = vadd.f32 %v9942, %v10134
        %v10136 = vpop.f32.mrf.mxu0
        %v10137 = vadd.f32 %v9944, %v10136
        %v10138 = vpop.f32.mrf.mxu0
        %v10139 = vadd.f32 %v9946, %v10138
        %v10140 = vpop.f32.mrf.mxu0
        %v10141 = vadd.f32 %v9948, %v10140
        %10142 = vmatprep.mubr.bf16.mxu0 %v9013
        %10143 = vmatmul.mubr.bf16.gmra.mxu0 %v9012
        %v10144 = vpop.f32.mrf.mxu0
        %v10145 = vadd.f32 %v9952, %v10144
        %v10146 = vpop.f32.mrf.mxu0
        %v10147 = vadd.f32 %v9954, %v10146
        %v10148 = vpop.f32.mrf.mxu0
        %v10149 = vadd.f32 %v9956, %v10148
        %v10150 = vpop.f32.mrf.mxu0
        %v10151 = vadd.f32 %v9958, %v10150
        %10152 = vmatprep.mubr.bf16.mxu0 %v9019
        %10153 = vmatmul.mubr.bf16.gmra.mxu0 %v9018
        %v10154 = vpop.f32.mrf.mxu0
        %v10155 = vadd.f32 %v9962, %v10154
        %v10156 = vpop.f32.mrf.mxu0
        %v10157 = vadd.f32 %v9964, %v10156
        %v10158 = vpop.f32.mrf.mxu0
        %v10159 = vadd.f32 %v9966, %v10158
        %v10160 = vpop.f32.mrf.mxu0
        %v10161 = vadd.f32 %v9968, %v10160
        %10162 = vmatprep.mubr.bf16.mxu0 %v9025
        %10163 = vmatmul.mubr.bf16.gmra.mxu0 %v9024
        %v10164 = vpop.f32.mrf.mxu0
        %v10165 = vadd.f32 %v9972, %v10164
        %v10166 = vpop.f32.mrf.mxu0
        %v10167 = vadd.f32 %v9974, %v10166
        %v10168 = vpop.f32.mrf.mxu0
        %v10169 = vadd.f32 %v9976, %v10168
        %v10170 = vpop.f32.mrf.mxu0
        %v10171 = vadd.f32 %v9978, %v10170
        %10172 = vmatprep.mubr.bf16.mxu0 %v9031
        %10173 = vmatmul.mubr.bf16.gmra.mxu0 %v9030
        %v10174 = vpop.f32.mrf.mxu0
        %v10175 = vadd.f32 %v9982, %v10174
        %v10176 = vpop.f32.mrf.mxu0
        %v10177 = vadd.f32 %v9984, %v10176
        %v10178 = vpop.f32.mrf.mxu0
        %v10179 = vadd.f32 %v9986, %v10178
        %v10180 = vpop.f32.mrf.mxu0
        %v10181 = vadd.f32 %v9988, %v10180
        %10182 = vmatprep.mubr.bf16.mxu0 %v9037
        %10183 = vmatmul.mubr.bf16.gmra.mxu0 %v9036
        %v10184 = vpop.f32.mrf.mxu0
        %v10185 = vadd.f32 %v9992, %v10184
        %v10186 = vpop.f32.mrf.mxu0
        %v10187 = vadd.f32 %v9994, %v10186
        %v10188 = vpop.f32.mrf.mxu0
        %v10189 = vadd.f32 %v9996, %v10188
        %v10190 = vpop.f32.mrf.mxu0
        %v10191 = vadd.f32 %v9998, %v10190
        %10192 = vmatprep.mubr.bf16.mxu0 %v9043
        %10193 = vmatmul.mubr.bf16.gmra.mxu0 %v9042
        %v10194 = vpop.f32.mrf.mxu0
        %v10195 = vadd.f32 %v10002, %v10194
        %v10196 = vpop.f32.mrf.mxu0
        %v10197 = vadd.f32 %v10004, %v10196
        %v10198 = vpop.f32.mrf.mxu0
        %v10199 = vadd.f32 %v10006, %v10198
        %v10200 = vpop.f32.mrf.mxu0
        %v10201 = vadd.f32 %v10008, %v10200
        %10202 = vmatprep.mubr.bf16.mxu0 %v9049
        %10203 = vmatmul.mubr.bf16.gmra.mxu0 %v9048
        %v10204 = vpop.f32.mrf.mxu0
        %v10205 = vadd.f32 %v10012, %v10204
        %v10206 = vpop.f32.mrf.mxu0
        %v10207 = vadd.f32 %v10014, %v10206
        %v10208 = vpop.f32.mrf.mxu0
        %v10209 = vadd.f32 %v10016, %v10208
        %v10210 = vpop.f32.mrf.mxu0
        %v10211 = vadd.f32 %v10018, %v10210
        %10212 = vmatprep.mubr.bf16.mxu0 %v9055
        %10213 = vmatmul.mubr.bf16.gmra.mxu0 %v9054
        %v10214 = vpop.f32.mrf.mxu0
        %v10215 = vadd.f32 %v10022, %v10214
        %v10216 = vpop.f32.mrf.mxu0
        %v10217 = vadd.f32 %v10024, %v10216
        %v10218 = vpop.f32.mrf.mxu0
        %v10219 = vadd.f32 %v10026, %v10218
        %v10220 = vpop.f32.mrf.mxu0
        %v10221 = vadd.f32 %v10028, %v10220
        %10222 = vdwg.mxu0
        %vm10223 = vcmp.gt.f32.partialorder %v10065, 0.0
        %vm10224 = vcmp.gt.f32.partialorder %v10067, 0.0
        %vm10225 = vcmp.gt.f32.partialorder %v10069, 0.0
        %vm10226 = vcmp.gt.f32.partialorder %v10071, 0.0
        %vm10227 = vcmp.gt.f32.partialorder %v10075, 0.0
        %vm10228 = vcmp.gt.f32.partialorder %v10077, 0.0
        %vm10229 = vcmp.gt.f32.partialorder %v10079, 0.0
        %vm10230 = vcmp.gt.f32.partialorder %v10081, 0.0
        %vm10231 = vcmp.gt.f32.partialorder %v10085, 0.0
        %vm10232 = vcmp.gt.f32.partialorder %v10087, 0.0
        %vm10233 = vcmp.gt.f32.partialorder %v10089, 0.0
        %vm10234 = vcmp.gt.f32.partialorder %v10091, 0.0
        %vm10235 = vcmp.gt.f32.partialorder %v10095, 0.0
        %vm10236 = vcmp.gt.f32.partialorder %v10097, 0.0
        %vm10237 = vcmp.gt.f32.partialorder %v10099, 0.0
        %vm10238 = vcmp.gt.f32.partialorder %v10101, 0.0
        %vm10239 = vcmp.gt.f32.partialorder %v10105, 0.0
        %vm10240 = vcmp.gt.f32.partialorder %v10107, 0.0
        %vm10241 = vcmp.gt.f32.partialorder %v10109, 0.0
        %vm10242 = vcmp.gt.f32.partialorder %v10111, 0.0
        %vm10243 = vcmp.gt.f32.partialorder %v10115, 0.0
        %vm10244 = vcmp.gt.f32.partialorder %v10117, 0.0
        %vm10245 = vcmp.gt.f32.partialorder %v10119, 0.0
        %vm10246 = vcmp.gt.f32.partialorder %v10121, 0.0
        %vm10247 = vcmp.gt.f32.partialorder %v10125, 0.0
        %vm10248 = vcmp.gt.f32.partialorder %v10127, 0.0
        %vm10249 = vcmp.gt.f32.partialorder %v10129, 0.0
        %vm10250 = vcmp.gt.f32.partialorder %v10131, 0.0
        %vm10251 = vcmp.gt.f32.partialorder %v10135, 0.0
        %vm10252 = vcmp.gt.f32.partialorder %v10137, 0.0
        %vm10253 = vcmp.gt.f32.partialorder %v10139, 0.0
        %vm10254 = vcmp.gt.f32.partialorder %v10141, 0.0
        %vm10255 = vcmp.gt.f32.partialorder %v10145, 0.0
        %vm10256 = vcmp.gt.f32.partialorder %v10147, 0.0
        %vm10257 = vcmp.gt.f32.partialorder %v10149, 0.0
        %vm10258 = vcmp.gt.f32.partialorder %v10151, 0.0
        %vm10259 = vcmp.gt.f32.partialorder %v10155, 0.0
        %vm10260 = vcmp.gt.f32.partialorder %v10157, 0.0
        %vm10261 = vcmp.gt.f32.partialorder %v10159, 0.0
        %vm10262 = vcmp.gt.f32.partialorder %v10161, 0.0
        %vm10263 = vcmp.gt.f32.partialorder %v10165, 0.0
        %vm10264 = vcmp.gt.f32.partialorder %v10167, 0.0
        %vm10265 = vcmp.gt.f32.partialorder %v10169, 0.0
        %vm10266 = vcmp.gt.f32.partialorder %v10171, 0.0
        %vm10267 = vcmp.gt.f32.partialorder %v10175, 0.0
        %vm10268 = vcmp.gt.f32.partialorder %v10177, 0.0
        %vm10269 = vcmp.gt.f32.partialorder %v10179, 0.0
        %vm10270 = vcmp.gt.f32.partialorder %v10181, 0.0
        %vm10271 = vcmp.gt.f32.partialorder %v10185, 0.0
        %vm10272 = vcmp.gt.f32.partialorder %v10187, 0.0
        %vm10273 = vcmp.gt.f32.partialorder %v10189, 0.0
        %vm10274 = vcmp.gt.f32.partialorder %v10191, 0.0
        %vm10275 = vcmp.gt.f32.partialorder %v10195, 0.0
        %vm10276 = vcmp.gt.f32.partialorder %v10197, 0.0
        %vm10277 = vcmp.gt.f32.partialorder %v10199, 0.0
        %vm10278 = vcmp.gt.f32.partialorder %v10201, 0.0
        %vm10279 = vcmp.gt.f32.partialorder %v10205, 0.0
        %vm10280 = vcmp.gt.f32.partialorder %v10207, 0.0
        %vm10281 = vcmp.gt.f32.partialorder %v10209, 0.0
        %vm10282 = vcmp.gt.f32.partialorder %v10211, 0.0
        %vm10283 = vcmp.gt.f32.partialorder %v10215, 0.0
        %vm10284 = vcmp.gt.f32.partialorder %v10217, 0.0
        %vm10285 = vcmp.gt.f32.partialorder %v10219, 0.0
        %vm10286 = vcmp.gt.f32.partialorder %v10221, 0.0
        %v10287 = vmin.f32 %v10065, 0.0
        %v10288 = vmin.f32 %v10067, 0.0
        %v10289 = vmin.f32 %v10069, 0.0
        %v10290 = vmin.f32 %v10071, 0.0
        %v10291 = vmin.f32 %v10075, 0.0
        %v10292 = vmin.f32 %v10077, 0.0
        %v10293 = vmin.f32 %v10079, 0.0
        %v10294 = vmin.f32 %v10081, 0.0
        %v10295 = vmin.f32 %v10085, 0.0
        %v10296 = vmin.f32 %v10087, 0.0
        %v10297 = vmin.f32 %v10089, 0.0
        %v10298 = vmin.f32 %v10091, 0.0
        %v10299 = vmin.f32 %v10095, 0.0
        %v10300 = vmin.f32 %v10097, 0.0
        %v10301 = vmin.f32 %v10099, 0.0
        %v10302 = vmin.f32 %v10101, 0.0
        %v10303 = vmin.f32 %v10105, 0.0
        %v10304 = vmin.f32 %v10107, 0.0
        %v10305 = vmin.f32 %v10109, 0.0
        %v10306 = vmin.f32 %v10111, 0.0
        %v10307 = vmin.f32 %v10115, 0.0
        %v10308 = vmin.f32 %v10117, 0.0
        %v10309 = vmin.f32 %v10119, 0.0
        %v10310 = vmin.f32 %v10121, 0.0
        %v10311 = vmin.f32 %v10125, 0.0
        %v10312 = vmin.f32 %v10127, 0.0
        %v10313 = vmin.f32 %v10129, 0.0
        %v10314 = vmin.f32 %v10131, 0.0
        %v10315 = vmin.f32 %v10135, 0.0
        %v10316 = vmin.f32 %v10137, 0.0
        %v10317 = vmin.f32 %v10139, 0.0
        %v10318 = vmin.f32 %v10141, 0.0
        %v10319 = vmin.f32 %v10145, 0.0
        %v10320 = vmin.f32 %v10147, 0.0
        %v10321 = vmin.f32 %v10149, 0.0
        %v10322 = vmin.f32 %v10151, 0.0
        %v10323 = vmin.f32 %v10155, 0.0
        %v10324 = vmin.f32 %v10157, 0.0
        %v10325 = vmin.f32 %v10159, 0.0
        %v10326 = vmin.f32 %v10161, 0.0
        %v10327 = vmin.f32 %v10165, 0.0
        %v10328 = vmin.f32 %v10167, 0.0
        %v10329 = vmin.f32 %v10169, 0.0
        %v10330 = vmin.f32 %v10171, 0.0
        %v10331 = vmin.f32 %v10175, 0.0
        %v10332 = vmin.f32 %v10177, 0.0
        %v10333 = vmin.f32 %v10179, 0.0
        %v10334 = vmin.f32 %v10181, 0.0
        %v10335 = vmin.f32 %v10185, 0.0
        %v10336 = vmin.f32 %v10187, 0.0
        %v10337 = vmin.f32 %v10189, 0.0
        %v10338 = vmin.f32 %v10191, 0.0
        %v10339 = vmin.f32 %v10195, 0.0
        %v10340 = vmin.f32 %v10197, 0.0
        %v10341 = vmin.f32 %v10199, 0.0
        %v10342 = vmin.f32 %v10201, 0.0
        %v10343 = vmin.f32 %v10205, 0.0
        %v10344 = vmin.f32 %v10207, 0.0
        %v10345 = vmin.f32 %v10209, 0.0
        %v10346 = vmin.f32 %v10211, 0.0
        %v10347 = vmin.f32 %v10215, 0.0
        %v10348 = vmin.f32 %v10217, 0.0
        %v10349 = vmin.f32 %v10219, 0.0
        %v10350 = vmin.f32 %v10221, 0.0
        %v10351 = vmul.f32 %v10287, 1.442695
        %v10352 = vpow.pop %v10351
        %v10353 = vmul.f32 %v10288, 1.442695
        %v10354 = vpow.pop %v10353
        %v10355 = vmul.f32 %v10289, 1.442695
        %v10356 = vpow.pop %v10355
        %v10357 = vmul.f32 %v10290, 1.442695
        %v10358 = vpow.pop %v10357
        %v10359 = vmul.f32 %v10291, 1.442695
        %v10360 = vpow.pop %v10359
        %v10361 = vmul.f32 %v10292, 1.442695
        %v10362 = vpow.pop %v10361
        %v10363 = vmul.f32 %v10293, 1.442695
        %v10364 = vpow.pop %v10363
        %v10365 = vmul.f32 %v10294, 1.442695
        %v10366 = vpow.pop %v10365
        %v10367 = vmul.f32 %v10295, 1.442695
        %v10368 = vpow.pop %v10367
        %v10369 = vmul.f32 %v10296, 1.442695
        %v10370 = vpow.pop %v10369
        %v10371 = vmul.f32 %v10297, 1.442695
        %v10372 = vpow.pop %v10371
        %v10373 = vmul.f32 %v10298, 1.442695
        %v10374 = vpow.pop %v10373
        %v10375 = vmul.f32 %v10299, 1.442695
        %v10376 = vpow.pop %v10375
        %v10377 = vmul.f32 %v10300, 1.442695
        %v10378 = vpow.pop %v10377
        %v10379 = vmul.f32 %v10301, 1.442695
        %v10380 = vpow.pop %v10379
        %v10381 = vmul.f32 %v10302, 1.442695
        %v10382 = vpow.pop %v10381
        %v10383 = vmul.f32 %v10303, 1.442695
        %v10384 = vpow.pop %v10383
        %v10385 = vmul.f32 %v10304, 1.442695
        %v10386 = vpow.pop %v10385
        %v10387 = vmul.f32 %v10305, 1.442695
        %v10388 = vpow.pop %v10387
        %v10389 = vmul.f32 %v10306, 1.442695
        %v10390 = vpow.pop %v10389
        %v10391 = vmul.f32 %v10307, 1.442695
        %v10392 = vpow.pop %v10391
        %v10393 = vmul.f32 %v10308, 1.442695
        %v10394 = vpow.pop %v10393
        %v10395 = vmul.f32 %v10309, 1.442695
        %v10396 = vpow.pop %v10395
        %v10397 = vmul.f32 %v10310, 1.442695
        %v10398 = vpow.pop %v10397
        %v10399 = vmul.f32 %v10311, 1.442695
        %v10400 = vpow.pop %v10399
        %v10401 = vmul.f32 %v10312, 1.442695
        %v10402 = vpow.pop %v10401
        %v10403 = vmul.f32 %v10313, 1.442695
        %v10404 = vpow.pop %v10403
        %v10405 = vmul.f32 %v10314, 1.442695
        %v10406 = vpow.pop %v10405
        %v10407 = vmul.f32 %v10315, 1.442695
        %v10408 = vpow.pop %v10407
        %v10409 = vmul.f32 %v10316, 1.442695
        %v10410 = vpow.pop %v10409
        %v10411 = vmul.f32 %v10317, 1.442695
        %v10412 = vpow.pop %v10411
        %v10413 = vmul.f32 %v10318, 1.442695
        %v10414 = vpow.pop %v10413
        %v10415 = vmul.f32 %v10319, 1.442695
        %v10416 = vpow.pop %v10415
        %v10417 = vmul.f32 %v10320, 1.442695
        %v10418 = vpow.pop %v10417
        %v10419 = vmul.f32 %v10321, 1.442695
        %v10420 = vpow.pop %v10419
        %v10421 = vmul.f32 %v10322, 1.442695
        %v10422 = vpow.pop %v10421
        %v10423 = vmul.f32 %v10323, 1.442695
        %v10424 = vpow.pop %v10423
        %v10425 = vmul.f32 %v10324, 1.442695
        %v10426 = vpow.pop %v10425
        %v10427 = vmul.f32 %v10325, 1.442695
        %v10428 = vpow.pop %v10427
        %v10429 = vmul.f32 %v10326, 1.442695
        %v10430 = vpow.pop %v10429
        %v10431 = vmul.f32 %v10327, 1.442695
        %v10432 = vpow.pop %v10431
        %v10433 = vmul.f32 %v10328, 1.442695
        %v10434 = vpow.pop %v10433
        %v10435 = vmul.f32 %v10329, 1.442695
        %v10436 = vpow.pop %v10435
        %v10437 = vmul.f32 %v10330, 1.442695
        %v10438 = vpow.pop %v10437
        %v10439 = vmul.f32 %v10331, 1.442695
        %v10440 = vpow.pop %v10439
        %v10441 = vmul.f32 %v10332, 1.442695
        %v10442 = vpow.pop %v10441
        %v10443 = vmul.f32 %v10333, 1.442695
        %v10444 = vpow.pop %v10443
        %v10445 = vmul.f32 %v10334, 1.442695
        %v10446 = vpow.pop %v10445
        %v10447 = vmul.f32 %v10335, 1.442695
        %v10448 = vpow.pop %v10447
        %v10449 = vmul.f32 %v10336, 1.442695
        %v10450 = vpow.pop %v10449
        %v10451 = vmul.f32 %v10337, 1.442695
        %v10452 = vpow.pop %v10451
        %v10453 = vmul.f32 %v10338, 1.442695
        %v10454 = vpow.pop %v10453
        %v10455 = vmul.f32 %v10339, 1.442695
        %v10456 = vpow.pop %v10455
        %v10457 = vmul.f32 %v10340, 1.442695
        %v10458 = vpow.pop %v10457
        %v10459 = vmul.f32 %v10341, 1.442695
        %v10460 = vpow.pop %v10459
        %v10461 = vmul.f32 %v10342, 1.442695
        %v10462 = vpow.pop %v10461
        %v10463 = vmul.f32 %v10343, 1.442695
        %v10464 = vpow.pop %v10463
        %v10465 = vmul.f32 %v10344, 1.442695
        %v10466 = vpow.pop %v10465
        %v10467 = vmul.f32 %v10345, 1.442695
        %v10468 = vpow.pop %v10467
        %v10469 = vmul.f32 %v10346, 1.442695
        %v10470 = vpow.pop %v10469
        %v10471 = vmul.f32 %v10347, 1.442695
        %v10472 = vpow.pop %v10471
        %v10473 = vmul.f32 %v10348, 1.442695
        %v10474 = vpow.pop %v10473
        %v10475 = vmul.f32 %v10349, 1.442695
        %v10476 = vpow.pop %v10475
        %v10477 = vmul.f32 %v10350, 1.442695
        %v10478 = vpow.pop %v10477
        %v10479 = vsub.f32 %v10352, 1.0
        %v10480 = vsub.f32 %v10354, 1.0
        %v10481 = vsub.f32 %v10356, 1.0
        %v10482 = vsub.f32 %v10358, 1.0
        %v10483 = vsub.f32 %v10360, 1.0
        %v10484 = vsub.f32 %v10362, 1.0
        %v10485 = vsub.f32 %v10364, 1.0
        %v10486 = vsub.f32 %v10366, 1.0
        %v10487 = vsub.f32 %v10368, 1.0
        %v10488 = vsub.f32 %v10370, 1.0
        %v10489 = vsub.f32 %v10372, 1.0
        %v10490 = vsub.f32 %v10374, 1.0
        %v10491 = vsub.f32 %v10376, 1.0
        %v10492 = vsub.f32 %v10378, 1.0
        %v10493 = vsub.f32 %v10380, 1.0
        %v10494 = vsub.f32 %v10382, 1.0
        %v10495 = vsub.f32 %v10384, 1.0
        %v10496 = vsub.f32 %v10386, 1.0
        %v10497 = vsub.f32 %v10388, 1.0
        %v10498 = vsub.f32 %v10390, 1.0
        %v10499 = vsub.f32 %v10392, 1.0
        %v10500 = vsub.f32 %v10394, 1.0
        %v10501 = vsub.f32 %v10396, 1.0
        %v10502 = vsub.f32 %v10398, 1.0
        %v10503 = vsub.f32 %v10400, 1.0
        %v10504 = vsub.f32 %v10402, 1.0
        %v10505 = vsub.f32 %v10404, 1.0
        %v10506 = vsub.f32 %v10406, 1.0
        %v10507 = vsub.f32 %v10408, 1.0
        %v10508 = vsub.f32 %v10410, 1.0
        %v10509 = vsub.f32 %v10412, 1.0
        %v10510 = vsub.f32 %v10414, 1.0
        %v10511 = vsub.f32 %v10416, 1.0
        %v10512 = vsub.f32 %v10418, 1.0
        %v10513 = vsub.f32 %v10420, 1.0
        %v10514 = vsub.f32 %v10422, 1.0
        %v10515 = vsub.f32 %v10424, 1.0
        %v10516 = vsub.f32 %v10426, 1.0
        %v10517 = vsub.f32 %v10428, 1.0
        %v10518 = vsub.f32 %v10430, 1.0
        %v10519 = vsub.f32 %v10432, 1.0
        %v10520 = vsub.f32 %v10434, 1.0
        %v10521 = vsub.f32 %v10436, 1.0
        %v10522 = vsub.f32 %v10438, 1.0
        %v10523 = vsub.f32 %v10440, 1.0
        %v10524 = vsub.f32 %v10442, 1.0
        %v10525 = vsub.f32 %v10444, 1.0
        %v10526 = vsub.f32 %v10446, 1.0
        %v10527 = vsub.f32 %v10448, 1.0
        %v10528 = vsub.f32 %v10450, 1.0
        %v10529 = vsub.f32 %v10452, 1.0
        %v10530 = vsub.f32 %v10454, 1.0
        %v10531 = vsub.f32 %v10456, 1.0
        %v10532 = vsub.f32 %v10458, 1.0
        %v10533 = vsub.f32 %v10460, 1.0
        %v10534 = vsub.f32 %v10462, 1.0
        %v10535 = vsub.f32 %v10464, 1.0
        %v10536 = vsub.f32 %v10466, 1.0
        %v10537 = vsub.f32 %v10468, 1.0
        %v10538 = vsub.f32 %v10470, 1.0
        %v10539 = vsub.f32 %v10472, 1.0
        %v10540 = vsub.f32 %v10474, 1.0
        %v10541 = vsub.f32 %v10476, 1.0
        %v10542 = vsub.f32 %v10478, 1.0
        %v10543 = vsel %vm10223, %v10065, %v10479
        %v10544 = vsel %vm10224, %v10067, %v10480
        %v10545 = vsel %vm10225, %v10069, %v10481
        %v10546 = vsel %vm10226, %v10071, %v10482
        %v10547 = vsel %vm10227, %v10075, %v10483
        %v10548 = vsel %vm10228, %v10077, %v10484
        %v10549 = vsel %vm10229, %v10079, %v10485
        %v10550 = vsel %vm10230, %v10081, %v10486
        %v10551 = vsel %vm10231, %v10085, %v10487
        %v10552 = vsel %vm10232, %v10087, %v10488
        %v10553 = vsel %vm10233, %v10089, %v10489
        %v10554 = vsel %vm10234, %v10091, %v10490
        %v10555 = vsel %vm10235, %v10095, %v10491
        %v10556 = vsel %vm10236, %v10097, %v10492
        %v10557 = vsel %vm10237, %v10099, %v10493
        %v10558 = vsel %vm10238, %v10101, %v10494
        %v10559 = vsel %vm10239, %v10105, %v10495
        %v10560 = vsel %vm10240, %v10107, %v10496
        %v10561 = vsel %vm10241, %v10109, %v10497
        %v10562 = vsel %vm10242, %v10111, %v10498
        %v10563 = vsel %vm10243, %v10115, %v10499
        %v10564 = vsel %vm10244, %v10117, %v10500
        %v10565 = vsel %vm10245, %v10119, %v10501
        %v10566 = vsel %vm10246, %v10121, %v10502
        %v10567 = vsel %vm10247, %v10125, %v10503
        %v10568 = vsel %vm10248, %v10127, %v10504
        %v10569 = vsel %vm10249, %v10129, %v10505
        %v10570 = vsel %vm10250, %v10131, %v10506
        %v10571 = vsel %vm10251, %v10135, %v10507
        %v10572 = vsel %vm10252, %v10137, %v10508
        %v10573 = vsel %vm10253, %v10139, %v10509
        %v10574 = vsel %vm10254, %v10141, %v10510
        %v10575 = vsel %vm10255, %v10145, %v10511
        %v10576 = vsel %vm10256, %v10147, %v10512
        %v10577 = vsel %vm10257, %v10149, %v10513
        %v10578 = vsel %vm10258, %v10151, %v10514
        %v10579 = vsel %vm10259, %v10155, %v10515
        %v10580 = vsel %vm10260, %v10157, %v10516
        %v10581 = vsel %vm10261, %v10159, %v10517
        %v10582 = vsel %vm10262, %v10161, %v10518
        %v10583 = vsel %vm10263, %v10165, %v10519
        %v10584 = vsel %vm10264, %v10167, %v10520
        %v10585 = vsel %vm10265, %v10169, %v10521
        %v10586 = vsel %vm10266, %v10171, %v10522
        %v10587 = vsel %vm10267, %v10175, %v10523
        %v10588 = vsel %vm10268, %v10177, %v10524
        %v10589 = vsel %vm10269, %v10179, %v10525
        %v10590 = vsel %vm10270, %v10181, %v10526
        %v10591 = vsel %vm10271, %v10185, %v10527
        %v10592 = vsel %vm10272, %v10187, %v10528
        %v10593 = vsel %vm10273, %v10189, %v10529
        %v10594 = vsel %vm10274, %v10191, %v10530
        %v10595 = vsel %vm10275, %v10195, %v10531
        %v10596 = vsel %vm10276, %v10197, %v10532
        %v10597 = vsel %vm10277, %v10199, %v10533
        %v10598 = vsel %vm10278, %v10201, %v10534
        %v10599 = vsel %vm10279, %v10205, %v10535
        %v10600 = vsel %vm10280, %v10207, %v10536
        %v10601 = vsel %vm10281, %v10209, %v10537
        %v10602 = vsel %vm10282, %v10211, %v10538
        %v10603 = vsel %vm10283, %v10215, %v10539
        %v10604 = vsel %vm10284, %v10217, %v10540
        %v10605 = vsel %vm10285, %v10219, %v10541
        %v10606 = vsel %vm10286, %v10221, %v10542
        %v10607 = vld [vmem:[%s8] sm:$0xff]
        %v10608 = vld [vmem:[%s8 + $0x8] sm:$0xff]
        %v10609 = vld [vmem:[%s8 + $0x10] sm:$0xff]
        %v10610 = vld [vmem:[%s8 + $0x18] sm:$0xff]
        %v10611 = vld [vmem:[%s8 + $0x20] sm:$0xff]
        %v10612 = vld [vmem:[%s8 + $0x28] sm:$0xff]
        %v10613 = vld [vmem:[%s8 + $0x30] sm:$0xff]
        %v10614 = vld [vmem:[%s8 + $0x38] sm:$0xff]
        %v10615 = vld [vmem:[%s7] sm:$0xff]
        %v10616 = vld [vmem:[%s7 + $0x8] sm:$0xff]
        %v10617 = vld [vmem:[%s7 + $0x10] sm:$0xff]
        %v10618 = vld [vmem:[%s7 + $0x18] sm:$0xff]
        %v10619 = vld [vmem:[%s7 + $0x20] sm:$0xff]
        %v10620 = vld [vmem:[%s7 + $0x28] sm:$0xff]
        %v10621 = vld [vmem:[%s7 + $0x30] sm:$0xff]
        %v10622 = vld [vmem:[%s7 + $0x38] sm:$0xff]
        %v10623 = vld [vmem:[%s7 + $0x40] sm:$0xff]
        %v10624 = vld [vmem:[%s7 + $0x48] sm:$0xff]
        %v10625 = vld [vmem:[%s7 + $0x50] sm:$0xff]
        %v10626 = vld [vmem:[%s7 + $0x58] sm:$0xff]
        %v10627 = vld [vmem:[%s7 + $0x60] sm:$0xff]
        %v10628 = vld [vmem:[%s7 + $0x68] sm:$0xff]
        %v10629 = vld [vmem:[%s7 + $0x70] sm:$0xff]
        %v10630 = vld [vmem:[%s7 + $0x78] sm:$0xff]
        %v10631 = vld [vmem:[%s7 + $0x80] sm:$0xff]
        %v10632 = vld [vmem:[%s7 + $0x88] sm:$0xff]
        %v10633 = vld [vmem:[%s7 + $0x90] sm:$0xff]
        %v10634 = vld [vmem:[%s7 + $0x98] sm:$0xff]
        %v10635 = vld [vmem:[%s7 + $0xa0] sm:$0xff]
        %v10636 = vld [vmem:[%s7 + $0xa8] sm:$0xff]
        %v10637 = vld [vmem:[%s7 + $0xb0] sm:$0xff]
        %v10638 = vld [vmem:[%s7 + $0xb8] sm:$0xff]
        %v10639 = vld [vmem:[%s7 + $0xc0] sm:$0xff]
        %v10640 = vld [vmem:[%s7 + $0xc8] sm:$0xff]
        %v10641 = vld [vmem:[%s7 + $0xd0] sm:$0xff]
        %v10642 = vld [vmem:[%s7 + $0xd8] sm:$0xff]
        %v10643 = vld [vmem:[%s7 + $0xe0] sm:$0xff]
        %v10644 = vld [vmem:[%s7 + $0xe8] sm:$0xff]
        %v10645 = vld [vmem:[%s7 + $0xf0] sm:$0xff]
        %v10646 = vld [vmem:[%s7 + $0xf8] sm:$0xff]
        %v10647 = vunpack.c.l.bf16 %v10615
        %v10648 = vunpack.c.h.bf16 %v10615
        %v10649 = vunpack.c.l.bf16 %v10616
        %v10650 = vunpack.c.h.bf16 %v10616
        %v10651 = vunpack.c.l.bf16 %v10617
        %v10652 = vunpack.c.h.bf16 %v10617
        %v10653 = vunpack.c.l.bf16 %v10618
        %v10654 = vunpack.c.h.bf16 %v10618
        %v10655 = vunpack.c.l.bf16 %v10619
        %v10656 = vunpack.c.h.bf16 %v10619
        %v10657 = vunpack.c.l.bf16 %v10620
        %v10658 = vunpack.c.h.bf16 %v10620
        %v10659 = vunpack.c.l.bf16 %v10621
        %v10660 = vunpack.c.h.bf16 %v10621
        %v10661 = vunpack.c.l.bf16 %v10622
        %v10662 = vunpack.c.h.bf16 %v10622
        %v10663 = vunpack.c.l.bf16 %v10623
        %v10664 = vunpack.c.h.bf16 %v10623
        %v10665 = vunpack.c.l.bf16 %v10624
        %v10666 = vunpack.c.h.bf16 %v10624
        %v10667 = vunpack.c.l.bf16 %v10625
        %v10668 = vunpack.c.h.bf16 %v10625
        %v10669 = vunpack.c.l.bf16 %v10626
        %v10670 = vunpack.c.h.bf16 %v10626
        %v10671 = vunpack.c.l.bf16 %v10627
        %v10672 = vunpack.c.h.bf16 %v10627
        %v10673 = vunpack.c.l.bf16 %v10628
        %v10674 = vunpack.c.h.bf16 %v10628
        %v10675 = vunpack.c.l.bf16 %v10629
        %v10676 = vunpack.c.h.bf16 %v10629
        %v10677 = vunpack.c.l.bf16 %v10630
        %v10678 = vunpack.c.h.bf16 %v10630
        %v10679 = vunpack.c.l.bf16 %v10631
        %v10680 = vunpack.c.h.bf16 %v10631
        %v10681 = vunpack.c.l.bf16 %v10632
        %v10682 = vunpack.c.h.bf16 %v10632
        %v10683 = vunpack.c.l.bf16 %v10633
        %v10684 = vunpack.c.h.bf16 %v10633
        %v10685 = vunpack.c.l.bf16 %v10634
        %v10686 = vunpack.c.h.bf16 %v10634
        %v10687 = vunpack.c.l.bf16 %v10635
        %v10688 = vunpack.c.h.bf16 %v10635
        %v10689 = vunpack.c.l.bf16 %v10636
        %v10690 = vunpack.c.h.bf16 %v10636
        %v10691 = vunpack.c.l.bf16 %v10637
        %v10692 = vunpack.c.h.bf16 %v10637
        %v10693 = vunpack.c.l.bf16 %v10638
        %v10694 = vunpack.c.h.bf16 %v10638
        %v10695 = vunpack.c.l.bf16 %v10639
        %v10696 = vunpack.c.h.bf16 %v10639
        %v10697 = vunpack.c.l.bf16 %v10640
        %v10698 = vunpack.c.h.bf16 %v10640
        %v10699 = vunpack.c.l.bf16 %v10641
        %v10700 = vunpack.c.h.bf16 %v10641
        %v10701 = vunpack.c.l.bf16 %v10642
        %v10702 = vunpack.c.h.bf16 %v10642
        %v10703 = vunpack.c.l.bf16 %v10643
        %v10704 = vunpack.c.h.bf16 %v10643
        %v10705 = vunpack.c.l.bf16 %v10644
        %v10706 = vunpack.c.h.bf16 %v10644
        %v10707 = vunpack.c.l.bf16 %v10645
        %v10708 = vunpack.c.h.bf16 %v10645
        %v10709 = vunpack.c.l.bf16 %v10646
        %v10710 = vunpack.c.h.bf16 %v10646
        %v10711 = vmul.f32 %v10543, %v10647
        %v10712 = vmul.f32 %v10544, %v10648
        %v10713 = vmul.f32 %v10545, %v10649
        %v10714 = vmul.f32 %v10546, %v10650
        %v10715 = vmul.f32 %v10547, %v10651
        %v10716 = vmul.f32 %v10548, %v10652
        %v10717 = vmul.f32 %v10549, %v10653
        %v10718 = vmul.f32 %v10550, %v10654
        %v10719 = vmul.f32 %v10551, %v10655
        %v10720 = vmul.f32 %v10552, %v10656
        %v10721 = vmul.f32 %v10553, %v10657
        %v10722 = vmul.f32 %v10554, %v10658
        %v10723 = vmul.f32 %v10555, %v10659
        %v10724 = vmul.f32 %v10556, %v10660
        %v10725 = vmul.f32 %v10557, %v10661
        %v10726 = vmul.f32 %v10558, %v10662
        %v10727 = vmul.f32 %v10559, %v10663
        %v10728 = vmul.f32 %v10560, %v10664
        %v10729 = vmul.f32 %v10561, %v10665
        %v10730 = vmul.f32 %v10562, %v10666
        %v10731 = vmul.f32 %v10563, %v10667
        %v10732 = vmul.f32 %v10564, %v10668
        %v10733 = vmul.f32 %v10565, %v10669
        %v10734 = vmul.f32 %v10566, %v10670
        %v10735 = vmul.f32 %v10567, %v10671
        %v10736 = vmul.f32 %v10568, %v10672
        %v10737 = vmul.f32 %v10569, %v10673
        %v10738 = vmul.f32 %v10570, %v10674
        %v10739 = vmul.f32 %v10571, %v10675
        %v10740 = vmul.f32 %v10572, %v10676
        %v10741 = vmul.f32 %v10573, %v10677
        %v10742 = vmul.f32 %v10574, %v10678
        %v10743 = vmul.f32 %v10575, %v10679
        %v10744 = vmul.f32 %v10576, %v10680
        %v10745 = vmul.f32 %v10577, %v10681
        %v10746 = vmul.f32 %v10578, %v10682
        %v10747 = vmul.f32 %v10579, %v10683
        %v10748 = vmul.f32 %v10580, %v10684
        %v10749 = vmul.f32 %v10581, %v10685
        %v10750 = vmul.f32 %v10582, %v10686
        %v10751 = vmul.f32 %v10583, %v10687
        %v10752 = vmul.f32 %v10584, %v10688
        %v10753 = vmul.f32 %v10585, %v10689
        %v10754 = vmul.f32 %v10586, %v10690
        %v10755 = vmul.f32 %v10587, %v10691
        %v10756 = vmul.f32 %v10588, %v10692
        %v10757 = vmul.f32 %v10589, %v10693
        %v10758 = vmul.f32 %v10590, %v10694
        %v10759 = vmul.f32 %v10591, %v10695
        %v10760 = vmul.f32 %v10592, %v10696
        %v10761 = vmul.f32 %v10593, %v10697
        %v10762 = vmul.f32 %v10594, %v10698
        %v10763 = vmul.f32 %v10595, %v10699
        %v10764 = vmul.f32 %v10596, %v10700
        %v10765 = vmul.f32 %v10597, %v10701
        %v10766 = vmul.f32 %v10598, %v10702
        %v10767 = vmul.f32 %v10599, %v10703
        %v10768 = vmul.f32 %v10600, %v10704
        %v10769 = vmul.f32 %v10601, %v10705
        %v10770 = vmul.f32 %v10602, %v10706
        %v10771 = vmul.f32 %v10603, %v10707
        %v10772 = vmul.f32 %v10604, %v10708
        %v10773 = vmul.f32 %v10605, %v10709
        %v10774 = vmul.f32 %v10606, %v10710
        %10775 = vmatprep.subr.mxu0 %v10742
        %10776 = vmatpush1.msra.mxu0 %v10741
        %10777 = vmatprep.subr.mxu0 %v10740
        %10778 = vmatpush1.msra.mxu0 %v10739
        %10779 = vmatprep.subr.mxu0 %v10738
        %10780 = vmatpush1.msra.mxu0 %v10737
        %10781 = vmatprep.subr.mxu0 %v10736
        %10782 = vmatpush1.msra.mxu0 %v10735
        %10783 = vmatprep.subr.mxu0 %v10734
        %10784 = vmatpush1.msra.mxu0 %v10733
        %10785 = vmatprep.subr.mxu0 %v10732
        %10786 = vmatpush1.msra.mxu0 %v10731
        %10787 = vmatprep.subr.mxu0 %v10730
        %10788 = vmatpush1.msra.mxu0 %v10729
        %10789 = vmatprep.subr.mxu0 %v10728
        %10790 = vmatpush1.msra.mxu0 %v10727
        %10791 = vmatprep.subr.mxu0 %v10726
        %10792 = vmatpush1.msra.mxu0 %v10725
        %10793 = vmatprep.subr.mxu0 %v10724
        %10794 = vmatpush1.msra.mxu0 %v10723
        %10795 = vmatprep.subr.mxu0 %v10722
        %10796 = vmatpush1.msra.mxu0 %v10721
        %10797 = vmatprep.subr.mxu0 %v10720
        %10798 = vmatpush1.msra.mxu0 %v10719
        %10799 = vmatprep.subr.mxu0 %v10718
        %10800 = vmatpush1.msra.mxu0 %v10717
        %10801 = vmatprep.subr.mxu0 %v10716
        %10802 = vmatpush1.msra.mxu0 %v10715
        %10803 = vmatprep.subr.mxu0 %v10714
        %10804 = vmatpush1.msra.mxu0 %v10713
        %10805 = vmatprep.subr.mxu0 %v10712
        %10806 = vmatpush1.msra.mxu0 %v10711
        %10807 = vmatprep.subr.mxu0 %v10774
        %10808 = vmatpush2.msra.mxu0 %v10773
        %10809 = vmatprep.subr.mxu0 %v10772
        %10810 = vmatpush2.msra.mxu0 %v10771
        %10811 = vmatprep.subr.mxu0 %v10770
        %10812 = vmatpush2.msra.mxu0 %v10769
        %10813 = vmatprep.subr.mxu0 %v10768
        %10814 = vmatpush2.msra.mxu0 %v10767
        %10815 = vmatprep.subr.mxu0 %v10766
        %10816 = vmatpush2.msra.mxu0 %v10765
        %10817 = vmatprep.subr.mxu0 %v10764
        %10818 = vmatpush2.msra.mxu0 %v10763
        %10819 = vmatprep.subr.mxu0 %v10762
        %10820 = vmatpush2.msra.mxu0 %v10761
        %10821 = vmatprep.subr.mxu0 %v10760
        %10822 = vmatpush2.msra.mxu0 %v10759
        %10823 = vmatprep.subr.mxu0 %v10758
        %10824 = vmatpush2.msra.mxu0 %v10757
        %10825 = vmatprep.subr.mxu0 %v10756
        %10826 = vmatpush2.msra.mxu0 %v10755
        %10827 = vmatprep.subr.mxu0 %v10754
        %10828 = vmatpush2.msra.mxu0 %v10753
        %10829 = vmatprep.subr.mxu0 %v10752
        %10830 = vmatpush2.msra.mxu0 %v10751
        %10831 = vmatprep.subr.mxu0 %v10750
        %10832 = vmatpush2.msra.mxu0 %v10749
        %10833 = vmatprep.subr.mxu0 %v10748
        %10834 = vmatpush2.msra.mxu0 %v10747
        %10835 = vmatprep.subr.mxu0 %v10746
        %10836 = vmatpush2.msra.mxu0 %v10745
        %10837 = vmatprep.subr.mxu0 %v10744
        %10838 = vmatpush2.msra.mxu0 %v10743
        %10839 = vmatprep.mubr.f32.mxu0 %v10608
        %10840 = vmatmul.mubr.f32.gmra.mxu0 %v10607
        %v10841 = vpop.f32.mrf.mxu0
        %v10842 = vadd.f32 0.0, %v10841
        %v10843 = vpop.f32.mrf.mxu0
        %v10844 = vadd.f32 0.0, %v10843
        %10845 = vmatprep.mubr.f32.mxu0 %v10610
        %10846 = vmatmul.mubr.f32.gmra.mxu0 %v10609
        %v10847 = vpop.f32.mrf.mxu0
        %v10848 = vadd.f32 0.0, %v10847
        %v10849 = vpop.f32.mrf.mxu0
        %v10850 = vadd.f32 0.0, %v10849
        %10851 = vmatprep.mubr.f32.mxu0 %v10612
        %10852 = vmatmul.mubr.f32.gmra.mxu0 %v10611
        %v10853 = vpop.f32.mrf.mxu0
        %v10854 = vadd.f32 0.0, %v10853
        %v10855 = vpop.f32.mrf.mxu0
        %v10856 = vadd.f32 0.0, %v10855
        %10857 = vmatprep.mubr.f32.mxu0 %v10614
        %10858 = vmatmul.mubr.f32.gmra.mxu0 %v10613
        %v10859 = vpop.f32.mrf.mxu0
        %v10860 = vadd.f32 0.0, %v10859
        %v10861 = vpop.f32.mrf.mxu0
        %v10862 = vadd.f32 0.0, %v10861
        %10863 = vdwg.mxu0
        %s10864 = scalar_lea.vmem %s7, 256
        %v10865 = vld [vmem:[%s10864] sm:$0xff]
        %v10866 = vld [vmem:[%s10864 + $0x8] sm:$0xff]
        %v10867 = vld [vmem:[%s10864 + $0x10] sm:$0xff]
        %v10868 = vld [vmem:[%s10864 + $0x18] sm:$0xff]
        %v10869 = vld [vmem:[%s10864 + $0x20] sm:$0xff]
        %v10870 = vld [vmem:[%s10864 + $0x28] sm:$0xff]
        %v10871 = vld [vmem:[%s10864 + $0x30] sm:$0xff]
        %v10872 = vld [vmem:[%s10864 + $0x38] sm:$0xff]
        %v10873 = vld [vmem:[%s10864 + $0x40] sm:$0xff]
        %v10874 = vld [vmem:[%s10864 + $0x48] sm:$0xff]
        %v10875 = vld [vmem:[%s10864 + $0x50] sm:$0xff]
        %v10876 = vld [vmem:[%s10864 + $0x58] sm:$0xff]
        %v10877 = vld [vmem:[%s10864 + $0x60] sm:$0xff]
        %v10878 = vld [vmem:[%s10864 + $0x68] sm:$0xff]
        %v10879 = vld [vmem:[%s10864 + $0x70] sm:$0xff]
        %v10880 = vld [vmem:[%s10864 + $0x78] sm:$0xff]
        %v10881 = vld [vmem:[%s10864 + $0x80] sm:$0xff]
        %v10882 = vld [vmem:[%s10864 + $0x88] sm:$0xff]
        %v10883 = vld [vmem:[%s10864 + $0x90] sm:$0xff]
        %v10884 = vld [vmem:[%s10864 + $0x98] sm:$0xff]
        %v10885 = vld [vmem:[%s10864 + $0xa0] sm:$0xff]
        %v10886 = vld [vmem:[%s10864 + $0xa8] sm:$0xff]
        %v10887 = vld [vmem:[%s10864 + $0xb0] sm:$0xff]
        %v10888 = vld [vmem:[%s10864 + $0xb8] sm:$0xff]
        %v10889 = vld [vmem:[%s10864 + $0xc0] sm:$0xff]
        %v10890 = vld [vmem:[%s10864 + $0xc8] sm:$0xff]
        %v10891 = vld [vmem:[%s10864 + $0xd0] sm:$0xff]
        %v10892 = vld [vmem:[%s10864 + $0xd8] sm:$0xff]
        %v10893 = vld [vmem:[%s10864 + $0xe0] sm:$0xff]
        %v10894 = vld [vmem:[%s10864 + $0xe8] sm:$0xff]
        %v10895 = vld [vmem:[%s10864 + $0xf0] sm:$0xff]
        %v10896 = vld [vmem:[%s10864 + $0xf8] sm:$0xff]
        %v10897 = vunpack.c.l.bf16 %v10865
        %v10898 = vunpack.c.h.bf16 %v10865
        %v10899 = vunpack.c.l.bf16 %v10866
        %v10900 = vunpack.c.h.bf16 %v10866
        %v10901 = vunpack.c.l.bf16 %v10867
        %v10902 = vunpack.c.h.bf16 %v10867
        %v10903 = vunpack.c.l.bf16 %v10868
        %v10904 = vunpack.c.h.bf16 %v10868
        %v10905 = vunpack.c.l.bf16 %v10869
        %v10906 = vunpack.c.h.bf16 %v10869
        %v10907 = vunpack.c.l.bf16 %v10870
        %v10908 = vunpack.c.h.bf16 %v10870
        %v10909 = vunpack.c.l.bf16 %v10871
        %v10910 = vunpack.c.h.bf16 %v10871
        %v10911 = vunpack.c.l.bf16 %v10872
        %v10912 = vunpack.c.h.bf16 %v10872
        %v10913 = vunpack.c.l.bf16 %v10873
        %v10914 = vunpack.c.h.bf16 %v10873
        %v10915 = vunpack.c.l.bf16 %v10874
        %v10916 = vunpack.c.h.bf16 %v10874
        %v10917 = vunpack.c.l.bf16 %v10875
        %v10918 = vunpack.c.h.bf16 %v10875
        %v10919 = vunpack.c.l.bf16 %v10876
        %v10920 = vunpack.c.h.bf16 %v10876
        %v10921 = vunpack.c.l.bf16 %v10877
        %v10922 = vunpack.c.h.bf16 %v10877
        %v10923 = vunpack.c.l.bf16 %v10878
        %v10924 = vunpack.c.h.bf16 %v10878
        %v10925 = vunpack.c.l.bf16 %v10879
        %v10926 = vunpack.c.h.bf16 %v10879
        %v10927 = vunpack.c.l.bf16 %v10880
        %v10928 = vunpack.c.h.bf16 %v10880
        %v10929 = vunpack.c.l.bf16 %v10881
        %v10930 = vunpack.c.h.bf16 %v10881
        %v10931 = vunpack.c.l.bf16 %v10882
        %v10932 = vunpack.c.h.bf16 %v10882
        %v10933 = vunpack.c.l.bf16 %v10883
        %v10934 = vunpack.c.h.bf16 %v10883
        %v10935 = vunpack.c.l.bf16 %v10884
        %v10936 = vunpack.c.h.bf16 %v10884
        %v10937 = vunpack.c.l.bf16 %v10885
        %v10938 = vunpack.c.h.bf16 %v10885
        %v10939 = vunpack.c.l.bf16 %v10886
        %v10940 = vunpack.c.h.bf16 %v10886
        %v10941 = vunpack.c.l.bf16 %v10887
        %v10942 = vunpack.c.h.bf16 %v10887
        %v10943 = vunpack.c.l.bf16 %v10888
        %v10944 = vunpack.c.h.bf16 %v10888
        %v10945 = vunpack.c.l.bf16 %v10889
        %v10946 = vunpack.c.h.bf16 %v10889
        %v10947 = vunpack.c.l.bf16 %v10890
        %v10948 = vunpack.c.h.bf16 %v10890
        %v10949 = vunpack.c.l.bf16 %v10891
        %v10950 = vunpack.c.h.bf16 %v10891
        %v10951 = vunpack.c.l.bf16 %v10892
        %v10952 = vunpack.c.h.bf16 %v10892
        %v10953 = vunpack.c.l.bf16 %v10893
        %v10954 = vunpack.c.h.bf16 %v10893
        %v10955 = vunpack.c.l.bf16 %v10894
        %v10956 = vunpack.c.h.bf16 %v10894
        %v10957 = vunpack.c.l.bf16 %v10895
        %v10958 = vunpack.c.h.bf16 %v10895
        %v10959 = vunpack.c.l.bf16 %v10896
        %v10960 = vunpack.c.h.bf16 %v10896
        %v10961 = vmul.f32 %v10543, %v10897
        %v10962 = vmul.f32 %v10544, %v10898
        %v10963 = vmul.f32 %v10545, %v10899
        %v10964 = vmul.f32 %v10546, %v10900
        %v10965 = vmul.f32 %v10547, %v10901
        %v10966 = vmul.f32 %v10548, %v10902
        %v10967 = vmul.f32 %v10549, %v10903
        %v10968 = vmul.f32 %v10550, %v10904
        %v10969 = vmul.f32 %v10551, %v10905
        %v10970 = vmul.f32 %v10552, %v10906
        %v10971 = vmul.f32 %v10553, %v10907
        %v10972 = vmul.f32 %v10554, %v10908
        %v10973 = vmul.f32 %v10555, %v10909
        %v10974 = vmul.f32 %v10556, %v10910
        %v10975 = vmul.f32 %v10557, %v10911
        %v10976 = vmul.f32 %v10558, %v10912
        %v10977 = vmul.f32 %v10559, %v10913
        %v10978 = vmul.f32 %v10560, %v10914
        %v10979 = vmul.f32 %v10561, %v10915
        %v10980 = vmul.f32 %v10562, %v10916
        %v10981 = vmul.f32 %v10563, %v10917
        %v10982 = vmul.f32 %v10564, %v10918
        %v10983 = vmul.f32 %v10565, %v10919
        %v10984 = vmul.f32 %v10566, %v10920
        %v10985 = vmul.f32 %v10567, %v10921
        %v10986 = vmul.f32 %v10568, %v10922
        %v10987 = vmul.f32 %v10569, %v10923
        %v10988 = vmul.f32 %v10570, %v10924
        %v10989 = vmul.f32 %v10571, %v10925
        %v10990 = vmul.f32 %v10572, %v10926
        %v10991 = vmul.f32 %v10573, %v10927
        %v10992 = vmul.f32 %v10574, %v10928
        %v10993 = vmul.f32 %v10575, %v10929
        %v10994 = vmul.f32 %v10576, %v10930
        %v10995 = vmul.f32 %v10577, %v10931
        %v10996 = vmul.f32 %v10578, %v10932
        %v10997 = vmul.f32 %v10579, %v10933
        %v10998 = vmul.f32 %v10580, %v10934
        %v10999 = vmul.f32 %v10581, %v10935
        %v11000 = vmul.f32 %v10582, %v10936
        %v11001 = vmul.f32 %v10583, %v10937
        %v11002 = vmul.f32 %v10584, %v10938
        %v11003 = vmul.f32 %v10585, %v10939
        %v11004 = vmul.f32 %v10586, %v10940
        %v11005 = vmul.f32 %v10587, %v10941
        %v11006 = vmul.f32 %v10588, %v10942
        %v11007 = vmul.f32 %v10589, %v10943
        %v11008 = vmul.f32 %v10590, %v10944
        %v11009 = vmul.f32 %v10591, %v10945
        %v11010 = vmul.f32 %v10592, %v10946
        %v11011 = vmul.f32 %v10593, %v10947
        %v11012 = vmul.f32 %v10594, %v10948
        %v11013 = vmul.f32 %v10595, %v10949
        %v11014 = vmul.f32 %v10596, %v10950
        %v11015 = vmul.f32 %v10597, %v10951
        %v11016 = vmul.f32 %v10598, %v10952
        %v11017 = vmul.f32 %v10599, %v10953
        %v11018 = vmul.f32 %v10600, %v10954
        %v11019 = vmul.f32 %v10601, %v10955
        %v11020 = vmul.f32 %v10602, %v10956
        %v11021 = vmul.f32 %v10603, %v10957
        %v11022 = vmul.f32 %v10604, %v10958
        %v11023 = vmul.f32 %v10605, %v10959
        %v11024 = vmul.f32 %v10606, %v10960
        %11025 = vmatprep.subr.mxu0 %v10992
        %11026 = vmatpush1.msra.mxu0 %v10991
        %11027 = vmatprep.subr.mxu0 %v10990
        %11028 = vmatpush1.msra.mxu0 %v10989
        %11029 = vmatprep.subr.mxu0 %v10988
        %11030 = vmatpush1.msra.mxu0 %v10987
        %11031 = vmatprep.subr.mxu0 %v10986
        %11032 = vmatpush1.msra.mxu0 %v10985
        %11033 = vmatprep.subr.mxu0 %v10984
        %11034 = vmatpush1.msra.mxu0 %v10983
        %11035 = vmatprep.subr.mxu0 %v10982
        %11036 = vmatpush1.msra.mxu0 %v10981
        %11037 = vmatprep.subr.mxu0 %v10980
        %11038 = vmatpush1.msra.mxu0 %v10979
        %11039 = vmatprep.subr.mxu0 %v10978
        %11040 = vmatpush1.msra.mxu0 %v10977
        %11041 = vmatprep.subr.mxu0 %v10976
        %11042 = vmatpush1.msra.mxu0 %v10975
        %11043 = vmatprep.subr.mxu0 %v10974
        %11044 = vmatpush1.msra.mxu0 %v10973
        %11045 = vmatprep.subr.mxu0 %v10972
        %11046 = vmatpush1.msra.mxu0 %v10971
        %11047 = vmatprep.subr.mxu0 %v10970
        %11048 = vmatpush1.msra.mxu0 %v10969
        %11049 = vmatprep.subr.mxu0 %v10968
        %11050 = vmatpush1.msra.mxu0 %v10967
        %11051 = vmatprep.subr.mxu0 %v10966
        %11052 = vmatpush1.msra.mxu0 %v10965
        %11053 = vmatprep.subr.mxu0 %v10964
        %11054 = vmatpush1.msra.mxu0 %v10963
        %11055 = vmatprep.subr.mxu0 %v10962
        %11056 = vmatpush1.msra.mxu0 %v10961
        %11057 = vmatprep.subr.mxu0 %v11024
        %11058 = vmatpush2.msra.mxu0 %v11023
        %11059 = vmatprep.subr.mxu0 %v11022
        %11060 = vmatpush2.msra.mxu0 %v11021
        %11061 = vmatprep.subr.mxu0 %v11020
        %11062 = vmatpush2.msra.mxu0 %v11019
        %11063 = vmatprep.subr.mxu0 %v11018
        %11064 = vmatpush2.msra.mxu0 %v11017
        %11065 = vmatprep.subr.mxu0 %v11016
        %11066 = vmatpush2.msra.mxu0 %v11015
        %11067 = vmatprep.subr.mxu0 %v11014
        %11068 = vmatpush2.msra.mxu0 %v11013
        %11069 = vmatprep.subr.mxu0 %v11012
        %11070 = vmatpush2.msra.mxu0 %v11011
        %11071 = vmatprep.subr.mxu0 %v11010
        %11072 = vmatpush2.msra.mxu0 %v11009
        %11073 = vmatprep.subr.mxu0 %v11008
        %11074 = vmatpush2.msra.mxu0 %v11007
        %11075 = vmatprep.subr.mxu0 %v11006
        %11076 = vmatpush2.msra.mxu0 %v11005
        %11077 = vmatprep.subr.mxu0 %v11004
        %11078 = vmatpush2.msra.mxu0 %v11003
        %11079 = vmatprep.subr.mxu0 %v11002
        %11080 = vmatpush2.msra.mxu0 %v11001
        %11081 = vmatprep.subr.mxu0 %v11000
        %11082 = vmatpush2.msra.mxu0 %v10999
        %11083 = vmatprep.subr.mxu0 %v10998
        %11084 = vmatpush2.msra.mxu0 %v10997
        %11085 = vmatprep.subr.mxu0 %v10996
        %11086 = vmatpush2.msra.mxu0 %v10995
        %11087 = vmatprep.subr.mxu0 %v10994
        %11088 = vmatpush2.msra.mxu0 %v10993
        %11089 = vmatprep.mubr.f32.mxu0 %v10608
        %11090 = vmatmul.mubr.f32.gmra.mxu0 %v10607
        %v11091 = vpop.f32.mrf.mxu0
        %v11092 = vadd.f32 0.0, %v11091
        %v11093 = vpop.f32.mrf.mxu0
        %v11094 = vadd.f32 0.0, %v11093
        %11095 = vmatprep.mubr.f32.mxu0 %v10610
        %11096 = vmatmul.mubr.f32.gmra.mxu0 %v10609
        %v11097 = vpop.f32.mrf.mxu0
        %v11098 = vadd.f32 0.0, %v11097
        %v11099 = vpop.f32.mrf.mxu0
        %v11100 = vadd.f32 0.0, %v11099
        %11101 = vmatprep.mubr.f32.mxu0 %v10612
        %11102 = vmatmul.mubr.f32.gmra.mxu0 %v10611
        %v11103 = vpop.f32.mrf.mxu0
        %v11104 = vadd.f32 0.0, %v11103
        %v11105 = vpop.f32.mrf.mxu0
        %v11106 = vadd.f32 0.0, %v11105
        %11107 = vmatprep.mubr.f32.mxu0 %v10614
        %11108 = vmatmul.mubr.f32.gmra.mxu0 %v10613
        %v11109 = vpop.f32.mrf.mxu0
        %v11110 = vadd.f32 0.0, %v11109
        %v11111 = vpop.f32.mrf.mxu0
        %v11112 = vadd.f32 0.0, %v11111
        %11113 = vdwg.mxu0
        %vm11114 = vcmask 916480
        %v11115 = vsel %vm11114, %v10844, 0.0
        %v11116 = vadd.f32 %v10842, %v11115
        %11117 = vadd.xlane.f32.xlu0 %v11116
        %v11118 = vpop.xlane.xlu0 %11117
        %v11119 = vsel %vm11114, %v10850, 0.0
        %v11120 = vadd.f32 %v10848, %v11119
        %11121 = vadd.xlane.f32.xlu0 %v11120
        %v11122 = vpop.xlane.xlu0 %11121
        %v11123 = vsel %vm11114, %v10856, 0.0
        %v11124 = vadd.f32 %v10854, %v11123
        %11125 = vadd.xlane.f32.xlu0 %v11124
        %v11126 = vpop.xlane.xlu0 %11125
        %v11127 = vsel %vm11114, %v10862, 0.0
        %v11128 = vadd.f32 %v10860, %v11127
        %11129 = vadd.xlane.f32.xlu0 %v11128
        %v11130 = vpop.xlane.xlu0 %11129
        %v11131 = vsel %vm11114, %v11094, 0.0
        %v11132 = vadd.f32 %v11092, %v11131
        %11133 = vadd.xlane.f32.xlu0 %v11132
        %v11134 = vpop.xlane.xlu0 %11133
        %v11135 = vsel %vm11114, %v11100, 0.0
        %v11136 = vadd.f32 %v11098, %v11135
        %11137 = vadd.xlane.f32.xlu0 %v11136
        %v11138 = vpop.xlane.xlu0 %11137
        %v11139 = vsel %vm11114, %v11106, 0.0
        %v11140 = vadd.f32 %v11104, %v11139
        %11141 = vadd.xlane.f32.xlu0 %v11140
        %v11142 = vpop.xlane.xlu0 %11141
        %v11143 = vsel %vm11114, %v11112, 0.0
        %v11144 = vadd.f32 %v11110, %v11143
        %11145 = vadd.xlane.f32.xlu0 %v11144
        %v11146 = vpop.xlane.xlu0 %11145
        %vm11147 = vcmask 7168
        %v11148 = vsel %vm11147, %v11118, %v11134
        %v11149 = vsel %vm11147, %v11122, %v11138
        %v11150 = vsel %vm11147, %v11126, %v11142
        %v11151 = vsel %vm11147, %v11130, %v11146
        %v11152 = vld [vmem:[%s9] sm:$0x1]
        %v11154 = vlaneseq
        %v11155 = vshrl.u32 %v11154, 7
        %v11156 = vsub.s32 0, %v11155
        %v11157 = vrot.slane %v11152, %v11156
        %v11159 = vadd.f32 %v11148, %v11157
        %v11160 = vadd.f32 %v11149, %v11157
        %v11161 = vadd.f32 %v11150, %v11157
        %v11162 = vadd.f32 %v11151, %v11157
        %vm11163 = vcmask 15360
        %v11164 = vsel %vm11163, %v11159, -inf
        %11165 = vmax.xlane.f32.xlu0 %v11164
        %v11166 = vpop.xlane.xlu0 %11165
        %v11167 = vsel %vm11163, %v11160, -inf
        %11168 = vmax.xlane.f32.xlu0 %v11167
        %v11169 = vpop.xlane.xlu0 %11168
        %v11170 = vsel %vm11163, %v11161, -inf
        %11171 = vmax.xlane.f32.xlu0 %v11170
        %v11172 = vpop.xlane.xlu0 %11171
        %v11173 = vsel %vm11163, %v11162, -inf
        %11174 = vmax.xlane.f32.xlu0 %v11173
        %v11175 = vpop.xlane.xlu0 %11174
        %v11176 = vsub.f32 %v11159, %v11166
        %v11177 = vsub.f32 %v11160, %v11169
        %v11178 = vsub.f32 %v11161, %v11172
        %v11179 = vsub.f32 %v11162, %v11175
        %v11180 = vmul.f32 %v11176, 1.442695
        %v11181 = vpow.pop %v11180
        %v11182 = vmul.f32 %v11177, 1.442695
        %v11183 = vpow.pop %v11182
        %v11184 = vmul.f32 %v11178, 1.442695
        %v11185 = vpow.pop %v11184
        %v11186 = vmul.f32 %v11179, 1.442695
        %v11187 = vpow.pop %v11186
        %v11188 = vsel %vm11163, %v11181, 0.0
        %11189 = vadd.xlane.f32.xlu0 %v11188
        %v11190 = vpop.xlane.xlu0 %11189
        %v11191 = vsel %vm11163, %v11183, 0.0
        %11192 = vadd.xlane.f32.xlu0 %v11191
        %v11193 = vpop.xlane.xlu0 %11192
        %v11194 = vsel %vm11163, %v11185, 0.0
        %11195 = vadd.xlane.f32.xlu0 %v11194
        %v11196 = vpop.xlane.xlu0 %11195
        %v11197 = vsel %vm11163, %v11187, 0.0
        %11198 = vadd.xlane.f32.xlu0 %v11197
        %v11199 = vpop.xlane.xlu0 %11198
        %v11200 = vrcp.pop %v11190
        %v11201 = vmul.f32 %v11181, %v11200
        %v11202 = vrcp.pop %v11193
        %v11203 = vmul.f32 %v11183, %v11202
        %v11204 = vrcp.pop %v11196
        %v11205 = vmul.f32 %v11185, %v11204
        %v11206 = vrcp.pop %v11199
        %v11207 = vmul.f32 %v11187, %v11206
        %11208 = vst.msk [vmem:[%s656] sm:$0xff] %vm11163, %v11201
        %11209 = vst.msk [vmem:[%s656 + $0x8] sm:$0xff] %vm11163, %v11203
        %11210 = vst.msk [vmem:[%s656 + $0x10] sm:$0xff] %vm11163, %v11205
        %11211 = vst.msk [vmem:[%s656 + $0x18] sm:$0xff] %vm11163, %v11207
        %s11212 = smul.u32 4, %s21
        %p11213 = scmp.lt.s32.totalorder %s11212, 7
        %s11214 = scalar_select %p11213, %s11212, 7
        %s11215 = smul.addr %s11214, 8
        %s11216 = scalar_lea.vmem %s10, %s11215
        // Predicated region
        $region102: #{eegnet_forward.1} parent=96 // pred_check
          %p11217 = pneg %p254
        $region103: #{eegnet_forward.1} parent=96 // pred_check_branch
          %11219 = sbr.rel (%p11217) target = $region105
        $region104: #{eegnet_forward.1} parent=96 // pred_region
          %s11220 = smul.u32 4, %s21
        $region105: #{eegnet_forward.1} parent=96 // pred_fallthru
          _
      $region97: #{eegnet_forward.1} parent=5 // pred_fallthru
        _
      %p11221 = scmp.le.s32.totalorder 2, %s16
      // Predicated region
      $region106: #{eegnet_forward.1} parent=5 // pred_check
        %p11222 = pneg %p11221
      $region107: #{eegnet_forward.1} parent=5 // pred_check_branch
        %11224 = sbr.rel (%p11222) target = $region109
      $region108: #{eegnet_forward.1} parent=5 // pred_region
        %s11225 = ssub.s32 %s16, 2
        // Predicated region
        $region110: #{eegnet_forward.1} parent=108 // pred_check
          %p11226 = pneg %p260
        $region111: #{eegnet_forward.1} parent=108 // pred_check_branch
          %11228 = sbr.rel (%p11226) target = $region113
        $region112: #{eegnet_forward.1} parent=108 // pred_region
          %s11229 = smul.u32 4, %s22
          %p11230 = scmp.lt.s32.totalorder %s11229, 7
          %s11231 = scalar_select %p11230, %s11229, 7
          %s11232 = smul.addr %s11231, 8
          %s11233 = scalar_lea.vmem %s10, %s11232
        $region113: #{eegnet_forward.1} parent=108 // pred_fallthru
          _
      $region109: #{eegnet_forward.1} parent=5 // pred_fallthru
        _
    $region6: #{eegnet_forward.1} parent=1 // loop_footer
      %s20 = sadd.s32 1, %s16
    $region7: #{eegnet_forward.1} parent=1 // loop_footer_branch
      %15 = sbr.rel target = $region3
    $region8: #{eegnet_forward.1} parent=1 // loop_exit
      _

</llo_original>
